<compile_context>
chip_gen: v6e
topology: v6e:2x2x1
jax: 0.10.0
libtpu: 0.0.40
codegen_flags: <defaults>
</compile_context>

<pallas_src>
import jax
import jax.numpy as jnp
import numpy as np
from jax.experimental import pallas as pl
from jax.experimental.pallas import tpu as pltpu

TB = 64            # batch tile per grid step; conv matmuls see M = 2*TB rows
KS = 5             # conv kernel size
CPAD = 128         # lane width
C1, C2 = 6, 16     # conv channel counts
F1, F2, F3 = 120, 84, 10


def _lenet_kernel(x_ref, w1_ref, b1_ref, w2_ref, b2_ref, w3_ref, b3_ref,
                  w4_ref, b4_ref, w5_ref, b5_ref, out_ref):
    f32, bf16 = jnp.float32, jnp.bfloat16

    # ---- conv1 (28x28x1 -> 24x24x6, valid) fused with 2x2 max-pool.
    # Banded MXU matmul per output-row pair: LHS = [rows 2m..2m+4 | rows
    # 2m+1..2m+5] concatenated along lanes (K=640) and pair-stacked along M;
    # RHS columns: [0:128] = even output cols (lane = j2*6+c), [128:256] = odd.
    w1 = w1_ref[...]                                    # (640, 256) f32
    x_rows = [x_ref[r] for r in range(28)]              # each (TB, 128) f32, lane = W_in
    p1 = []                                             # 12 pooled rows, (TB,128) bf16
    for m in range(12):
        top = jnp.concatenate([x_rows[2 * m + k] for k in range(KS)], axis=-1)
        bot = jnp.concatenate([x_rows[2 * m + 1 + k] for k in range(KS)], axis=-1)
        lhs = jnp.concatenate([top, bot], axis=0)       # (2*TB, 640)
        y = jnp.dot(lhs, w1, preferred_element_type=f32)          # (2*TB, 256)
        y = jnp.maximum(y[:, :CPAD], y[:, CPAD:])       # pool over W (even vs odd cols)
        y = jnp.maximum(y[:TB], y[TB:])                 # pool over H (row 2m vs 2m+1)
        p1.append(jnp.maximum(y + b1_ref[...], 0.0).astype(bf16))  # lane = j2*6 + c

    # ---- conv2 (12x12x6 -> 8x8x16, valid) fused with 2x2 max-pool, same trick.
    # RHS columns: [0:128] even output cols (lane = j2*16+co, 64 real), [128:256] odd.
    w2 = w2_ref[...]                                    # (640, 256) bf16
    p2 = []                                             # 4 pooled rows, (TB,128) bf16
    for m in range(4):
        top = jnp.concatenate([p1[2 * m + k] for k in range(KS)], axis=-1)
        bot = jnp.concatenate([p1[2 * m + 1 + k] for k in range(KS)], axis=-1)
        lhs = jnp.concatenate([top, bot], axis=0)       # (2*TB, 640) bf16
        y = jnp.dot(lhs, w2, preferred_element_type=f32)          # (2*TB, 256)
        y = jnp.maximum(y[:, :CPAD], y[:, CPAD:])       # pool over W
        y = jnp.maximum(y[:TB], y[TB:])                 # pool over H
        p2.append(jnp.maximum(y + b2_ref[...], 0.0).astype(bf16))  # lane = j2*16 + co

    # ---- fc1 as one (TB,512)@(512,128) contraction (weights pre-permuted to
    # torch's c*16+h*4+w flatten order), then fc2 + fc3.  bf16 operands, f32 acc.
    h = jnp.concatenate(p2, axis=-1)                                # (TB, 512) bf16
    h = jnp.dot(h, w3_ref[...], preferred_element_type=f32) + b3_ref[...]
    h = jnp.maximum(h, 0.0).astype(bf16)
    h = jnp.dot(h, w4_ref[...], preferred_element_type=f32) + b4_ref[...]
    h = jnp.maximum(h, 0.0).astype(bf16)
    out_ref[...] = jnp.dot(h, w5_ref[...], preferred_element_type=f32) + b5_ref[...]


@jax.jit
def lenet_forward(packed, x):
    """x: (N, 1, 28, 28) float32 NCHW -> logits (N, 10)."""
    n = x.shape[0]
    npad = ((n + TB - 1) // TB) * TB
    # Host relayout: NCHW -> (H, batch, W) with W on lanes (padded 28 -> 128).
    xt = jnp.transpose(x.astype(jnp.float32)[:, 0], (1, 0, 2))      # (28, N, 28)
    xt = jnp.pad(xt, ((0, 0), (0, npad - n), (0, CPAD - 28)))        # (28, npad, 128)

    out = pl.pallas_call(
        _lenet_kernel,
        out_shape=jax.ShapeDtypeStruct((npad, CPAD), jnp.float32),
        grid=(npad // TB,),
        in_specs=[
            pl.BlockSpec((28, TB, CPAD), lambda b: (0, b, 0)),        # x
            pl.BlockSpec((KS * CPAD, 2 * CPAD), lambda b: (0, 0)),    # conv1 band
            pl.BlockSpec((1, CPAD), lambda b: (0, 0)),                # conv1 bias
            pl.BlockSpec((KS * CPAD, 2 * CPAD), lambda b: (0, 0)),    # conv2 band
            pl.BlockSpec((1, CPAD), lambda b: (0, 0)),                # conv2 bias
            pl.BlockSpec((4 * CPAD, CPAD), lambda b: (0, 0)),         # fc1 w
            pl.BlockSpec((1, CPAD), lambda b: (0, 0)),                # fc1 b
            pl.BlockSpec((CPAD, CPAD), lambda b: (0, 0)),             # fc2 w
            pl.BlockSpec((1, CPAD), lambda b: (0, 0)),                # fc2 b
            pl.BlockSpec((CPAD, CPAD), lambda b: (0, 0)),             # fc3 w
            pl.BlockSpec((1, CPAD), lambda b: (0, 0)),                # fc3 b
        ],
        out_specs=pl.BlockSpec((TB, CPAD), lambda b: (b, 0)),
        compiler_params=pltpu.CompilerParams(
            dimension_semantics=("parallel",),
            vmem_limit_bytes=32 * 1024 * 1024,
        ),
    )(xt, packed["w1"], packed["b1"], packed["w2"], packed["b2"],
      packed["w3"], packed["b3"], packed["w4"], packed["b4"],
      packed["w5"], packed["b5"])
    return out[:n, :F3]


def init_params(key):
    """PyTorch-default-style uniform init (+/- 1/sqrt(fan_in)), PyTorch layouts."""
    def uniform(k, shape, fan_in):
        bound = 1.0 / jnp.sqrt(jnp.float32(fan_in))
        return jax.random.uniform(k, shape, jnp.float32, -bound, bound)
    ks = jax.random.split(key, 10)
    return {
        "conv1_w": uniform(ks[0], (C1, 1, KS, KS), 1 * KS * KS),
        "conv1_b": uniform(ks[1], (C1,), 1 * KS * KS),
        "conv2_w": uniform(ks[2], (C2, C1, KS, KS), C1 * KS * KS),
        "conv2_b": uniform(ks[3], (C2,), C1 * KS * KS),
        "fc1_w":   uniform(ks[4], (F1, 4 * 4 * C2), 4 * 4 * C2),
        "fc1_b":   uniform(ks[5], (F1,), 4 * 4 * C2),
        "fc2_w":   uniform(ks[6], (F2, F1), F1),
        "fc2_b":   uniform(ks[7], (F2,), F1),
        "fc3_w":   uniform(ks[8], (F3, F2), F2),
        "fc3_b":   uniform(ks[9], (F3,), F2),
    }


def pack_params(p):
    """One-time repack of PyTorch-layout params into the kernel's band-matrix /
    lane-dense layouts (done at init, never inside the jitted forward)."""
    w1 = np.asarray(p["conv1_w"], np.float32)     # (6, 1, 5, 5)
    w2 = np.asarray(p["conv2_w"], np.float32)     # (16, 6, 5, 5)
    fc1 = np.asarray(p["fc1_w"], np.float32)      # (120, 256)  flat = c*16 + h*4 + w
    fc2 = np.asarray(p["fc2_w"], np.float32)      # (84, 120)
    fc3 = np.asarray(p["fc3_w"], np.float32)      # (10, 84)

    # conv1 band: rows = ki*128 + w_in (input column), cols = par*128 + j2*6 + c
    # (output column j = 2*j2 + par).
    W1 = np.zeros((KS * CPAD, 2 * CPAD), np.float32)
    for ki in range(KS):
        for kj in range(KS):
            for par in range(2):
                for j2 in range(12):
                    j = 2 * j2 + par
                    W1[ki * CPAD + j + kj,
                       par * CPAD + j2 * C1: par * CPAD + (j2 + 1) * C1] = w1[:, 0, ki, kj]

    # conv2 band: rows = ki*128 + jin*6 + ci, cols = par*128 + j2*16 + co.
    W2 = np.zeros((KS * CPAD, 2 * CPAD), np.float32)
    for ki in range(KS):
        for kj in range(KS):
            for par in range(2):
                for j2 in range(4):
                    jin = 2 * j2 + par + kj
                    for ci in range(C1):
                        W2[ki * CPAD + jin * C1 + ci,
                           par * CPAD + j2 * C2: par * CPAD + (j2 + 1) * C2] = w2[:, ci, ki, kj]

    # fc1: rows = h*128 + w*16 + co  (kernel's p2 lane layout), torch flatten order.
    W3 = np.zeros((4 * CPAD, CPAD), np.float32)
    fc1r = fc1.reshape(F1, C2, 4, 4)              # (n, c, h, w)
    for h in range(4):
        for w in range(4):
            W3[h * CPAD + w * C2: h * CPAD + (w + 1) * C2, :F1] = fc1r[:, :, h, w].T

    W4 = np.zeros((CPAD, CPAD), np.float32); W4[:F1, :F2] = fc2.T
    W5 = np.zeros((CPAD, CPAD), np.float32); W5[:F2, :F3] = fc3.T

    b1v = np.zeros((1, CPAD), np.float32)
    b1v[0, :12 * C1] = np.tile(np.asarray(p["conv1_b"], np.float32), 12)
    b2v = np.zeros((1, CPAD), np.float32)
    b2v[0, :4 * C2] = np.tile(np.asarray(p["conv2_b"], np.float32), 4)
    b3v = np.zeros((1, CPAD), np.float32); b3v[0, :F1] = np.asarray(p["fc1_b"], np.float32)
    b4v = np.zeros((1, CPAD), np.float32); b4v[0, :F2] = np.asarray(p["fc2_b"], np.float32)
    b5v = np.zeros((1, CPAD), np.float32); b5v[0, :F3] = np.asarray(p["fc3_b"], np.float32)

    bf16 = jnp.bfloat16
    return {
        "w1": jnp.asarray(W1, jnp.float32),        # conv1 operands stay f32 (raw pixels)
        "b1": jnp.asarray(b1v),
        "w2": jnp.asarray(W2, bf16), "b2": jnp.asarray(b2v),
        "w3": jnp.asarray(W3, bf16), "b3": jnp.asarray(b3v),
        "w4": jnp.asarray(W4, bf16), "b4": jnp.asarray(b4v),
        "w5": jnp.asarray(W5, bf16), "b5": jnp.asarray(b5v),
    }


def reference_forward(p, x):
    """Pure-JAX reference (matches the PyTorch module) for a correctness check."""
    dn = ("NCHW", "OIHW", "NCHW")

    def pool(y):
        n, c, h, w = y.shape
        return jnp.max(y.reshape(n, c, h // 2, 2, w // 2, 2), axis=(3, 5))

    y = jax.lax.conv_general_dilated(x, p["conv1_w"], (1, 1), "VALID",
                                     dimension_numbers=dn)
    y = pool(jax.nn.relu(y + p["conv1_b"][None, :, None, None]))
    y = jax.lax.conv_general_dilated(y, p["conv2_w"], (1, 1), "VALID",
                                     dimension_numbers=dn)
    y = pool(jax.nn.relu(y + p["conv2_b"][None, :, None, None]))
    y = y.reshape(y.shape[0], -1)
    y = jax.nn.relu(y @ p["fc1_w"].T + p["fc1_b"])
    y = jax.nn.relu(y @ p["fc2_w"].T + p["fc2_b"])
    return y @ p["fc3_w"].T + p["fc3_b"]


if __name__ == "__main__":
    key = jax.random.PRNGKey(0)
    kx, kp = jax.random.split(key)
    x = jax.random.normal(kx, (2, 1, 28, 28), jnp.float32)  # 28x28 implied by fc1=4*4*16
    params = init_params(kp)
    packed = pack_params(params)          # one-time weight repack (not in hot path)

    out = jax.block_until_ready(lenet_forward(packed, x))
    assert out.shape == (2, F3) and out.dtype == jnp.float32

    ref = jax.block_until_ready(reference_forward(params, x))
    err = float(jnp.max(jnp.abs(out - ref)))
    assert err < 5e-2, f"kernel/reference mismatch: max abs err = {err}"
    print("KERNEL_OK")
</pallas_src>

<mosaic_0001>
module attributes {stable_mosaic.version = 11 : i64} {
  func.func @_lenet_kernel(%arg0: i32, %arg1: memref<28x64x128xf32, #tpu.memory_space<vmem>>, %arg2: memref<640x256xf32, #tpu.memory_space<vmem>>, %arg3: memref<1x128xf32, #tpu.memory_space<vmem>>, %arg4: memref<640x256xbf16, #tpu.memory_space<vmem>>, %arg5: memref<1x128xf32, #tpu.memory_space<vmem>>, %arg6: memref<512x128xbf16, #tpu.memory_space<vmem>>, %arg7: memref<1x128xf32, #tpu.memory_space<vmem>>, %arg8: memref<128x128xbf16, #tpu.memory_space<vmem>>, %arg9: memref<1x128xf32, #tpu.memory_space<vmem>>, %arg10: memref<128x128xbf16, #tpu.memory_space<vmem>>, %arg11: memref<1x128xf32, #tpu.memory_space<vmem>>, %arg12: memref<64x128xf32, #tpu.memory_space<vmem>>) attributes {dimension_semantics = [#tpu.dimension_semantics<parallel>], iteration_bounds = array<i64: 1>, scalar_prefetch = 0 : i64, scratch_operands = 0 : i64, tpu.core_type = #tpu.core_type<tc>, window_params = [{transform_indices = @transform_0, window_bounds = array<i64: 28, 64, 128>}, {pipeline_mode = #tpu.pipeline_mode<synchronous>, transform_indices = @transform_1, window_bounds = array<i64: 640, 256>}, {pipeline_mode = #tpu.pipeline_mode<synchronous>, transform_indices = @transform_2, window_bounds = array<i64: 1, 128>}, {pipeline_mode = #tpu.pipeline_mode<synchronous>, transform_indices = @transform_3, window_bounds = array<i64: 640, 256>}, {pipeline_mode = #tpu.pipeline_mode<synchronous>, transform_indices = @transform_4, window_bounds = array<i64: 1, 128>}, {pipeline_mode = #tpu.pipeline_mode<synchronous>, transform_indices = @transform_5, window_bounds = array<i64: 512, 128>}, {pipeline_mode = #tpu.pipeline_mode<synchronous>, transform_indices = @transform_6, window_bounds = array<i64: 1, 128>}, {pipeline_mode = #tpu.pipeline_mode<synchronous>, transform_indices = @transform_7, window_bounds = array<i64: 128, 128>}, {pipeline_mode = #tpu.pipeline_mode<synchronous>, transform_indices = @transform_8, window_bounds = array<i64: 1, 128>}, {pipeline_mode = #tpu.pipeline_mode<synchronous>, transform_indices = @transform_9, window_bounds = array<i64: 128, 128>}, {pipeline_mode = #tpu.pipeline_mode<synchronous>, transform_indices = @transform_10, window_bounds = array<i64: 1, 128>}, {transform_indices = @transform_11, window_bounds = array<i64: 64, 128>}]} {
    %c0 = arith.constant 0 : index
    %c0_0 = arith.constant 0 : index
    %0 = vector.load %arg2[%c0, %c0_0] : memref<640x256xf32, #tpu.memory_space<vmem>>, vector<640x256xf32>
    %c0_1 = arith.constant 0 : index
    %c0_2 = arith.constant 0 : index
    %c0_3 = arith.constant 0 : index
    %1 = vector.load %arg1[%c0_1, %c0_2, %c0_3] : memref<28x64x128xf32, #tpu.memory_space<vmem>>, vector<1x64x128xf32>
    %2 = vector.shape_cast %1 : vector<1x64x128xf32> to vector<64x128xf32>
    %c1 = arith.constant 1 : index
    %c0_4 = arith.constant 0 : index
    %c0_5 = arith.constant 0 : index
    %3 = vector.load %arg1[%c1, %c0_4, %c0_5] : memref<28x64x128xf32, #tpu.memory_space<vmem>>, vector<1x64x128xf32>
    %4 = vector.shape_cast %3 : vector<1x64x128xf32> to vector<64x128xf32>
    %c2 = arith.constant 2 : index
    %c0_6 = arith.constant 0 : index
    %c0_7 = arith.constant 0 : index
    %5 = vector.load %arg1[%c2, %c0_6, %c0_7] : memref<28x64x128xf32, #tpu.memory_space<vmem>>, vector<1x64x128xf32>
    %6 = vector.shape_cast %5 : vector<1x64x128xf32> to vector<64x128xf32>
    %c3 = arith.constant 3 : index
    %c0_8 = arith.constant 0 : index
    %c0_9 = arith.constant 0 : index
    %7 = vector.load %arg1[%c3, %c0_8, %c0_9] : memref<28x64x128xf32, #tpu.memory_space<vmem>>, vector<1x64x128xf32>
    %8 = vector.shape_cast %7 : vector<1x64x128xf32> to vector<64x128xf32>
    %c4 = arith.constant 4 : index
    %c0_10 = arith.constant 0 : index
    %c0_11 = arith.constant 0 : index
    %9 = vector.load %arg1[%c4, %c0_10, %c0_11] : memref<28x64x128xf32, #tpu.memory_space<vmem>>, vector<1x64x128xf32>
    %10 = vector.shape_cast %9 : vector<1x64x128xf32> to vector<64x128xf32>
    %c5 = arith.constant 5 : index
    %c0_12 = arith.constant 0 : index
    %c0_13 = arith.constant 0 : index
    %11 = vector.load %arg1[%c5, %c0_12, %c0_13] : memref<28x64x128xf32, #tpu.memory_space<vmem>>, vector<1x64x128xf32>
    %12 = vector.shape_cast %11 : vector<1x64x128xf32> to vector<64x128xf32>
    %c6 = arith.constant 6 : index
    %c0_14 = arith.constant 0 : index
    %c0_15 = arith.constant 0 : index
    %13 = vector.load %arg1[%c6, %c0_14, %c0_15] : memref<28x64x128xf32, #tpu.memory_space<vmem>>, vector<1x64x128xf32>
    %14 = vector.shape_cast %13 : vector<1x64x128xf32> to vector<64x128xf32>
    %c7 = arith.constant 7 : index
    %c0_16 = arith.constant 0 : index
    %c0_17 = arith.constant 0 : index
    %15 = vector.load %arg1[%c7, %c0_16, %c0_17] : memref<28x64x128xf32, #tpu.memory_space<vmem>>, vector<1x64x128xf32>
    %16 = vector.shape_cast %15 : vector<1x64x128xf32> to vector<64x128xf32>
    %c8 = arith.constant 8 : index
    %c0_18 = arith.constant 0 : index
    %c0_19 = arith.constant 0 : index
    %17 = vector.load %arg1[%c8, %c0_18, %c0_19] : memref<28x64x128xf32, #tpu.memory_space<vmem>>, vector<1x64x128xf32>
    %18 = vector.shape_cast %17 : vector<1x64x128xf32> to vector<64x128xf32>
    %c9 = arith.constant 9 : index
    %c0_20 = arith.constant 0 : index
    %c0_21 = arith.constant 0 : index
    %19 = vector.load %arg1[%c9, %c0_20, %c0_21] : memref<28x64x128xf32, #tpu.memory_space<vmem>>, vector<1x64x128xf32>
    %20 = vector.shape_cast %19 : vector<1x64x128xf32> to vector<64x128xf32>
    %c10 = arith.constant 10 : index
    %c0_22 = arith.constant 0 : index
    %c0_23 = arith.constant 0 : index
    %21 = vector.load %arg1[%c10, %c0_22, %c0_23] : memref<28x64x128xf32, #tpu.memory_space<vmem>>, vector<1x64x128xf32>
    %22 = vector.shape_cast %21 : vector<1x64x128xf32> to vector<64x128xf32>
    %c11 = arith.constant 11 : index
    %c0_24 = arith.constant 0 : index
    %c0_25 = arith.constant 0 : index
    %23 = vector.load %arg1[%c11, %c0_24, %c0_25] : memref<28x64x128xf32, #tpu.memory_space<vmem>>, vector<1x64x128xf32>
    %24 = vector.shape_cast %23 : vector<1x64x128xf32> to vector<64x128xf32>
    %c12 = arith.constant 12 : index
    %c0_26 = arith.constant 0 : index
    %c0_27 = arith.constant 0 : index
    %25 = vector.load %arg1[%c12, %c0_26, %c0_27] : memref<28x64x128xf32, #tpu.memory_space<vmem>>, vector<1x64x128xf32>
    %26 = vector.shape_cast %25 : vector<1x64x128xf32> to vector<64x128xf32>
    %c13 = arith.constant 13 : index
    %c0_28 = arith.constant 0 : index
    %c0_29 = arith.constant 0 : index
    %27 = vector.load %arg1[%c13, %c0_28, %c0_29] : memref<28x64x128xf32, #tpu.memory_space<vmem>>, vector<1x64x128xf32>
    %28 = vector.shape_cast %27 : vector<1x64x128xf32> to vector<64x128xf32>
    %c14 = arith.constant 14 : index
    %c0_30 = arith.constant 0 : index
    %c0_31 = arith.constant 0 : index
    %29 = vector.load %arg1[%c14, %c0_30, %c0_31] : memref<28x64x128xf32, #tpu.memory_space<vmem>>, vector<1x64x128xf32>
    %30 = vector.shape_cast %29 : vector<1x64x128xf32> to vector<64x128xf32>
    %c15 = arith.constant 15 : index
    %c0_32 = arith.constant 0 : index
    %c0_33 = arith.constant 0 : index
    %31 = vector.load %arg1[%c15, %c0_32, %c0_33] : memref<28x64x128xf32, #tpu.memory_space<vmem>>, vector<1x64x128xf32>
    %32 = vector.shape_cast %31 : vector<1x64x128xf32> to vector<64x128xf32>
    %c16 = arith.constant 16 : index
    %c0_34 = arith.constant 0 : index
    %c0_35 = arith.constant 0 : index
    %33 = vector.load %arg1[%c16, %c0_34, %c0_35] : memref<28x64x128xf32, #tpu.memory_space<vmem>>, vector<1x64x128xf32>
    %34 = vector.shape_cast %33 : vector<1x64x128xf32> to vector<64x128xf32>
    %c17 = arith.constant 17 : index
    %c0_36 = arith.constant 0 : index
    %c0_37 = arith.constant 0 : index
    %35 = vector.load %arg1[%c17, %c0_36, %c0_37] : memref<28x64x128xf32, #tpu.memory_space<vmem>>, vector<1x64x128xf32>
    %36 = vector.shape_cast %35 : vector<1x64x128xf32> to vector<64x128xf32>
    %c18 = arith.constant 18 : index
    %c0_38 = arith.constant 0 : index
    %c0_39 = arith.constant 0 : index
    %37 = vector.load %arg1[%c18, %c0_38, %c0_39] : memref<28x64x128xf32, #tpu.memory_space<vmem>>, vector<1x64x128xf32>
    %38 = vector.shape_cast %37 : vector<1x64x128xf32> to vector<64x128xf32>
    %c19 = arith.constant 19 : index
    %c0_40 = arith.constant 0 : index
    %c0_41 = arith.constant 0 : index
    %39 = vector.load %arg1[%c19, %c0_40, %c0_41] : memref<28x64x128xf32, #tpu.memory_space<vmem>>, vector<1x64x128xf32>
    %40 = vector.shape_cast %39 : vector<1x64x128xf32> to vector<64x128xf32>
    %c20 = arith.constant 20 : index
    %c0_42 = arith.constant 0 : index
    %c0_43 = arith.constant 0 : index
    %41 = vector.load %arg1[%c20, %c0_42, %c0_43] : memref<28x64x128xf32, #tpu.memory_space<vmem>>, vector<1x64x128xf32>
    %42 = vector.shape_cast %41 : vector<1x64x128xf32> to vector<64x128xf32>
    %c21 = arith.constant 21 : index
    %c0_44 = arith.constant 0 : index
    %c0_45 = arith.constant 0 : index
    %43 = vector.load %arg1[%c21, %c0_44, %c0_45] : memref<28x64x128xf32, #tpu.memory_space<vmem>>, vector<1x64x128xf32>
    %44 = vector.shape_cast %43 : vector<1x64x128xf32> to vector<64x128xf32>
    %c22 = arith.constant 22 : index
    %c0_46 = arith.constant 0 : index
    %c0_47 = arith.constant 0 : index
    %45 = vector.load %arg1[%c22, %c0_46, %c0_47] : memref<28x64x128xf32, #tpu.memory_space<vmem>>, vector<1x64x128xf32>
    %46 = vector.shape_cast %45 : vector<1x64x128xf32> to vector<64x128xf32>
    %c23 = arith.constant 23 : index
    %c0_48 = arith.constant 0 : index
    %c0_49 = arith.constant 0 : index
    %47 = vector.load %arg1[%c23, %c0_48, %c0_49] : memref<28x64x128xf32, #tpu.memory_space<vmem>>, vector<1x64x128xf32>
    %48 = vector.shape_cast %47 : vector<1x64x128xf32> to vector<64x128xf32>
    %c24 = arith.constant 24 : index
    %c0_50 = arith.constant 0 : index
    %c0_51 = arith.constant 0 : index
    %49 = vector.load %arg1[%c24, %c0_50, %c0_51] : memref<28x64x128xf32, #tpu.memory_space<vmem>>, vector<1x64x128xf32>
    %50 = vector.shape_cast %49 : vector<1x64x128xf32> to vector<64x128xf32>
    %c25 = arith.constant 25 : index
    %c0_52 = arith.constant 0 : index
    %c0_53 = arith.constant 0 : index
    %51 = vector.load %arg1[%c25, %c0_52, %c0_53] : memref<28x64x128xf32, #tpu.memory_space<vmem>>, vector<1x64x128xf32>
    %52 = vector.shape_cast %51 : vector<1x64x128xf32> to vector<64x128xf32>
    %c26 = arith.constant 26 : index
    %c0_54 = arith.constant 0 : index
    %c0_55 = arith.constant 0 : index
    %53 = vector.load %arg1[%c26, %c0_54, %c0_55] : memref<28x64x128xf32, #tpu.memory_space<vmem>>, vector<1x64x128xf32>
    %54 = vector.shape_cast %53 : vector<1x64x128xf32> to vector<64x128xf32>
    %c27 = arith.constant 27 : index
    %c0_56 = arith.constant 0 : index
    %c0_57 = arith.constant 0 : index
    %55 = vector.load %arg1[%c27, %c0_56, %c0_57] : memref<28x64x128xf32, #tpu.memory_space<vmem>>, vector<1x64x128xf32>
    %56 = vector.shape_cast %55 : vector<1x64x128xf32> to vector<64x128xf32>
    %57 = tpu.concatenate %2, %4, %6, %8, %10 in 1 : vector<64x128xf32>, vector<64x128xf32>, vector<64x128xf32>, vector<64x128xf32>, vector<64x128xf32> -> vector<64x640xf32>
    %58 = tpu.concatenate %4, %6, %8, %10, %12 in 1 : vector<64x128xf32>, vector<64x128xf32>, vector<64x128xf32>, vector<64x128xf32>, vector<64x128xf32> -> vector<64x640xf32>
    %59 = tpu.concatenate %57, %58 in 0 : vector<64x640xf32>, vector<64x640xf32> -> vector<128x640xf32>
    %cst = arith.constant dense<0.000000e+00> : vector<128x256xf32>
    %60 = tpu.matmul %59, %0, %cst {dimension_numbers = #tpu.dot_dimension_numbers<[1], [0], [0], [1], [0, 0, 1, 1], [], []>} : vector<128x640xf32>, vector<640x256xf32>, vector<128x256xf32> -> vector<128x256xf32>
    %61 = vector.extract_strided_slice %60 {offsets = [0, 0], sizes = [128, 128], strides = [1, 1]} : vector<128x256xf32> to vector<128x128xf32>
    %62 = vector.extract_strided_slice %60 {offsets = [0, 128], sizes = [128, 128], strides = [1, 1]} : vector<128x256xf32> to vector<128x128xf32>
    %63 = arith.maximumf %61, %62 : vector<128x128xf32>
    %64 = vector.extract_strided_slice %63 {offsets = [0, 0], sizes = [64, 128], strides = [1, 1]} : vector<128x128xf32> to vector<64x128xf32>
    %65 = vector.extract_strided_slice %63 {offsets = [64, 0], sizes = [64, 128], strides = [1, 1]} : vector<128x128xf32> to vector<64x128xf32>
    %66 = arith.maximumf %64, %65 : vector<64x128xf32>
    %c0_58 = arith.constant 0 : index
    %c0_59 = arith.constant 0 : index
    %67 = vector.load %arg3[%c0_58, %c0_59] : memref<1x128xf32, #tpu.memory_space<vmem>>, vector<1x128xf32>
    %68 = vector.broadcast %67 : vector<1x128xf32> to vector<64x128xf32>
    %69 = arith.addf %66, %68 : vector<64x128xf32>
    %cst_60 = arith.constant 0.000000e+00 : f32
    %70 = vector.broadcast %cst_60 : f32 to vector<64x128xf32>
    %71 = arith.maximumf %69, %70 : vector<64x128xf32>
    %72 = arith.truncf %71 : vector<64x128xf32> to vector<64x128xbf16>
    %73 = tpu.concatenate %6, %8, %10, %12, %14 in 1 : vector<64x128xf32>, vector<64x128xf32>, vector<64x128xf32>, vector<64x128xf32>, vector<64x128xf32> -> vector<64x640xf32>
    %74 = tpu.concatenate %8, %10, %12, %14, %16 in 1 : vector<64x128xf32>, vector<64x128xf32>, vector<64x128xf32>, vector<64x128xf32>, vector<64x128xf32> -> vector<64x640xf32>
    %75 = tpu.concatenate %73, %74 in 0 : vector<64x640xf32>, vector<64x640xf32> -> vector<128x640xf32>
    %cst_61 = arith.constant dense<0.000000e+00> : vector<128x256xf32>
    %76 = tpu.matmul %75, %0, %cst_61 {dimension_numbers = #tpu.dot_dimension_numbers<[1], [0], [0], [1], [0, 0, 1, 1], [], []>} : vector<128x640xf32>, vector<640x256xf32>, vector<128x256xf32> -> vector<128x256xf32>
    %77 = vector.extract_strided_slice %76 {offsets = [0, 0], sizes = [128, 128], strides = [1, 1]} : vector<128x256xf32> to vector<128x128xf32>
    %78 = vector.extract_strided_slice %76 {offsets = [0, 128], sizes = [128, 128], strides = [1, 1]} : vector<128x256xf32> to vector<128x128xf32>
    %79 = arith.maximumf %77, %78 : vector<128x128xf32>
    %80 = vector.extract_strided_slice %79 {offsets = [0, 0], sizes = [64, 128], strides = [1, 1]} : vector<128x128xf32> to vector<64x128xf32>
    %81 = vector.extract_strided_slice %79 {offsets = [64, 0], sizes = [64, 128], strides = [1, 1]} : vector<128x128xf32> to vector<64x128xf32>
    %82 = arith.maximumf %80, %81 : vector<64x128xf32>
    %c0_62 = arith.constant 0 : index
    %c0_63 = arith.constant 0 : index
    %83 = vector.load %arg3[%c0_62, %c0_63] : memref<1x128xf32, #tpu.memory_space<vmem>>, vector<1x128xf32>
    %84 = vector.broadcast %83 : vector<1x128xf32> to vector<64x128xf32>
    %85 = arith.addf %82, %84 : vector<64x128xf32>
    %cst_64 = arith.constant 0.000000e+00 : f32
    %86 = vector.broadcast %cst_64 : f32 to vector<64x128xf32>
    %87 = arith.maximumf %85, %86 : vector<64x128xf32>
    %88 = arith.truncf %87 : vector<64x128xf32> to vector<64x128xbf16>
    %89 = tpu.concatenate %10, %12, %14, %16, %18 in 1 : vector<64x128xf32>, vector<64x128xf32>, vector<64x128xf32>, vector<64x128xf32>, vector<64x128xf32> -> vector<64x640xf32>
    %90 = tpu.concatenate %12, %14, %16, %18, %20 in 1 : vector<64x128xf32>, vector<64x128xf32>, vector<64x128xf32>, vector<64x128xf32>, vector<64x128xf32> -> vector<64x640xf32>
    %91 = tpu.concatenate %89, %90 in 0 : vector<64x640xf32>, vector<64x640xf32> -> vector<128x640xf32>
    %cst_65 = arith.constant dense<0.000000e+00> : vector<128x256xf32>
    %92 = tpu.matmul %91, %0, %cst_65 {dimension_numbers = #tpu.dot_dimension_numbers<[1], [0], [0], [1], [0, 0, 1, 1], [], []>} : vector<128x640xf32>, vector<640x256xf32>, vector<128x256xf32> -> vector<128x256xf32>
    %93 = vector.extract_strided_slice %92 {offsets = [0, 0], sizes = [128, 128], strides = [1, 1]} : vector<128x256xf32> to vector<128x128xf32>
    %94 = vector.extract_strided_slice %92 {offsets = [0, 128], sizes = [128, 128], strides = [1, 1]} : vector<128x256xf32> to vector<128x128xf32>
    %95 = arith.maximumf %93, %94 : vector<128x128xf32>
    %96 = vector.extract_strided_slice %95 {offsets = [0, 0], sizes = [64, 128], strides = [1, 1]} : vector<128x128xf32> to vector<64x128xf32>
    %97 = vector.extract_strided_slice %95 {offsets = [64, 0], sizes = [64, 128], strides = [1, 1]} : vector<128x128xf32> to vector<64x128xf32>
    %98 = arith.maximumf %96, %97 : vector<64x128xf32>
    %c0_66 = arith.constant 0 : index
    %c0_67 = arith.constant 0 : index
    %99 = vector.load %arg3[%c0_66, %c0_67] : memref<1x128xf32, #tpu.memory_space<vmem>>, vector<1x128xf32>
    %100 = vector.broadcast %99 : vector<1x128xf32> to vector<64x128xf32>
    %101 = arith.addf %98, %100 : vector<64x128xf32>
    %cst_68 = arith.constant 0.000000e+00 : f32
    %102 = vector.broadcast %cst_68 : f32 to vector<64x128xf32>
    %103 = arith.maximumf %101, %102 : vector<64x128xf32>
    %104 = arith.truncf %103 : vector<64x128xf32> to vector<64x128xbf16>
    %105 = tpu.concatenate %14, %16, %18, %20, %22 in 1 : vector<64x128xf32>, vector<64x128xf32>, vector<64x128xf32>, vector<64x128xf32>, vector<64x128xf32> -> vector<64x640xf32>
    %106 = tpu.concatenate %16, %18, %20, %22, %24 in 1 : vector<64x128xf32>, vector<64x128xf32>, vector<64x128xf32>, vector<64x128xf32>, vector<64x128xf32> -> vector<64x640xf32>
    %107 = tpu.concatenate %105, %106 in 0 : vector<64x640xf32>, vector<64x640xf32> -> vector<128x640xf32>
    %cst_69 = arith.constant dense<0.000000e+00> : vector<128x256xf32>
    %108 = tpu.matmul %107, %0, %cst_69 {dimension_numbers = #tpu.dot_dimension_numbers<[1], [0], [0], [1], [0, 0, 1, 1], [], []>} : vector<128x640xf32>, vector<640x256xf32>, vector<128x256xf32> -> vector<128x256xf32>
    %109 = vector.extract_strided_slice %108 {offsets = [0, 0], sizes = [128, 128], strides = [1, 1]} : vector<128x256xf32> to vector<128x128xf32>
    %110 = vector.extract_strided_slice %108 {offsets = [0, 128], sizes = [128, 128], strides = [1, 1]} : vector<128x256xf32> to vector<128x128xf32>
    %111 = arith.maximumf %109, %110 : vector<128x128xf32>
    %112 = vector.extract_strided_slice %111 {offsets = [0, 0], sizes = [64, 128], strides = [1, 1]} : vector<128x128xf32> to vector<64x128xf32>
    %113 = vector.extract_strided_slice %111 {offsets = [64, 0], sizes = [64, 128], strides = [1, 1]} : vector<128x128xf32> to vector<64x128xf32>
    %114 = arith.maximumf %112, %113 : vector<64x128xf32>
    %c0_70 = arith.constant 0 : index
    %c0_71 = arith.constant 0 : index
    %115 = vector.load %arg3[%c0_70, %c0_71] : memref<1x128xf32, #tpu.memory_space<vmem>>, vector<1x128xf32>
    %116 = vector.broadcast %115 : vector<1x128xf32> to vector<64x128xf32>
    %117 = arith.addf %114, %116 : vector<64x128xf32>
    %cst_72 = arith.constant 0.000000e+00 : f32
    %118 = vector.broadcast %cst_72 : f32 to vector<64x128xf32>
    %119 = arith.maximumf %117, %118 : vector<64x128xf32>
    %120 = arith.truncf %119 : vector<64x128xf32> to vector<64x128xbf16>
    %121 = tpu.concatenate %18, %20, %22, %24, %26 in 1 : vector<64x128xf32>, vector<64x128xf32>, vector<64x128xf32>, vector<64x128xf32>, vector<64x128xf32> -> vector<64x640xf32>
    %122 = tpu.concatenate %20, %22, %24, %26, %28 in 1 : vector<64x128xf32>, vector<64x128xf32>, vector<64x128xf32>, vector<64x128xf32>, vector<64x128xf32> -> vector<64x640xf32>
    %123 = tpu.concatenate %121, %122 in 0 : vector<64x640xf32>, vector<64x640xf32> -> vector<128x640xf32>
    %cst_73 = arith.constant dense<0.000000e+00> : vector<128x256xf32>
    %124 = tpu.matmul %123, %0, %cst_73 {dimension_numbers = #tpu.dot_dimension_numbers<[1], [0], [0], [1], [0, 0, 1, 1], [], []>} : vector<128x640xf32>, vector<640x256xf32>, vector<128x256xf32> -> vector<128x256xf32>
    %125 = vector.extract_strided_slice %124 {offsets = [0, 0], sizes = [128, 128], strides = [1, 1]} : vector<128x256xf32> to vector<128x128xf32>
    %126 = vector.extract_strided_slice %124 {offsets = [0, 128], sizes = [128, 128], strides = [1, 1]} : vector<128x256xf32> to vector<128x128xf32>
    %127 = arith.maximumf %125, %126 : vector<128x128xf32>
    %128 = vector.extract_strided_slice %127 {offsets = [0, 0], sizes = [64, 128], strides = [1, 1]} : vector<128x128xf32> to vector<64x128xf32>
    %129 = vector.extract_strided_slice %127 {offsets = [64, 0], sizes = [64, 128], strides = [1, 1]} : vector<128x128xf32> to vector<64x128xf32>
    %130 = arith.maximumf %128, %129 : vector<64x128xf32>
    %c0_74 = arith.constant 0 : index
    %c0_75 = arith.constant 0 : index
    %131 = vector.load %arg3[%c0_74, %c0_75] : memref<1x128xf32, #tpu.memory_space<vmem>>, vector<1x128xf32>
    %132 = vector.broadcast %131 : vector<1x128xf32> to vector<64x128xf32>
    %133 = arith.addf %130, %132 : vector<64x128xf32>
    %cst_76 = arith.constant 0.000000e+00 : f32
    %134 = vector.broadcast %cst_76 : f32 to vector<64x128xf32>
    %135 = arith.maximumf %133, %134 : vector<64x128xf32>
    %136 = arith.truncf %135 : vector<64x128xf32> to vector<64x128xbf16>
    %137 = tpu.concatenate %22, %24, %26, %28, %30 in 1 : vector<64x128xf32>, vector<64x128xf32>, vector<64x128xf32>, vector<64x128xf32>, vector<64x128xf32> -> vector<64x640xf32>
    %138 = tpu.concatenate %24, %26, %28, %30, %32 in 1 : vector<64x128xf32>, vector<64x128xf32>, vector<64x128xf32>, vector<64x128xf32>, vector<64x128xf32> -> vector<64x640xf32>
    %139 = tpu.concatenate %137, %138 in 0 : vector<64x640xf32>, vector<64x640xf32> -> vector<128x640xf32>
    %cst_77 = arith.constant dense<0.000000e+00> : vector<128x256xf32>
    %140 = tpu.matmul %139, %0, %cst_77 {dimension_numbers = #tpu.dot_dimension_numbers<[1], [0], [0], [1], [0, 0, 1, 1], [], []>} : vector<128x640xf32>, vector<640x256xf32>, vector<128x256xf32> -> vector<128x256xf32>
    %141 = vector.extract_strided_slice %140 {offsets = [0, 0], sizes = [128, 128], strides = [1, 1]} : vector<128x256xf32> to vector<128x128xf32>
    %142 = vector.extract_strided_slice %140 {offsets = [0, 128], sizes = [128, 128], strides = [1, 1]} : vector<128x256xf32> to vector<128x128xf32>
    %143 = arith.maximumf %141, %142 : vector<128x128xf32>
    %144 = vector.extract_strided_slice %143 {offsets = [0, 0], sizes = [64, 128], strides = [1, 1]} : vector<128x128xf32> to vector<64x128xf32>
    %145 = vector.extract_strided_slice %143 {offsets = [64, 0], sizes = [64, 128], strides = [1, 1]} : vector<128x128xf32> to vector<64x128xf32>
    %146 = arith.maximumf %144, %145 : vector<64x128xf32>
    %c0_78 = arith.constant 0 : index
    %c0_79 = arith.constant 0 : index
    %147 = vector.load %arg3[%c0_78, %c0_79] : memref<1x128xf32, #tpu.memory_space<vmem>>, vector<1x128xf32>
    %148 = vector.broadcast %147 : vector<1x128xf32> to vector<64x128xf32>
    %149 = arith.addf %146, %148 : vector<64x128xf32>
    %cst_80 = arith.constant 0.000000e+00 : f32
    %150 = vector.broadcast %cst_80 : f32 to vector<64x128xf32>
    %151 = arith.maximumf %149, %150 : vector<64x128xf32>
    %152 = arith.truncf %151 : vector<64x128xf32> to vector<64x128xbf16>
    %153 = tpu.concatenate %26, %28, %30, %32, %34 in 1 : vector<64x128xf32>, vector<64x128xf32>, vector<64x128xf32>, vector<64x128xf32>, vector<64x128xf32> -> vector<64x640xf32>
    %154 = tpu.concatenate %28, %30, %32, %34, %36 in 1 : vector<64x128xf32>, vector<64x128xf32>, vector<64x128xf32>, vector<64x128xf32>, vector<64x128xf32> -> vector<64x640xf32>
    %155 = tpu.concatenate %153, %154 in 0 : vector<64x640xf32>, vector<64x640xf32> -> vector<128x640xf32>
    %cst_81 = arith.constant dense<0.000000e+00> : vector<128x256xf32>
    %156 = tpu.matmul %155, %0, %cst_81 {dimension_numbers = #tpu.dot_dimension_numbers<[1], [0], [0], [1], [0, 0, 1, 1], [], []>} : vector<128x640xf32>, vector<640x256xf32>, vector<128x256xf32> -> vector<128x256xf32>
    %157 = vector.extract_strided_slice %156 {offsets = [0, 0], sizes = [128, 128], strides = [1, 1]} : vector<128x256xf32> to vector<128x128xf32>
    %158 = vector.extract_strided_slice %156 {offsets = [0, 128], sizes = [128, 128], strides = [1, 1]} : vector<128x256xf32> to vector<128x128xf32>
    %159 = arith.maximumf %157, %158 : vector<128x128xf32>
    %160 = vector.extract_strided_slice %159 {offsets = [0, 0], sizes = [64, 128], strides = [1, 1]} : vector<128x128xf32> to vector<64x128xf32>
    %161 = vector.extract_strided_slice %159 {offsets = [64, 0], sizes = [64, 128], strides = [1, 1]} : vector<128x128xf32> to vector<64x128xf32>
    %162 = arith.maximumf %160, %161 : vector<64x128xf32>
    %c0_82 = arith.constant 0 : index
    %c0_83 = arith.constant 0 : index
    %163 = vector.load %arg3[%c0_82, %c0_83] : memref<1x128xf32, #tpu.memory_space<vmem>>, vector<1x128xf32>
    %164 = vector.broadcast %163 : vector<1x128xf32> to vector<64x128xf32>
    %165 = arith.addf %162, %164 : vector<64x128xf32>
    %cst_84 = arith.constant 0.000000e+00 : f32
    %166 = vector.broadcast %cst_84 : f32 to vector<64x128xf32>
    %167 = arith.maximumf %165, %166 : vector<64x128xf32>
    %168 = arith.truncf %167 : vector<64x128xf32> to vector<64x128xbf16>
    %169 = tpu.concatenate %30, %32, %34, %36, %38 in 1 : vector<64x128xf32>, vector<64x128xf32>, vector<64x128xf32>, vector<64x128xf32>, vector<64x128xf32> -> vector<64x640xf32>
    %170 = tpu.concatenate %32, %34, %36, %38, %40 in 1 : vector<64x128xf32>, vector<64x128xf32>, vector<64x128xf32>, vector<64x128xf32>, vector<64x128xf32> -> vector<64x640xf32>
    %171 = tpu.concatenate %169, %170 in 0 : vector<64x640xf32>, vector<64x640xf32> -> vector<128x640xf32>
    %cst_85 = arith.constant dense<0.000000e+00> : vector<128x256xf32>
    %172 = tpu.matmul %171, %0, %cst_85 {dimension_numbers = #tpu.dot_dimension_numbers<[1], [0], [0], [1], [0, 0, 1, 1], [], []>} : vector<128x640xf32>, vector<640x256xf32>, vector<128x256xf32> -> vector<128x256xf32>
    %173 = vector.extract_strided_slice %172 {offsets = [0, 0], sizes = [128, 128], strides = [1, 1]} : vector<128x256xf32> to vector<128x128xf32>
    %174 = vector.extract_strided_slice %172 {offsets = [0, 128], sizes = [128, 128], strides = [1, 1]} : vector<128x256xf32> to vector<128x128xf32>
    %175 = arith.maximumf %173, %174 : vector<128x128xf32>
    %176 = vector.extract_strided_slice %175 {offsets = [0, 0], sizes = [64, 128], strides = [1, 1]} : vector<128x128xf32> to vector<64x128xf32>
    %177 = vector.extract_strided_slice %175 {offsets = [64, 0], sizes = [64, 128], strides = [1, 1]} : vector<128x128xf32> to vector<64x128xf32>
    %178 = arith.maximumf %176, %177 : vector<64x128xf32>
    %c0_86 = arith.constant 0 : index
    %c0_87 = arith.constant 0 : index
    %179 = vector.load %arg3[%c0_86, %c0_87] : memref<1x128xf32, #tpu.memory_space<vmem>>, vector<1x128xf32>
    %180 = vector.broadcast %179 : vector<1x128xf32> to vector<64x128xf32>
    %181 = arith.addf %178, %180 : vector<64x128xf32>
    %cst_88 = arith.constant 0.000000e+00 : f32
    %182 = vector.broadcast %cst_88 : f32 to vector<64x128xf32>
    %183 = arith.maximumf %181, %182 : vector<64x128xf32>
    %184 = arith.truncf %183 : vector<64x128xf32> to vector<64x128xbf16>
    %185 = tpu.concatenate %34, %36, %38, %40, %42 in 1 : vector<64x128xf32>, vector<64x128xf32>, vector<64x128xf32>, vector<64x128xf32>, vector<64x128xf32> -> vector<64x640xf32>
    %186 = tpu.concatenate %36, %38, %40, %42, %44 in 1 : vector<64x128xf32>, vector<64x128xf32>, vector<64x128xf32>, vector<64x128xf32>, vector<64x128xf32> -> vector<64x640xf32>
    %187 = tpu.concatenate %185, %186 in 0 : vector<64x640xf32>, vector<64x640xf32> -> vector<128x640xf32>
    %cst_89 = arith.constant dense<0.000000e+00> : vector<128x256xf32>
    %188 = tpu.matmul %187, %0, %cst_89 {dimension_numbers = #tpu.dot_dimension_numbers<[1], [0], [0], [1], [0, 0, 1, 1], [], []>} : vector<128x640xf32>, vector<640x256xf32>, vector<128x256xf32> -> vector<128x256xf32>
    %189 = vector.extract_strided_slice %188 {offsets = [0, 0], sizes = [128, 128], strides = [1, 1]} : vector<128x256xf32> to vector<128x128xf32>
    %190 = vector.extract_strided_slice %188 {offsets = [0, 128], sizes = [128, 128], strides = [1, 1]} : vector<128x256xf32> to vector<128x128xf32>
    %191 = arith.maximumf %189, %190 : vector<128x128xf32>
    %192 = vector.extract_strided_slice %191 {offsets = [0, 0], sizes = [64, 128], strides = [1, 1]} : vector<128x128xf32> to vector<64x128xf32>
    %193 = vector.extract_strided_slice %191 {offsets = [64, 0], sizes = [64, 128], strides = [1, 1]} : vector<128x128xf32> to vector<64x128xf32>
    %194 = arith.maximumf %192, %193 : vector<64x128xf32>
    %c0_90 = arith.constant 0 : index
    %c0_91 = arith.constant 0 : index
    %195 = vector.load %arg3[%c0_90, %c0_91] : memref<1x128xf32, #tpu.memory_space<vmem>>, vector<1x128xf32>
    %196 = vector.broadcast %195 : vector<1x128xf32> to vector<64x128xf32>
    %197 = arith.addf %194, %196 : vector<64x128xf32>
    %cst_92 = arith.constant 0.000000e+00 : f32
    %198 = vector.broadcast %cst_92 : f32 to vector<64x128xf32>
    %199 = arith.maximumf %197, %198 : vector<64x128xf32>
    %200 = arith.truncf %199 : vector<64x128xf32> to vector<64x128xbf16>
    %201 = tpu.concatenate %38, %40, %42, %44, %46 in 1 : vector<64x128xf32>, vector<64x128xf32>, vector<64x128xf32>, vector<64x128xf32>, vector<64x128xf32> -> vector<64x640xf32>
    %202 = tpu.concatenate %40, %42, %44, %46, %48 in 1 : vector<64x128xf32>, vector<64x128xf32>, vector<64x128xf32>, vector<64x128xf32>, vector<64x128xf32> -> vector<64x640xf32>
    %203 = tpu.concatenate %201, %202 in 0 : vector<64x640xf32>, vector<64x640xf32> -> vector<128x640xf32>
    %cst_93 = arith.constant dense<0.000000e+00> : vector<128x256xf32>
    %204 = tpu.matmul %203, %0, %cst_93 {dimension_numbers = #tpu.dot_dimension_numbers<[1], [0], [0], [1], [0, 0, 1, 1], [], []>} : vector<128x640xf32>, vector<640x256xf32>, vector<128x256xf32> -> vector<128x256xf32>
    %205 = vector.extract_strided_slice %204 {offsets = [0, 0], sizes = [128, 128], strides = [1, 1]} : vector<128x256xf32> to vector<128x128xf32>
    %206 = vector.extract_strided_slice %204 {offsets = [0, 128], sizes = [128, 128], strides = [1, 1]} : vector<128x256xf32> to vector<128x128xf32>
    %207 = arith.maximumf %205, %206 : vector<128x128xf32>
    %208 = vector.extract_strided_slice %207 {offsets = [0, 0], sizes = [64, 128], strides = [1, 1]} : vector<128x128xf32> to vector<64x128xf32>
    %209 = vector.extract_strided_slice %207 {offsets = [64, 0], sizes = [64, 128], strides = [1, 1]} : vector<128x128xf32> to vector<64x128xf32>
    %210 = arith.maximumf %208, %209 : vector<64x128xf32>
    %c0_94 = arith.constant 0 : index
    %c0_95 = arith.constant 0 : index
    %211 = vector.load %arg3[%c0_94, %c0_95] : memref<1x128xf32, #tpu.memory_space<vmem>>, vector<1x128xf32>
    %212 = vector.broadcast %211 : vector<1x128xf32> to vector<64x128xf32>
    %213 = arith.addf %210, %212 : vector<64x128xf32>
    %cst_96 = arith.constant 0.000000e+00 : f32
    %214 = vector.broadcast %cst_96 : f32 to vector<64x128xf32>
    %215 = arith.maximumf %213, %214 : vector<64x128xf32>
    %216 = arith.truncf %215 : vector<64x128xf32> to vector<64x128xbf16>
    %217 = tpu.concatenate %42, %44, %46, %48, %50 in 1 : vector<64x128xf32>, vector<64x128xf32>, vector<64x128xf32>, vector<64x128xf32>, vector<64x128xf32> -> vector<64x640xf32>
    %218 = tpu.concatenate %44, %46, %48, %50, %52 in 1 : vector<64x128xf32>, vector<64x128xf32>, vector<64x128xf32>, vector<64x128xf32>, vector<64x128xf32> -> vector<64x640xf32>
    %219 = tpu.concatenate %217, %218 in 0 : vector<64x640xf32>, vector<64x640xf32> -> vector<128x640xf32>
    %cst_97 = arith.constant dense<0.000000e+00> : vector<128x256xf32>
    %220 = tpu.matmul %219, %0, %cst_97 {dimension_numbers = #tpu.dot_dimension_numbers<[1], [0], [0], [1], [0, 0, 1, 1], [], []>} : vector<128x640xf32>, vector<640x256xf32>, vector<128x256xf32> -> vector<128x256xf32>
    %221 = vector.extract_strided_slice %220 {offsets = [0, 0], sizes = [128, 128], strides = [1, 1]} : vector<128x256xf32> to vector<128x128xf32>
    %222 = vector.extract_strided_slice %220 {offsets = [0, 128], sizes = [128, 128], strides = [1, 1]} : vector<128x256xf32> to vector<128x128xf32>
    %223 = arith.maximumf %221, %222 : vector<128x128xf32>
    %224 = vector.extract_strided_slice %223 {offsets = [0, 0], sizes = [64, 128], strides = [1, 1]} : vector<128x128xf32> to vector<64x128xf32>
    %225 = vector.extract_strided_slice %223 {offsets = [64, 0], sizes = [64, 128], strides = [1, 1]} : vector<128x128xf32> to vector<64x128xf32>
    %226 = arith.maximumf %224, %225 : vector<64x128xf32>
    %c0_98 = arith.constant 0 : index
    %c0_99 = arith.constant 0 : index
    %227 = vector.load %arg3[%c0_98, %c0_99] : memref<1x128xf32, #tpu.memory_space<vmem>>, vector<1x128xf32>
    %228 = vector.broadcast %227 : vector<1x128xf32> to vector<64x128xf32>
    %229 = arith.addf %226, %228 : vector<64x128xf32>
    %cst_100 = arith.constant 0.000000e+00 : f32
    %230 = vector.broadcast %cst_100 : f32 to vector<64x128xf32>
    %231 = arith.maximumf %229, %230 : vector<64x128xf32>
    %232 = arith.truncf %231 : vector<64x128xf32> to vector<64x128xbf16>
    %233 = tpu.concatenate %46, %48, %50, %52, %54 in 1 : vector<64x128xf32>, vector<64x128xf32>, vector<64x128xf32>, vector<64x128xf32>, vector<64x128xf32> -> vector<64x640xf32>
    %234 = tpu.concatenate %48, %50, %52, %54, %56 in 1 : vector<64x128xf32>, vector<64x128xf32>, vector<64x128xf32>, vector<64x128xf32>, vector<64x128xf32> -> vector<64x640xf32>
    %235 = tpu.concatenate %233, %234 in 0 : vector<64x640xf32>, vector<64x640xf32> -> vector<128x640xf32>
    %cst_101 = arith.constant dense<0.000000e+00> : vector<128x256xf32>
    %236 = tpu.matmul %235, %0, %cst_101 {dimension_numbers = #tpu.dot_dimension_numbers<[1], [0], [0], [1], [0, 0, 1, 1], [], []>} : vector<128x640xf32>, vector<640x256xf32>, vector<128x256xf32> -> vector<128x256xf32>
    %237 = vector.extract_strided_slice %236 {offsets = [0, 0], sizes = [128, 128], strides = [1, 1]} : vector<128x256xf32> to vector<128x128xf32>
    %238 = vector.extract_strided_slice %236 {offsets = [0, 128], sizes = [128, 128], strides = [1, 1]} : vector<128x256xf32> to vector<128x128xf32>
    %239 = arith.maximumf %237, %238 : vector<128x128xf32>
    %240 = vector.extract_strided_slice %239 {offsets = [0, 0], sizes = [64, 128], strides = [1, 1]} : vector<128x128xf32> to vector<64x128xf32>
    %241 = vector.extract_strided_slice %239 {offsets = [64, 0], sizes = [64, 128], strides = [1, 1]} : vector<128x128xf32> to vector<64x128xf32>
    %242 = arith.maximumf %240, %241 : vector<64x128xf32>
    %c0_102 = arith.constant 0 : index
    %c0_103 = arith.constant 0 : index
    %243 = vector.load %arg3[%c0_102, %c0_103] : memref<1x128xf32, #tpu.memory_space<vmem>>, vector<1x128xf32>
    %244 = vector.broadcast %243 : vector<1x128xf32> to vector<64x128xf32>
    %245 = arith.addf %242, %244 : vector<64x128xf32>
    %cst_104 = arith.constant 0.000000e+00 : f32
    %246 = vector.broadcast %cst_104 : f32 to vector<64x128xf32>
    %247 = arith.maximumf %245, %246 : vector<64x128xf32>
    %248 = arith.truncf %247 : vector<64x128xf32> to vector<64x128xbf16>
    %c0_105 = arith.constant 0 : index
    %c0_106 = arith.constant 0 : index
    %249 = vector.load %arg4[%c0_105, %c0_106] : memref<640x256xbf16, #tpu.memory_space<vmem>>, vector<640x256xbf16>
    %250 = tpu.concatenate %72, %88, %104, %120, %136 in 1 : vector<64x128xbf16>, vector<64x128xbf16>, vector<64x128xbf16>, vector<64x128xbf16>, vector<64x128xbf16> -> vector<64x640xbf16>
    %251 = tpu.concatenate %88, %104, %120, %136, %152 in 1 : vector<64x128xbf16>, vector<64x128xbf16>, vector<64x128xbf16>, vector<64x128xbf16>, vector<64x128xbf16> -> vector<64x640xbf16>
    %252 = tpu.concatenate %250, %251 in 0 : vector<64x640xbf16>, vector<64x640xbf16> -> vector<128x640xbf16>
    %cst_107 = arith.constant dense<0.000000e+00> : vector<128x256xf32>
    %253 = tpu.matmul %252, %249, %cst_107 {dimension_numbers = #tpu.dot_dimension_numbers<[1], [0], [0], [1], [0, 0, 1, 1], [], []>} : vector<128x640xbf16>, vector<640x256xbf16>, vector<128x256xf32> -> vector<128x256xf32>
    %254 = vector.extract_strided_slice %253 {offsets = [0, 0], sizes = [128, 128], strides = [1, 1]} : vector<128x256xf32> to vector<128x128xf32>
    %255 = vector.extract_strided_slice %253 {offsets = [0, 128], sizes = [128, 128], strides = [1, 1]} : vector<128x256xf32> to vector<128x128xf32>
    %256 = arith.maximumf %254, %255 : vector<128x128xf32>
    %257 = vector.extract_strided_slice %256 {offsets = [0, 0], sizes = [64, 128], strides = [1, 1]} : vector<128x128xf32> to vector<64x128xf32>
    %258 = vector.extract_strided_slice %256 {offsets = [64, 0], sizes = [64, 128], strides = [1, 1]} : vector<128x128xf32> to vector<64x128xf32>
    %259 = arith.maximumf %257, %258 : vector<64x128xf32>
    %c0_108 = arith.constant 0 : index
    %c0_109 = arith.constant 0 : index
    %260 = vector.load %arg5[%c0_108, %c0_109] : memref<1x128xf32, #tpu.memory_space<vmem>>, vector<1x128xf32>
    %261 = vector.broadcast %260 : vector<1x128xf32> to vector<64x128xf32>
    %262 = arith.addf %259, %261 : vector<64x128xf32>
    %cst_110 = arith.constant 0.000000e+00 : f32
    %263 = vector.broadcast %cst_110 : f32 to vector<64x128xf32>
    %264 = arith.maximumf %262, %263 : vector<64x128xf32>
    %265 = arith.truncf %264 : vector<64x128xf32> to vector<64x128xbf16>
    %266 = tpu.concatenate %104, %120, %136, %152, %168 in 1 : vector<64x128xbf16>, vector<64x128xbf16>, vector<64x128xbf16>, vector<64x128xbf16>, vector<64x128xbf16> -> vector<64x640xbf16>
    %267 = tpu.concatenate %120, %136, %152, %168, %184 in 1 : vector<64x128xbf16>, vector<64x128xbf16>, vector<64x128xbf16>, vector<64x128xbf16>, vector<64x128xbf16> -> vector<64x640xbf16>
    %268 = tpu.concatenate %266, %267 in 0 : vector<64x640xbf16>, vector<64x640xbf16> -> vector<128x640xbf16>
    %cst_111 = arith.constant dense<0.000000e+00> : vector<128x256xf32>
    %269 = tpu.matmul %268, %249, %cst_111 {dimension_numbers = #tpu.dot_dimension_numbers<[1], [0], [0], [1], [0, 0, 1, 1], [], []>} : vector<128x640xbf16>, vector<640x256xbf16>, vector<128x256xf32> -> vector<128x256xf32>
    %270 = vector.extract_strided_slice %269 {offsets = [0, 0], sizes = [128, 128], strides = [1, 1]} : vector<128x256xf32> to vector<128x128xf32>
    %271 = vector.extract_strided_slice %269 {offsets = [0, 128], sizes = [128, 128], strides = [1, 1]} : vector<128x256xf32> to vector<128x128xf32>
    %272 = arith.maximumf %270, %271 : vector<128x128xf32>
    %273 = vector.extract_strided_slice %272 {offsets = [0, 0], sizes = [64, 128], strides = [1, 1]} : vector<128x128xf32> to vector<64x128xf32>
    %274 = vector.extract_strided_slice %272 {offsets = [64, 0], sizes = [64, 128], strides = [1, 1]} : vector<128x128xf32> to vector<64x128xf32>
    %275 = arith.maximumf %273, %274 : vector<64x128xf32>
    %c0_112 = arith.constant 0 : index
    %c0_113 = arith.constant 0 : index
    %276 = vector.load %arg5[%c0_112, %c0_113] : memref<1x128xf32, #tpu.memory_space<vmem>>, vector<1x128xf32>
    %277 = vector.broadcast %276 : vector<1x128xf32> to vector<64x128xf32>
    %278 = arith.addf %275, %277 : vector<64x128xf32>
    %cst_114 = arith.constant 0.000000e+00 : f32
    %279 = vector.broadcast %cst_114 : f32 to vector<64x128xf32>
    %280 = arith.maximumf %278, %279 : vector<64x128xf32>
    %281 = arith.truncf %280 : vector<64x128xf32> to vector<64x128xbf16>
    %282 = tpu.concatenate %136, %152, %168, %184, %200 in 1 : vector<64x128xbf16>, vector<64x128xbf16>, vector<64x128xbf16>, vector<64x128xbf16>, vector<64x128xbf16> -> vector<64x640xbf16>
    %283 = tpu.concatenate %152, %168, %184, %200, %216 in 1 : vector<64x128xbf16>, vector<64x128xbf16>, vector<64x128xbf16>, vector<64x128xbf16>, vector<64x128xbf16> -> vector<64x640xbf16>
    %284 = tpu.concatenate %282, %283 in 0 : vector<64x640xbf16>, vector<64x640xbf16> -> vector<128x640xbf16>
    %cst_115 = arith.constant dense<0.000000e+00> : vector<128x256xf32>
    %285 = tpu.matmul %284, %249, %cst_115 {dimension_numbers = #tpu.dot_dimension_numbers<[1], [0], [0], [1], [0, 0, 1, 1], [], []>} : vector<128x640xbf16>, vector<640x256xbf16>, vector<128x256xf32> -> vector<128x256xf32>
    %286 = vector.extract_strided_slice %285 {offsets = [0, 0], sizes = [128, 128], strides = [1, 1]} : vector<128x256xf32> to vector<128x128xf32>
    %287 = vector.extract_strided_slice %285 {offsets = [0, 128], sizes = [128, 128], strides = [1, 1]} : vector<128x256xf32> to vector<128x128xf32>
    %288 = arith.maximumf %286, %287 : vector<128x128xf32>
    %289 = vector.extract_strided_slice %288 {offsets = [0, 0], sizes = [64, 128], strides = [1, 1]} : vector<128x128xf32> to vector<64x128xf32>
    %290 = vector.extract_strided_slice %288 {offsets = [64, 0], sizes = [64, 128], strides = [1, 1]} : vector<128x128xf32> to vector<64x128xf32>
    %291 = arith.maximumf %289, %290 : vector<64x128xf32>
    %c0_116 = arith.constant 0 : index
    %c0_117 = arith.constant 0 : index
    %292 = vector.load %arg5[%c0_116, %c0_117] : memref<1x128xf32, #tpu.memory_space<vmem>>, vector<1x128xf32>
    %293 = vector.broadcast %292 : vector<1x128xf32> to vector<64x128xf32>
    %294 = arith.addf %291, %293 : vector<64x128xf32>
    %cst_118 = arith.constant 0.000000e+00 : f32
    %295 = vector.broadcast %cst_118 : f32 to vector<64x128xf32>
    %296 = arith.maximumf %294, %295 : vector<64x128xf32>
    %297 = arith.truncf %296 : vector<64x128xf32> to vector<64x128xbf16>
    %298 = tpu.concatenate %168, %184, %200, %216, %232 in 1 : vector<64x128xbf16>, vector<64x128xbf16>, vector<64x128xbf16>, vector<64x128xbf16>, vector<64x128xbf16> -> vector<64x640xbf16>
    %299 = tpu.concatenate %184, %200, %216, %232, %248 in 1 : vector<64x128xbf16>, vector<64x128xbf16>, vector<64x128xbf16>, vector<64x128xbf16>, vector<64x128xbf16> -> vector<64x640xbf16>
    %300 = tpu.concatenate %298, %299 in 0 : vector<64x640xbf16>, vector<64x640xbf16> -> vector<128x640xbf16>
    %cst_119 = arith.constant dense<0.000000e+00> : vector<128x256xf32>
    %301 = tpu.matmul %300, %249, %cst_119 {dimension_numbers = #tpu.dot_dimension_numbers<[1], [0], [0], [1], [0, 0, 1, 1], [], []>} : vector<128x640xbf16>, vector<640x256xbf16>, vector<128x256xf32> -> vector<128x256xf32>
    %302 = vector.extract_strided_slice %301 {offsets = [0, 0], sizes = [128, 128], strides = [1, 1]} : vector<128x256xf32> to vector<128x128xf32>
    %303 = vector.extract_strided_slice %301 {offsets = [0, 128], sizes = [128, 128], strides = [1, 1]} : vector<128x256xf32> to vector<128x128xf32>
    %304 = arith.maximumf %302, %303 : vector<128x128xf32>
    %305 = vector.extract_strided_slice %304 {offsets = [0, 0], sizes = [64, 128], strides = [1, 1]} : vector<128x128xf32> to vector<64x128xf32>
    %306 = vector.extract_strided_slice %304 {offsets = [64, 0], sizes = [64, 128], strides = [1, 1]} : vector<128x128xf32> to vector<64x128xf32>
    %307 = arith.maximumf %305, %306 : vector<64x128xf32>
    %c0_120 = arith.constant 0 : index
    %c0_121 = arith.constant 0 : index
    %308 = vector.load %arg5[%c0_120, %c0_121] : memref<1x128xf32, #tpu.memory_space<vmem>>, vector<1x128xf32>
    %309 = vector.broadcast %308 : vector<1x128xf32> to vector<64x128xf32>
    %310 = arith.addf %307, %309 : vector<64x128xf32>
    %cst_122 = arith.constant 0.000000e+00 : f32
    %311 = vector.broadcast %cst_122 : f32 to vector<64x128xf32>
    %312 = arith.maximumf %310, %311 : vector<64x128xf32>
    %313 = arith.truncf %312 : vector<64x128xf32> to vector<64x128xbf16>
    %314 = tpu.concatenate %265, %281, %297, %313 in 1 : vector<64x128xbf16>, vector<64x128xbf16>, vector<64x128xbf16>, vector<64x128xbf16> -> vector<64x512xbf16>
    %c0_123 = arith.constant 0 : index
    %c0_124 = arith.constant 0 : index
    %315 = vector.load %arg6[%c0_123, %c0_124] : memref<512x128xbf16, #tpu.memory_space<vmem>>, vector<512x128xbf16>
    %cst_125 = arith.constant dense<0.000000e+00> : vector<64x128xf32>
    %316 = tpu.matmul %314, %315, %cst_125 {dimension_numbers = #tpu.dot_dimension_numbers<[1], [0], [0], [1], [0, 0, 1, 1], [], []>} : vector<64x512xbf16>, vector<512x128xbf16>, vector<64x128xf32> -> vector<64x128xf32>
    %c0_126 = arith.constant 0 : index
    %c0_127 = arith.constant 0 : index
    %317 = vector.load %arg7[%c0_126, %c0_127] : memref<1x128xf32, #tpu.memory_space<vmem>>, vector<1x128xf32>
    %318 = vector.broadcast %317 : vector<1x128xf32> to vector<64x128xf32>
    %319 = arith.addf %316, %318 : vector<64x128xf32>
    %cst_128 = arith.constant 0.000000e+00 : f32
    %320 = vector.broadcast %cst_128 : f32 to vector<64x128xf32>
    %321 = arith.maximumf %319, %320 : vector<64x128xf32>
    %322 = arith.truncf %321 : vector<64x128xf32> to vector<64x128xbf16>
    %c0_129 = arith.constant 0 : index
    %c0_130 = arith.constant 0 : index
    %323 = vector.load %arg8[%c0_129, %c0_130] : memref<128x128xbf16, #tpu.memory_space<vmem>>, vector<128x128xbf16>
    %cst_131 = arith.constant dense<0.000000e+00> : vector<64x128xf32>
    %324 = tpu.matmul %322, %323, %cst_131 {dimension_numbers = #tpu.dot_dimension_numbers<[1], [0], [0], [1], [0, 0, 1, 1], [], []>} : vector<64x128xbf16>, vector<128x128xbf16>, vector<64x128xf32> -> vector<64x128xf32>
    %c0_132 = arith.constant 0 : index
    %c0_133 = arith.constant 0 : index
    %325 = vector.load %arg9[%c0_132, %c0_133] : memref<1x128xf32, #tpu.memory_space<vmem>>, vector<1x128xf32>
    %326 = vector.broadcast %325 : vector<1x128xf32> to vector<64x128xf32>
    %327 = arith.addf %324, %326 : vector<64x128xf32>
    %cst_134 = arith.constant 0.000000e+00 : f32
    %328 = vector.broadcast %cst_134 : f32 to vector<64x128xf32>
    %329 = arith.maximumf %327, %328 : vector<64x128xf32>
    %330 = arith.truncf %329 : vector<64x128xf32> to vector<64x128xbf16>
    %c0_135 = arith.constant 0 : index
    %c0_136 = arith.constant 0 : index
    %331 = vector.load %arg10[%c0_135, %c0_136] : memref<128x128xbf16, #tpu.memory_space<vmem>>, vector<128x128xbf16>
    %cst_137 = arith.constant dense<0.000000e+00> : vector<64x128xf32>
    %332 = tpu.matmul %330, %331, %cst_137 {dimension_numbers = #tpu.dot_dimension_numbers<[1], [0], [0], [1], [0, 0, 1, 1], [], []>} : vector<64x128xbf16>, vector<128x128xbf16>, vector<64x128xf32> -> vector<64x128xf32>
    %c0_138 = arith.constant 0 : index
    %c0_139 = arith.constant 0 : index
    %333 = vector.load %arg11[%c0_138, %c0_139] : memref<1x128xf32, #tpu.memory_space<vmem>>, vector<1x128xf32>
    %334 = vector.broadcast %333 : vector<1x128xf32> to vector<64x128xf32>
    %335 = arith.addf %332, %334 : vector<64x128xf32>
    %c0_140 = arith.constant 0 : index
    %c0_141 = arith.constant 0 : index
    %336 = vector.load %arg12[%c0_140, %c0_141] : memref<64x128xf32, #tpu.memory_space<vmem>>, vector<64x128xf32>
    tpu.vector_store %arg12[%c0_140, %c0_141], %335 {strides = array<i32>} : memref<64x128xf32, #tpu.memory_space<vmem>>, vector<64x128xf32>,
    return
  }
  func.func @transform_0(%arg0: i32) -> (i32, i32, i32) {
    %c0_i32 = arith.constant 0 : i32
    %c0_i32_0 = arith.constant 0 : i32
    %c0_i32_1 = arith.constant 0 : i32
    return %c0_i32, %arg0, %c0_i32_0 : i32, i32, i32
  }
  func.func @transform_1(%arg0: i32) -> (i32, i32) {
    %c0_i32 = arith.constant 0 : i32
    %c0_i32_0 = arith.constant 0 : i32
    %c0_i32_1 = arith.constant 0 : i32
    return %c0_i32, %c0_i32_0 : i32, i32
  }
  func.func @transform_2(%arg0: i32) -> (i32, i32) {
    %c0_i32 = arith.constant 0 : i32
    %c0_i32_0 = arith.constant 0 : i32
    %c0_i32_1 = arith.constant 0 : i32
    return %c0_i32, %c0_i32_0 : i32, i32
  }
  func.func @transform_3(%arg0: i32) -> (i32, i32) {
    %c0_i32 = arith.constant 0 : i32
    %c0_i32_0 = arith.constant 0 : i32
    %c0_i32_1 = arith.constant 0 : i32
    return %c0_i32, %c0_i32_0 : i32, i32
  }
  func.func @transform_4(%arg0: i32) -> (i32, i32) {
    %c0_i32 = arith.constant 0 : i32
    %c0_i32_0 = arith.constant 0 : i32
    %c0_i32_1 = arith.constant 0 : i32
    return %c0_i32, %c0_i32_0 : i32, i32
  }
  func.func @transform_5(%arg0: i32) -> (i32, i32) {
    %c0_i32 = arith.constant 0 : i32
    %c0_i32_0 = arith.constant 0 : i32
    %c0_i32_1 = arith.constant 0 : i32
    return %c0_i32, %c0_i32_0 : i32, i32
  }
  func.func @transform_6(%arg0: i32) -> (i32, i32) {
    %c0_i32 = arith.constant 0 : i32
    %c0_i32_0 = arith.constant 0 : i32
    %c0_i32_1 = arith.constant 0 : i32
    return %c0_i32, %c0_i32_0 : i32, i32
  }
  func.func @transform_7(%arg0: i32) -> (i32, i32) {
    %c0_i32 = arith.constant 0 : i32
    %c0_i32_0 = arith.constant 0 : i32
    %c0_i32_1 = arith.constant 0 : i32
    return %c0_i32, %c0_i32_0 : i32, i32
  }
  func.func @transform_8(%arg0: i32) -> (i32, i32) {
    %c0_i32 = arith.constant 0 : i32
    %c0_i32_0 = arith.constant 0 : i32
    %c0_i32_1 = arith.constant 0 : i32
    return %c0_i32, %c0_i32_0 : i32, i32
  }
  func.func @transform_9(%arg0: i32) -> (i32, i32) {
    %c0_i32 = arith.constant 0 : i32
    %c0_i32_0 = arith.constant 0 : i32
    %c0_i32_1 = arith.constant 0 : i32
    return %c0_i32, %c0_i32_0 : i32, i32
  }
  func.func @transform_10(%arg0: i32) -> (i32, i32) {
    %c0_i32 = arith.constant 0 : i32
    %c0_i32_0 = arith.constant 0 : i32
    %c0_i32_1 = arith.constant 0 : i32
    return %c0_i32, %c0_i32_0 : i32, i32
  }
  func.func @transform_11(%arg0: i32) -> (i32, i32) {
    %c0_i32 = arith.constant 0 : i32
    %c0_i32_0 = arith.constant 0 : i32
    return %arg0, %c0_i32 : i32, i32
  }
}

</mosaic_0001>

<llo_original>
// kernel: lenet_forward.1
$region0: #{lenet_forward.1}
  #allocation0 [shape = 'u32[]', space=smem, size = 0x4, offset = 0x4, fixed_abs, tag = 'smem constant byte address 0x4 - core index']
  #allocation1 [shape = 'u32[144,128]{1,0:T(1,128)}', space=vmem, size = 0x12000, scoped, tag = 'internal scratch']
  %s0 = inlined_call_operand.vmem [shape: f32[28,64,128], index: 0, kind: input, shape index: {}]
  %s1 = inlined_call_operand.vmem [shape: f32[640,256], index: 1, kind: input, shape index: {}]
  %s2 = inlined_call_operand.vmem [shape: f32[1,128], index: 2, kind: input, shape index: {}]
  %s3 = inlined_call_operand.vmem [shape: bf16[640,256], index: 3, kind: input, shape index: {}]
  %s4 = inlined_call_operand.vmem [shape: f32[1,128], index: 4, kind: input, shape index: {}]
  %s5 = inlined_call_operand.hbm [shape: bf16[512,128], index: 5, kind: input, shape index: {}]
  %s6 = inlined_call_operand.vmem [shape: f32[1,128], index: 6, kind: input, shape index: {}]
  %s7 = inlined_call_operand.hbm [shape: bf16[128,128], index: 7, kind: input, shape index: {}]
  %s8 = inlined_call_operand.vmem [shape: f32[1,128], index: 8, kind: input, shape index: {}]
  %s9 = inlined_call_operand.hbm [shape: bf16[128,128], index: 9, kind: input, shape index: {}]
  %s10 = inlined_call_operand.vmem [shape: f32[1,128], index: 10, kind: input, shape index: {}]
  %s11 = inlined_call_operand.vmem [shape: f32[64,128], index: 11, kind: output, shape index: {}]
  %s12 = sld [smem:[#allocation0]]
  $region66: #{lenet_forward.1} parent=0
    _
  %s14 = ssub.s32 1, %s12
  %s15 = scalar_select 0, %s14, %s12
  $region1: #{lenet_forward.1} parent=0
    #allocation2 [shape = 'u8[131072]{0}', space=vmem, size = 0x20000, scoped, tag = 'input window, operand 5, single buffered']
    #allocation3 [shape = 's32[1]{0}', space=sflag, size = 0x4, scoped, tag = 'scoped memory for lenet_forward.1']
    #allocation4 [shape = 'u8[32768]{0}', space=vmem, size = 0x8000, scoped, tag = 'input window, operand 7, single buffered']
    #allocation5 [shape = 's32[1]{0}', space=sflag, size = 0x4, scoped, tag = 'scoped memory for lenet_forward.1']
    #allocation6 [shape = 'u8[32768]{0}', space=vmem, size = 0x8000, scoped, tag = 'input window, operand 9, single buffered']
    %16 = vsyncpa [#allocation3], 0
    %17 = vsyncpa [#allocation5], 0
    // Predicated region
    $region2: #{lenet_forward.1} parent=1 // pred_check
      _
    $region3: #{lenet_forward.1} parent=1 // pred_check_branch
      %19 = sbr.rel (0) target = $region5
    $region4: #{lenet_forward.1} parent=1 // pred_region
      _
    $region5: #{lenet_forward.1} parent=1 // pred_fallthru
      _
    // Predicated region
    $region6: #{lenet_forward.1} parent=1 // pred_check
      _
    $region7: #{lenet_forward.1} parent=1 // pred_check_branch
      %21 = sbr.rel (0) target = $region9
    $region8: #{lenet_forward.1} parent=1 // pred_region
      _
    $region9: #{lenet_forward.1} parent=1 // pred_fallthru
      _
    // Predicated region
    $region10: #{lenet_forward.1} parent=1 // pred_check
      _
    $region11: #{lenet_forward.1} parent=1 // pred_check_branch
      %23 = sbr.rel (0) target = $region13
    $region12: #{lenet_forward.1} parent=1 // pred_region
      _
    $region13: #{lenet_forward.1} parent=1 // pred_fallthru
      _
    // Predicated region
    $region14: #{lenet_forward.1} parent=1 // pred_check
      _
    $region15: #{lenet_forward.1} parent=1 // pred_check_branch
      %25 = sbr.rel (0) target = $region17
    $region16: #{lenet_forward.1} parent=1 // pred_region
      _
    $region17: #{lenet_forward.1} parent=1 // pred_fallthru
      _
    // Predicated region
    $region18: #{lenet_forward.1} parent=1 // pred_check
      _
    $region19: #{lenet_forward.1} parent=1 // pred_check_branch
      %27 = sbr.rel (0) target = $region21
    $region20: #{lenet_forward.1} parent=1 // pred_region
      _
    $region21: #{lenet_forward.1} parent=1 // pred_fallthru
      _
    // Predicated region
    $region22: #{lenet_forward.1} parent=1 // pred_check
      _
    $region23: #{lenet_forward.1} parent=1 // pred_check_branch
      %29 = sbr.rel (0) target = $region25
    $region24: #{lenet_forward.1} parent=1 // pred_region
      %s31 = ssub.s32 4096, 4096
      %32 = vsyncadd [#allocation3], %s31
      %s33 = sshll.u32 [#allocation2], 4
      %s34 = int_to_ptr.vmem [resolvable:$true] %s33
      %39 = dma.hbm_to_vmem [thread:$0]  %s5, 4096, %s34, [#allocation3], 64, 64, 4
    $region25: #{lenet_forward.1} parent=1 // pred_fallthru
      _
    // Predicated region
    $region26: #{lenet_forward.1} parent=1 // pred_check
      _
    $region27: #{lenet_forward.1} parent=1 // pred_check_branch
      %41 = sbr.rel (0) target = $region29
    $region28: #{lenet_forward.1} parent=1 // pred_region
      _
    $region29: #{lenet_forward.1} parent=1 // pred_fallthru
      _
    // Predicated region
    $region30: #{lenet_forward.1} parent=1 // pred_check
      _
    $region31: #{lenet_forward.1} parent=1 // pred_check_branch
      %43 = sbr.rel (0) target = $region33
    $region32: #{lenet_forward.1} parent=1 // pred_region
      %s45 = ssub.s32 1024, 1024
      %46 = vsyncadd [#allocation5], %s45
      %s47 = sshll.u32 [#allocation4], 4
      %s48 = int_to_ptr.vmem [resolvable:$true] %s47
      %53 = dma.hbm_to_vmem [thread:$0]  %s7, 1024, %s48, [#allocation5], 64, 64, 4
    $region33: #{lenet_forward.1} parent=1 // pred_fallthru
      _
    // Predicated region
    $region34: #{lenet_forward.1} parent=1 // pred_check
      _
    $region35: #{lenet_forward.1} parent=1 // pred_check_branch
      %55 = sbr.rel (0) target = $region37
    $region36: #{lenet_forward.1} parent=1 // pred_region
      _
    $region37: #{lenet_forward.1} parent=1 // pred_fallthru
      _
    // Predicated region
    $region38: #{lenet_forward.1} parent=1 // pred_check
      _
    $region39: #{lenet_forward.1} parent=1 // pred_check_branch
      %57 = sbr.rel (0) target = $region41
    $region40: #{lenet_forward.1} parent=1 // pred_region
      %s59 = ssub.s32 1024, 1024
      %60 = vsyncadd [#allocation5], %s59
      %s61 = sshll.u32 [#allocation6], 4
      %s62 = int_to_ptr.vmem [resolvable:$true] %s61
      %67 = dma.hbm_to_vmem [thread:$0]  %s9, 1024, %s62, [#allocation5], 64, 64, 4
    $region41: #{lenet_forward.1} parent=1 // pred_fallthru
      _
    // Predicated region
    $region42: #{lenet_forward.1} parent=1 // pred_check
      _
    $region43: #{lenet_forward.1} parent=1 // pred_check_branch
      %69 = sbr.rel (0) target = $region45
    $region44: #{lenet_forward.1} parent=1 // pred_region
      _
    $region45: #{lenet_forward.1} parent=1 // pred_fallthru
      _
    // Predicated region
    $region46: #{lenet_forward.1} parent=1 // pred_check
      _
    $region47: #{lenet_forward.1} parent=1 // pred_check_branch
      %71 = sbr.rel (0) target = $region49
    $region48: #{lenet_forward.1} parent=1 // pred_region
      %72 = dma.done [#allocation3], 4096
    $region49: #{lenet_forward.1} parent=1 // pred_fallthru
      _
    // Predicated region
    $region50: #{lenet_forward.1} parent=1 // pred_check
      _
    $region51: #{lenet_forward.1} parent=1 // pred_check_branch
      %74 = sbr.rel (0) target = $region53
    $region52: #{lenet_forward.1} parent=1 // pred_region
      %75 = dma.done [#allocation5], 1024
    $region53: #{lenet_forward.1} parent=1 // pred_fallthru
      _
    // Predicated region
    $region54: #{lenet_forward.1} parent=1 // pred_check
      _
    $region55: #{lenet_forward.1} parent=1 // pred_check_branch
      %77 = sbr.rel (0) target = $region57
    $region56: #{lenet_forward.1} parent=1 // pred_region
      %78 = dma.done [#allocation5], 1024
    $region57: #{lenet_forward.1} parent=1 // pred_fallthru
      _
    %v80 = vld [vmem:[%s1] sm:$0xff]
    %v81 = vld [vmem:[%s1 + $0x8] sm:$0xff]
    %v82 = vld [vmem:[%s1 + $0x10] sm:$0xff]
    %v83 = vld [vmem:[%s1 + $0x18] sm:$0xff]
    %v84 = vld [vmem:[%s1 + $0x20] sm:$0xff]
    %v85 = vld [vmem:[%s1 + $0x28] sm:$0xff]
    %v86 = vld [vmem:[%s1 + $0x30] sm:$0xff]
    %v87 = vld [vmem:[%s1 + $0x38] sm:$0xff]
    %v88 = vld [vmem:[%s1 + $0x40] sm:$0xff]
    %v89 = vld [vmem:[%s1 + $0x48] sm:$0xff]
    %v90 = vld [vmem:[%s1 + $0x50] sm:$0xff]
    %v91 = vld [vmem:[%s1 + $0x58] sm:$0xff]
    %v92 = vld [vmem:[%s1 + $0x60] sm:$0xff]
    %v93 = vld [vmem:[%s1 + $0x68] sm:$0xff]
    %v94 = vld [vmem:[%s1 + $0x70] sm:$0xff]
    %v95 = vld [vmem:[%s1 + $0x78] sm:$0xff]
    %v96 = vld [vmem:[%s1 + $0x80] sm:$0xff]
    %v97 = vld [vmem:[%s1 + $0x88] sm:$0xff]
    %v98 = vld [vmem:[%s1 + $0x90] sm:$0xff]
    %v99 = vld [vmem:[%s1 + $0x98] sm:$0xff]
    %v100 = vld [vmem:[%s1 + $0xa0] sm:$0xff]
    %v101 = vld [vmem:[%s1 + $0xa8] sm:$0xff]
    %v102 = vld [vmem:[%s1 + $0xb0] sm:$0xff]
    %v103 = vld [vmem:[%s1 + $0xb8] sm:$0xff]
    %v104 = vld [vmem:[%s1 + $0xc0] sm:$0xff]
    %v105 = vld [vmem:[%s1 + $0xc8] sm:$0xff]
    %v106 = vld [vmem:[%s1 + $0xd0] sm:$0xff]
    %v107 = vld [vmem:[%s1 + $0xd8] sm:$0xff]
    %v108 = vld [vmem:[%s1 + $0xe0] sm:$0xff]
    %v109 = vld [vmem:[%s1 + $0xe8] sm:$0xff]
    %v110 = vld [vmem:[%s1 + $0xf0] sm:$0xff]
    %v111 = vld [vmem:[%s1 + $0xf8] sm:$0xff]
    %v112 = vld [vmem:[%s1 + $0x100] sm:$0xff]
    %v113 = vld [vmem:[%s1 + $0x108] sm:$0xff]
    %v114 = vld [vmem:[%s1 + $0x110] sm:$0xff]
    %v115 = vld [vmem:[%s1 + $0x118] sm:$0xff]
    %v116 = vld [vmem:[%s1 + $0x120] sm:$0xff]
    %v117 = vld [vmem:[%s1 + $0x128] sm:$0xff]
    %v118 = vld [vmem:[%s1 + $0x130] sm:$0xff]
    %v119 = vld [vmem:[%s1 + $0x138] sm:$0xff]
    %v120 = vld [vmem:[%s1 + $0x140] sm:$0xff]
    %v121 = vld [vmem:[%s1 + $0x148] sm:$0xff]
    %v122 = vld [vmem:[%s1 + $0x150] sm:$0xff]
    %v123 = vld [vmem:[%s1 + $0x158] sm:$0xff]
    %v124 = vld [vmem:[%s1 + $0x160] sm:$0xff]
    %v125 = vld [vmem:[%s1 + $0x168] sm:$0xff]
    %v126 = vld [vmem:[%s1 + $0x170] sm:$0xff]
    %v127 = vld [vmem:[%s1 + $0x178] sm:$0xff]
    %v128 = vld [vmem:[%s1 + $0x180] sm:$0xff]
    %v129 = vld [vmem:[%s1 + $0x188] sm:$0xff]
    %v130 = vld [vmem:[%s1 + $0x190] sm:$0xff]
    %v131 = vld [vmem:[%s1 + $0x198] sm:$0xff]
    %v132 = vld [vmem:[%s1 + $0x1a0] sm:$0xff]
    %v133 = vld [vmem:[%s1 + $0x1a8] sm:$0xff]
    %v134 = vld [vmem:[%s1 + $0x1b0] sm:$0xff]
    %v135 = vld [vmem:[%s1 + $0x1b8] sm:$0xff]
    %v136 = vld [vmem:[%s1 + $0x1c0] sm:$0xff]
    %v137 = vld [vmem:[%s1 + $0x1c8] sm:$0xff]
    %v138 = vld [vmem:[%s1 + $0x1d0] sm:$0xff]
    %v139 = vld [vmem:[%s1 + $0x1d8] sm:$0xff]
    %v140 = vld [vmem:[%s1 + $0x1e0] sm:$0xff]
    %v141 = vld [vmem:[%s1 + $0x1e8] sm:$0xff]
    %v142 = vld [vmem:[%s1 + $0x1f0] sm:$0xff]
    %v143 = vld [vmem:[%s1 + $0x1f8] sm:$0xff]
    %v144 = vld [vmem:[%s1 + $0x200] sm:$0xff]
    %v145 = vld [vmem:[%s1 + $0x208] sm:$0xff]
    %v146 = vld [vmem:[%s1 + $0x210] sm:$0xff]
    %v147 = vld [vmem:[%s1 + $0x218] sm:$0xff]
    %v148 = vld [vmem:[%s1 + $0x220] sm:$0xff]
    %v149 = vld [vmem:[%s1 + $0x228] sm:$0xff]
    %v150 = vld [vmem:[%s1 + $0x230] sm:$0xff]
    %v151 = vld [vmem:[%s1 + $0x238] sm:$0xff]
    %v152 = vld [vmem:[%s1 + $0x240] sm:$0xff]
    %v153 = vld [vmem:[%s1 + $0x248] sm:$0xff]
    %v154 = vld [vmem:[%s1 + $0x250] sm:$0xff]
    %v155 = vld [vmem:[%s1 + $0x258] sm:$0xff]
    %v156 = vld [vmem:[%s1 + $0x260] sm:$0xff]
    %v157 = vld [vmem:[%s1 + $0x268] sm:$0xff]
    %v158 = vld [vmem:[%s1 + $0x270] sm:$0xff]
    %v159 = vld [vmem:[%s1 + $0x278] sm:$0xff]
    %v160 = vld [vmem:[%s1 + $0x280] sm:$0xff]
    %v161 = vld [vmem:[%s1 + $0x288] sm:$0xff]
    %v162 = vld [vmem:[%s1 + $0x290] sm:$0xff]
    %v163 = vld [vmem:[%s1 + $0x298] sm:$0xff]
    %v164 = vld [vmem:[%s1 + $0x2a0] sm:$0xff]
    %v165 = vld [vmem:[%s1 + $0x2a8] sm:$0xff]
    %v166 = vld [vmem:[%s1 + $0x2b0] sm:$0xff]
    %v167 = vld [vmem:[%s1 + $0x2b8] sm:$0xff]
    %v168 = vld [vmem:[%s1 + $0x2c0] sm:$0xff]
    %v169 = vld [vmem:[%s1 + $0x2c8] sm:$0xff]
    %v170 = vld [vmem:[%s1 + $0x2d0] sm:$0xff]
    %v171 = vld [vmem:[%s1 + $0x2d8] sm:$0xff]
    %v172 = vld [vmem:[%s1 + $0x2e0] sm:$0xff]
    %v173 = vld [vmem:[%s1 + $0x2e8] sm:$0xff]
    %v174 = vld [vmem:[%s1 + $0x2f0] sm:$0xff]
    %v175 = vld [vmem:[%s1 + $0x2f8] sm:$0xff]
    %v176 = vld [vmem:[%s1 + $0x300] sm:$0xff]
    %v177 = vld [vmem:[%s1 + $0x308] sm:$0xff]
    %v178 = vld [vmem:[%s1 + $0x310] sm:$0xff]
    %v179 = vld [vmem:[%s1 + $0x318] sm:$0xff]
    %v180 = vld [vmem:[%s1 + $0x320] sm:$0xff]
    %v181 = vld [vmem:[%s1 + $0x328] sm:$0xff]
    %v182 = vld [vmem:[%s1 + $0x330] sm:$0xff]
    %v183 = vld [vmem:[%s1 + $0x338] sm:$0xff]
    %v184 = vld [vmem:[%s1 + $0x340] sm:$0xff]
    %v185 = vld [vmem:[%s1 + $0x348] sm:$0xff]
    %v186 = vld [vmem:[%s1 + $0x350] sm:$0xff]
    %v187 = vld [vmem:[%s1 + $0x358] sm:$0xff]
    %v188 = vld [vmem:[%s1 + $0x360] sm:$0xff]
    %v189 = vld [vmem:[%s1 + $0x368] sm:$0xff]
    %v190 = vld [vmem:[%s1 + $0x370] sm:$0xff]
    %v191 = vld [vmem:[%s1 + $0x378] sm:$0xff]
    %v192 = vld [vmem:[%s1 + $0x380] sm:$0xff]
    %v193 = vld [vmem:[%s1 + $0x388] sm:$0xff]
    %v194 = vld [vmem:[%s1 + $0x390] sm:$0xff]
    %v195 = vld [vmem:[%s1 + $0x398] sm:$0xff]
    %v196 = vld [vmem:[%s1 + $0x3a0] sm:$0xff]
    %v197 = vld [vmem:[%s1 + $0x3a8] sm:$0xff]
    %v198 = vld [vmem:[%s1 + $0x3b0] sm:$0xff]
    %v199 = vld [vmem:[%s1 + $0x3b8] sm:$0xff]
    %v200 = vld [vmem:[%s1 + $0x3c0] sm:$0xff]
    %v201 = vld [vmem:[%s1 + $0x3c8] sm:$0xff]
    %v202 = vld [vmem:[%s1 + $0x3d0] sm:$0xff]
    %v203 = vld [vmem:[%s1 + $0x3d8] sm:$0xff]
    %v204 = vld [vmem:[%s1 + $0x3e0] sm:$0xff]
    %v205 = vld [vmem:[%s1 + $0x3e8] sm:$0xff]
    %v206 = vld [vmem:[%s1 + $0x3f0] sm:$0xff]
    %v207 = vld [vmem:[%s1 + $0x3f8] sm:$0xff]
    %v208 = vld [vmem:[%s1 + $0x400] sm:$0xff]
    %v209 = vld [vmem:[%s1 + $0x408] sm:$0xff]
    %v210 = vld [vmem:[%s1 + $0x410] sm:$0xff]
    %v211 = vld [vmem:[%s1 + $0x418] sm:$0xff]
    %v212 = vld [vmem:[%s1 + $0x420] sm:$0xff]
    %v213 = vld [vmem:[%s1 + $0x428] sm:$0xff]
    %v214 = vld [vmem:[%s1 + $0x430] sm:$0xff]
    %v215 = vld [vmem:[%s1 + $0x438] sm:$0xff]
    %v216 = vld [vmem:[%s1 + $0x440] sm:$0xff]
    %v217 = vld [vmem:[%s1 + $0x448] sm:$0xff]
    %v218 = vld [vmem:[%s1 + $0x450] sm:$0xff]
    %v219 = vld [vmem:[%s1 + $0x458] sm:$0xff]
    %v220 = vld [vmem:[%s1 + $0x460] sm:$0xff]
    %v221 = vld [vmem:[%s1 + $0x468] sm:$0xff]
    %v222 = vld [vmem:[%s1 + $0x470] sm:$0xff]
    %v223 = vld [vmem:[%s1 + $0x478] sm:$0xff]
    %v224 = vld [vmem:[%s1 + $0x480] sm:$0xff]
    %v225 = vld [vmem:[%s1 + $0x488] sm:$0xff]
    %v226 = vld [vmem:[%s1 + $0x490] sm:$0xff]
    %v227 = vld [vmem:[%s1 + $0x498] sm:$0xff]
    %v228 = vld [vmem:[%s1 + $0x4a0] sm:$0xff]
    %v229 = vld [vmem:[%s1 + $0x4a8] sm:$0xff]
    %v230 = vld [vmem:[%s1 + $0x4b0] sm:$0xff]
    %v231 = vld [vmem:[%s1 + $0x4b8] sm:$0xff]
    %v232 = vld [vmem:[%s1 + $0x4c0] sm:$0xff]
    %v233 = vld [vmem:[%s1 + $0x4c8] sm:$0xff]
    %v234 = vld [vmem:[%s1 + $0x4d0] sm:$0xff]
    %v235 = vld [vmem:[%s1 + $0x4d8] sm:$0xff]
    %v236 = vld [vmem:[%s1 + $0x4e0] sm:$0xff]
    %v237 = vld [vmem:[%s1 + $0x4e8] sm:$0xff]
    %v238 = vld [vmem:[%s1 + $0x4f0] sm:$0xff]
    %v239 = vld [vmem:[%s1 + $0x4f8] sm:$0xff]
    %v240 = vld [vmem:[%s0] sm:$0xff]
    %v241 = vld [vmem:[%s0 + $0x8] sm:$0xff]
    %v242 = vld [vmem:[%s0 + $0x10] sm:$0xff]
    %v243 = vld [vmem:[%s0 + $0x18] sm:$0xff]
    %v244 = vld [vmem:[%s0 + $0x20] sm:$0xff]
    %v245 = vld [vmem:[%s0 + $0x28] sm:$0xff]
    %v246 = vld [vmem:[%s0 + $0x30] sm:$0xff]
    %v247 = vld [vmem:[%s0 + $0x38] sm:$0xff]
    %s248 = scalar_lea.vmem %s0, 64
    %v249 = vld [vmem:[%s248] sm:$0xff]
    %v250 = vld [vmem:[%s248 + $0x8] sm:$0xff]
    %v251 = vld [vmem:[%s248 + $0x10] sm:$0xff]
    %v252 = vld [vmem:[%s248 + $0x18] sm:$0xff]
    %v253 = vld [vmem:[%s248 + $0x20] sm:$0xff]
    %v254 = vld [vmem:[%s248 + $0x28] sm:$0xff]
    %v255 = vld [vmem:[%s248 + $0x30] sm:$0xff]
    %v256 = vld [vmem:[%s248 + $0x38] sm:$0xff]
    %s257 = scalar_lea.vmem %s0, 128
    %v258 = vld [vmem:[%s257] sm:$0xff]
    %v259 = vld [vmem:[%s257 + $0x8] sm:$0xff]
    %v260 = vld [vmem:[%s257 + $0x10] sm:$0xff]
    %v261 = vld [vmem:[%s257 + $0x18] sm:$0xff]
    %v262 = vld [vmem:[%s257 + $0x20] sm:$0xff]
    %v263 = vld [vmem:[%s257 + $0x28] sm:$0xff]
    %v264 = vld [vmem:[%s257 + $0x30] sm:$0xff]
    %v265 = vld [vmem:[%s257 + $0x38] sm:$0xff]
    %s266 = scalar_lea.vmem %s0, 192
    %v267 = vld [vmem:[%s266] sm:$0xff]
    %v268 = vld [vmem:[%s266 + $0x8] sm:$0xff]
    %v269 = vld [vmem:[%s266 + $0x10] sm:$0xff]
    %v270 = vld [vmem:[%s266 + $0x18] sm:$0xff]
    %v271 = vld [vmem:[%s266 + $0x20] sm:$0xff]
    %v272 = vld [vmem:[%s266 + $0x28] sm:$0xff]
    %v273 = vld [vmem:[%s266 + $0x30] sm:$0xff]
    %v274 = vld [vmem:[%s266 + $0x38] sm:$0xff]
    %s275 = scalar_lea.vmem %s0, 256
    %v276 = vld [vmem:[%s275] sm:$0xff]
    %v277 = vld [vmem:[%s275 + $0x8] sm:$0xff]
    %v278 = vld [vmem:[%s275 + $0x10] sm:$0xff]
    %v279 = vld [vmem:[%s275 + $0x18] sm:$0xff]
    %v280 = vld [vmem:[%s275 + $0x20] sm:$0xff]
    %v281 = vld [vmem:[%s275 + $0x28] sm:$0xff]
    %v282 = vld [vmem:[%s275 + $0x30] sm:$0xff]
    %v283 = vld [vmem:[%s275 + $0x38] sm:$0xff]
    %s284 = scalar_lea.vmem %s0, 320
    %v285 = vld [vmem:[%s284] sm:$0xff]
    %v286 = vld [vmem:[%s284 + $0x8] sm:$0xff]
    %v287 = vld [vmem:[%s284 + $0x10] sm:$0xff]
    %v288 = vld [vmem:[%s284 + $0x18] sm:$0xff]
    %v289 = vld [vmem:[%s284 + $0x20] sm:$0xff]
    %v290 = vld [vmem:[%s284 + $0x28] sm:$0xff]
    %v291 = vld [vmem:[%s284 + $0x30] sm:$0xff]
    %v292 = vld [vmem:[%s284 + $0x38] sm:$0xff]
    %s293 = scalar_lea.vmem %s0, 384
    %v294 = vld [vmem:[%s293] sm:$0xff]
    %v295 = vld [vmem:[%s293 + $0x8] sm:$0xff]
    %v296 = vld [vmem:[%s293 + $0x10] sm:$0xff]
    %v297 = vld [vmem:[%s293 + $0x18] sm:$0xff]
    %v298 = vld [vmem:[%s293 + $0x20] sm:$0xff]
    %v299 = vld [vmem:[%s293 + $0x28] sm:$0xff]
    %v300 = vld [vmem:[%s293 + $0x30] sm:$0xff]
    %v301 = vld [vmem:[%s293 + $0x38] sm:$0xff]
    %s302 = scalar_lea.vmem %s0, 448
    %v303 = vld [vmem:[%s302] sm:$0xff]
    %v304 = vld [vmem:[%s302 + $0x8] sm:$0xff]
    %v305 = vld [vmem:[%s302 + $0x10] sm:$0xff]
    %v306 = vld [vmem:[%s302 + $0x18] sm:$0xff]
    %v307 = vld [vmem:[%s302 + $0x20] sm:$0xff]
    %v308 = vld [vmem:[%s302 + $0x28] sm:$0xff]
    %v309 = vld [vmem:[%s302 + $0x30] sm:$0xff]
    %v310 = vld [vmem:[%s302 + $0x38] sm:$0xff]
    %s311 = scalar_lea.vmem %s0, 512
    %v312 = vld [vmem:[%s311] sm:$0xff]
    %v313 = vld [vmem:[%s311 + $0x8] sm:$0xff]
    %v314 = vld [vmem:[%s311 + $0x10] sm:$0xff]
    %v315 = vld [vmem:[%s311 + $0x18] sm:$0xff]
    %v316 = vld [vmem:[%s311 + $0x20] sm:$0xff]
    %v317 = vld [vmem:[%s311 + $0x28] sm:$0xff]
    %v318 = vld [vmem:[%s311 + $0x30] sm:$0xff]
    %v319 = vld [vmem:[%s311 + $0x38] sm:$0xff]
    %s320 = scalar_lea.vmem %s0, 576
    %v321 = vld [vmem:[%s320] sm:$0xff]
    %v322 = vld [vmem:[%s320 + $0x8] sm:$0xff]
    %v323 = vld [vmem:[%s320 + $0x10] sm:$0xff]
    %v324 = vld [vmem:[%s320 + $0x18] sm:$0xff]
    %v325 = vld [vmem:[%s320 + $0x20] sm:$0xff]
    %v326 = vld [vmem:[%s320 + $0x28] sm:$0xff]
    %v327 = vld [vmem:[%s320 + $0x30] sm:$0xff]
    %v328 = vld [vmem:[%s320 + $0x38] sm:$0xff]
    %s329 = scalar_lea.vmem %s0, 640
    %v330 = vld [vmem:[%s329] sm:$0xff]
    %v331 = vld [vmem:[%s329 + $0x8] sm:$0xff]
    %v332 = vld [vmem:[%s329 + $0x10] sm:$0xff]
    %v333 = vld [vmem:[%s329 + $0x18] sm:$0xff]
    %v334 = vld [vmem:[%s329 + $0x20] sm:$0xff]
    %v335 = vld [vmem:[%s329 + $0x28] sm:$0xff]
    %v336 = vld [vmem:[%s329 + $0x30] sm:$0xff]
    %v337 = vld [vmem:[%s329 + $0x38] sm:$0xff]
    %s338 = scalar_lea.vmem %s0, 704
    %v339 = vld [vmem:[%s338] sm:$0xff]
    %v340 = vld [vmem:[%s338 + $0x8] sm:$0xff]
    %v341 = vld [vmem:[%s338 + $0x10] sm:$0xff]
    %v342 = vld [vmem:[%s338 + $0x18] sm:$0xff]
    %v343 = vld [vmem:[%s338 + $0x20] sm:$0xff]
    %v344 = vld [vmem:[%s338 + $0x28] sm:$0xff]
    %v345 = vld [vmem:[%s338 + $0x30] sm:$0xff]
    %v346 = vld [vmem:[%s338 + $0x38] sm:$0xff]
    %s347 = scalar_lea.vmem %s0, 768
    %v348 = vld [vmem:[%s347] sm:$0xff]
    %v349 = vld [vmem:[%s347 + $0x8] sm:$0xff]
    %v350 = vld [vmem:[%s347 + $0x10] sm:$0xff]
    %v351 = vld [vmem:[%s347 + $0x18] sm:$0xff]
    %v352 = vld [vmem:[%s347 + $0x20] sm:$0xff]
    %v353 = vld [vmem:[%s347 + $0x28] sm:$0xff]
    %v354 = vld [vmem:[%s347 + $0x30] sm:$0xff]
    %v355 = vld [vmem:[%s347 + $0x38] sm:$0xff]
    %s356 = scalar_lea.vmem %s0, 832
    %v357 = vld [vmem:[%s356] sm:$0xff]
    %v358 = vld [vmem:[%s356 + $0x8] sm:$0xff]
    %v359 = vld [vmem:[%s356 + $0x10] sm:$0xff]
    %v360 = vld [vmem:[%s356 + $0x18] sm:$0xff]
    %v361 = vld [vmem:[%s356 + $0x20] sm:$0xff]
    %v362 = vld [vmem:[%s356 + $0x28] sm:$0xff]
    %v363 = vld [vmem:[%s356 + $0x30] sm:$0xff]
    %v364 = vld [vmem:[%s356 + $0x38] sm:$0xff]
    %s365 = scalar_lea.vmem %s0, 896
    %v366 = vld [vmem:[%s365] sm:$0xff]
    %v367 = vld [vmem:[%s365 + $0x8] sm:$0xff]
    %v368 = vld [vmem:[%s365 + $0x10] sm:$0xff]
    %v369 = vld [vmem:[%s365 + $0x18] sm:$0xff]
    %v370 = vld [vmem:[%s365 + $0x20] sm:$0xff]
    %v371 = vld [vmem:[%s365 + $0x28] sm:$0xff]
    %v372 = vld [vmem:[%s365 + $0x30] sm:$0xff]
    %v373 = vld [vmem:[%s365 + $0x38] sm:$0xff]
    %s374 = scalar_lea.vmem %s0, 960
    %v375 = vld [vmem:[%s374] sm:$0xff]
    %v376 = vld [vmem:[%s374 + $0x8] sm:$0xff]
    %v377 = vld [vmem:[%s374 + $0x10] sm:$0xff]
    %v378 = vld [vmem:[%s374 + $0x18] sm:$0xff]
    %v379 = vld [vmem:[%s374 + $0x20] sm:$0xff]
    %v380 = vld [vmem:[%s374 + $0x28] sm:$0xff]
    %v381 = vld [vmem:[%s374 + $0x30] sm:$0xff]
    %v382 = vld [vmem:[%s374 + $0x38] sm:$0xff]
    %s383 = scalar_lea.vmem %s0, 1024
    %v384 = vld [vmem:[%s383] sm:$0xff]
    %v385 = vld [vmem:[%s383 + $0x8] sm:$0xff]
    %v386 = vld [vmem:[%s383 + $0x10] sm:$0xff]
    %v387 = vld [vmem:[%s383 + $0x18] sm:$0xff]
    %v388 = vld [vmem:[%s383 + $0x20] sm:$0xff]
    %v389 = vld [vmem:[%s383 + $0x28] sm:$0xff]
    %v390 = vld [vmem:[%s383 + $0x30] sm:$0xff]
    %v391 = vld [vmem:[%s383 + $0x38] sm:$0xff]
    %s392 = scalar_lea.vmem %s0, 1088
    %v393 = vld [vmem:[%s392] sm:$0xff]
    %v394 = vld [vmem:[%s392 + $0x8] sm:$0xff]
    %v395 = vld [vmem:[%s392 + $0x10] sm:$0xff]
    %v396 = vld [vmem:[%s392 + $0x18] sm:$0xff]
    %v397 = vld [vmem:[%s392 + $0x20] sm:$0xff]
    %v398 = vld [vmem:[%s392 + $0x28] sm:$0xff]
    %v399 = vld [vmem:[%s392 + $0x30] sm:$0xff]
    %v400 = vld [vmem:[%s392 + $0x38] sm:$0xff]
    %s401 = scalar_lea.vmem %s0, 1152
    %v402 = vld [vmem:[%s401] sm:$0xff]
    %v403 = vld [vmem:[%s401 + $0x8] sm:$0xff]
    %v404 = vld [vmem:[%s401 + $0x10] sm:$0xff]
    %v405 = vld [vmem:[%s401 + $0x18] sm:$0xff]
    %v406 = vld [vmem:[%s401 + $0x20] sm:$0xff]
    %v407 = vld [vmem:[%s401 + $0x28] sm:$0xff]
    %v408 = vld [vmem:[%s401 + $0x30] sm:$0xff]
    %v409 = vld [vmem:[%s401 + $0x38] sm:$0xff]
    %s410 = scalar_lea.vmem %s0, 1216
    %v411 = vld [vmem:[%s410] sm:$0xff]
    %v412 = vld [vmem:[%s410 + $0x8] sm:$0xff]
    %v413 = vld [vmem:[%s410 + $0x10] sm:$0xff]
    %v414 = vld [vmem:[%s410 + $0x18] sm:$0xff]
    %v415 = vld [vmem:[%s410 + $0x20] sm:$0xff]
    %v416 = vld [vmem:[%s410 + $0x28] sm:$0xff]
    %v417 = vld [vmem:[%s410 + $0x30] sm:$0xff]
    %v418 = vld [vmem:[%s410 + $0x38] sm:$0xff]
    %s419 = scalar_lea.vmem %s0, 1280
    %v420 = vld [vmem:[%s419] sm:$0xff]
    %v421 = vld [vmem:[%s419 + $0x8] sm:$0xff]
    %v422 = vld [vmem:[%s419 + $0x10] sm:$0xff]
    %v423 = vld [vmem:[%s419 + $0x18] sm:$0xff]
    %v424 = vld [vmem:[%s419 + $0x20] sm:$0xff]
    %v425 = vld [vmem:[%s419 + $0x28] sm:$0xff]
    %v426 = vld [vmem:[%s419 + $0x30] sm:$0xff]
    %v427 = vld [vmem:[%s419 + $0x38] sm:$0xff]
    %s428 = scalar_lea.vmem %s0, 1344
    %v429 = vld [vmem:[%s428] sm:$0xff]
    %v430 = vld [vmem:[%s428 + $0x8] sm:$0xff]
    %v431 = vld [vmem:[%s428 + $0x10] sm:$0xff]
    %v432 = vld [vmem:[%s428 + $0x18] sm:$0xff]
    %v433 = vld [vmem:[%s428 + $0x20] sm:$0xff]
    %v434 = vld [vmem:[%s428 + $0x28] sm:$0xff]
    %v435 = vld [vmem:[%s428 + $0x30] sm:$0xff]
    %v436 = vld [vmem:[%s428 + $0x38] sm:$0xff]
    %s437 = scalar_lea.vmem %s0, 1408
    %v438 = vld [vmem:[%s437] sm:$0xff]
    %v439 = vld [vmem:[%s437 + $0x8] sm:$0xff]
    %v440 = vld [vmem:[%s437 + $0x10] sm:$0xff]
    %v441 = vld [vmem:[%s437 + $0x18] sm:$0xff]
    %v442 = vld [vmem:[%s437 + $0x20] sm:$0xff]
    %v443 = vld [vmem:[%s437 + $0x28] sm:$0xff]
    %v444 = vld [vmem:[%s437 + $0x30] sm:$0xff]
    %v445 = vld [vmem:[%s437 + $0x38] sm:$0xff]
    %s446 = scalar_lea.vmem %s0, 1472
    %v447 = vld [vmem:[%s446] sm:$0xff]
    %v448 = vld [vmem:[%s446 + $0x8] sm:$0xff]
    %v449 = vld [vmem:[%s446 + $0x10] sm:$0xff]
    %v450 = vld [vmem:[%s446 + $0x18] sm:$0xff]
    %v451 = vld [vmem:[%s446 + $0x20] sm:$0xff]
    %v452 = vld [vmem:[%s446 + $0x28] sm:$0xff]
    %v453 = vld [vmem:[%s446 + $0x30] sm:$0xff]
    %v454 = vld [vmem:[%s446 + $0x38] sm:$0xff]
    %s455 = scalar_lea.vmem %s0, 1536
    %v456 = vld [vmem:[%s455] sm:$0xff]
    %v457 = vld [vmem:[%s455 + $0x8] sm:$0xff]
    %v458 = vld [vmem:[%s455 + $0x10] sm:$0xff]
    %v459 = vld [vmem:[%s455 + $0x18] sm:$0xff]
    %v460 = vld [vmem:[%s455 + $0x20] sm:$0xff]
    %v461 = vld [vmem:[%s455 + $0x28] sm:$0xff]
    %v462 = vld [vmem:[%s455 + $0x30] sm:$0xff]
    %v463 = vld [vmem:[%s455 + $0x38] sm:$0xff]
    %s464 = scalar_lea.vmem %s0, 1600
    %v465 = vld [vmem:[%s464] sm:$0xff]
    %v466 = vld [vmem:[%s464 + $0x8] sm:$0xff]
    %v467 = vld [vmem:[%s464 + $0x10] sm:$0xff]
    %v468 = vld [vmem:[%s464 + $0x18] sm:$0xff]
    %v469 = vld [vmem:[%s464 + $0x20] sm:$0xff]
    %v470 = vld [vmem:[%s464 + $0x28] sm:$0xff]
    %v471 = vld [vmem:[%s464 + $0x30] sm:$0xff]
    %v472 = vld [vmem:[%s464 + $0x38] sm:$0xff]
    %s473 = scalar_lea.vmem %s0, 1664
    %v474 = vld [vmem:[%s473] sm:$0xff]
    %v475 = vld [vmem:[%s473 + $0x8] sm:$0xff]
    %v476 = vld [vmem:[%s473 + $0x10] sm:$0xff]
    %v477 = vld [vmem:[%s473 + $0x18] sm:$0xff]
    %v478 = vld [vmem:[%s473 + $0x20] sm:$0xff]
    %v479 = vld [vmem:[%s473 + $0x28] sm:$0xff]
    %v480 = vld [vmem:[%s473 + $0x30] sm:$0xff]
    %v481 = vld [vmem:[%s473 + $0x38] sm:$0xff]
    %s482 = scalar_lea.vmem %s0, 1728
    %v483 = vld [vmem:[%s482] sm:$0xff]
    %v484 = vld [vmem:[%s482 + $0x8] sm:$0xff]
    %v485 = vld [vmem:[%s482 + $0x10] sm:$0xff]
    %v486 = vld [vmem:[%s482 + $0x18] sm:$0xff]
    %v487 = vld [vmem:[%s482 + $0x20] sm:$0xff]
    %v488 = vld [vmem:[%s482 + $0x28] sm:$0xff]
    %v489 = vld [vmem:[%s482 + $0x30] sm:$0xff]
    %v490 = vld [vmem:[%s482 + $0x38] sm:$0xff]
    %491 = vmatprep.subr.mxu0 %v111
    %492 = vmatpush1.msra.mxu0 %v110
    %493 = vmatprep.subr.mxu0 %v109
    %494 = vmatpush1.msra.mxu0 %v108
    %495 = vmatprep.subr.mxu0 %v107
    %496 = vmatpush1.msra.mxu0 %v106
    %497 = vmatprep.subr.mxu0 %v105
    %498 = vmatpush1.msra.mxu0 %v104
    %499 = vmatprep.subr.mxu0 %v103
    %500 = vmatpush1.msra.mxu0 %v102
    %501 = vmatprep.subr.mxu0 %v101
    %502 = vmatpush1.msra.mxu0 %v100
    %503 = vmatprep.subr.mxu0 %v99
    %504 = vmatpush1.msra.mxu0 %v98
    %505 = vmatprep.subr.mxu0 %v97
    %506 = vmatpush1.msra.mxu0 %v96
    %507 = vmatprep.subr.mxu0 %v95
    %508 = vmatpush1.msra.mxu0 %v94
    %509 = vmatprep.subr.mxu0 %v93
    %510 = vmatpush1.msra.mxu0 %v92
    %511 = vmatprep.subr.mxu0 %v91
    %512 = vmatpush1.msra.mxu0 %v90
    %513 = vmatprep.subr.mxu0 %v89
    %514 = vmatpush1.msra.mxu0 %v88
    %515 = vmatprep.subr.mxu0 %v87
    %516 = vmatpush1.msra.mxu0 %v86
    %517 = vmatprep.subr.mxu0 %v85
    %518 = vmatpush1.msra.mxu0 %v84
    %519 = vmatprep.subr.mxu0 %v83
    %520 = vmatpush1.msra.mxu0 %v82
    %521 = vmatprep.subr.mxu0 %v81
    %522 = vmatpush1.msra.mxu0 %v80
    %523 = vmatprep.subr.mxu0 %v143
    %524 = vmatpush2.msra.mxu0 %v142
    %525 = vmatprep.subr.mxu0 %v141
    %526 = vmatpush2.msra.mxu0 %v140
    %527 = vmatprep.subr.mxu0 %v139
    %528 = vmatpush2.msra.mxu0 %v138
    %529 = vmatprep.subr.mxu0 %v137
    %530 = vmatpush2.msra.mxu0 %v136
    %531 = vmatprep.subr.mxu0 %v135
    %532 = vmatpush2.msra.mxu0 %v134
    %533 = vmatprep.subr.mxu0 %v133
    %534 = vmatpush2.msra.mxu0 %v132
    %535 = vmatprep.subr.mxu0 %v131
    %536 = vmatpush2.msra.mxu0 %v130
    %537 = vmatprep.subr.mxu0 %v129
    %538 = vmatpush2.msra.mxu0 %v128
    %539 = vmatprep.subr.mxu0 %v127
    %540 = vmatpush2.msra.mxu0 %v126
    %541 = vmatprep.subr.mxu0 %v125
    %542 = vmatpush2.msra.mxu0 %v124
    %543 = vmatprep.subr.mxu0 %v123
    %544 = vmatpush2.msra.mxu0 %v122
    %545 = vmatprep.subr.mxu0 %v121
    %546 = vmatpush2.msra.mxu0 %v120
    %547 = vmatprep.subr.mxu0 %v119
    %548 = vmatpush2.msra.mxu0 %v118
    %549 = vmatprep.subr.mxu0 %v117
    %550 = vmatpush2.msra.mxu0 %v116
    %551 = vmatprep.subr.mxu0 %v115
    %552 = vmatpush2.msra.mxu0 %v114
    %553 = vmatprep.subr.mxu0 %v113
    %554 = vmatpush2.msra.mxu0 %v112
    %555 = vmatprep.mubr.f32.mxu0 %v249
    %556 = vmatmul.mubr.f32.gmra.mxu0 %v240
    %v557 = vpop.f32.mrf.mxu0
    %v558 = vadd.f32 0.0, %v557
    %v559 = vpop.f32.mrf.mxu0
    %v560 = vadd.f32 0.0, %v559
    %561 = vmatprep.mubr.f32.mxu0 %v250
    %562 = vmatmul.mubr.f32.gmra.mxu0 %v241
    %v563 = vpop.f32.mrf.mxu0
    %v564 = vadd.f32 0.0, %v563
    %v565 = vpop.f32.mrf.mxu0
    %v566 = vadd.f32 0.0, %v565
    %567 = vmatprep.mubr.f32.mxu0 %v251
    %568 = vmatmul.mubr.f32.gmra.mxu0 %v242
    %v569 = vpop.f32.mrf.mxu0
    %v570 = vadd.f32 0.0, %v569
    %v571 = vpop.f32.mrf.mxu0
    %v572 = vadd.f32 0.0, %v571
    %573 = vmatprep.mubr.f32.mxu0 %v252
    %574 = vmatmul.mubr.f32.gmra.mxu0 %v243
    %v575 = vpop.f32.mrf.mxu0
    %v576 = vadd.f32 0.0, %v575
    %v577 = vpop.f32.mrf.mxu0
    %v578 = vadd.f32 0.0, %v577
    %579 = vmatprep.mubr.f32.mxu0 %v253
    %580 = vmatmul.mubr.f32.gmra.mxu0 %v244
    %v581 = vpop.f32.mrf.mxu0
    %v582 = vadd.f32 0.0, %v581
    %v583 = vpop.f32.mrf.mxu0
    %v584 = vadd.f32 0.0, %v583
    %585 = vmatprep.mubr.f32.mxu0 %v254
    %586 = vmatmul.mubr.f32.gmra.mxu0 %v245
    %v587 = vpop.f32.mrf.mxu0
    %v588 = vadd.f32 0.0, %v587
    %v589 = vpop.f32.mrf.mxu0
    %v590 = vadd.f32 0.0, %v589
    %591 = vmatprep.mubr.f32.mxu0 %v255
    %592 = vmatmul.mubr.f32.gmra.mxu0 %v246
    %v593 = vpop.f32.mrf.mxu0
    %v594 = vadd.f32 0.0, %v593
    %v595 = vpop.f32.mrf.mxu0
    %v596 = vadd.f32 0.0, %v595
    %597 = vmatprep.mubr.f32.mxu0 %v256
    %598 = vmatmul.mubr.f32.gmra.mxu0 %v247
    %v599 = vpop.f32.mrf.mxu0
    %v600 = vadd.f32 0.0, %v599
    %v601 = vpop.f32.mrf.mxu0
    %v602 = vadd.f32 0.0, %v601
    %603 = vmatprep.mubr.f32.mxu0 %v258
    %604 = vmatmul.mubr.f32.gmra.mxu0 %v249
    %v605 = vpop.f32.mrf.mxu0
    %v606 = vadd.f32 0.0, %v605
    %v607 = vpop.f32.mrf.mxu0
    %v608 = vadd.f32 0.0, %v607
    %609 = vmatprep.mubr.f32.mxu0 %v259
    %610 = vmatmul.mubr.f32.gmra.mxu0 %v250
    %v611 = vpop.f32.mrf.mxu0
    %v612 = vadd.f32 0.0, %v611
    %v613 = vpop.f32.mrf.mxu0
    %v614 = vadd.f32 0.0, %v613
    %615 = vmatprep.mubr.f32.mxu0 %v260
    %616 = vmatmul.mubr.f32.gmra.mxu0 %v251
    %v617 = vpop.f32.mrf.mxu0
    %v618 = vadd.f32 0.0, %v617
    %v619 = vpop.f32.mrf.mxu0
    %v620 = vadd.f32 0.0, %v619
    %621 = vmatprep.mubr.f32.mxu0 %v261
    %622 = vmatmul.mubr.f32.gmra.mxu0 %v252
    %v623 = vpop.f32.mrf.mxu0
    %v624 = vadd.f32 0.0, %v623
    %v625 = vpop.f32.mrf.mxu0
    %v626 = vadd.f32 0.0, %v625
    %627 = vmatprep.mubr.f32.mxu0 %v262
    %628 = vmatmul.mubr.f32.gmra.mxu0 %v253
    %v629 = vpop.f32.mrf.mxu0
    %v630 = vadd.f32 0.0, %v629
    %v631 = vpop.f32.mrf.mxu0
    %v632 = vadd.f32 0.0, %v631
    %633 = vmatprep.mubr.f32.mxu0 %v263
    %634 = vmatmul.mubr.f32.gmra.mxu0 %v254
    %v635 = vpop.f32.mrf.mxu0
    %v636 = vadd.f32 0.0, %v635
    %v637 = vpop.f32.mrf.mxu0
    %v638 = vadd.f32 0.0, %v637
    %639 = vmatprep.mubr.f32.mxu0 %v264
    %640 = vmatmul.mubr.f32.gmra.mxu0 %v255
    %v641 = vpop.f32.mrf.mxu0
    %v642 = vadd.f32 0.0, %v641
    %v643 = vpop.f32.mrf.mxu0
    %v644 = vadd.f32 0.0, %v643
    %645 = vmatprep.mubr.f32.mxu0 %v265
    %646 = vmatmul.mubr.f32.gmra.mxu0 %v256
    %v647 = vpop.f32.mrf.mxu0
    %v648 = vadd.f32 0.0, %v647
    %v649 = vpop.f32.mrf.mxu0
    %v650 = vadd.f32 0.0, %v649
    %651 = vdwg.mxu0
    %652 = vmatprep.subr.mxu0 %v175
    %653 = vmatpush1.msra.mxu0 %v174
    %654 = vmatprep.subr.mxu0 %v173
    %655 = vmatpush1.msra.mxu0 %v172
    %656 = vmatprep.subr.mxu0 %v171
    %657 = vmatpush1.msra.mxu0 %v170
    %658 = vmatprep.subr.mxu0 %v169
    %659 = vmatpush1.msra.mxu0 %v168
    %660 = vmatprep.subr.mxu0 %v167
    %661 = vmatpush1.msra.mxu0 %v166
    %662 = vmatprep.subr.mxu0 %v165
    %663 = vmatpush1.msra.mxu0 %v164
    %664 = vmatprep.subr.mxu0 %v163
    %665 = vmatpush1.msra.mxu0 %v162
    %666 = vmatprep.subr.mxu0 %v161
    %667 = vmatpush1.msra.mxu0 %v160
    %668 = vmatprep.subr.mxu0 %v159
    %669 = vmatpush1.msra.mxu0 %v158
    %670 = vmatprep.subr.mxu0 %v157
    %671 = vmatpush1.msra.mxu0 %v156
    %672 = vmatprep.subr.mxu0 %v155
    %673 = vmatpush1.msra.mxu0 %v154
    %674 = vmatprep.subr.mxu0 %v153
    %675 = vmatpush1.msra.mxu0 %v152
    %676 = vmatprep.subr.mxu0 %v151
    %677 = vmatpush1.msra.mxu0 %v150
    %678 = vmatprep.subr.mxu0 %v149
    %679 = vmatpush1.msra.mxu0 %v148
    %680 = vmatprep.subr.mxu0 %v147
    %681 = vmatpush1.msra.mxu0 %v146
    %682 = vmatprep.subr.mxu0 %v145
    %683 = vmatpush1.msra.mxu0 %v144
    %684 = vmatprep.subr.mxu0 %v207
    %685 = vmatpush2.msra.mxu0 %v206
    %686 = vmatprep.subr.mxu0 %v205
    %687 = vmatpush2.msra.mxu0 %v204
    %688 = vmatprep.subr.mxu0 %v203
    %689 = vmatpush2.msra.mxu0 %v202
    %690 = vmatprep.subr.mxu0 %v201
    %691 = vmatpush2.msra.mxu0 %v200
    %692 = vmatprep.subr.mxu0 %v199
    %693 = vmatpush2.msra.mxu0 %v198
    %694 = vmatprep.subr.mxu0 %v197
    %695 = vmatpush2.msra.mxu0 %v196
    %696 = vmatprep.subr.mxu0 %v195
    %697 = vmatpush2.msra.mxu0 %v194
    %698 = vmatprep.subr.mxu0 %v193
    %699 = vmatpush2.msra.mxu0 %v192
    %700 = vmatprep.subr.mxu0 %v191
    %701 = vmatpush2.msra.mxu0 %v190
    %702 = vmatprep.subr.mxu0 %v189
    %703 = vmatpush2.msra.mxu0 %v188
    %704 = vmatprep.subr.mxu0 %v187
    %705 = vmatpush2.msra.mxu0 %v186
    %706 = vmatprep.subr.mxu0 %v185
    %707 = vmatpush2.msra.mxu0 %v184
    %708 = vmatprep.subr.mxu0 %v183
    %709 = vmatpush2.msra.mxu0 %v182
    %710 = vmatprep.subr.mxu0 %v181
    %711 = vmatpush2.msra.mxu0 %v180
    %712 = vmatprep.subr.mxu0 %v179
    %713 = vmatpush2.msra.mxu0 %v178
    %714 = vmatprep.subr.mxu0 %v177
    %715 = vmatpush2.msra.mxu0 %v176
    %716 = vmatprep.mubr.f32.mxu0 %v267
    %717 = vmatmul.mubr.f32.gmra.mxu0 %v258
    %v718 = vpop.f32.mrf.mxu0
    %v719 = vadd.f32 %v558, %v718
    %v720 = vpop.f32.mrf.mxu0
    %v721 = vadd.f32 %v560, %v720
    %722 = vmatprep.mubr.f32.mxu0 %v268
    %723 = vmatmul.mubr.f32.gmra.mxu0 %v259
    %v724 = vpop.f32.mrf.mxu0
    %v725 = vadd.f32 %v564, %v724
    %v726 = vpop.f32.mrf.mxu0
    %v727 = vadd.f32 %v566, %v726
    %728 = vmatprep.mubr.f32.mxu0 %v269
    %729 = vmatmul.mubr.f32.gmra.mxu0 %v260
    %v730 = vpop.f32.mrf.mxu0
    %v731 = vadd.f32 %v570, %v730
    %v732 = vpop.f32.mrf.mxu0
    %v733 = vadd.f32 %v572, %v732
    %734 = vmatprep.mubr.f32.mxu0 %v270
    %735 = vmatmul.mubr.f32.gmra.mxu0 %v261
    %v736 = vpop.f32.mrf.mxu0
    %v737 = vadd.f32 %v576, %v736
    %v738 = vpop.f32.mrf.mxu0
    %v739 = vadd.f32 %v578, %v738
    %740 = vmatprep.mubr.f32.mxu0 %v271
    %741 = vmatmul.mubr.f32.gmra.mxu0 %v262
    %v742 = vpop.f32.mrf.mxu0
    %v743 = vadd.f32 %v582, %v742
    %v744 = vpop.f32.mrf.mxu0
    %v745 = vadd.f32 %v584, %v744
    %746 = vmatprep.mubr.f32.mxu0 %v272
    %747 = vmatmul.mubr.f32.gmra.mxu0 %v263
    %v748 = vpop.f32.mrf.mxu0
    %v749 = vadd.f32 %v588, %v748
    %v750 = vpop.f32.mrf.mxu0
    %v751 = vadd.f32 %v590, %v750
    %752 = vmatprep.mubr.f32.mxu0 %v273
    %753 = vmatmul.mubr.f32.gmra.mxu0 %v264
    %v754 = vpop.f32.mrf.mxu0
    %v755 = vadd.f32 %v594, %v754
    %v756 = vpop.f32.mrf.mxu0
    %v757 = vadd.f32 %v596, %v756
    %758 = vmatprep.mubr.f32.mxu0 %v274
    %759 = vmatmul.mubr.f32.gmra.mxu0 %v265
    %v760 = vpop.f32.mrf.mxu0
    %v761 = vadd.f32 %v600, %v760
    %v762 = vpop.f32.mrf.mxu0
    %v763 = vadd.f32 %v602, %v762
    %764 = vmatprep.mubr.f32.mxu0 %v276
    %765 = vmatmul.mubr.f32.gmra.mxu0 %v267
    %v766 = vpop.f32.mrf.mxu0
    %v767 = vadd.f32 %v606, %v766
    %v768 = vpop.f32.mrf.mxu0
    %v769 = vadd.f32 %v608, %v768
    %770 = vmatprep.mubr.f32.mxu0 %v277
    %771 = vmatmul.mubr.f32.gmra.mxu0 %v268
    %v772 = vpop.f32.mrf.mxu0
    %v773 = vadd.f32 %v612, %v772
    %v774 = vpop.f32.mrf.mxu0
    %v775 = vadd.f32 %v614, %v774
    %776 = vmatprep.mubr.f32.mxu0 %v278
    %777 = vmatmul.mubr.f32.gmra.mxu0 %v269
    %v778 = vpop.f32.mrf.mxu0
    %v779 = vadd.f32 %v618, %v778
    %v780 = vpop.f32.mrf.mxu0
    %v781 = vadd.f32 %v620, %v780
    %782 = vmatprep.mubr.f32.mxu0 %v279
    %783 = vmatmul.mubr.f32.gmra.mxu0 %v270
    %v784 = vpop.f32.mrf.mxu0
    %v785 = vadd.f32 %v624, %v784
    %v786 = vpop.f32.mrf.mxu0
    %v787 = vadd.f32 %v626, %v786
    %788 = vmatprep.mubr.f32.mxu0 %v280
    %789 = vmatmul.mubr.f32.gmra.mxu0 %v271
    %v790 = vpop.f32.mrf.mxu0
    %v791 = vadd.f32 %v630, %v790
    %v792 = vpop.f32.mrf.mxu0
    %v793 = vadd.f32 %v632, %v792
    %794 = vmatprep.mubr.f32.mxu0 %v281
    %795 = vmatmul.mubr.f32.gmra.mxu0 %v272
    %v796 = vpop.f32.mrf.mxu0
    %v797 = vadd.f32 %v636, %v796
    %v798 = vpop.f32.mrf.mxu0
    %v799 = vadd.f32 %v638, %v798
    %800 = vmatprep.mubr.f32.mxu0 %v282
    %801 = vmatmul.mubr.f32.gmra.mxu0 %v273
    %v802 = vpop.f32.mrf.mxu0
    %v803 = vadd.f32 %v642, %v802
    %v804 = vpop.f32.mrf.mxu0
    %v805 = vadd.f32 %v644, %v804
    %806 = vmatprep.mubr.f32.mxu0 %v283
    %807 = vmatmul.mubr.f32.gmra.mxu0 %v274
    %v808 = vpop.f32.mrf.mxu0
    %v809 = vadd.f32 %v648, %v808
    %v810 = vpop.f32.mrf.mxu0
    %v811 = vadd.f32 %v650, %v810
    %812 = vdwg.mxu0
    %813 = vmatprep.subr.mxu0 %v239
    %814 = vmatpush1.msra.mxu0 %v238
    %815 = vmatprep.subr.mxu0 %v237
    %816 = vmatpush1.msra.mxu0 %v236
    %817 = vmatprep.subr.mxu0 %v235
    %818 = vmatpush1.msra.mxu0 %v234
    %819 = vmatprep.subr.mxu0 %v233
    %820 = vmatpush1.msra.mxu0 %v232
    %821 = vmatprep.subr.mxu0 %v231
    %822 = vmatpush1.msra.mxu0 %v230
    %823 = vmatprep.subr.mxu0 %v229
    %824 = vmatpush1.msra.mxu0 %v228
    %825 = vmatprep.subr.mxu0 %v227
    %826 = vmatpush1.msra.mxu0 %v226
    %827 = vmatprep.subr.mxu0 %v225
    %828 = vmatpush1.msra.mxu0 %v224
    %829 = vmatprep.subr.mxu0 %v223
    %830 = vmatpush1.msra.mxu0 %v222
    %831 = vmatprep.subr.mxu0 %v221
    %832 = vmatpush1.msra.mxu0 %v220
    %833 = vmatprep.subr.mxu0 %v219
    %834 = vmatpush1.msra.mxu0 %v218
    %835 = vmatprep.subr.mxu0 %v217
    %836 = vmatpush1.msra.mxu0 %v216
    %837 = vmatprep.subr.mxu0 %v215
    %838 = vmatpush1.msra.mxu0 %v214
    %839 = vmatprep.subr.mxu0 %v213
    %840 = vmatpush1.msra.mxu0 %v212
    %841 = vmatprep.subr.mxu0 %v211
    %842 = vmatpush1.msra.mxu0 %v210
    %843 = vmatprep.subr.mxu0 %v209
    %844 = vmatpush1.msra.mxu0 %v208
    %845 = vmatprep.subr.mxu0 0.0
    %846 = vmatpush2.msra.mxu0 0.0
    %847 = vmatprep.subr.mxu0 0.0
    %848 = vmatpush2.msra.mxu0 0.0
    %849 = vmatprep.subr.mxu0 0.0
    %850 = vmatpush2.msra.mxu0 0.0
    %851 = vmatprep.subr.mxu0 0.0
    %852 = vmatpush2.msra.mxu0 0.0
    %853 = vmatprep.subr.mxu0 0.0
    %854 = vmatpush2.msra.mxu0 0.0
    %855 = vmatprep.subr.mxu0 0.0
    %856 = vmatpush2.msra.mxu0 0.0
    %857 = vmatprep.subr.mxu0 0.0
    %858 = vmatpush2.msra.mxu0 0.0
    %859 = vmatprep.subr.mxu0 0.0
    %860 = vmatpush2.msra.mxu0 0.0
    %861 = vmatprep.subr.mxu0 0.0
    %862 = vmatpush2.msra.mxu0 0.0
    %863 = vmatprep.subr.mxu0 0.0
    %864 = vmatpush2.msra.mxu0 0.0
    %865 = vmatprep.subr.mxu0 0.0
    %866 = vmatpush2.msra.mxu0 0.0
    %867 = vmatprep.subr.mxu0 0.0
    %868 = vmatpush2.msra.mxu0 0.0
    %869 = vmatprep.subr.mxu0 0.0
    %870 = vmatpush2.msra.mxu0 0.0
    %871 = vmatprep.subr.mxu0 0.0
    %872 = vmatpush2.msra.mxu0 0.0
    %873 = vmatprep.subr.mxu0 0.0
    %874 = vmatpush2.msra.mxu0 0.0
    %875 = vmatprep.subr.mxu0 0.0
    %876 = vmatpush2.msra.mxu0 0.0
    %877 = vmatprep.mubr.f32.mxu0 0.0
    %878 = vmatmul.mubr.f32.gmra.mxu0 %v276
    %v879 = vpop.f32.mrf.mxu0
    %v880 = vadd.f32 %v719, %v879
    %v881 = vpop.f32.mrf.mxu0
    %v882 = vadd.f32 %v721, %v881
    %883 = vmatprep.mubr.f32.mxu0 0.0
    %884 = vmatmul.mubr.f32.gmra.mxu0 %v277
    %v885 = vpop.f32.mrf.mxu0
    %v886 = vadd.f32 %v725, %v885
    %v887 = vpop.f32.mrf.mxu0
    %v888 = vadd.f32 %v727, %v887
    %889 = vmatprep.mubr.f32.mxu0 0.0
    %890 = vmatmul.mubr.f32.gmra.mxu0 %v278
    %v891 = vpop.f32.mrf.mxu0
    %v892 = vadd.f32 %v731, %v891
    %v893 = vpop.f32.mrf.mxu0
    %v894 = vadd.f32 %v733, %v893
    %895 = vmatprep.mubr.f32.mxu0 0.0
    %896 = vmatmul.mubr.f32.gmra.mxu0 %v279
    %v897 = vpop.f32.mrf.mxu0
    %v898 = vadd.f32 %v737, %v897
    %v899 = vpop.f32.mrf.mxu0
    %v900 = vadd.f32 %v739, %v899
    %901 = vmatprep.mubr.f32.mxu0 0.0
    %902 = vmatmul.mubr.f32.gmra.mxu0 %v280
    %v903 = vpop.f32.mrf.mxu0
    %v904 = vadd.f32 %v743, %v903
    %v905 = vpop.f32.mrf.mxu0
    %v906 = vadd.f32 %v745, %v905
    %907 = vmatprep.mubr.f32.mxu0 0.0
    %908 = vmatmul.mubr.f32.gmra.mxu0 %v281
    %v909 = vpop.f32.mrf.mxu0
    %v910 = vadd.f32 %v749, %v909
    %v911 = vpop.f32.mrf.mxu0
    %v912 = vadd.f32 %v751, %v911
    %913 = vmatprep.mubr.f32.mxu0 0.0
    %914 = vmatmul.mubr.f32.gmra.mxu0 %v282
    %v915 = vpop.f32.mrf.mxu0
    %v916 = vadd.f32 %v755, %v915
    %v917 = vpop.f32.mrf.mxu0
    %v918 = vadd.f32 %v757, %v917
    %919 = vmatprep.mubr.f32.mxu0 0.0
    %920 = vmatmul.mubr.f32.gmra.mxu0 %v283
    %v921 = vpop.f32.mrf.mxu0
    %v922 = vadd.f32 %v761, %v921
    %v923 = vpop.f32.mrf.mxu0
    %v924 = vadd.f32 %v763, %v923
    %925 = vmatprep.mubr.f32.mxu0 0.0
    %926 = vmatmul.mubr.f32.gmra.mxu0 %v285
    %v927 = vpop.f32.mrf.mxu0
    %v928 = vadd.f32 %v767, %v927
    %v929 = vpop.f32.mrf.mxu0
    %v930 = vadd.f32 %v769, %v929
    %931 = vmatprep.mubr.f32.mxu0 0.0
    %932 = vmatmul.mubr.f32.gmra.mxu0 %v286
    %v933 = vpop.f32.mrf.mxu0
    %v934 = vadd.f32 %v773, %v933
    %v935 = vpop.f32.mrf.mxu0
    %v936 = vadd.f32 %v775, %v935
    %937 = vmatprep.mubr.f32.mxu0 0.0
    %938 = vmatmul.mubr.f32.gmra.mxu0 %v287
    %v939 = vpop.f32.mrf.mxu0
    %v940 = vadd.f32 %v779, %v939
    %v941 = vpop.f32.mrf.mxu0
    %v942 = vadd.f32 %v781, %v941
    %943 = vmatprep.mubr.f32.mxu0 0.0
    %944 = vmatmul.mubr.f32.gmra.mxu0 %v288
    %v945 = vpop.f32.mrf.mxu0
    %v946 = vadd.f32 %v785, %v945
    %v947 = vpop.f32.mrf.mxu0
    %v948 = vadd.f32 %v787, %v947
    %949 = vmatprep.mubr.f32.mxu0 0.0
    %950 = vmatmul.mubr.f32.gmra.mxu0 %v289
    %v951 = vpop.f32.mrf.mxu0
    %v952 = vadd.f32 %v791, %v951
    %v953 = vpop.f32.mrf.mxu0
    %v954 = vadd.f32 %v793, %v953
    %955 = vmatprep.mubr.f32.mxu0 0.0
    %956 = vmatmul.mubr.f32.gmra.mxu0 %v290
    %v957 = vpop.f32.mrf.mxu0
    %v958 = vadd.f32 %v797, %v957
    %v959 = vpop.f32.mrf.mxu0
    %v960 = vadd.f32 %v799, %v959
    %961 = vmatprep.mubr.f32.mxu0 0.0
    %962 = vmatmul.mubr.f32.gmra.mxu0 %v291
    %v963 = vpop.f32.mrf.mxu0
    %v964 = vadd.f32 %v803, %v963
    %v965 = vpop.f32.mrf.mxu0
    %v966 = vadd.f32 %v805, %v965
    %967 = vmatprep.mubr.f32.mxu0 0.0
    %968 = vmatmul.mubr.f32.gmra.mxu0 %v292
    %v969 = vpop.f32.mrf.mxu0
    %v970 = vadd.f32 %v809, %v969
    %v971 = vpop.f32.mrf.mxu0
    %v972 = vadd.f32 %v811, %v971
    %973 = vdwg.mxu0
    %v974 = vmax.f32 %v880, %v882
    %v975 = vmax.f32 %v886, %v888
    %v976 = vmax.f32 %v892, %v894
    %v977 = vmax.f32 %v898, %v900
    %v978 = vmax.f32 %v904, %v906
    %v979 = vmax.f32 %v910, %v912
    %v980 = vmax.f32 %v916, %v918
    %v981 = vmax.f32 %v922, %v924
    %v982 = vmax.f32 %v928, %v930
    %v983 = vmax.f32 %v934, %v936
    %v984 = vmax.f32 %v940, %v942
    %v985 = vmax.f32 %v946, %v948
    %v986 = vmax.f32 %v952, %v954
    %v987 = vmax.f32 %v958, %v960
    %v988 = vmax.f32 %v964, %v966
    %v989 = vmax.f32 %v970, %v972
    %v990 = vmax.f32 %v974, %v982
    %v991 = vmax.f32 %v975, %v983
    %v992 = vmax.f32 %v976, %v984
    %v993 = vmax.f32 %v977, %v985
    %v994 = vmax.f32 %v978, %v986
    %v995 = vmax.f32 %v979, %v987
    %v996 = vmax.f32 %v980, %v988
    %v997 = vmax.f32 %v981, %v989
    %v998 = vld [vmem:[%s2] sm:$0x1]
    %v1000 = vlaneseq
    %v1001 = vshrl.u32 %v1000, 7
    %v1002 = vsub.s32 0, %v1001
    %v1003 = vrot.slane %v998, %v1002
    %v1005 = vadd.f32 %v990, %v1003
    %v1006 = vadd.f32 %v991, %v1003
    %v1007 = vadd.f32 %v992, %v1003
    %v1008 = vadd.f32 %v993, %v1003
    %v1009 = vadd.f32 %v994, %v1003
    %v1010 = vadd.f32 %v995, %v1003
    %v1011 = vadd.f32 %v996, %v1003
    %v1012 = vadd.f32 %v997, %v1003
    %v1013 = vmax.f32 %v1005, 0.0
    %v1014 = vmax.f32 %v1006, 0.0
    %v1015 = vmax.f32 %v1007, 0.0
    %v1016 = vmax.f32 %v1008, 0.0
    %v1017 = vmax.f32 %v1009, 0.0
    %v1018 = vmax.f32 %v1010, 0.0
    %v1019 = vmax.f32 %v1011, 0.0
    %v1020 = vmax.f32 %v1012, 0.0
    %v1021 = vpack.c.bf16 %v1014, %v1013
    %v1022 = vpack.c.bf16 %v1016, %v1015
    %v1023 = vpack.c.bf16 %v1018, %v1017
    %v1024 = vpack.c.bf16 %v1020, %v1019
    %1025 = vmatprep.subr.mxu0 %v111
    %1026 = vmatpush1.msra.mxu0 %v110
    %1027 = vmatprep.subr.mxu0 %v109
    %1028 = vmatpush1.msra.mxu0 %v108
    %1029 = vmatprep.subr.mxu0 %v107
    %1030 = vmatpush1.msra.mxu0 %v106
    %1031 = vmatprep.subr.mxu0 %v105
    %1032 = vmatpush1.msra.mxu0 %v104
    %1033 = vmatprep.subr.mxu0 %v103
    %1034 = vmatpush1.msra.mxu0 %v102
    %1035 = vmatprep.subr.mxu0 %v101
    %1036 = vmatpush1.msra.mxu0 %v100
    %1037 = vmatprep.subr.mxu0 %v99
    %1038 = vmatpush1.msra.mxu0 %v98
    %1039 = vmatprep.subr.mxu0 %v97
    %1040 = vmatpush1.msra.mxu0 %v96
    %1041 = vmatprep.subr.mxu0 %v95
    %1042 = vmatpush1.msra.mxu0 %v94
    %1043 = vmatprep.subr.mxu0 %v93
    %1044 = vmatpush1.msra.mxu0 %v92
    %1045 = vmatprep.subr.mxu0 %v91
    %1046 = vmatpush1.msra.mxu0 %v90
    %1047 = vmatprep.subr.mxu0 %v89
    %1048 = vmatpush1.msra.mxu0 %v88
    %1049 = vmatprep.subr.mxu0 %v87
    %1050 = vmatpush1.msra.mxu0 %v86
    %1051 = vmatprep.subr.mxu0 %v85
    %1052 = vmatpush1.msra.mxu0 %v84
    %1053 = vmatprep.subr.mxu0 %v83
    %1054 = vmatpush1.msra.mxu0 %v82
    %1055 = vmatprep.subr.mxu0 %v81
    %1056 = vmatpush1.msra.mxu0 %v80
    %1057 = vmatprep.subr.mxu0 %v143
    %1058 = vmatpush2.msra.mxu0 %v142
    %1059 = vmatprep.subr.mxu0 %v141
    %1060 = vmatpush2.msra.mxu0 %v140
    %1061 = vmatprep.subr.mxu0 %v139
    %1062 = vmatpush2.msra.mxu0 %v138
    %1063 = vmatprep.subr.mxu0 %v137
    %1064 = vmatpush2.msra.mxu0 %v136
    %1065 = vmatprep.subr.mxu0 %v135
    %1066 = vmatpush2.msra.mxu0 %v134
    %1067 = vmatprep.subr.mxu0 %v133
    %1068 = vmatpush2.msra.mxu0 %v132
    %1069 = vmatprep.subr.mxu0 %v131
    %1070 = vmatpush2.msra.mxu0 %v130
    %1071 = vmatprep.subr.mxu0 %v129
    %1072 = vmatpush2.msra.mxu0 %v128
    %1073 = vmatprep.subr.mxu0 %v127
    %1074 = vmatpush2.msra.mxu0 %v126
    %1075 = vmatprep.subr.mxu0 %v125
    %1076 = vmatpush2.msra.mxu0 %v124
    %1077 = vmatprep.subr.mxu0 %v123
    %1078 = vmatpush2.msra.mxu0 %v122
    %1079 = vmatprep.subr.mxu0 %v121
    %1080 = vmatpush2.msra.mxu0 %v120
    %1081 = vmatprep.subr.mxu0 %v119
    %1082 = vmatpush2.msra.mxu0 %v118
    %1083 = vmatprep.subr.mxu0 %v117
    %1084 = vmatpush2.msra.mxu0 %v116
    %1085 = vmatprep.subr.mxu0 %v115
    %1086 = vmatpush2.msra.mxu0 %v114
    %1087 = vmatprep.subr.mxu0 %v113
    %1088 = vmatpush2.msra.mxu0 %v112
    %1089 = vmatprep.mubr.f32.mxu0 %v267
    %1090 = vmatmul.mubr.f32.gmra.mxu0 %v258
    %v1091 = vpop.f32.mrf.mxu0
    %v1092 = vadd.f32 0.0, %v1091
    %v1093 = vpop.f32.mrf.mxu0
    %v1094 = vadd.f32 0.0, %v1093
    %1095 = vmatprep.mubr.f32.mxu0 %v268
    %1096 = vmatmul.mubr.f32.gmra.mxu0 %v259
    %v1097 = vpop.f32.mrf.mxu0
    %v1098 = vadd.f32 0.0, %v1097
    %v1099 = vpop.f32.mrf.mxu0
    %v1100 = vadd.f32 0.0, %v1099
    %1101 = vmatprep.mubr.f32.mxu0 %v269
    %1102 = vmatmul.mubr.f32.gmra.mxu0 %v260
    %v1103 = vpop.f32.mrf.mxu0
    %v1104 = vadd.f32 0.0, %v1103
    %v1105 = vpop.f32.mrf.mxu0
    %v1106 = vadd.f32 0.0, %v1105
    %1107 = vmatprep.mubr.f32.mxu0 %v270
    %1108 = vmatmul.mubr.f32.gmra.mxu0 %v261
    %v1109 = vpop.f32.mrf.mxu0
    %v1110 = vadd.f32 0.0, %v1109
    %v1111 = vpop.f32.mrf.mxu0
    %v1112 = vadd.f32 0.0, %v1111
    %1113 = vmatprep.mubr.f32.mxu0 %v271
    %1114 = vmatmul.mubr.f32.gmra.mxu0 %v262
    %v1115 = vpop.f32.mrf.mxu0
    %v1116 = vadd.f32 0.0, %v1115
    %v1117 = vpop.f32.mrf.mxu0
    %v1118 = vadd.f32 0.0, %v1117
    %1119 = vmatprep.mubr.f32.mxu0 %v272
    %1120 = vmatmul.mubr.f32.gmra.mxu0 %v263
    %v1121 = vpop.f32.mrf.mxu0
    %v1122 = vadd.f32 0.0, %v1121
    %v1123 = vpop.f32.mrf.mxu0
    %v1124 = vadd.f32 0.0, %v1123
    %1125 = vmatprep.mubr.f32.mxu0 %v273
    %1126 = vmatmul.mubr.f32.gmra.mxu0 %v264
    %v1127 = vpop.f32.mrf.mxu0
    %v1128 = vadd.f32 0.0, %v1127
    %v1129 = vpop.f32.mrf.mxu0
    %v1130 = vadd.f32 0.0, %v1129
    %1131 = vmatprep.mubr.f32.mxu0 %v274
    %1132 = vmatmul.mubr.f32.gmra.mxu0 %v265
    %v1133 = vpop.f32.mrf.mxu0
    %v1134 = vadd.f32 0.0, %v1133
    %v1135 = vpop.f32.mrf.mxu0
    %v1136 = vadd.f32 0.0, %v1135
    %1137 = vmatprep.mubr.f32.mxu0 %v276
    %1138 = vmatmul.mubr.f32.gmra.mxu0 %v267
    %v1139 = vpop.f32.mrf.mxu0
    %v1140 = vadd.f32 0.0, %v1139
    %v1141 = vpop.f32.mrf.mxu0
    %v1142 = vadd.f32 0.0, %v1141
    %1143 = vmatprep.mubr.f32.mxu0 %v277
    %1144 = vmatmul.mubr.f32.gmra.mxu0 %v268
    %v1145 = vpop.f32.mrf.mxu0
    %v1146 = vadd.f32 0.0, %v1145
    %v1147 = vpop.f32.mrf.mxu0
    %v1148 = vadd.f32 0.0, %v1147
    %1149 = vmatprep.mubr.f32.mxu0 %v278
    %1150 = vmatmul.mubr.f32.gmra.mxu0 %v269
    %v1151 = vpop.f32.mrf.mxu0
    %v1152 = vadd.f32 0.0, %v1151
    %v1153 = vpop.f32.mrf.mxu0
    %v1154 = vadd.f32 0.0, %v1153
    %1155 = vmatprep.mubr.f32.mxu0 %v279
    %1156 = vmatmul.mubr.f32.gmra.mxu0 %v270
    %v1157 = vpop.f32.mrf.mxu0
    %v1158 = vadd.f32 0.0, %v1157
    %v1159 = vpop.f32.mrf.mxu0
    %v1160 = vadd.f32 0.0, %v1159
    %1161 = vmatprep.mubr.f32.mxu0 %v280
    %1162 = vmatmul.mubr.f32.gmra.mxu0 %v271
    %v1163 = vpop.f32.mrf.mxu0
    %v1164 = vadd.f32 0.0, %v1163
    %v1165 = vpop.f32.mrf.mxu0
    %v1166 = vadd.f32 0.0, %v1165
    %1167 = vmatprep.mubr.f32.mxu0 %v281
    %1168 = vmatmul.mubr.f32.gmra.mxu0 %v272
    %v1169 = vpop.f32.mrf.mxu0
    %v1170 = vadd.f32 0.0, %v1169
    %v1171 = vpop.f32.mrf.mxu0
    %v1172 = vadd.f32 0.0, %v1171
    %1173 = vmatprep.mubr.f32.mxu0 %v282
    %1174 = vmatmul.mubr.f32.gmra.mxu0 %v273
    %v1175 = vpop.f32.mrf.mxu0
    %v1176 = vadd.f32 0.0, %v1175
    %v1177 = vpop.f32.mrf.mxu0
    %v1178 = vadd.f32 0.0, %v1177
    %1179 = vmatprep.mubr.f32.mxu0 %v283
    %1180 = vmatmul.mubr.f32.gmra.mxu0 %v274
    %v1181 = vpop.f32.mrf.mxu0
    %v1182 = vadd.f32 0.0, %v1181
    %v1183 = vpop.f32.mrf.mxu0
    %v1184 = vadd.f32 0.0, %v1183
    %1185 = vdwg.mxu0
    %1186 = vmatprep.subr.mxu0 %v175
    %1187 = vmatpush1.msra.mxu0 %v174
    %1188 = vmatprep.subr.mxu0 %v173
    %1189 = vmatpush1.msra.mxu0 %v172
    %1190 = vmatprep.subr.mxu0 %v171
    %1191 = vmatpush1.msra.mxu0 %v170
    %1192 = vmatprep.subr.mxu0 %v169
    %1193 = vmatpush1.msra.mxu0 %v168
    %1194 = vmatprep.subr.mxu0 %v167
    %1195 = vmatpush1.msra.mxu0 %v166
    %1196 = vmatprep.subr.mxu0 %v165
    %1197 = vmatpush1.msra.mxu0 %v164
    %1198 = vmatprep.subr.mxu0 %v163
    %1199 = vmatpush1.msra.mxu0 %v162
    %1200 = vmatprep.subr.mxu0 %v161
    %1201 = vmatpush1.msra.mxu0 %v160
    %1202 = vmatprep.subr.mxu0 %v159
    %1203 = vmatpush1.msra.mxu0 %v158
    %1204 = vmatprep.subr.mxu0 %v157
    %1205 = vmatpush1.msra.mxu0 %v156
    %1206 = vmatprep.subr.mxu0 %v155
    %1207 = vmatpush1.msra.mxu0 %v154
    %1208 = vmatprep.subr.mxu0 %v153
    %1209 = vmatpush1.msra.mxu0 %v152
    %1210 = vmatprep.subr.mxu0 %v151
    %1211 = vmatpush1.msra.mxu0 %v150
    %1212 = vmatprep.subr.mxu0 %v149
    %1213 = vmatpush1.msra.mxu0 %v148
    %1214 = vmatprep.subr.mxu0 %v147
    %1215 = vmatpush1.msra.mxu0 %v146
    %1216 = vmatprep.subr.mxu0 %v145
    %1217 = vmatpush1.msra.mxu0 %v144
    %1218 = vmatprep.subr.mxu0 %v207
    %1219 = vmatpush2.msra.mxu0 %v206
    %1220 = vmatprep.subr.mxu0 %v205
    %1221 = vmatpush2.msra.mxu0 %v204
    %1222 = vmatprep.subr.mxu0 %v203
    %1223 = vmatpush2.msra.mxu0 %v202
    %1224 = vmatprep.subr.mxu0 %v201
    %1225 = vmatpush2.msra.mxu0 %v200
    %1226 = vmatprep.subr.mxu0 %v199
    %1227 = vmatpush2.msra.mxu0 %v198
    %1228 = vmatprep.subr.mxu0 %v197
    %1229 = vmatpush2.msra.mxu0 %v196
    %1230 = vmatprep.subr.mxu0 %v195
    %1231 = vmatpush2.msra.mxu0 %v194
    %1232 = vmatprep.subr.mxu0 %v193
    %1233 = vmatpush2.msra.mxu0 %v192
    %1234 = vmatprep.subr.mxu0 %v191
    %1235 = vmatpush2.msra.mxu0 %v190
    %1236 = vmatprep.subr.mxu0 %v189
    %1237 = vmatpush2.msra.mxu0 %v188
    %1238 = vmatprep.subr.mxu0 %v187
    %1239 = vmatpush2.msra.mxu0 %v186
    %1240 = vmatprep.subr.mxu0 %v185
    %1241 = vmatpush2.msra.mxu0 %v184
    %1242 = vmatprep.subr.mxu0 %v183
    %1243 = vmatpush2.msra.mxu0 %v182
    %1244 = vmatprep.subr.mxu0 %v181
    %1245 = vmatpush2.msra.mxu0 %v180
    %1246 = vmatprep.subr.mxu0 %v179
    %1247 = vmatpush2.msra.mxu0 %v178
    %1248 = vmatprep.subr.mxu0 %v177
    %1249 = vmatpush2.msra.mxu0 %v176
    %1250 = vmatprep.mubr.f32.mxu0 %v285
    %1251 = vmatmul.mubr.f32.gmra.mxu0 %v276
    %v1252 = vpop.f32.mrf.mxu0
    %v1253 = vadd.f32 %v1092, %v1252
    %v1254 = vpop.f32.mrf.mxu0
    %v1255 = vadd.f32 %v1094, %v1254
    %1256 = vmatprep.mubr.f32.mxu0 %v286
    %1257 = vmatmul.mubr.f32.gmra.mxu0 %v277
    %v1258 = vpop.f32.mrf.mxu0
    %v1259 = vadd.f32 %v1098, %v1258
    %v1260 = vpop.f32.mrf.mxu0
    %v1261 = vadd.f32 %v1100, %v1260
    %1262 = vmatprep.mubr.f32.mxu0 %v287
    %1263 = vmatmul.mubr.f32.gmra.mxu0 %v278
    %v1264 = vpop.f32.mrf.mxu0
    %v1265 = vadd.f32 %v1104, %v1264
    %v1266 = vpop.f32.mrf.mxu0
    %v1267 = vadd.f32 %v1106, %v1266
    %1268 = vmatprep.mubr.f32.mxu0 %v288
    %1269 = vmatmul.mubr.f32.gmra.mxu0 %v279
    %v1270 = vpop.f32.mrf.mxu0
    %v1271 = vadd.f32 %v1110, %v1270
    %v1272 = vpop.f32.mrf.mxu0
    %v1273 = vadd.f32 %v1112, %v1272
    %1274 = vmatprep.mubr.f32.mxu0 %v289
    %1275 = vmatmul.mubr.f32.gmra.mxu0 %v280
    %v1276 = vpop.f32.mrf.mxu0
    %v1277 = vadd.f32 %v1116, %v1276
    %v1278 = vpop.f32.mrf.mxu0
    %v1279 = vadd.f32 %v1118, %v1278
    %1280 = vmatprep.mubr.f32.mxu0 %v290
    %1281 = vmatmul.mubr.f32.gmra.mxu0 %v281
    %v1282 = vpop.f32.mrf.mxu0
    %v1283 = vadd.f32 %v1122, %v1282
    %v1284 = vpop.f32.mrf.mxu0
    %v1285 = vadd.f32 %v1124, %v1284
    %1286 = vmatprep.mubr.f32.mxu0 %v291
    %1287 = vmatmul.mubr.f32.gmra.mxu0 %v282
    %v1288 = vpop.f32.mrf.mxu0
    %v1289 = vadd.f32 %v1128, %v1288
    %v1290 = vpop.f32.mrf.mxu0
    %v1291 = vadd.f32 %v1130, %v1290
    %1292 = vmatprep.mubr.f32.mxu0 %v292
    %1293 = vmatmul.mubr.f32.gmra.mxu0 %v283
    %v1294 = vpop.f32.mrf.mxu0
    %v1295 = vadd.f32 %v1134, %v1294
    %v1296 = vpop.f32.mrf.mxu0
    %v1297 = vadd.f32 %v1136, %v1296
    %1298 = vmatprep.mubr.f32.mxu0 %v294
    %1299 = vmatmul.mubr.f32.gmra.mxu0 %v285
    %v1300 = vpop.f32.mrf.mxu0
    %v1301 = vadd.f32 %v1140, %v1300
    %v1302 = vpop.f32.mrf.mxu0
    %v1303 = vadd.f32 %v1142, %v1302
    %1304 = vmatprep.mubr.f32.mxu0 %v295
    %1305 = vmatmul.mubr.f32.gmra.mxu0 %v286
    %v1306 = vpop.f32.mrf.mxu0
    %v1307 = vadd.f32 %v1146, %v1306
    %v1308 = vpop.f32.mrf.mxu0
    %v1309 = vadd.f32 %v1148, %v1308
    %1310 = vmatprep.mubr.f32.mxu0 %v296
    %1311 = vmatmul.mubr.f32.gmra.mxu0 %v287
    %v1312 = vpop.f32.mrf.mxu0
    %v1313 = vadd.f32 %v1152, %v1312
    %v1314 = vpop.f32.mrf.mxu0
    %v1315 = vadd.f32 %v1154, %v1314
    %1316 = vmatprep.mubr.f32.mxu0 %v297
    %1317 = vmatmul.mubr.f32.gmra.mxu0 %v288
    %v1318 = vpop.f32.mrf.mxu0
    %v1319 = vadd.f32 %v1158, %v1318
    %v1320 = vpop.f32.mrf.mxu0
    %v1321 = vadd.f32 %v1160, %v1320
    %1322 = vmatprep.mubr.f32.mxu0 %v298
    %1323 = vmatmul.mubr.f32.gmra.mxu0 %v289
    %v1324 = vpop.f32.mrf.mxu0
    %v1325 = vadd.f32 %v1164, %v1324
    %v1326 = vpop.f32.mrf.mxu0
    %v1327 = vadd.f32 %v1166, %v1326
    %1328 = vmatprep.mubr.f32.mxu0 %v299
    %1329 = vmatmul.mubr.f32.gmra.mxu0 %v290
    %v1330 = vpop.f32.mrf.mxu0
    %v1331 = vadd.f32 %v1170, %v1330
    %v1332 = vpop.f32.mrf.mxu0
    %v1333 = vadd.f32 %v1172, %v1332
    %1334 = vmatprep.mubr.f32.mxu0 %v300
    %1335 = vmatmul.mubr.f32.gmra.mxu0 %v291
    %v1336 = vpop.f32.mrf.mxu0
    %v1337 = vadd.f32 %v1176, %v1336
    %v1338 = vpop.f32.mrf.mxu0
    %v1339 = vadd.f32 %v1178, %v1338
    %1340 = vmatprep.mubr.f32.mxu0 %v301
    %1341 = vmatmul.mubr.f32.gmra.mxu0 %v292
    %v1342 = vpop.f32.mrf.mxu0
    %v1343 = vadd.f32 %v1182, %v1342
    %v1344 = vpop.f32.mrf.mxu0
    %v1345 = vadd.f32 %v1184, %v1344
    %1346 = vdwg.mxu0
    %1347 = vmatprep.subr.mxu0 %v239
    %1348 = vmatpush1.msra.mxu0 %v238
    %1349 = vmatprep.subr.mxu0 %v237
    %1350 = vmatpush1.msra.mxu0 %v236
    %1351 = vmatprep.subr.mxu0 %v235
    %1352 = vmatpush1.msra.mxu0 %v234
    %1353 = vmatprep.subr.mxu0 %v233
    %1354 = vmatpush1.msra.mxu0 %v232
    %1355 = vmatprep.subr.mxu0 %v231
    %1356 = vmatpush1.msra.mxu0 %v230
    %1357 = vmatprep.subr.mxu0 %v229
    %1358 = vmatpush1.msra.mxu0 %v228
    %1359 = vmatprep.subr.mxu0 %v227
    %1360 = vmatpush1.msra.mxu0 %v226
    %1361 = vmatprep.subr.mxu0 %v225
    %1362 = vmatpush1.msra.mxu0 %v224
    %1363 = vmatprep.subr.mxu0 %v223
    %1364 = vmatpush1.msra.mxu0 %v222
    %1365 = vmatprep.subr.mxu0 %v221
    %1366 = vmatpush1.msra.mxu0 %v220
    %1367 = vmatprep.subr.mxu0 %v219
    %1368 = vmatpush1.msra.mxu0 %v218
    %1369 = vmatprep.subr.mxu0 %v217
    %1370 = vmatpush1.msra.mxu0 %v216
    %1371 = vmatprep.subr.mxu0 %v215
    %1372 = vmatpush1.msra.mxu0 %v214
    %1373 = vmatprep.subr.mxu0 %v213
    %1374 = vmatpush1.msra.mxu0 %v212
    %1375 = vmatprep.subr.mxu0 %v211
    %1376 = vmatpush1.msra.mxu0 %v210
    %1377 = vmatprep.subr.mxu0 %v209
    %1378 = vmatpush1.msra.mxu0 %v208
    %1379 = vmatprep.subr.mxu0 0.0
    %1380 = vmatpush2.msra.mxu0 0.0
    %1381 = vmatprep.subr.mxu0 0.0
    %1382 = vmatpush2.msra.mxu0 0.0
    %1383 = vmatprep.subr.mxu0 0.0
    %1384 = vmatpush2.msra.mxu0 0.0
    %1385 = vmatprep.subr.mxu0 0.0
    %1386 = vmatpush2.msra.mxu0 0.0
    %1387 = vmatprep.subr.mxu0 0.0
    %1388 = vmatpush2.msra.mxu0 0.0
    %1389 = vmatprep.subr.mxu0 0.0
    %1390 = vmatpush2.msra.mxu0 0.0
    %1391 = vmatprep.subr.mxu0 0.0
    %1392 = vmatpush2.msra.mxu0 0.0
    %1393 = vmatprep.subr.mxu0 0.0
    %1394 = vmatpush2.msra.mxu0 0.0
    %1395 = vmatprep.subr.mxu0 0.0
    %1396 = vmatpush2.msra.mxu0 0.0
    %1397 = vmatprep.subr.mxu0 0.0
    %1398 = vmatpush2.msra.mxu0 0.0
    %1399 = vmatprep.subr.mxu0 0.0
    %1400 = vmatpush2.msra.mxu0 0.0
    %1401 = vmatprep.subr.mxu0 0.0
    %1402 = vmatpush2.msra.mxu0 0.0
    %1403 = vmatprep.subr.mxu0 0.0
    %1404 = vmatpush2.msra.mxu0 0.0
    %1405 = vmatprep.subr.mxu0 0.0
    %1406 = vmatpush2.msra.mxu0 0.0
    %1407 = vmatprep.subr.mxu0 0.0
    %1408 = vmatpush2.msra.mxu0 0.0
    %1409 = vmatprep.subr.mxu0 0.0
    %1410 = vmatpush2.msra.mxu0 0.0
    %1411 = vmatprep.mubr.f32.mxu0 0.0
    %1412 = vmatmul.mubr.f32.gmra.mxu0 %v294
    %v1413 = vpop.f32.mrf.mxu0
    %v1414 = vadd.f32 %v1253, %v1413
    %v1415 = vpop.f32.mrf.mxu0
    %v1416 = vadd.f32 %v1255, %v1415
    %1417 = vmatprep.mubr.f32.mxu0 0.0
    %1418 = vmatmul.mubr.f32.gmra.mxu0 %v295
    %v1419 = vpop.f32.mrf.mxu0
    %v1420 = vadd.f32 %v1259, %v1419
    %v1421 = vpop.f32.mrf.mxu0
    %v1422 = vadd.f32 %v1261, %v1421
    %1423 = vmatprep.mubr.f32.mxu0 0.0
    %1424 = vmatmul.mubr.f32.gmra.mxu0 %v296
    %v1425 = vpop.f32.mrf.mxu0
    %v1426 = vadd.f32 %v1265, %v1425
    %v1427 = vpop.f32.mrf.mxu0
    %v1428 = vadd.f32 %v1267, %v1427
    %1429 = vmatprep.mubr.f32.mxu0 0.0
    %1430 = vmatmul.mubr.f32.gmra.mxu0 %v297
    %v1431 = vpop.f32.mrf.mxu0
    %v1432 = vadd.f32 %v1271, %v1431
    %v1433 = vpop.f32.mrf.mxu0
    %v1434 = vadd.f32 %v1273, %v1433
    %1435 = vmatprep.mubr.f32.mxu0 0.0
    %1436 = vmatmul.mubr.f32.gmra.mxu0 %v298
    %v1437 = vpop.f32.mrf.mxu0
    %v1438 = vadd.f32 %v1277, %v1437
    %v1439 = vpop.f32.mrf.mxu0
    %v1440 = vadd.f32 %v1279, %v1439
    %1441 = vmatprep.mubr.f32.mxu0 0.0
    %1442 = vmatmul.mubr.f32.gmra.mxu0 %v299
    %v1443 = vpop.f32.mrf.mxu0
    %v1444 = vadd.f32 %v1283, %v1443
    %v1445 = vpop.f32.mrf.mxu0
    %v1446 = vadd.f32 %v1285, %v1445
    %1447 = vmatprep.mubr.f32.mxu0 0.0
    %1448 = vmatmul.mubr.f32.gmra.mxu0 %v300
    %v1449 = vpop.f32.mrf.mxu0
    %v1450 = vadd.f32 %v1289, %v1449
    %v1451 = vpop.f32.mrf.mxu0
    %v1452 = vadd.f32 %v1291, %v1451
    %1453 = vmatprep.mubr.f32.mxu0 0.0
    %1454 = vmatmul.mubr.f32.gmra.mxu0 %v301
    %v1455 = vpop.f32.mrf.mxu0
    %v1456 = vadd.f32 %v1295, %v1455
    %v1457 = vpop.f32.mrf.mxu0
    %v1458 = vadd.f32 %v1297, %v1457
    %1459 = vmatprep.mubr.f32.mxu0 0.0
    %1460 = vmatmul.mubr.f32.gmra.mxu0 %v303
    %v1461 = vpop.f32.mrf.mxu0
    %v1462 = vadd.f32 %v1301, %v1461
    %v1463 = vpop.f32.mrf.mxu0
    %v1464 = vadd.f32 %v1303, %v1463
    %1465 = vmatprep.mubr.f32.mxu0 0.0
    %1466 = vmatmul.mubr.f32.gmra.mxu0 %v304
    %v1467 = vpop.f32.mrf.mxu0
    %v1468 = vadd.f32 %v1307, %v1467
    %v1469 = vpop.f32.mrf.mxu0
    %v1470 = vadd.f32 %v1309, %v1469
    %1471 = vmatprep.mubr.f32.mxu0 0.0
    %1472 = vmatmul.mubr.f32.gmra.mxu0 %v305
    %v1473 = vpop.f32.mrf.mxu0
    %v1474 = vadd.f32 %v1313, %v1473
    %v1475 = vpop.f32.mrf.mxu0
    %v1476 = vadd.f32 %v1315, %v1475
    %1477 = vmatprep.mubr.f32.mxu0 0.0
    %1478 = vmatmul.mubr.f32.gmra.mxu0 %v306
    %v1479 = vpop.f32.mrf.mxu0
    %v1480 = vadd.f32 %v1319, %v1479
    %v1481 = vpop.f32.mrf.mxu0
    %v1482 = vadd.f32 %v1321, %v1481
    %1483 = vmatprep.mubr.f32.mxu0 0.0
    %1484 = vmatmul.mubr.f32.gmra.mxu0 %v307
    %v1485 = vpop.f32.mrf.mxu0
    %v1486 = vadd.f32 %v1325, %v1485
    %v1487 = vpop.f32.mrf.mxu0
    %v1488 = vadd.f32 %v1327, %v1487
    %1489 = vmatprep.mubr.f32.mxu0 0.0
    %1490 = vmatmul.mubr.f32.gmra.mxu0 %v308
    %v1491 = vpop.f32.mrf.mxu0
    %v1492 = vadd.f32 %v1331, %v1491
    %v1493 = vpop.f32.mrf.mxu0
    %v1494 = vadd.f32 %v1333, %v1493
    %1495 = vmatprep.mubr.f32.mxu0 0.0
    %1496 = vmatmul.mubr.f32.gmra.mxu0 %v309
    %v1497 = vpop.f32.mrf.mxu0
    %v1498 = vadd.f32 %v1337, %v1497
    %v1499 = vpop.f32.mrf.mxu0
    %v1500 = vadd.f32 %v1339, %v1499
    %1501 = vmatprep.mubr.f32.mxu0 0.0
    %1502 = vmatmul.mubr.f32.gmra.mxu0 %v310
    %v1503 = vpop.f32.mrf.mxu0
    %v1504 = vadd.f32 %v1343, %v1503
    %v1505 = vpop.f32.mrf.mxu0
    %v1506 = vadd.f32 %v1345, %v1505
    %1507 = vdwg.mxu0
    %v1508 = vmax.f32 %v1414, %v1416
    %v1509 = vmax.f32 %v1420, %v1422
    %v1510 = vmax.f32 %v1426, %v1428
    %v1511 = vmax.f32 %v1432, %v1434
    %v1512 = vmax.f32 %v1438, %v1440
    %v1513 = vmax.f32 %v1444, %v1446
    %v1514 = vmax.f32 %v1450, %v1452
    %v1515 = vmax.f32 %v1456, %v1458
    %v1516 = vmax.f32 %v1462, %v1464
    %v1517 = vmax.f32 %v1468, %v1470
    %v1518 = vmax.f32 %v1474, %v1476
    %v1519 = vmax.f32 %v1480, %v1482
    %v1520 = vmax.f32 %v1486, %v1488
    %v1521 = vmax.f32 %v1492, %v1494
    %v1522 = vmax.f32 %v1498, %v1500
    %v1523 = vmax.f32 %v1504, %v1506
    %v1524 = vmax.f32 %v1508, %v1516
    %v1525 = vmax.f32 %v1509, %v1517
    %v1526 = vmax.f32 %v1510, %v1518
    %v1527 = vmax.f32 %v1511, %v1519
    %v1528 = vmax.f32 %v1512, %v1520
    %v1529 = vmax.f32 %v1513, %v1521
    %v1530 = vmax.f32 %v1514, %v1522
    %v1531 = vmax.f32 %v1515, %v1523
    %v1532 = vadd.f32 %v1524, %v1003
    %v1533 = vadd.f32 %v1525, %v1003
    %v1534 = vadd.f32 %v1526, %v1003
    %v1535 = vadd.f32 %v1527, %v1003
    %v1536 = vadd.f32 %v1528, %v1003
    %v1537 = vadd.f32 %v1529, %v1003
    %v1538 = vadd.f32 %v1530, %v1003
    %v1539 = vadd.f32 %v1531, %v1003
    %v1540 = vmax.f32 %v1532, 0.0
    %v1541 = vmax.f32 %v1533, 0.0
    %v1542 = vmax.f32 %v1534, 0.0
    %v1543 = vmax.f32 %v1535, 0.0
    %v1544 = vmax.f32 %v1536, 0.0
    %v1545 = vmax.f32 %v1537, 0.0
    %v1546 = vmax.f32 %v1538, 0.0
    %v1547 = vmax.f32 %v1539, 0.0
    %v1548 = vpack.c.bf16 %v1541, %v1540
    %v1549 = vpack.c.bf16 %v1543, %v1542
    %v1550 = vpack.c.bf16 %v1545, %v1544
    %v1551 = vpack.c.bf16 %v1547, %v1546
    %1552 = vmatprep.subr.mxu0 %v111
    %1553 = vmatpush1.msra.mxu0 %v110
    %1554 = vmatprep.subr.mxu0 %v109
    %1555 = vmatpush1.msra.mxu0 %v108
    %1556 = vmatprep.subr.mxu0 %v107
    %1557 = vmatpush1.msra.mxu0 %v106
    %1558 = vmatprep.subr.mxu0 %v105
    %1559 = vmatpush1.msra.mxu0 %v104
    %1560 = vmatprep.subr.mxu0 %v103
    %1561 = vmatpush1.msra.mxu0 %v102
    %1562 = vmatprep.subr.mxu0 %v101
    %1563 = vmatpush1.msra.mxu0 %v100
    %1564 = vmatprep.subr.mxu0 %v99
    %1565 = vmatpush1.msra.mxu0 %v98
    %1566 = vmatprep.subr.mxu0 %v97
    %1567 = vmatpush1.msra.mxu0 %v96
    %1568 = vmatprep.subr.mxu0 %v95
    %1569 = vmatpush1.msra.mxu0 %v94
    %1570 = vmatprep.subr.mxu0 %v93
    %1571 = vmatpush1.msra.mxu0 %v92
    %1572 = vmatprep.subr.mxu0 %v91
    %1573 = vmatpush1.msra.mxu0 %v90
    %1574 = vmatprep.subr.mxu0 %v89
    %1575 = vmatpush1.msra.mxu0 %v88
    %1576 = vmatprep.subr.mxu0 %v87
    %1577 = vmatpush1.msra.mxu0 %v86
    %1578 = vmatprep.subr.mxu0 %v85
    %1579 = vmatpush1.msra.mxu0 %v84
    %1580 = vmatprep.subr.mxu0 %v83
    %1581 = vmatpush1.msra.mxu0 %v82
    %1582 = vmatprep.subr.mxu0 %v81
    %1583 = vmatpush1.msra.mxu0 %v80
    %1584 = vmatprep.subr.mxu0 %v143
    %1585 = vmatpush2.msra.mxu0 %v142
    %1586 = vmatprep.subr.mxu0 %v141
    %1587 = vmatpush2.msra.mxu0 %v140
    %1588 = vmatprep.subr.mxu0 %v139
    %1589 = vmatpush2.msra.mxu0 %v138
    %1590 = vmatprep.subr.mxu0 %v137
    %1591 = vmatpush2.msra.mxu0 %v136
    %1592 = vmatprep.subr.mxu0 %v135
    %1593 = vmatpush2.msra.mxu0 %v134
    %1594 = vmatprep.subr.mxu0 %v133
    %1595 = vmatpush2.msra.mxu0 %v132
    %1596 = vmatprep.subr.mxu0 %v131
    %1597 = vmatpush2.msra.mxu0 %v130
    %1598 = vmatprep.subr.mxu0 %v129
    %1599 = vmatpush2.msra.mxu0 %v128
    %1600 = vmatprep.subr.mxu0 %v127
    %1601 = vmatpush2.msra.mxu0 %v126
    %1602 = vmatprep.subr.mxu0 %v125
    %1603 = vmatpush2.msra.mxu0 %v124
    %1604 = vmatprep.subr.mxu0 %v123
    %1605 = vmatpush2.msra.mxu0 %v122
    %1606 = vmatprep.subr.mxu0 %v121
    %1607 = vmatpush2.msra.mxu0 %v120
    %1608 = vmatprep.subr.mxu0 %v119
    %1609 = vmatpush2.msra.mxu0 %v118
    %1610 = vmatprep.subr.mxu0 %v117
    %1611 = vmatpush2.msra.mxu0 %v116
    %1612 = vmatprep.subr.mxu0 %v115
    %1613 = vmatpush2.msra.mxu0 %v114
    %1614 = vmatprep.subr.mxu0 %v113
    %1615 = vmatpush2.msra.mxu0 %v112
    %1616 = vmatprep.mubr.f32.mxu0 %v285
    %1617 = vmatmul.mubr.f32.gmra.mxu0 %v276
    %v1618 = vpop.f32.mrf.mxu0
    %v1619 = vadd.f32 0.0, %v1618
    %v1620 = vpop.f32.mrf.mxu0
    %v1621 = vadd.f32 0.0, %v1620
    %1622 = vmatprep.mubr.f32.mxu0 %v286
    %1623 = vmatmul.mubr.f32.gmra.mxu0 %v277
    %v1624 = vpop.f32.mrf.mxu0
    %v1625 = vadd.f32 0.0, %v1624
    %v1626 = vpop.f32.mrf.mxu0
    %v1627 = vadd.f32 0.0, %v1626
    %1628 = vmatprep.mubr.f32.mxu0 %v287
    %1629 = vmatmul.mubr.f32.gmra.mxu0 %v278
    %v1630 = vpop.f32.mrf.mxu0
    %v1631 = vadd.f32 0.0, %v1630
    %v1632 = vpop.f32.mrf.mxu0
    %v1633 = vadd.f32 0.0, %v1632
    %1634 = vmatprep.mubr.f32.mxu0 %v288
    %1635 = vmatmul.mubr.f32.gmra.mxu0 %v279
    %v1636 = vpop.f32.mrf.mxu0
    %v1637 = vadd.f32 0.0, %v1636
    %v1638 = vpop.f32.mrf.mxu0
    %v1639 = vadd.f32 0.0, %v1638
    %1640 = vmatprep.mubr.f32.mxu0 %v289
    %1641 = vmatmul.mubr.f32.gmra.mxu0 %v280
    %v1642 = vpop.f32.mrf.mxu0
    %v1643 = vadd.f32 0.0, %v1642
    %v1644 = vpop.f32.mrf.mxu0
    %v1645 = vadd.f32 0.0, %v1644
    %1646 = vmatprep.mubr.f32.mxu0 %v290
    %1647 = vmatmul.mubr.f32.gmra.mxu0 %v281
    %v1648 = vpop.f32.mrf.mxu0
    %v1649 = vadd.f32 0.0, %v1648
    %v1650 = vpop.f32.mrf.mxu0
    %v1651 = vadd.f32 0.0, %v1650
    %1652 = vmatprep.mubr.f32.mxu0 %v291
    %1653 = vmatmul.mubr.f32.gmra.mxu0 %v282
    %v1654 = vpop.f32.mrf.mxu0
    %v1655 = vadd.f32 0.0, %v1654
    %v1656 = vpop.f32.mrf.mxu0
    %v1657 = vadd.f32 0.0, %v1656
    %1658 = vmatprep.mubr.f32.mxu0 %v292
    %1659 = vmatmul.mubr.f32.gmra.mxu0 %v283
    %v1660 = vpop.f32.mrf.mxu0
    %v1661 = vadd.f32 0.0, %v1660
    %v1662 = vpop.f32.mrf.mxu0
    %v1663 = vadd.f32 0.0, %v1662
    %1664 = vmatprep.mubr.f32.mxu0 %v294
    %1665 = vmatmul.mubr.f32.gmra.mxu0 %v285
    %v1666 = vpop.f32.mrf.mxu0
    %v1667 = vadd.f32 0.0, %v1666
    %v1668 = vpop.f32.mrf.mxu0
    %v1669 = vadd.f32 0.0, %v1668
    %1670 = vmatprep.mubr.f32.mxu0 %v295
    %1671 = vmatmul.mubr.f32.gmra.mxu0 %v286
    %v1672 = vpop.f32.mrf.mxu0
    %v1673 = vadd.f32 0.0, %v1672
    %v1674 = vpop.f32.mrf.mxu0
    %v1675 = vadd.f32 0.0, %v1674
    %1676 = vmatprep.mubr.f32.mxu0 %v296
    %1677 = vmatmul.mubr.f32.gmra.mxu0 %v287
    %v1678 = vpop.f32.mrf.mxu0
    %v1679 = vadd.f32 0.0, %v1678
    %v1680 = vpop.f32.mrf.mxu0
    %v1681 = vadd.f32 0.0, %v1680
    %1682 = vmatprep.mubr.f32.mxu0 %v297
    %1683 = vmatmul.mubr.f32.gmra.mxu0 %v288
    %v1684 = vpop.f32.mrf.mxu0
    %v1685 = vadd.f32 0.0, %v1684
    %v1686 = vpop.f32.mrf.mxu0
    %v1687 = vadd.f32 0.0, %v1686
    %1688 = vmatprep.mubr.f32.mxu0 %v298
    %1689 = vmatmul.mubr.f32.gmra.mxu0 %v289
    %v1690 = vpop.f32.mrf.mxu0
    %v1691 = vadd.f32 0.0, %v1690
    %v1692 = vpop.f32.mrf.mxu0
    %v1693 = vadd.f32 0.0, %v1692
    %1694 = vmatprep.mubr.f32.mxu0 %v299
    %1695 = vmatmul.mubr.f32.gmra.mxu0 %v290
    %v1696 = vpop.f32.mrf.mxu0
    %v1697 = vadd.f32 0.0, %v1696
    %v1698 = vpop.f32.mrf.mxu0
    %v1699 = vadd.f32 0.0, %v1698
    %1700 = vmatprep.mubr.f32.mxu0 %v300
    %1701 = vmatmul.mubr.f32.gmra.mxu0 %v291
    %v1702 = vpop.f32.mrf.mxu0
    %v1703 = vadd.f32 0.0, %v1702
    %v1704 = vpop.f32.mrf.mxu0
    %v1705 = vadd.f32 0.0, %v1704
    %1706 = vmatprep.mubr.f32.mxu0 %v301
    %1707 = vmatmul.mubr.f32.gmra.mxu0 %v292
    %v1708 = vpop.f32.mrf.mxu0
    %v1709 = vadd.f32 0.0, %v1708
    %v1710 = vpop.f32.mrf.mxu0
    %v1711 = vadd.f32 0.0, %v1710
    %1712 = vdwg.mxu0
    %1713 = vmatprep.subr.mxu0 %v175
    %1714 = vmatpush1.msra.mxu0 %v174
    %1715 = vmatprep.subr.mxu0 %v173
    %1716 = vmatpush1.msra.mxu0 %v172
    %1717 = vmatprep.subr.mxu0 %v171
    %1718 = vmatpush1.msra.mxu0 %v170
    %1719 = vmatprep.subr.mxu0 %v169
    %1720 = vmatpush1.msra.mxu0 %v168
    %1721 = vmatprep.subr.mxu0 %v167
    %1722 = vmatpush1.msra.mxu0 %v166
    %1723 = vmatprep.subr.mxu0 %v165
    %1724 = vmatpush1.msra.mxu0 %v164
    %1725 = vmatprep.subr.mxu0 %v163
    %1726 = vmatpush1.msra.mxu0 %v162
    %1727 = vmatprep.subr.mxu0 %v161
    %1728 = vmatpush1.msra.mxu0 %v160
    %1729 = vmatprep.subr.mxu0 %v159
    %1730 = vmatpush1.msra.mxu0 %v158
    %1731 = vmatprep.subr.mxu0 %v157
    %1732 = vmatpush1.msra.mxu0 %v156
    %1733 = vmatprep.subr.mxu0 %v155
    %1734 = vmatpush1.msra.mxu0 %v154
    %1735 = vmatprep.subr.mxu0 %v153
    %1736 = vmatpush1.msra.mxu0 %v152
    %1737 = vmatprep.subr.mxu0 %v151
    %1738 = vmatpush1.msra.mxu0 %v150
    %1739 = vmatprep.subr.mxu0 %v149
    %1740 = vmatpush1.msra.mxu0 %v148
    %1741 = vmatprep.subr.mxu0 %v147
    %1742 = vmatpush1.msra.mxu0 %v146
    %1743 = vmatprep.subr.mxu0 %v145
    %1744 = vmatpush1.msra.mxu0 %v144
    %1745 = vmatprep.subr.mxu0 %v207
    %1746 = vmatpush2.msra.mxu0 %v206
    %1747 = vmatprep.subr.mxu0 %v205
    %1748 = vmatpush2.msra.mxu0 %v204
    %1749 = vmatprep.subr.mxu0 %v203
    %1750 = vmatpush2.msra.mxu0 %v202
    %1751 = vmatprep.subr.mxu0 %v201
    %1752 = vmatpush2.msra.mxu0 %v200
    %1753 = vmatprep.subr.mxu0 %v199
    %1754 = vmatpush2.msra.mxu0 %v198
    %1755 = vmatprep.subr.mxu0 %v197
    %1756 = vmatpush2.msra.mxu0 %v196
    %1757 = vmatprep.subr.mxu0 %v195
    %1758 = vmatpush2.msra.mxu0 %v194
    %1759 = vmatprep.subr.mxu0 %v193
    %1760 = vmatpush2.msra.mxu0 %v192
    %1761 = vmatprep.subr.mxu0 %v191
    %1762 = vmatpush2.msra.mxu0 %v190
    %1763 = vmatprep.subr.mxu0 %v189
    %1764 = vmatpush2.msra.mxu0 %v188
    %1765 = vmatprep.subr.mxu0 %v187
    %1766 = vmatpush2.msra.mxu0 %v186
    %1767 = vmatprep.subr.mxu0 %v185
    %1768 = vmatpush2.msra.mxu0 %v184
    %1769 = vmatprep.subr.mxu0 %v183
    %1770 = vmatpush2.msra.mxu0 %v182
    %1771 = vmatprep.subr.mxu0 %v181
    %1772 = vmatpush2.msra.mxu0 %v180
    %1773 = vmatprep.subr.mxu0 %v179
    %1774 = vmatpush2.msra.mxu0 %v178
    %1775 = vmatprep.subr.mxu0 %v177
    %1776 = vmatpush2.msra.mxu0 %v176
    %1777 = vmatprep.mubr.f32.mxu0 %v303
    %1778 = vmatmul.mubr.f32.gmra.mxu0 %v294
    %v1779 = vpop.f32.mrf.mxu0
    %v1780 = vadd.f32 %v1619, %v1779
    %v1781 = vpop.f32.mrf.mxu0
    %v1782 = vadd.f32 %v1621, %v1781
    %1783 = vmatprep.mubr.f32.mxu0 %v304
    %1784 = vmatmul.mubr.f32.gmra.mxu0 %v295
    %v1785 = vpop.f32.mrf.mxu0
    %v1786 = vadd.f32 %v1625, %v1785
    %v1787 = vpop.f32.mrf.mxu0
    %v1788 = vadd.f32 %v1627, %v1787
    %1789 = vmatprep.mubr.f32.mxu0 %v305
    %1790 = vmatmul.mubr.f32.gmra.mxu0 %v296
    %v1791 = vpop.f32.mrf.mxu0
    %v1792 = vadd.f32 %v1631, %v1791
    %v1793 = vpop.f32.mrf.mxu0
    %v1794 = vadd.f32 %v1633, %v1793
    %1795 = vmatprep.mubr.f32.mxu0 %v306
    %1796 = vmatmul.mubr.f32.gmra.mxu0 %v297
    %v1797 = vpop.f32.mrf.mxu0
    %v1798 = vadd.f32 %v1637, %v1797
    %v1799 = vpop.f32.mrf.mxu0
    %v1800 = vadd.f32 %v1639, %v1799
    %1801 = vmatprep.mubr.f32.mxu0 %v307
    %1802 = vmatmul.mubr.f32.gmra.mxu0 %v298
    %v1803 = vpop.f32.mrf.mxu0
    %v1804 = vadd.f32 %v1643, %v1803
    %v1805 = vpop.f32.mrf.mxu0
    %v1806 = vadd.f32 %v1645, %v1805
    %1807 = vmatprep.mubr.f32.mxu0 %v308
    %1808 = vmatmul.mubr.f32.gmra.mxu0 %v299
    %v1809 = vpop.f32.mrf.mxu0
    %v1810 = vadd.f32 %v1649, %v1809
    %v1811 = vpop.f32.mrf.mxu0
    %v1812 = vadd.f32 %v1651, %v1811
    %1813 = vmatprep.mubr.f32.mxu0 %v309
    %1814 = vmatmul.mubr.f32.gmra.mxu0 %v300
    %v1815 = vpop.f32.mrf.mxu0
    %v1816 = vadd.f32 %v1655, %v1815
    %v1817 = vpop.f32.mrf.mxu0
    %v1818 = vadd.f32 %v1657, %v1817
    %1819 = vmatprep.mubr.f32.mxu0 %v310
    %1820 = vmatmul.mubr.f32.gmra.mxu0 %v301
    %v1821 = vpop.f32.mrf.mxu0
    %v1822 = vadd.f32 %v1661, %v1821
    %v1823 = vpop.f32.mrf.mxu0
    %v1824 = vadd.f32 %v1663, %v1823
    %1825 = vmatprep.mubr.f32.mxu0 %v312
    %1826 = vmatmul.mubr.f32.gmra.mxu0 %v303
    %v1827 = vpop.f32.mrf.mxu0
    %v1828 = vadd.f32 %v1667, %v1827
    %v1829 = vpop.f32.mrf.mxu0
    %v1830 = vadd.f32 %v1669, %v1829
    %1831 = vmatprep.mubr.f32.mxu0 %v313
    %1832 = vmatmul.mubr.f32.gmra.mxu0 %v304
    %v1833 = vpop.f32.mrf.mxu0
    %v1834 = vadd.f32 %v1673, %v1833
    %v1835 = vpop.f32.mrf.mxu0
    %v1836 = vadd.f32 %v1675, %v1835
    %1837 = vmatprep.mubr.f32.mxu0 %v314
    %1838 = vmatmul.mubr.f32.gmra.mxu0 %v305
    %v1839 = vpop.f32.mrf.mxu0
    %v1840 = vadd.f32 %v1679, %v1839
    %v1841 = vpop.f32.mrf.mxu0
    %v1842 = vadd.f32 %v1681, %v1841
    %1843 = vmatprep.mubr.f32.mxu0 %v315
    %1844 = vmatmul.mubr.f32.gmra.mxu0 %v306
    %v1845 = vpop.f32.mrf.mxu0
    %v1846 = vadd.f32 %v1685, %v1845
    %v1847 = vpop.f32.mrf.mxu0
    %v1848 = vadd.f32 %v1687, %v1847
    %1849 = vmatprep.mubr.f32.mxu0 %v316
    %1850 = vmatmul.mubr.f32.gmra.mxu0 %v307
    %v1851 = vpop.f32.mrf.mxu0
    %v1852 = vadd.f32 %v1691, %v1851
    %v1853 = vpop.f32.mrf.mxu0
    %v1854 = vadd.f32 %v1693, %v1853
    %1855 = vmatprep.mubr.f32.mxu0 %v317
    %1856 = vmatmul.mubr.f32.gmra.mxu0 %v308
    %v1857 = vpop.f32.mrf.mxu0
    %v1858 = vadd.f32 %v1697, %v1857
    %v1859 = vpop.f32.mrf.mxu0
    %v1860 = vadd.f32 %v1699, %v1859
    %1861 = vmatprep.mubr.f32.mxu0 %v318
    %1862 = vmatmul.mubr.f32.gmra.mxu0 %v309
    %v1863 = vpop.f32.mrf.mxu0
    %v1864 = vadd.f32 %v1703, %v1863
    %v1865 = vpop.f32.mrf.mxu0
    %v1866 = vadd.f32 %v1705, %v1865
    %1867 = vmatprep.mubr.f32.mxu0 %v319
    %1868 = vmatmul.mubr.f32.gmra.mxu0 %v310
    %v1869 = vpop.f32.mrf.mxu0
    %v1870 = vadd.f32 %v1709, %v1869
    %v1871 = vpop.f32.mrf.mxu0
    %v1872 = vadd.f32 %v1711, %v1871
    %1873 = vdwg.mxu0
    %1874 = vmatprep.subr.mxu0 %v239
    %1875 = vmatpush1.msra.mxu0 %v238
    %1876 = vmatprep.subr.mxu0 %v237
    %1877 = vmatpush1.msra.mxu0 %v236
    %1878 = vmatprep.subr.mxu0 %v235
    %1879 = vmatpush1.msra.mxu0 %v234
    %1880 = vmatprep.subr.mxu0 %v233
    %1881 = vmatpush1.msra.mxu0 %v232
    %1882 = vmatprep.subr.mxu0 %v231
    %1883 = vmatpush1.msra.mxu0 %v230
    %1884 = vmatprep.subr.mxu0 %v229
    %1885 = vmatpush1.msra.mxu0 %v228
    %1886 = vmatprep.subr.mxu0 %v227
    %1887 = vmatpush1.msra.mxu0 %v226
    %1888 = vmatprep.subr.mxu0 %v225
    %1889 = vmatpush1.msra.mxu0 %v224
    %1890 = vmatprep.subr.mxu0 %v223
    %1891 = vmatpush1.msra.mxu0 %v222
    %1892 = vmatprep.subr.mxu0 %v221
    %1893 = vmatpush1.msra.mxu0 %v220
    %1894 = vmatprep.subr.mxu0 %v219
    %1895 = vmatpush1.msra.mxu0 %v218
    %1896 = vmatprep.subr.mxu0 %v217
    %1897 = vmatpush1.msra.mxu0 %v216
    %1898 = vmatprep.subr.mxu0 %v215
    %1899 = vmatpush1.msra.mxu0 %v214
    %1900 = vmatprep.subr.mxu0 %v213
    %1901 = vmatpush1.msra.mxu0 %v212
    %1902 = vmatprep.subr.mxu0 %v211
    %1903 = vmatpush1.msra.mxu0 %v210
    %1904 = vmatprep.subr.mxu0 %v209
    %1905 = vmatpush1.msra.mxu0 %v208
    %1906 = vmatprep.subr.mxu0 0.0
    %1907 = vmatpush2.msra.mxu0 0.0
    %1908 = vmatprep.subr.mxu0 0.0
    %1909 = vmatpush2.msra.mxu0 0.0
    %1910 = vmatprep.subr.mxu0 0.0
    %1911 = vmatpush2.msra.mxu0 0.0
    %1912 = vmatprep.subr.mxu0 0.0
    %1913 = vmatpush2.msra.mxu0 0.0
    %1914 = vmatprep.subr.mxu0 0.0
    %1915 = vmatpush2.msra.mxu0 0.0
    %1916 = vmatprep.subr.mxu0 0.0
    %1917 = vmatpush2.msra.mxu0 0.0
    %1918 = vmatprep.subr.mxu0 0.0
    %1919 = vmatpush2.msra.mxu0 0.0
    %1920 = vmatprep.subr.mxu0 0.0
    %1921 = vmatpush2.msra.mxu0 0.0
    %1922 = vmatprep.subr.mxu0 0.0
    %1923 = vmatpush2.msra.mxu0 0.0
    %1924 = vmatprep.subr.mxu0 0.0
    %1925 = vmatpush2.msra.mxu0 0.0
    %1926 = vmatprep.subr.mxu0 0.0
    %1927 = vmatpush2.msra.mxu0 0.0
    %1928 = vmatprep.subr.mxu0 0.0
    %1929 = vmatpush2.msra.mxu0 0.0
    %1930 = vmatprep.subr.mxu0 0.0
    %1931 = vmatpush2.msra.mxu0 0.0
    %1932 = vmatprep.subr.mxu0 0.0
    %1933 = vmatpush2.msra.mxu0 0.0
    %1934 = vmatprep.subr.mxu0 0.0
    %1935 = vmatpush2.msra.mxu0 0.0
    %1936 = vmatprep.subr.mxu0 0.0
    %1937 = vmatpush2.msra.mxu0 0.0
    %1938 = vmatprep.mubr.f32.mxu0 0.0
    %1939 = vmatmul.mubr.f32.gmra.mxu0 %v312
    %v1940 = vpop.f32.mrf.mxu0
    %v1941 = vadd.f32 %v1780, %v1940
    %v1942 = vpop.f32.mrf.mxu0
    %v1943 = vadd.f32 %v1782, %v1942
    %1944 = vmatprep.mubr.f32.mxu0 0.0
    %1945 = vmatmul.mubr.f32.gmra.mxu0 %v313
    %v1946 = vpop.f32.mrf.mxu0
    %v1947 = vadd.f32 %v1786, %v1946
    %v1948 = vpop.f32.mrf.mxu0
    %v1949 = vadd.f32 %v1788, %v1948
    %1950 = vmatprep.mubr.f32.mxu0 0.0
    %1951 = vmatmul.mubr.f32.gmra.mxu0 %v314
    %v1952 = vpop.f32.mrf.mxu0
    %v1953 = vadd.f32 %v1792, %v1952
    %v1954 = vpop.f32.mrf.mxu0
    %v1955 = vadd.f32 %v1794, %v1954
    %1956 = vmatprep.mubr.f32.mxu0 0.0
    %1957 = vmatmul.mubr.f32.gmra.mxu0 %v315
    %v1958 = vpop.f32.mrf.mxu0
    %v1959 = vadd.f32 %v1798, %v1958
    %v1960 = vpop.f32.mrf.mxu0
    %v1961 = vadd.f32 %v1800, %v1960
    %1962 = vmatprep.mubr.f32.mxu0 0.0
    %1963 = vmatmul.mubr.f32.gmra.mxu0 %v316
    %v1964 = vpop.f32.mrf.mxu0
    %v1965 = vadd.f32 %v1804, %v1964
    %v1966 = vpop.f32.mrf.mxu0
    %v1967 = vadd.f32 %v1806, %v1966
    %1968 = vmatprep.mubr.f32.mxu0 0.0
    %1969 = vmatmul.mubr.f32.gmra.mxu0 %v317
    %v1970 = vpop.f32.mrf.mxu0
    %v1971 = vadd.f32 %v1810, %v1970
    %v1972 = vpop.f32.mrf.mxu0
    %v1973 = vadd.f32 %v1812, %v1972
    %1974 = vmatprep.mubr.f32.mxu0 0.0
    %1975 = vmatmul.mubr.f32.gmra.mxu0 %v318
    %v1976 = vpop.f32.mrf.mxu0
    %v1977 = vadd.f32 %v1816, %v1976
    %v1978 = vpop.f32.mrf.mxu0
    %v1979 = vadd.f32 %v1818, %v1978
    %1980 = vmatprep.mubr.f32.mxu0 0.0
    %1981 = vmatmul.mubr.f32.gmra.mxu0 %v319
    %v1982 = vpop.f32.mrf.mxu0
    %v1983 = vadd.f32 %v1822, %v1982
    %v1984 = vpop.f32.mrf.mxu0
    %v1985 = vadd.f32 %v1824, %v1984
    %1986 = vmatprep.mubr.f32.mxu0 0.0
    %1987 = vmatmul.mubr.f32.gmra.mxu0 %v321
    %v1988 = vpop.f32.mrf.mxu0
    %v1989 = vadd.f32 %v1828, %v1988
    %v1990 = vpop.f32.mrf.mxu0
    %v1991 = vadd.f32 %v1830, %v1990
    %1992 = vmatprep.mubr.f32.mxu0 0.0
    %1993 = vmatmul.mubr.f32.gmra.mxu0 %v322
    %v1994 = vpop.f32.mrf.mxu0
    %v1995 = vadd.f32 %v1834, %v1994
    %v1996 = vpop.f32.mrf.mxu0
    %v1997 = vadd.f32 %v1836, %v1996
    %1998 = vmatprep.mubr.f32.mxu0 0.0
    %1999 = vmatmul.mubr.f32.gmra.mxu0 %v323
    %v2000 = vpop.f32.mrf.mxu0
    %v2001 = vadd.f32 %v1840, %v2000
    %v2002 = vpop.f32.mrf.mxu0
    %v2003 = vadd.f32 %v1842, %v2002
    %2004 = vmatprep.mubr.f32.mxu0 0.0
    %2005 = vmatmul.mubr.f32.gmra.mxu0 %v324
    %v2006 = vpop.f32.mrf.mxu0
    %v2007 = vadd.f32 %v1846, %v2006
    %v2008 = vpop.f32.mrf.mxu0
    %v2009 = vadd.f32 %v1848, %v2008
    %2010 = vmatprep.mubr.f32.mxu0 0.0
    %2011 = vmatmul.mubr.f32.gmra.mxu0 %v325
    %v2012 = vpop.f32.mrf.mxu0
    %v2013 = vadd.f32 %v1852, %v2012
    %v2014 = vpop.f32.mrf.mxu0
    %v2015 = vadd.f32 %v1854, %v2014
    %2016 = vmatprep.mubr.f32.mxu0 0.0
    %2017 = vmatmul.mubr.f32.gmra.mxu0 %v326
    %v2018 = vpop.f32.mrf.mxu0
    %v2019 = vadd.f32 %v1858, %v2018
    %v2020 = vpop.f32.mrf.mxu0
    %v2021 = vadd.f32 %v1860, %v2020
    %2022 = vmatprep.mubr.f32.mxu0 0.0
    %2023 = vmatmul.mubr.f32.gmra.mxu0 %v327
    %v2024 = vpop.f32.mrf.mxu0
    %v2025 = vadd.f32 %v1864, %v2024
    %v2026 = vpop.f32.mrf.mxu0
    %v2027 = vadd.f32 %v1866, %v2026
    %2028 = vmatprep.mubr.f32.mxu0 0.0
    %2029 = vmatmul.mubr.f32.gmra.mxu0 %v328
    %v2030 = vpop.f32.mrf.mxu0
    %v2031 = vadd.f32 %v1870, %v2030
    %v2032 = vpop.f32.mrf.mxu0
    %v2033 = vadd.f32 %v1872, %v2032
    %2034 = vdwg.mxu0
    %v2035 = vmax.f32 %v1941, %v1943
    %v2036 = vmax.f32 %v1947, %v1949
    %v2037 = vmax.f32 %v1953, %v1955
    %v2038 = vmax.f32 %v1959, %v1961
    %v2039 = vmax.f32 %v1965, %v1967
    %v2040 = vmax.f32 %v1971, %v1973
    %v2041 = vmax.f32 %v1977, %v1979
    %v2042 = vmax.f32 %v1983, %v1985
    %v2043 = vmax.f32 %v1989, %v1991
    %v2044 = vmax.f32 %v1995, %v1997
    %v2045 = vmax.f32 %v2001, %v2003
    %v2046 = vmax.f32 %v2007, %v2009
    %v2047 = vmax.f32 %v2013, %v2015
    %v2048 = vmax.f32 %v2019, %v2021
    %v2049 = vmax.f32 %v2025, %v2027
    %v2050 = vmax.f32 %v2031, %v2033
    %v2051 = vmax.f32 %v2035, %v2043
    %v2052 = vmax.f32 %v2036, %v2044
    %v2053 = vmax.f32 %v2037, %v2045
    %v2054 = vmax.f32 %v2038, %v2046
    %v2055 = vmax.f32 %v2039, %v2047
    %v2056 = vmax.f32 %v2040, %v2048
    %v2057 = vmax.f32 %v2041, %v2049
    %v2058 = vmax.f32 %v2042, %v2050
    %v2059 = vadd.f32 %v2051, %v1003
    %v2060 = vadd.f32 %v2052, %v1003
    %v2061 = vadd.f32 %v2053, %v1003
    %v2062 = vadd.f32 %v2054, %v1003
    %v2063 = vadd.f32 %v2055, %v1003
    %v2064 = vadd.f32 %v2056, %v1003
    %v2065 = vadd.f32 %v2057, %v1003
    %v2066 = vadd.f32 %v2058, %v1003
    %v2067 = vmax.f32 %v2059, 0.0
    %v2068 = vmax.f32 %v2060, 0.0
    %v2069 = vmax.f32 %v2061, 0.0
    %v2070 = vmax.f32 %v2062, 0.0
    %v2071 = vmax.f32 %v2063, 0.0
    %v2072 = vmax.f32 %v2064, 0.0
    %v2073 = vmax.f32 %v2065, 0.0
    %v2074 = vmax.f32 %v2066, 0.0
    %v2075 = vpack.c.bf16 %v2068, %v2067
    %v2076 = vpack.c.bf16 %v2070, %v2069
    %v2077 = vpack.c.bf16 %v2072, %v2071
    %v2078 = vpack.c.bf16 %v2074, %v2073
    %2079 = vmatprep.subr.mxu0 %v111
    %2080 = vmatpush1.msra.mxu0 %v110
    %2081 = vmatprep.subr.mxu0 %v109
    %2082 = vmatpush1.msra.mxu0 %v108
    %2083 = vmatprep.subr.mxu0 %v107
    %2084 = vmatpush1.msra.mxu0 %v106
    %2085 = vmatprep.subr.mxu0 %v105
    %2086 = vmatpush1.msra.mxu0 %v104
    %2087 = vmatprep.subr.mxu0 %v103
    %2088 = vmatpush1.msra.mxu0 %v102
    %2089 = vmatprep.subr.mxu0 %v101
    %2090 = vmatpush1.msra.mxu0 %v100
    %2091 = vmatprep.subr.mxu0 %v99
    %2092 = vmatpush1.msra.mxu0 %v98
    %2093 = vmatprep.subr.mxu0 %v97
    %2094 = vmatpush1.msra.mxu0 %v96
    %2095 = vmatprep.subr.mxu0 %v95
    %2096 = vmatpush1.msra.mxu0 %v94
    %2097 = vmatprep.subr.mxu0 %v93
    %2098 = vmatpush1.msra.mxu0 %v92
    %2099 = vmatprep.subr.mxu0 %v91
    %2100 = vmatpush1.msra.mxu0 %v90
    %2101 = vmatprep.subr.mxu0 %v89
    %2102 = vmatpush1.msra.mxu0 %v88
    %2103 = vmatprep.subr.mxu0 %v87
    %2104 = vmatpush1.msra.mxu0 %v86
    %2105 = vmatprep.subr.mxu0 %v85
    %2106 = vmatpush1.msra.mxu0 %v84
    %2107 = vmatprep.subr.mxu0 %v83
    %2108 = vmatpush1.msra.mxu0 %v82
    %2109 = vmatprep.subr.mxu0 %v81
    %2110 = vmatpush1.msra.mxu0 %v80
    %2111 = vmatprep.subr.mxu0 %v143
    %2112 = vmatpush2.msra.mxu0 %v142
    %2113 = vmatprep.subr.mxu0 %v141
    %2114 = vmatpush2.msra.mxu0 %v140
    %2115 = vmatprep.subr.mxu0 %v139
    %2116 = vmatpush2.msra.mxu0 %v138
    %2117 = vmatprep.subr.mxu0 %v137
    %2118 = vmatpush2.msra.mxu0 %v136
    %2119 = vmatprep.subr.mxu0 %v135
    %2120 = vmatpush2.msra.mxu0 %v134
    %2121 = vmatprep.subr.mxu0 %v133
    %2122 = vmatpush2.msra.mxu0 %v132
    %2123 = vmatprep.subr.mxu0 %v131
    %2124 = vmatpush2.msra.mxu0 %v130
    %2125 = vmatprep.subr.mxu0 %v129
    %2126 = vmatpush2.msra.mxu0 %v128
    %2127 = vmatprep.subr.mxu0 %v127
    %2128 = vmatpush2.msra.mxu0 %v126
    %2129 = vmatprep.subr.mxu0 %v125
    %2130 = vmatpush2.msra.mxu0 %v124
    %2131 = vmatprep.subr.mxu0 %v123
    %2132 = vmatpush2.msra.mxu0 %v122
    %2133 = vmatprep.subr.mxu0 %v121
    %2134 = vmatpush2.msra.mxu0 %v120
    %2135 = vmatprep.subr.mxu0 %v119
    %2136 = vmatpush2.msra.mxu0 %v118
    %2137 = vmatprep.subr.mxu0 %v117
    %2138 = vmatpush2.msra.mxu0 %v116
    %2139 = vmatprep.subr.mxu0 %v115
    %2140 = vmatpush2.msra.mxu0 %v114
    %2141 = vmatprep.subr.mxu0 %v113
    %2142 = vmatpush2.msra.mxu0 %v112
    %2143 = vmatprep.mubr.f32.mxu0 %v303
    %2144 = vmatmul.mubr.f32.gmra.mxu0 %v294
    %v2145 = vpop.f32.mrf.mxu0
    %v2146 = vadd.f32 0.0, %v2145
    %v2147 = vpop.f32.mrf.mxu0
    %v2148 = vadd.f32 0.0, %v2147
    %2149 = vmatprep.mubr.f32.mxu0 %v304
    %2150 = vmatmul.mubr.f32.gmra.mxu0 %v295
    %v2151 = vpop.f32.mrf.mxu0
    %v2152 = vadd.f32 0.0, %v2151
    %v2153 = vpop.f32.mrf.mxu0
    %v2154 = vadd.f32 0.0, %v2153
    %2155 = vmatprep.mubr.f32.mxu0 %v305
    %2156 = vmatmul.mubr.f32.gmra.mxu0 %v296
    %v2157 = vpop.f32.mrf.mxu0
    %v2158 = vadd.f32 0.0, %v2157
    %v2159 = vpop.f32.mrf.mxu0
    %v2160 = vadd.f32 0.0, %v2159
    %2161 = vmatprep.mubr.f32.mxu0 %v306
    %2162 = vmatmul.mubr.f32.gmra.mxu0 %v297
    %v2163 = vpop.f32.mrf.mxu0
    %v2164 = vadd.f32 0.0, %v2163
    %v2165 = vpop.f32.mrf.mxu0
    %v2166 = vadd.f32 0.0, %v2165
    %2167 = vmatprep.mubr.f32.mxu0 %v307
    %2168 = vmatmul.mubr.f32.gmra.mxu0 %v298
    %v2169 = vpop.f32.mrf.mxu0
    %v2170 = vadd.f32 0.0, %v2169
    %v2171 = vpop.f32.mrf.mxu0
    %v2172 = vadd.f32 0.0, %v2171
    %2173 = vmatprep.mubr.f32.mxu0 %v308
    %2174 = vmatmul.mubr.f32.gmra.mxu0 %v299
    %v2175 = vpop.f32.mrf.mxu0
    %v2176 = vadd.f32 0.0, %v2175
    %v2177 = vpop.f32.mrf.mxu0
    %v2178 = vadd.f32 0.0, %v2177
    %2179 = vmatprep.mubr.f32.mxu0 %v309
    %2180 = vmatmul.mubr.f32.gmra.mxu0 %v300
    %v2181 = vpop.f32.mrf.mxu0
    %v2182 = vadd.f32 0.0, %v2181
    %v2183 = vpop.f32.mrf.mxu0
    %v2184 = vadd.f32 0.0, %v2183
    %2185 = vmatprep.mubr.f32.mxu0 %v310
    %2186 = vmatmul.mubr.f32.gmra.mxu0 %v301
    %v2187 = vpop.f32.mrf.mxu0
    %v2188 = vadd.f32 0.0, %v2187
    %v2189 = vpop.f32.mrf.mxu0
    %v2190 = vadd.f32 0.0, %v2189
    %2191 = vmatprep.mubr.f32.mxu0 %v312
    %2192 = vmatmul.mubr.f32.gmra.mxu0 %v303
    %v2193 = vpop.f32.mrf.mxu0
    %v2194 = vadd.f32 0.0, %v2193
    %v2195 = vpop.f32.mrf.mxu0
    %v2196 = vadd.f32 0.0, %v2195
    %2197 = vmatprep.mubr.f32.mxu0 %v313
    %2198 = vmatmul.mubr.f32.gmra.mxu0 %v304
    %v2199 = vpop.f32.mrf.mxu0
    %v2200 = vadd.f32 0.0, %v2199
    %v2201 = vpop.f32.mrf.mxu0
    %v2202 = vadd.f32 0.0, %v2201
    %2203 = vmatprep.mubr.f32.mxu0 %v314
    %2204 = vmatmul.mubr.f32.gmra.mxu0 %v305
    %v2205 = vpop.f32.mrf.mxu0
    %v2206 = vadd.f32 0.0, %v2205
    %v2207 = vpop.f32.mrf.mxu0
    %v2208 = vadd.f32 0.0, %v2207
    %2209 = vmatprep.mubr.f32.mxu0 %v315
    %2210 = vmatmul.mubr.f32.gmra.mxu0 %v306
    %v2211 = vpop.f32.mrf.mxu0
    %v2212 = vadd.f32 0.0, %v2211
    %v2213 = vpop.f32.mrf.mxu0
    %v2214 = vadd.f32 0.0, %v2213
    %2215 = vmatprep.mubr.f32.mxu0 %v316
    %2216 = vmatmul.mubr.f32.gmra.mxu0 %v307
    %v2217 = vpop.f32.mrf.mxu0
    %v2218 = vadd.f32 0.0, %v2217
    %v2219 = vpop.f32.mrf.mxu0
    %v2220 = vadd.f32 0.0, %v2219
    %2221 = vmatprep.mubr.f32.mxu0 %v317
    %2222 = vmatmul.mubr.f32.gmra.mxu0 %v308
    %v2223 = vpop.f32.mrf.mxu0
    %v2224 = vadd.f32 0.0, %v2223
    %v2225 = vpop.f32.mrf.mxu0
    %v2226 = vadd.f32 0.0, %v2225
    %2227 = vmatprep.mubr.f32.mxu0 %v318
    %2228 = vmatmul.mubr.f32.gmra.mxu0 %v309
    %v2229 = vpop.f32.mrf.mxu0
    %v2230 = vadd.f32 0.0, %v2229
    %v2231 = vpop.f32.mrf.mxu0
    %v2232 = vadd.f32 0.0, %v2231
    %2233 = vmatprep.mubr.f32.mxu0 %v319
    %2234 = vmatmul.mubr.f32.gmra.mxu0 %v310
    %v2235 = vpop.f32.mrf.mxu0
    %v2236 = vadd.f32 0.0, %v2235
    %v2237 = vpop.f32.mrf.mxu0
    %v2238 = vadd.f32 0.0, %v2237
    %2239 = vdwg.mxu0
    %2240 = vmatprep.subr.mxu0 %v175
    %2241 = vmatpush1.msra.mxu0 %v174
    %2242 = vmatprep.subr.mxu0 %v173
    %2243 = vmatpush1.msra.mxu0 %v172
    %2244 = vmatprep.subr.mxu0 %v171
    %2245 = vmatpush1.msra.mxu0 %v170
    %2246 = vmatprep.subr.mxu0 %v169
    %2247 = vmatpush1.msra.mxu0 %v168
    %2248 = vmatprep.subr.mxu0 %v167
    %2249 = vmatpush1.msra.mxu0 %v166
    %2250 = vmatprep.subr.mxu0 %v165
    %2251 = vmatpush1.msra.mxu0 %v164
    %2252 = vmatprep.subr.mxu0 %v163
    %2253 = vmatpush1.msra.mxu0 %v162
    %2254 = vmatprep.subr.mxu0 %v161
    %2255 = vmatpush1.msra.mxu0 %v160
    %2256 = vmatprep.subr.mxu0 %v159
    %2257 = vmatpush1.msra.mxu0 %v158
    %2258 = vmatprep.subr.mxu0 %v157
    %2259 = vmatpush1.msra.mxu0 %v156
    %2260 = vmatprep.subr.mxu0 %v155
    %2261 = vmatpush1.msra.mxu0 %v154
    %2262 = vmatprep.subr.mxu0 %v153
    %2263 = vmatpush1.msra.mxu0 %v152
    %2264 = vmatprep.subr.mxu0 %v151
    %2265 = vmatpush1.msra.mxu0 %v150
    %2266 = vmatprep.subr.mxu0 %v149
    %2267 = vmatpush1.msra.mxu0 %v148
    %2268 = vmatprep.subr.mxu0 %v147
    %2269 = vmatpush1.msra.mxu0 %v146
    %2270 = vmatprep.subr.mxu0 %v145
    %2271 = vmatpush1.msra.mxu0 %v144
    %2272 = vmatprep.subr.mxu0 %v207
    %2273 = vmatpush2.msra.mxu0 %v206
    %2274 = vmatprep.subr.mxu0 %v205
    %2275 = vmatpush2.msra.mxu0 %v204
    %2276 = vmatprep.subr.mxu0 %v203
    %2277 = vmatpush2.msra.mxu0 %v202
    %2278 = vmatprep.subr.mxu0 %v201
    %2279 = vmatpush2.msra.mxu0 %v200
    %2280 = vmatprep.subr.mxu0 %v199
    %2281 = vmatpush2.msra.mxu0 %v198
    %2282 = vmatprep.subr.mxu0 %v197
    %2283 = vmatpush2.msra.mxu0 %v196
    %2284 = vmatprep.subr.mxu0 %v195
    %2285 = vmatpush2.msra.mxu0 %v194
    %2286 = vmatprep.subr.mxu0 %v193
    %2287 = vmatpush2.msra.mxu0 %v192
    %2288 = vmatprep.subr.mxu0 %v191
    %2289 = vmatpush2.msra.mxu0 %v190
    %2290 = vmatprep.subr.mxu0 %v189
    %2291 = vmatpush2.msra.mxu0 %v188
    %2292 = vmatprep.subr.mxu0 %v187
    %2293 = vmatpush2.msra.mxu0 %v186
    %2294 = vmatprep.subr.mxu0 %v185
    %2295 = vmatpush2.msra.mxu0 %v184
    %2296 = vmatprep.subr.mxu0 %v183
    %2297 = vmatpush2.msra.mxu0 %v182
    %2298 = vmatprep.subr.mxu0 %v181
    %2299 = vmatpush2.msra.mxu0 %v180
    %2300 = vmatprep.subr.mxu0 %v179
    %2301 = vmatpush2.msra.mxu0 %v178
    %2302 = vmatprep.subr.mxu0 %v177
    %2303 = vmatpush2.msra.mxu0 %v176
    %2304 = vmatprep.mubr.f32.mxu0 %v321
    %2305 = vmatmul.mubr.f32.gmra.mxu0 %v312
    %v2306 = vpop.f32.mrf.mxu0
    %v2307 = vadd.f32 %v2146, %v2306
    %v2308 = vpop.f32.mrf.mxu0
    %v2309 = vadd.f32 %v2148, %v2308
    %2310 = vmatprep.mubr.f32.mxu0 %v322
    %2311 = vmatmul.mubr.f32.gmra.mxu0 %v313
    %v2312 = vpop.f32.mrf.mxu0
    %v2313 = vadd.f32 %v2152, %v2312
    %v2314 = vpop.f32.mrf.mxu0
    %v2315 = vadd.f32 %v2154, %v2314
    %2316 = vmatprep.mubr.f32.mxu0 %v323
    %2317 = vmatmul.mubr.f32.gmra.mxu0 %v314
    %v2318 = vpop.f32.mrf.mxu0
    %v2319 = vadd.f32 %v2158, %v2318
    %v2320 = vpop.f32.mrf.mxu0
    %v2321 = vadd.f32 %v2160, %v2320
    %2322 = vmatprep.mubr.f32.mxu0 %v324
    %2323 = vmatmul.mubr.f32.gmra.mxu0 %v315
    %v2324 = vpop.f32.mrf.mxu0
    %v2325 = vadd.f32 %v2164, %v2324
    %v2326 = vpop.f32.mrf.mxu0
    %v2327 = vadd.f32 %v2166, %v2326
    %2328 = vmatprep.mubr.f32.mxu0 %v325
    %2329 = vmatmul.mubr.f32.gmra.mxu0 %v316
    %v2330 = vpop.f32.mrf.mxu0
    %v2331 = vadd.f32 %v2170, %v2330
    %v2332 = vpop.f32.mrf.mxu0
    %v2333 = vadd.f32 %v2172, %v2332
    %2334 = vmatprep.mubr.f32.mxu0 %v326
    %2335 = vmatmul.mubr.f32.gmra.mxu0 %v317
    %v2336 = vpop.f32.mrf.mxu0
    %v2337 = vadd.f32 %v2176, %v2336
    %v2338 = vpop.f32.mrf.mxu0
    %v2339 = vadd.f32 %v2178, %v2338
    %2340 = vmatprep.mubr.f32.mxu0 %v327
    %2341 = vmatmul.mubr.f32.gmra.mxu0 %v318
    %v2342 = vpop.f32.mrf.mxu0
    %v2343 = vadd.f32 %v2182, %v2342
    %v2344 = vpop.f32.mrf.mxu0
    %v2345 = vadd.f32 %v2184, %v2344
    %2346 = vmatprep.mubr.f32.mxu0 %v328
    %2347 = vmatmul.mubr.f32.gmra.mxu0 %v319
    %v2348 = vpop.f32.mrf.mxu0
    %v2349 = vadd.f32 %v2188, %v2348
    %v2350 = vpop.f32.mrf.mxu0
    %v2351 = vadd.f32 %v2190, %v2350
    %2352 = vmatprep.mubr.f32.mxu0 %v330
    %2353 = vmatmul.mubr.f32.gmra.mxu0 %v321
    %v2354 = vpop.f32.mrf.mxu0
    %v2355 = vadd.f32 %v2194, %v2354
    %v2356 = vpop.f32.mrf.mxu0
    %v2357 = vadd.f32 %v2196, %v2356
    %2358 = vmatprep.mubr.f32.mxu0 %v331
    %2359 = vmatmul.mubr.f32.gmra.mxu0 %v322
    %v2360 = vpop.f32.mrf.mxu0
    %v2361 = vadd.f32 %v2200, %v2360
    %v2362 = vpop.f32.mrf.mxu0
    %v2363 = vadd.f32 %v2202, %v2362
    %2364 = vmatprep.mubr.f32.mxu0 %v332
    %2365 = vmatmul.mubr.f32.gmra.mxu0 %v323
    %v2366 = vpop.f32.mrf.mxu0
    %v2367 = vadd.f32 %v2206, %v2366
    %v2368 = vpop.f32.mrf.mxu0
    %v2369 = vadd.f32 %v2208, %v2368
    %2370 = vmatprep.mubr.f32.mxu0 %v333
    %2371 = vmatmul.mubr.f32.gmra.mxu0 %v324
    %v2372 = vpop.f32.mrf.mxu0
    %v2373 = vadd.f32 %v2212, %v2372
    %v2374 = vpop.f32.mrf.mxu0
    %v2375 = vadd.f32 %v2214, %v2374
    %2376 = vmatprep.mubr.f32.mxu0 %v334
    %2377 = vmatmul.mubr.f32.gmra.mxu0 %v325
    %v2378 = vpop.f32.mrf.mxu0
    %v2379 = vadd.f32 %v2218, %v2378
    %v2380 = vpop.f32.mrf.mxu0
    %v2381 = vadd.f32 %v2220, %v2380
    %2382 = vmatprep.mubr.f32.mxu0 %v335
    %2383 = vmatmul.mubr.f32.gmra.mxu0 %v326
    %v2384 = vpop.f32.mrf.mxu0
    %v2385 = vadd.f32 %v2224, %v2384
    %v2386 = vpop.f32.mrf.mxu0
    %v2387 = vadd.f32 %v2226, %v2386
    %2388 = vmatprep.mubr.f32.mxu0 %v336
    %2389 = vmatmul.mubr.f32.gmra.mxu0 %v327
    %v2390 = vpop.f32.mrf.mxu0
    %v2391 = vadd.f32 %v2230, %v2390
    %v2392 = vpop.f32.mrf.mxu0
    %v2393 = vadd.f32 %v2232, %v2392
    %2394 = vmatprep.mubr.f32.mxu0 %v337
    %2395 = vmatmul.mubr.f32.gmra.mxu0 %v328
    %v2396 = vpop.f32.mrf.mxu0
    %v2397 = vadd.f32 %v2236, %v2396
    %v2398 = vpop.f32.mrf.mxu0
    %v2399 = vadd.f32 %v2238, %v2398
    %2400 = vdwg.mxu0
    %2401 = vmatprep.subr.mxu0 %v239
    %2402 = vmatpush1.msra.mxu0 %v238
    %2403 = vmatprep.subr.mxu0 %v237
    %2404 = vmatpush1.msra.mxu0 %v236
    %2405 = vmatprep.subr.mxu0 %v235
    %2406 = vmatpush1.msra.mxu0 %v234
    %2407 = vmatprep.subr.mxu0 %v233
    %2408 = vmatpush1.msra.mxu0 %v232
    %2409 = vmatprep.subr.mxu0 %v231
    %2410 = vmatpush1.msra.mxu0 %v230
    %2411 = vmatprep.subr.mxu0 %v229
    %2412 = vmatpush1.msra.mxu0 %v228
    %2413 = vmatprep.subr.mxu0 %v227
    %2414 = vmatpush1.msra.mxu0 %v226
    %2415 = vmatprep.subr.mxu0 %v225
    %2416 = vmatpush1.msra.mxu0 %v224
    %2417 = vmatprep.subr.mxu0 %v223
    %2418 = vmatpush1.msra.mxu0 %v222
    %2419 = vmatprep.subr.mxu0 %v221
    %2420 = vmatpush1.msra.mxu0 %v220
    %2421 = vmatprep.subr.mxu0 %v219
    %2422 = vmatpush1.msra.mxu0 %v218
    %2423 = vmatprep.subr.mxu0 %v217
    %2424 = vmatpush1.msra.mxu0 %v216
    %2425 = vmatprep.subr.mxu0 %v215
    %2426 = vmatpush1.msra.mxu0 %v214
    %2427 = vmatprep.subr.mxu0 %v213
    %2428 = vmatpush1.msra.mxu0 %v212
    %2429 = vmatprep.subr.mxu0 %v211
    %2430 = vmatpush1.msra.mxu0 %v210
    %2431 = vmatprep.subr.mxu0 %v209
    %2432 = vmatpush1.msra.mxu0 %v208
    %2433 = vmatprep.subr.mxu0 0.0
    %2434 = vmatpush2.msra.mxu0 0.0
    %2435 = vmatprep.subr.mxu0 0.0
    %2436 = vmatpush2.msra.mxu0 0.0
    %2437 = vmatprep.subr.mxu0 0.0
    %2438 = vmatpush2.msra.mxu0 0.0
    %2439 = vmatprep.subr.mxu0 0.0
    %2440 = vmatpush2.msra.mxu0 0.0
    %2441 = vmatprep.subr.mxu0 0.0
    %2442 = vmatpush2.msra.mxu0 0.0
    %2443 = vmatprep.subr.mxu0 0.0
    %2444 = vmatpush2.msra.mxu0 0.0
    %2445 = vmatprep.subr.mxu0 0.0
    %2446 = vmatpush2.msra.mxu0 0.0
    %2447 = vmatprep.subr.mxu0 0.0
    %2448 = vmatpush2.msra.mxu0 0.0
    %2449 = vmatprep.subr.mxu0 0.0
    %2450 = vmatpush2.msra.mxu0 0.0
    %2451 = vmatprep.subr.mxu0 0.0
    %2452 = vmatpush2.msra.mxu0 0.0
    %2453 = vmatprep.subr.mxu0 0.0
    %2454 = vmatpush2.msra.mxu0 0.0
    %2455 = vmatprep.subr.mxu0 0.0
    %2456 = vmatpush2.msra.mxu0 0.0
    %2457 = vmatprep.subr.mxu0 0.0
    %2458 = vmatpush2.msra.mxu0 0.0
    %2459 = vmatprep.subr.mxu0 0.0
    %2460 = vmatpush2.msra.mxu0 0.0
    %2461 = vmatprep.subr.mxu0 0.0
    %2462 = vmatpush2.msra.mxu0 0.0
    %2463 = vmatprep.subr.mxu0 0.0
    %2464 = vmatpush2.msra.mxu0 0.0
    %2465 = vmatprep.mubr.f32.mxu0 0.0
    %2466 = vmatmul.mubr.f32.gmra.mxu0 %v330
    %v2467 = vpop.f32.mrf.mxu0
    %v2468 = vadd.f32 %v2307, %v2467
    %v2469 = vpop.f32.mrf.mxu0
    %v2470 = vadd.f32 %v2309, %v2469
    %2471 = vmatprep.mubr.f32.mxu0 0.0
    %2472 = vmatmul.mubr.f32.gmra.mxu0 %v331
    %v2473 = vpop.f32.mrf.mxu0
    %v2474 = vadd.f32 %v2313, %v2473
    %v2475 = vpop.f32.mrf.mxu0
    %v2476 = vadd.f32 %v2315, %v2475
    %2477 = vmatprep.mubr.f32.mxu0 0.0
    %2478 = vmatmul.mubr.f32.gmra.mxu0 %v332
    %v2479 = vpop.f32.mrf.mxu0
    %v2480 = vadd.f32 %v2319, %v2479
    %v2481 = vpop.f32.mrf.mxu0
    %v2482 = vadd.f32 %v2321, %v2481
    %2483 = vmatprep.mubr.f32.mxu0 0.0
    %2484 = vmatmul.mubr.f32.gmra.mxu0 %v333
    %v2485 = vpop.f32.mrf.mxu0
    %v2486 = vadd.f32 %v2325, %v2485
    %v2487 = vpop.f32.mrf.mxu0
    %v2488 = vadd.f32 %v2327, %v2487
    %2489 = vmatprep.mubr.f32.mxu0 0.0
    %2490 = vmatmul.mubr.f32.gmra.mxu0 %v334
    %v2491 = vpop.f32.mrf.mxu0
    %v2492 = vadd.f32 %v2331, %v2491
    %v2493 = vpop.f32.mrf.mxu0
    %v2494 = vadd.f32 %v2333, %v2493
    %2495 = vmatprep.mubr.f32.mxu0 0.0
    %2496 = vmatmul.mubr.f32.gmra.mxu0 %v335
    %v2497 = vpop.f32.mrf.mxu0
    %v2498 = vadd.f32 %v2337, %v2497
    %v2499 = vpop.f32.mrf.mxu0
    %v2500 = vadd.f32 %v2339, %v2499
    %2501 = vmatprep.mubr.f32.mxu0 0.0
    %2502 = vmatmul.mubr.f32.gmra.mxu0 %v336
    %v2503 = vpop.f32.mrf.mxu0
    %v2504 = vadd.f32 %v2343, %v2503
    %v2505 = vpop.f32.mrf.mxu0
    %v2506 = vadd.f32 %v2345, %v2505
    %2507 = vmatprep.mubr.f32.mxu0 0.0
    %2508 = vmatmul.mubr.f32.gmra.mxu0 %v337
    %v2509 = vpop.f32.mrf.mxu0
    %v2510 = vadd.f32 %v2349, %v2509
    %v2511 = vpop.f32.mrf.mxu0
    %v2512 = vadd.f32 %v2351, %v2511
    %2513 = vmatprep.mubr.f32.mxu0 0.0
    %2514 = vmatmul.mubr.f32.gmra.mxu0 %v339
    %v2515 = vpop.f32.mrf.mxu0
    %v2516 = vadd.f32 %v2355, %v2515
    %v2517 = vpop.f32.mrf.mxu0
    %v2518 = vadd.f32 %v2357, %v2517
    %2519 = vmatprep.mubr.f32.mxu0 0.0
    %2520 = vmatmul.mubr.f32.gmra.mxu0 %v340
    %v2521 = vpop.f32.mrf.mxu0
    %v2522 = vadd.f32 %v2361, %v2521
    %v2523 = vpop.f32.mrf.mxu0
    %v2524 = vadd.f32 %v2363, %v2523
    %2525 = vmatprep.mubr.f32.mxu0 0.0
    %2526 = vmatmul.mubr.f32.gmra.mxu0 %v341
    %v2527 = vpop.f32.mrf.mxu0
    %v2528 = vadd.f32 %v2367, %v2527
    %v2529 = vpop.f32.mrf.mxu0
    %v2530 = vadd.f32 %v2369, %v2529
    %2531 = vmatprep.mubr.f32.mxu0 0.0
    %2532 = vmatmul.mubr.f32.gmra.mxu0 %v342
    %v2533 = vpop.f32.mrf.mxu0
    %v2534 = vadd.f32 %v2373, %v2533
    %v2535 = vpop.f32.mrf.mxu0
    %v2536 = vadd.f32 %v2375, %v2535
    %2537 = vmatprep.mubr.f32.mxu0 0.0
    %2538 = vmatmul.mubr.f32.gmra.mxu0 %v343
    %v2539 = vpop.f32.mrf.mxu0
    %v2540 = vadd.f32 %v2379, %v2539
    %v2541 = vpop.f32.mrf.mxu0
    %v2542 = vadd.f32 %v2381, %v2541
    %2543 = vmatprep.mubr.f32.mxu0 0.0
    %2544 = vmatmul.mubr.f32.gmra.mxu0 %v344
    %v2545 = vpop.f32.mrf.mxu0
    %v2546 = vadd.f32 %v2385, %v2545
    %v2547 = vpop.f32.mrf.mxu0
    %v2548 = vadd.f32 %v2387, %v2547
    %2549 = vmatprep.mubr.f32.mxu0 0.0
    %2550 = vmatmul.mubr.f32.gmra.mxu0 %v345
    %v2551 = vpop.f32.mrf.mxu0
    %v2552 = vadd.f32 %v2391, %v2551
    %v2553 = vpop.f32.mrf.mxu0
    %v2554 = vadd.f32 %v2393, %v2553
    %2555 = vmatprep.mubr.f32.mxu0 0.0
    %2556 = vmatmul.mubr.f32.gmra.mxu0 %v346
    %v2557 = vpop.f32.mrf.mxu0
    %v2558 = vadd.f32 %v2397, %v2557
    %v2559 = vpop.f32.mrf.mxu0
    %v2560 = vadd.f32 %v2399, %v2559
    %2561 = vdwg.mxu0
    %v2562 = vmax.f32 %v2468, %v2470
    %v2563 = vmax.f32 %v2474, %v2476
    %v2564 = vmax.f32 %v2480, %v2482
    %v2565 = vmax.f32 %v2486, %v2488
    %v2566 = vmax.f32 %v2492, %v2494
    %v2567 = vmax.f32 %v2498, %v2500
    %v2568 = vmax.f32 %v2504, %v2506
    %v2569 = vmax.f32 %v2510, %v2512
    %v2570 = vmax.f32 %v2516, %v2518
    %v2571 = vmax.f32 %v2522, %v2524
    %v2572 = vmax.f32 %v2528, %v2530
    %v2573 = vmax.f32 %v2534, %v2536
    %v2574 = vmax.f32 %v2540, %v2542
    %v2575 = vmax.f32 %v2546, %v2548
    %v2576 = vmax.f32 %v2552, %v2554
    %v2577 = vmax.f32 %v2558, %v2560
    %v2578 = vmax.f32 %v2562, %v2570
    %v2579 = vmax.f32 %v2563, %v2571
    %v2580 = vmax.f32 %v2564, %v2572
    %v2581 = vmax.f32 %v2565, %v2573
    %v2582 = vmax.f32 %v2566, %v2574
    %v2583 = vmax.f32 %v2567, %v2575
    %v2584 = vmax.f32 %v2568, %v2576
    %v2585 = vmax.f32 %v2569, %v2577
    %v2586 = vadd.f32 %v2578, %v1003
    %v2587 = vadd.f32 %v2579, %v1003
    %v2588 = vadd.f32 %v2580, %v1003
    %v2589 = vadd.f32 %v2581, %v1003
    %v2590 = vadd.f32 %v2582, %v1003
    %v2591 = vadd.f32 %v2583, %v1003
    %v2592 = vadd.f32 %v2584, %v1003
    %v2593 = vadd.f32 %v2585, %v1003
    %v2594 = vmax.f32 %v2586, 0.0
    %v2595 = vmax.f32 %v2587, 0.0
    %v2596 = vmax.f32 %v2588, 0.0
    %v2597 = vmax.f32 %v2589, 0.0
    %v2598 = vmax.f32 %v2590, 0.0
    %v2599 = vmax.f32 %v2591, 0.0
    %v2600 = vmax.f32 %v2592, 0.0
    %v2601 = vmax.f32 %v2593, 0.0
    %v2602 = vpack.c.bf16 %v2595, %v2594
    %v2603 = vpack.c.bf16 %v2597, %v2596
    %v2604 = vpack.c.bf16 %v2599, %v2598
    %v2605 = vpack.c.bf16 %v2601, %v2600
    %2606 = vmatprep.subr.mxu0 %v111
    %2607 = vmatpush1.msra.mxu0 %v110
    %2608 = vmatprep.subr.mxu0 %v109
    %2609 = vmatpush1.msra.mxu0 %v108
    %2610 = vmatprep.subr.mxu0 %v107
    %2611 = vmatpush1.msra.mxu0 %v106
    %2612 = vmatprep.subr.mxu0 %v105
    %2613 = vmatpush1.msra.mxu0 %v104
    %2614 = vmatprep.subr.mxu0 %v103
    %2615 = vmatpush1.msra.mxu0 %v102
    %2616 = vmatprep.subr.mxu0 %v101
    %2617 = vmatpush1.msra.mxu0 %v100
    %2618 = vmatprep.subr.mxu0 %v99
    %2619 = vmatpush1.msra.mxu0 %v98
    %2620 = vmatprep.subr.mxu0 %v97
    %2621 = vmatpush1.msra.mxu0 %v96
    %2622 = vmatprep.subr.mxu0 %v95
    %2623 = vmatpush1.msra.mxu0 %v94
    %2624 = vmatprep.subr.mxu0 %v93
    %2625 = vmatpush1.msra.mxu0 %v92
    %2626 = vmatprep.subr.mxu0 %v91
    %2627 = vmatpush1.msra.mxu0 %v90
    %2628 = vmatprep.subr.mxu0 %v89
    %2629 = vmatpush1.msra.mxu0 %v88
    %2630 = vmatprep.subr.mxu0 %v87
    %2631 = vmatpush1.msra.mxu0 %v86
    %2632 = vmatprep.subr.mxu0 %v85
    %2633 = vmatpush1.msra.mxu0 %v84
    %2634 = vmatprep.subr.mxu0 %v83
    %2635 = vmatpush1.msra.mxu0 %v82
    %2636 = vmatprep.subr.mxu0 %v81
    %2637 = vmatpush1.msra.mxu0 %v80
    %2638 = vmatprep.subr.mxu0 %v143
    %2639 = vmatpush2.msra.mxu0 %v142
    %2640 = vmatprep.subr.mxu0 %v141
    %2641 = vmatpush2.msra.mxu0 %v140
    %2642 = vmatprep.subr.mxu0 %v139
    %2643 = vmatpush2.msra.mxu0 %v138
    %2644 = vmatprep.subr.mxu0 %v137
    %2645 = vmatpush2.msra.mxu0 %v136
    %2646 = vmatprep.subr.mxu0 %v135
    %2647 = vmatpush2.msra.mxu0 %v134
    %2648 = vmatprep.subr.mxu0 %v133
    %2649 = vmatpush2.msra.mxu0 %v132
    %2650 = vmatprep.subr.mxu0 %v131
    %2651 = vmatpush2.msra.mxu0 %v130
    %2652 = vmatprep.subr.mxu0 %v129
    %2653 = vmatpush2.msra.mxu0 %v128
    %2654 = vmatprep.subr.mxu0 %v127
    %2655 = vmatpush2.msra.mxu0 %v126
    %2656 = vmatprep.subr.mxu0 %v125
    %2657 = vmatpush2.msra.mxu0 %v124
    %2658 = vmatprep.subr.mxu0 %v123
    %2659 = vmatpush2.msra.mxu0 %v122
    %2660 = vmatprep.subr.mxu0 %v121
    %2661 = vmatpush2.msra.mxu0 %v120
    %2662 = vmatprep.subr.mxu0 %v119
    %2663 = vmatpush2.msra.mxu0 %v118
    %2664 = vmatprep.subr.mxu0 %v117
    %2665 = vmatpush2.msra.mxu0 %v116
    %2666 = vmatprep.subr.mxu0 %v115
    %2667 = vmatpush2.msra.mxu0 %v114
    %2668 = vmatprep.subr.mxu0 %v113
    %2669 = vmatpush2.msra.mxu0 %v112
    %2670 = vmatprep.mubr.f32.mxu0 %v321
    %2671 = vmatmul.mubr.f32.gmra.mxu0 %v312
    %v2672 = vpop.f32.mrf.mxu0
    %v2673 = vadd.f32 0.0, %v2672
    %v2674 = vpop.f32.mrf.mxu0
    %v2675 = vadd.f32 0.0, %v2674
    %2676 = vmatprep.mubr.f32.mxu0 %v322
    %2677 = vmatmul.mubr.f32.gmra.mxu0 %v313
    %v2678 = vpop.f32.mrf.mxu0
    %v2679 = vadd.f32 0.0, %v2678
    %v2680 = vpop.f32.mrf.mxu0
    %v2681 = vadd.f32 0.0, %v2680
    %2682 = vmatprep.mubr.f32.mxu0 %v323
    %2683 = vmatmul.mubr.f32.gmra.mxu0 %v314
    %v2684 = vpop.f32.mrf.mxu0
    %v2685 = vadd.f32 0.0, %v2684
    %v2686 = vpop.f32.mrf.mxu0
    %v2687 = vadd.f32 0.0, %v2686
    %2688 = vmatprep.mubr.f32.mxu0 %v324
    %2689 = vmatmul.mubr.f32.gmra.mxu0 %v315
    %v2690 = vpop.f32.mrf.mxu0
    %v2691 = vadd.f32 0.0, %v2690
    %v2692 = vpop.f32.mrf.mxu0
    %v2693 = vadd.f32 0.0, %v2692
    %2694 = vmatprep.mubr.f32.mxu0 %v325
    %2695 = vmatmul.mubr.f32.gmra.mxu0 %v316
    %v2696 = vpop.f32.mrf.mxu0
    %v2697 = vadd.f32 0.0, %v2696
    %v2698 = vpop.f32.mrf.mxu0
    %v2699 = vadd.f32 0.0, %v2698
    %2700 = vmatprep.mubr.f32.mxu0 %v326
    %2701 = vmatmul.mubr.f32.gmra.mxu0 %v317
    %v2702 = vpop.f32.mrf.mxu0
    %v2703 = vadd.f32 0.0, %v2702
    %v2704 = vpop.f32.mrf.mxu0
    %v2705 = vadd.f32 0.0, %v2704
    %2706 = vmatprep.mubr.f32.mxu0 %v327
    %2707 = vmatmul.mubr.f32.gmra.mxu0 %v318
    %v2708 = vpop.f32.mrf.mxu0
    %v2709 = vadd.f32 0.0, %v2708
    %v2710 = vpop.f32.mrf.mxu0
    %v2711 = vadd.f32 0.0, %v2710
    %2712 = vmatprep.mubr.f32.mxu0 %v328
    %2713 = vmatmul.mubr.f32.gmra.mxu0 %v319
    %v2714 = vpop.f32.mrf.mxu0
    %v2715 = vadd.f32 0.0, %v2714
    %v2716 = vpop.f32.mrf.mxu0
    %v2717 = vadd.f32 0.0, %v2716
    %2718 = vmatprep.mubr.f32.mxu0 %v330
    %2719 = vmatmul.mubr.f32.gmra.mxu0 %v321
    %v2720 = vpop.f32.mrf.mxu0
    %v2721 = vadd.f32 0.0, %v2720
    %v2722 = vpop.f32.mrf.mxu0
    %v2723 = vadd.f32 0.0, %v2722
    %2724 = vmatprep.mubr.f32.mxu0 %v331
    %2725 = vmatmul.mubr.f32.gmra.mxu0 %v322
    %v2726 = vpop.f32.mrf.mxu0
    %v2727 = vadd.f32 0.0, %v2726
    %v2728 = vpop.f32.mrf.mxu0
    %v2729 = vadd.f32 0.0, %v2728
    %2730 = vmatprep.mubr.f32.mxu0 %v332
    %2731 = vmatmul.mubr.f32.gmra.mxu0 %v323
    %v2732 = vpop.f32.mrf.mxu0
    %v2733 = vadd.f32 0.0, %v2732
    %v2734 = vpop.f32.mrf.mxu0
    %v2735 = vadd.f32 0.0, %v2734
    %2736 = vmatprep.mubr.f32.mxu0 %v333
    %2737 = vmatmul.mubr.f32.gmra.mxu0 %v324
    %v2738 = vpop.f32.mrf.mxu0
    %v2739 = vadd.f32 0.0, %v2738
    %v2740 = vpop.f32.mrf.mxu0
    %v2741 = vadd.f32 0.0, %v2740
    %2742 = vmatprep.mubr.f32.mxu0 %v334
    %2743 = vmatmul.mubr.f32.gmra.mxu0 %v325
    %v2744 = vpop.f32.mrf.mxu0
    %v2745 = vadd.f32 0.0, %v2744
    %v2746 = vpop.f32.mrf.mxu0
    %v2747 = vadd.f32 0.0, %v2746
    %2748 = vmatprep.mubr.f32.mxu0 %v335
    %2749 = vmatmul.mubr.f32.gmra.mxu0 %v326
    %v2750 = vpop.f32.mrf.mxu0
    %v2751 = vadd.f32 0.0, %v2750
    %v2752 = vpop.f32.mrf.mxu0
    %v2753 = vadd.f32 0.0, %v2752
    %2754 = vmatprep.mubr.f32.mxu0 %v336
    %2755 = vmatmul.mubr.f32.gmra.mxu0 %v327
    %v2756 = vpop.f32.mrf.mxu0
    %v2757 = vadd.f32 0.0, %v2756
    %v2758 = vpop.f32.mrf.mxu0
    %v2759 = vadd.f32 0.0, %v2758
    %2760 = vmatprep.mubr.f32.mxu0 %v337
    %2761 = vmatmul.mubr.f32.gmra.mxu0 %v328
    %v2762 = vpop.f32.mrf.mxu0
    %v2763 = vadd.f32 0.0, %v2762
    %v2764 = vpop.f32.mrf.mxu0
    %v2765 = vadd.f32 0.0, %v2764
    %2766 = vdwg.mxu0
    %2767 = vmatprep.subr.mxu0 %v175
    %2768 = vmatpush1.msra.mxu0 %v174
    %2769 = vmatprep.subr.mxu0 %v173
    %2770 = vmatpush1.msra.mxu0 %v172
    %2771 = vmatprep.subr.mxu0 %v171
    %2772 = vmatpush1.msra.mxu0 %v170
    %2773 = vmatprep.subr.mxu0 %v169
    %2774 = vmatpush1.msra.mxu0 %v168
    %2775 = vmatprep.subr.mxu0 %v167
    %2776 = vmatpush1.msra.mxu0 %v166
    %2777 = vmatprep.subr.mxu0 %v165
    %2778 = vmatpush1.msra.mxu0 %v164
    %2779 = vmatprep.subr.mxu0 %v163
    %2780 = vmatpush1.msra.mxu0 %v162
    %2781 = vmatprep.subr.mxu0 %v161
    %2782 = vmatpush1.msra.mxu0 %v160
    %2783 = vmatprep.subr.mxu0 %v159
    %2784 = vmatpush1.msra.mxu0 %v158
    %2785 = vmatprep.subr.mxu0 %v157
    %2786 = vmatpush1.msra.mxu0 %v156
    %2787 = vmatprep.subr.mxu0 %v155
    %2788 = vmatpush1.msra.mxu0 %v154
    %2789 = vmatprep.subr.mxu0 %v153
    %2790 = vmatpush1.msra.mxu0 %v152
    %2791 = vmatprep.subr.mxu0 %v151
    %2792 = vmatpush1.msra.mxu0 %v150
    %2793 = vmatprep.subr.mxu0 %v149
    %2794 = vmatpush1.msra.mxu0 %v148
    %2795 = vmatprep.subr.mxu0 %v147
    %2796 = vmatpush1.msra.mxu0 %v146
    %2797 = vmatprep.subr.mxu0 %v145
    %2798 = vmatpush1.msra.mxu0 %v144
    %2799 = vmatprep.subr.mxu0 %v207
    %2800 = vmatpush2.msra.mxu0 %v206
    %2801 = vmatprep.subr.mxu0 %v205
    %2802 = vmatpush2.msra.mxu0 %v204
    %2803 = vmatprep.subr.mxu0 %v203
    %2804 = vmatpush2.msra.mxu0 %v202
    %2805 = vmatprep.subr.mxu0 %v201
    %2806 = vmatpush2.msra.mxu0 %v200
    %2807 = vmatprep.subr.mxu0 %v199
    %2808 = vmatpush2.msra.mxu0 %v198
    %2809 = vmatprep.subr.mxu0 %v197
    %2810 = vmatpush2.msra.mxu0 %v196
    %2811 = vmatprep.subr.mxu0 %v195
    %2812 = vmatpush2.msra.mxu0 %v194
    %2813 = vmatprep.subr.mxu0 %v193
    %2814 = vmatpush2.msra.mxu0 %v192
    %2815 = vmatprep.subr.mxu0 %v191
    %2816 = vmatpush2.msra.mxu0 %v190
    %2817 = vmatprep.subr.mxu0 %v189
    %2818 = vmatpush2.msra.mxu0 %v188
    %2819 = vmatprep.subr.mxu0 %v187
    %2820 = vmatpush2.msra.mxu0 %v186
    %2821 = vmatprep.subr.mxu0 %v185
    %2822 = vmatpush2.msra.mxu0 %v184
    %2823 = vmatprep.subr.mxu0 %v183
    %2824 = vmatpush2.msra.mxu0 %v182
    %2825 = vmatprep.subr.mxu0 %v181
    %2826 = vmatpush2.msra.mxu0 %v180
    %2827 = vmatprep.subr.mxu0 %v179
    %2828 = vmatpush2.msra.mxu0 %v178
    %2829 = vmatprep.subr.mxu0 %v177
    %2830 = vmatpush2.msra.mxu0 %v176
    %2831 = vmatprep.mubr.f32.mxu0 %v339
    %2832 = vmatmul.mubr.f32.gmra.mxu0 %v330
    %v2833 = vpop.f32.mrf.mxu0
    %v2834 = vadd.f32 %v2673, %v2833
    %v2835 = vpop.f32.mrf.mxu0
    %v2836 = vadd.f32 %v2675, %v2835
    %2837 = vmatprep.mubr.f32.mxu0 %v340
    %2838 = vmatmul.mubr.f32.gmra.mxu0 %v331
    %v2839 = vpop.f32.mrf.mxu0
    %v2840 = vadd.f32 %v2679, %v2839
    %v2841 = vpop.f32.mrf.mxu0
    %v2842 = vadd.f32 %v2681, %v2841
    %2843 = vmatprep.mubr.f32.mxu0 %v341
    %2844 = vmatmul.mubr.f32.gmra.mxu0 %v332
    %v2845 = vpop.f32.mrf.mxu0
    %v2846 = vadd.f32 %v2685, %v2845
    %v2847 = vpop.f32.mrf.mxu0
    %v2848 = vadd.f32 %v2687, %v2847
    %2849 = vmatprep.mubr.f32.mxu0 %v342
    %2850 = vmatmul.mubr.f32.gmra.mxu0 %v333
    %v2851 = vpop.f32.mrf.mxu0
    %v2852 = vadd.f32 %v2691, %v2851
    %v2853 = vpop.f32.mrf.mxu0
    %v2854 = vadd.f32 %v2693, %v2853
    %2855 = vmatprep.mubr.f32.mxu0 %v343
    %2856 = vmatmul.mubr.f32.gmra.mxu0 %v334
    %v2857 = vpop.f32.mrf.mxu0
    %v2858 = vadd.f32 %v2697, %v2857
    %v2859 = vpop.f32.mrf.mxu0
    %v2860 = vadd.f32 %v2699, %v2859
    %2861 = vmatprep.mubr.f32.mxu0 %v344
    %2862 = vmatmul.mubr.f32.gmra.mxu0 %v335
    %v2863 = vpop.f32.mrf.mxu0
    %v2864 = vadd.f32 %v2703, %v2863
    %v2865 = vpop.f32.mrf.mxu0
    %v2866 = vadd.f32 %v2705, %v2865
    %2867 = vmatprep.mubr.f32.mxu0 %v345
    %2868 = vmatmul.mubr.f32.gmra.mxu0 %v336
    %v2869 = vpop.f32.mrf.mxu0
    %v2870 = vadd.f32 %v2709, %v2869
    %v2871 = vpop.f32.mrf.mxu0
    %v2872 = vadd.f32 %v2711, %v2871
    %2873 = vmatprep.mubr.f32.mxu0 %v346
    %2874 = vmatmul.mubr.f32.gmra.mxu0 %v337
    %v2875 = vpop.f32.mrf.mxu0
    %v2876 = vadd.f32 %v2715, %v2875
    %v2877 = vpop.f32.mrf.mxu0
    %v2878 = vadd.f32 %v2717, %v2877
    %2879 = vmatprep.mubr.f32.mxu0 %v348
    %2880 = vmatmul.mubr.f32.gmra.mxu0 %v339
    %v2881 = vpop.f32.mrf.mxu0
    %v2882 = vadd.f32 %v2721, %v2881
    %v2883 = vpop.f32.mrf.mxu0
    %v2884 = vadd.f32 %v2723, %v2883
    %2885 = vmatprep.mubr.f32.mxu0 %v349
    %2886 = vmatmul.mubr.f32.gmra.mxu0 %v340
    %v2887 = vpop.f32.mrf.mxu0
    %v2888 = vadd.f32 %v2727, %v2887
    %v2889 = vpop.f32.mrf.mxu0
    %v2890 = vadd.f32 %v2729, %v2889
    %2891 = vmatprep.mubr.f32.mxu0 %v350
    %2892 = vmatmul.mubr.f32.gmra.mxu0 %v341
    %v2893 = vpop.f32.mrf.mxu0
    %v2894 = vadd.f32 %v2733, %v2893
    %v2895 = vpop.f32.mrf.mxu0
    %v2896 = vadd.f32 %v2735, %v2895
    %2897 = vmatprep.mubr.f32.mxu0 %v351
    %2898 = vmatmul.mubr.f32.gmra.mxu0 %v342
    %v2899 = vpop.f32.mrf.mxu0
    %v2900 = vadd.f32 %v2739, %v2899
    %v2901 = vpop.f32.mrf.mxu0
    %v2902 = vadd.f32 %v2741, %v2901
    %2903 = vmatprep.mubr.f32.mxu0 %v352
    %2904 = vmatmul.mubr.f32.gmra.mxu0 %v343
    %v2905 = vpop.f32.mrf.mxu0
    %v2906 = vadd.f32 %v2745, %v2905
    %v2907 = vpop.f32.mrf.mxu0
    %v2908 = vadd.f32 %v2747, %v2907
    %2909 = vmatprep.mubr.f32.mxu0 %v353
    %2910 = vmatmul.mubr.f32.gmra.mxu0 %v344
    %v2911 = vpop.f32.mrf.mxu0
    %v2912 = vadd.f32 %v2751, %v2911
    %v2913 = vpop.f32.mrf.mxu0
    %v2914 = vadd.f32 %v2753, %v2913
    %2915 = vmatprep.mubr.f32.mxu0 %v354
    %2916 = vmatmul.mubr.f32.gmra.mxu0 %v345
    %v2917 = vpop.f32.mrf.mxu0
    %v2918 = vadd.f32 %v2757, %v2917
    %v2919 = vpop.f32.mrf.mxu0
    %v2920 = vadd.f32 %v2759, %v2919
    %2921 = vmatprep.mubr.f32.mxu0 %v355
    %2922 = vmatmul.mubr.f32.gmra.mxu0 %v346
    %v2923 = vpop.f32.mrf.mxu0
    %v2924 = vadd.f32 %v2763, %v2923
    %v2925 = vpop.f32.mrf.mxu0
    %v2926 = vadd.f32 %v2765, %v2925
    %2927 = vdwg.mxu0
    %2928 = vmatprep.subr.mxu0 %v239
    %2929 = vmatpush1.msra.mxu0 %v238
    %2930 = vmatprep.subr.mxu0 %v237
    %2931 = vmatpush1.msra.mxu0 %v236
    %2932 = vmatprep.subr.mxu0 %v235
    %2933 = vmatpush1.msra.mxu0 %v234
    %2934 = vmatprep.subr.mxu0 %v233
    %2935 = vmatpush1.msra.mxu0 %v232
    %2936 = vmatprep.subr.mxu0 %v231
    %2937 = vmatpush1.msra.mxu0 %v230
    %2938 = vmatprep.subr.mxu0 %v229
    %2939 = vmatpush1.msra.mxu0 %v228
    %2940 = vmatprep.subr.mxu0 %v227
    %2941 = vmatpush1.msra.mxu0 %v226
    %2942 = vmatprep.subr.mxu0 %v225
    %2943 = vmatpush1.msra.mxu0 %v224
    %2944 = vmatprep.subr.mxu0 %v223
    %2945 = vmatpush1.msra.mxu0 %v222
    %2946 = vmatprep.subr.mxu0 %v221
    %2947 = vmatpush1.msra.mxu0 %v220
    %2948 = vmatprep.subr.mxu0 %v219
    %2949 = vmatpush1.msra.mxu0 %v218
    %2950 = vmatprep.subr.mxu0 %v217
    %2951 = vmatpush1.msra.mxu0 %v216
    %2952 = vmatprep.subr.mxu0 %v215
    %2953 = vmatpush1.msra.mxu0 %v214
    %2954 = vmatprep.subr.mxu0 %v213
    %2955 = vmatpush1.msra.mxu0 %v212
    %2956 = vmatprep.subr.mxu0 %v211
    %2957 = vmatpush1.msra.mxu0 %v210
    %2958 = vmatprep.subr.mxu0 %v209
    %2959 = vmatpush1.msra.mxu0 %v208
    %2960 = vmatprep.subr.mxu0 0.0
    %2961 = vmatpush2.msra.mxu0 0.0
    %2962 = vmatprep.subr.mxu0 0.0
    %2963 = vmatpush2.msra.mxu0 0.0
    %2964 = vmatprep.subr.mxu0 0.0
    %2965 = vmatpush2.msra.mxu0 0.0
    %2966 = vmatprep.subr.mxu0 0.0
    %2967 = vmatpush2.msra.mxu0 0.0
    %2968 = vmatprep.subr.mxu0 0.0
    %2969 = vmatpush2.msra.mxu0 0.0
    %2970 = vmatprep.subr.mxu0 0.0
    %2971 = vmatpush2.msra.mxu0 0.0
    %2972 = vmatprep.subr.mxu0 0.0
    %2973 = vmatpush2.msra.mxu0 0.0
    %2974 = vmatprep.subr.mxu0 0.0
    %2975 = vmatpush2.msra.mxu0 0.0
    %2976 = vmatprep.subr.mxu0 0.0
    %2977 = vmatpush2.msra.mxu0 0.0
    %2978 = vmatprep.subr.mxu0 0.0
    %2979 = vmatpush2.msra.mxu0 0.0
    %2980 = vmatprep.subr.mxu0 0.0
    %2981 = vmatpush2.msra.mxu0 0.0
    %2982 = vmatprep.subr.mxu0 0.0
    %2983 = vmatpush2.msra.mxu0 0.0
    %2984 = vmatprep.subr.mxu0 0.0
    %2985 = vmatpush2.msra.mxu0 0.0
    %2986 = vmatprep.subr.mxu0 0.0
    %2987 = vmatpush2.msra.mxu0 0.0
    %2988 = vmatprep.subr.mxu0 0.0
    %2989 = vmatpush2.msra.mxu0 0.0
    %2990 = vmatprep.subr.mxu0 0.0
    %2991 = vmatpush2.msra.mxu0 0.0
    %2992 = vmatprep.mubr.f32.mxu0 0.0
    %2993 = vmatmul.mubr.f32.gmra.mxu0 %v348
    %v2994 = vpop.f32.mrf.mxu0
    %v2995 = vadd.f32 %v2834, %v2994
    %v2996 = vpop.f32.mrf.mxu0
    %v2997 = vadd.f32 %v2836, %v2996
    %2998 = vmatprep.mubr.f32.mxu0 0.0
    %2999 = vmatmul.mubr.f32.gmra.mxu0 %v349
    %v3000 = vpop.f32.mrf.mxu0
    %v3001 = vadd.f32 %v2840, %v3000
    %v3002 = vpop.f32.mrf.mxu0
    %v3003 = vadd.f32 %v2842, %v3002
    %3004 = vmatprep.mubr.f32.mxu0 0.0
    %3005 = vmatmul.mubr.f32.gmra.mxu0 %v350
    %v3006 = vpop.f32.mrf.mxu0
    %v3007 = vadd.f32 %v2846, %v3006
    %v3008 = vpop.f32.mrf.mxu0
    %v3009 = vadd.f32 %v2848, %v3008
    %3010 = vmatprep.mubr.f32.mxu0 0.0
    %3011 = vmatmul.mubr.f32.gmra.mxu0 %v351
    %v3012 = vpop.f32.mrf.mxu0
    %v3013 = vadd.f32 %v2852, %v3012
    %v3014 = vpop.f32.mrf.mxu0
    %v3015 = vadd.f32 %v2854, %v3014
    %3016 = vmatprep.mubr.f32.mxu0 0.0
    %3017 = vmatmul.mubr.f32.gmra.mxu0 %v352
    %v3018 = vpop.f32.mrf.mxu0
    %v3019 = vadd.f32 %v2858, %v3018
    %v3020 = vpop.f32.mrf.mxu0
    %v3021 = vadd.f32 %v2860, %v3020
    %3022 = vmatprep.mubr.f32.mxu0 0.0
    %3023 = vmatmul.mubr.f32.gmra.mxu0 %v353
    %v3024 = vpop.f32.mrf.mxu0
    %v3025 = vadd.f32 %v2864, %v3024
    %v3026 = vpop.f32.mrf.mxu0
    %v3027 = vadd.f32 %v2866, %v3026
    %3028 = vmatprep.mubr.f32.mxu0 0.0
    %3029 = vmatmul.mubr.f32.gmra.mxu0 %v354
    %v3030 = vpop.f32.mrf.mxu0
    %v3031 = vadd.f32 %v2870, %v3030
    %v3032 = vpop.f32.mrf.mxu0
    %v3033 = vadd.f32 %v2872, %v3032
    %3034 = vmatprep.mubr.f32.mxu0 0.0
    %3035 = vmatmul.mubr.f32.gmra.mxu0 %v355
    %v3036 = vpop.f32.mrf.mxu0
    %v3037 = vadd.f32 %v2876, %v3036
    %v3038 = vpop.f32.mrf.mxu0
    %v3039 = vadd.f32 %v2878, %v3038
    %3040 = vmatprep.mubr.f32.mxu0 0.0
    %3041 = vmatmul.mubr.f32.gmra.mxu0 %v357
    %v3042 = vpop.f32.mrf.mxu0
    %v3043 = vadd.f32 %v2882, %v3042
    %v3044 = vpop.f32.mrf.mxu0
    %v3045 = vadd.f32 %v2884, %v3044
    %3046 = vmatprep.mubr.f32.mxu0 0.0
    %3047 = vmatmul.mubr.f32.gmra.mxu0 %v358
    %v3048 = vpop.f32.mrf.mxu0
    %v3049 = vadd.f32 %v2888, %v3048
    %v3050 = vpop.f32.mrf.mxu0
    %v3051 = vadd.f32 %v2890, %v3050
    %3052 = vmatprep.mubr.f32.mxu0 0.0
    %3053 = vmatmul.mubr.f32.gmra.mxu0 %v359
    %v3054 = vpop.f32.mrf.mxu0
    %v3055 = vadd.f32 %v2894, %v3054
    %v3056 = vpop.f32.mrf.mxu0
    %v3057 = vadd.f32 %v2896, %v3056
    %3058 = vmatprep.mubr.f32.mxu0 0.0
    %3059 = vmatmul.mubr.f32.gmra.mxu0 %v360
    %v3060 = vpop.f32.mrf.mxu0
    %v3061 = vadd.f32 %v2900, %v3060
    %v3062 = vpop.f32.mrf.mxu0
    %v3063 = vadd.f32 %v2902, %v3062
    %3064 = vmatprep.mubr.f32.mxu0 0.0
    %3065 = vmatmul.mubr.f32.gmra.mxu0 %v361
    %v3066 = vpop.f32.mrf.mxu0
    %v3067 = vadd.f32 %v2906, %v3066
    %v3068 = vpop.f32.mrf.mxu0
    %v3069 = vadd.f32 %v2908, %v3068
    %3070 = vmatprep.mubr.f32.mxu0 0.0
    %3071 = vmatmul.mubr.f32.gmra.mxu0 %v362
    %v3072 = vpop.f32.mrf.mxu0
    %v3073 = vadd.f32 %v2912, %v3072
    %v3074 = vpop.f32.mrf.mxu0
    %v3075 = vadd.f32 %v2914, %v3074
    %3076 = vmatprep.mubr.f32.mxu0 0.0
    %3077 = vmatmul.mubr.f32.gmra.mxu0 %v363
    %v3078 = vpop.f32.mrf.mxu0
    %v3079 = vadd.f32 %v2918, %v3078
    %v3080 = vpop.f32.mrf.mxu0
    %v3081 = vadd.f32 %v2920, %v3080
    %3082 = vmatprep.mubr.f32.mxu0 0.0
    %3083 = vmatmul.mubr.f32.gmra.mxu0 %v364
    %v3084 = vpop.f32.mrf.mxu0
    %v3085 = vadd.f32 %v2924, %v3084
    %v3086 = vpop.f32.mrf.mxu0
    %v3087 = vadd.f32 %v2926, %v3086
    %3088 = vdwg.mxu0
    %v3089 = vmax.f32 %v2995, %v2997
    %v3090 = vmax.f32 %v3001, %v3003
    %v3091 = vmax.f32 %v3007, %v3009
    %v3092 = vmax.f32 %v3013, %v3015
    %v3093 = vmax.f32 %v3019, %v3021
    %v3094 = vmax.f32 %v3025, %v3027
    %v3095 = vmax.f32 %v3031, %v3033
    %v3096 = vmax.f32 %v3037, %v3039
    %v3097 = vmax.f32 %v3043, %v3045
    %v3098 = vmax.f32 %v3049, %v3051
    %v3099 = vmax.f32 %v3055, %v3057
    %v3100 = vmax.f32 %v3061, %v3063
    %v3101 = vmax.f32 %v3067, %v3069
    %v3102 = vmax.f32 %v3073, %v3075
    %v3103 = vmax.f32 %v3079, %v3081
    %v3104 = vmax.f32 %v3085, %v3087
    %v3105 = vmax.f32 %v3089, %v3097
    %v3106 = vmax.f32 %v3090, %v3098
    %v3107 = vmax.f32 %v3091, %v3099
    %v3108 = vmax.f32 %v3092, %v3100
    %v3109 = vmax.f32 %v3093, %v3101
    %v3110 = vmax.f32 %v3094, %v3102
    %v3111 = vmax.f32 %v3095, %v3103
    %v3112 = vmax.f32 %v3096, %v3104
    %v3113 = vadd.f32 %v3105, %v1003
    %v3114 = vadd.f32 %v3106, %v1003
    %v3115 = vadd.f32 %v3107, %v1003
    %v3116 = vadd.f32 %v3108, %v1003
    %v3117 = vadd.f32 %v3109, %v1003
    %v3118 = vadd.f32 %v3110, %v1003
    %v3119 = vadd.f32 %v3111, %v1003
    %v3120 = vadd.f32 %v3112, %v1003
    %v3121 = vmax.f32 %v3113, 0.0
    %v3122 = vmax.f32 %v3114, 0.0
    %v3123 = vmax.f32 %v3115, 0.0
    %v3124 = vmax.f32 %v3116, 0.0
    %v3125 = vmax.f32 %v3117, 0.0
    %v3126 = vmax.f32 %v3118, 0.0
    %v3127 = vmax.f32 %v3119, 0.0
    %v3128 = vmax.f32 %v3120, 0.0
    %v3129 = vpack.c.bf16 %v3122, %v3121
    %v3130 = vpack.c.bf16 %v3124, %v3123
    %v3131 = vpack.c.bf16 %v3126, %v3125
    %v3132 = vpack.c.bf16 %v3128, %v3127
    %3133 = vmatprep.subr.mxu0 %v111
    %3134 = vmatpush1.msra.mxu0 %v110
    %3135 = vmatprep.subr.mxu0 %v109
    %3136 = vmatpush1.msra.mxu0 %v108
    %3137 = vmatprep.subr.mxu0 %v107
    %3138 = vmatpush1.msra.mxu0 %v106
    %3139 = vmatprep.subr.mxu0 %v105
    %3140 = vmatpush1.msra.mxu0 %v104
    %3141 = vmatprep.subr.mxu0 %v103
    %3142 = vmatpush1.msra.mxu0 %v102
    %3143 = vmatprep.subr.mxu0 %v101
    %3144 = vmatpush1.msra.mxu0 %v100
    %3145 = vmatprep.subr.mxu0 %v99
    %3146 = vmatpush1.msra.mxu0 %v98
    %3147 = vmatprep.subr.mxu0 %v97
    %3148 = vmatpush1.msra.mxu0 %v96
    %3149 = vmatprep.subr.mxu0 %v95
    %3150 = vmatpush1.msra.mxu0 %v94
    %3151 = vmatprep.subr.mxu0 %v93
    %3152 = vmatpush1.msra.mxu0 %v92
    %3153 = vmatprep.subr.mxu0 %v91
    %3154 = vmatpush1.msra.mxu0 %v90
    %3155 = vmatprep.subr.mxu0 %v89
    %3156 = vmatpush1.msra.mxu0 %v88
    %3157 = vmatprep.subr.mxu0 %v87
    %3158 = vmatpush1.msra.mxu0 %v86
    %3159 = vmatprep.subr.mxu0 %v85
    %3160 = vmatpush1.msra.mxu0 %v84
    %3161 = vmatprep.subr.mxu0 %v83
    %3162 = vmatpush1.msra.mxu0 %v82
    %3163 = vmatprep.subr.mxu0 %v81
    %3164 = vmatpush1.msra.mxu0 %v80
    %3165 = vmatprep.subr.mxu0 %v143
    %3166 = vmatpush2.msra.mxu0 %v142
    %3167 = vmatprep.subr.mxu0 %v141
    %3168 = vmatpush2.msra.mxu0 %v140
    %3169 = vmatprep.subr.mxu0 %v139
    %3170 = vmatpush2.msra.mxu0 %v138
    %3171 = vmatprep.subr.mxu0 %v137
    %3172 = vmatpush2.msra.mxu0 %v136
    %3173 = vmatprep.subr.mxu0 %v135
    %3174 = vmatpush2.msra.mxu0 %v134
    %3175 = vmatprep.subr.mxu0 %v133
    %3176 = vmatpush2.msra.mxu0 %v132
    %3177 = vmatprep.subr.mxu0 %v131
    %3178 = vmatpush2.msra.mxu0 %v130
    %3179 = vmatprep.subr.mxu0 %v129
    %3180 = vmatpush2.msra.mxu0 %v128
    %3181 = vmatprep.subr.mxu0 %v127
    %3182 = vmatpush2.msra.mxu0 %v126
    %3183 = vmatprep.subr.mxu0 %v125
    %3184 = vmatpush2.msra.mxu0 %v124
    %3185 = vmatprep.subr.mxu0 %v123
    %3186 = vmatpush2.msra.mxu0 %v122
    %3187 = vmatprep.subr.mxu0 %v121
    %3188 = vmatpush2.msra.mxu0 %v120
    %3189 = vmatprep.subr.mxu0 %v119
    %3190 = vmatpush2.msra.mxu0 %v118
    %3191 = vmatprep.subr.mxu0 %v117
    %3192 = vmatpush2.msra.mxu0 %v116
    %3193 = vmatprep.subr.mxu0 %v115
    %3194 = vmatpush2.msra.mxu0 %v114
    %3195 = vmatprep.subr.mxu0 %v113
    %3196 = vmatpush2.msra.mxu0 %v112
    %3197 = vmatprep.mubr.f32.mxu0 %v339
    %3198 = vmatmul.mubr.f32.gmra.mxu0 %v330
    %v3199 = vpop.f32.mrf.mxu0
    %v3200 = vadd.f32 0.0, %v3199
    %v3201 = vpop.f32.mrf.mxu0
    %v3202 = vadd.f32 0.0, %v3201
    %3203 = vmatprep.mubr.f32.mxu0 %v340
    %3204 = vmatmul.mubr.f32.gmra.mxu0 %v331
    %v3205 = vpop.f32.mrf.mxu0
    %v3206 = vadd.f32 0.0, %v3205
    %v3207 = vpop.f32.mrf.mxu0
    %v3208 = vadd.f32 0.0, %v3207
    %3209 = vmatprep.mubr.f32.mxu0 %v341
    %3210 = vmatmul.mubr.f32.gmra.mxu0 %v332
    %v3211 = vpop.f32.mrf.mxu0
    %v3212 = vadd.f32 0.0, %v3211
    %v3213 = vpop.f32.mrf.mxu0
    %v3214 = vadd.f32 0.0, %v3213
    %3215 = vmatprep.mubr.f32.mxu0 %v342
    %3216 = vmatmul.mubr.f32.gmra.mxu0 %v333
    %v3217 = vpop.f32.mrf.mxu0
    %v3218 = vadd.f32 0.0, %v3217
    %v3219 = vpop.f32.mrf.mxu0
    %v3220 = vadd.f32 0.0, %v3219
    %3221 = vmatprep.mubr.f32.mxu0 %v343
    %3222 = vmatmul.mubr.f32.gmra.mxu0 %v334
    %v3223 = vpop.f32.mrf.mxu0
    %v3224 = vadd.f32 0.0, %v3223
    %v3225 = vpop.f32.mrf.mxu0
    %v3226 = vadd.f32 0.0, %v3225
    %3227 = vmatprep.mubr.f32.mxu0 %v344
    %3228 = vmatmul.mubr.f32.gmra.mxu0 %v335
    %v3229 = vpop.f32.mrf.mxu0
    %v3230 = vadd.f32 0.0, %v3229
    %v3231 = vpop.f32.mrf.mxu0
    %v3232 = vadd.f32 0.0, %v3231
    %3233 = vmatprep.mubr.f32.mxu0 %v345
    %3234 = vmatmul.mubr.f32.gmra.mxu0 %v336
    %v3235 = vpop.f32.mrf.mxu0
    %v3236 = vadd.f32 0.0, %v3235
    %v3237 = vpop.f32.mrf.mxu0
    %v3238 = vadd.f32 0.0, %v3237
    %3239 = vmatprep.mubr.f32.mxu0 %v346
    %3240 = vmatmul.mubr.f32.gmra.mxu0 %v337
    %v3241 = vpop.f32.mrf.mxu0
    %v3242 = vadd.f32 0.0, %v3241
    %v3243 = vpop.f32.mrf.mxu0
    %v3244 = vadd.f32 0.0, %v3243
    %3245 = vmatprep.mubr.f32.mxu0 %v348
    %3246 = vmatmul.mubr.f32.gmra.mxu0 %v339
    %v3247 = vpop.f32.mrf.mxu0
    %v3248 = vadd.f32 0.0, %v3247
    %v3249 = vpop.f32.mrf.mxu0
    %v3250 = vadd.f32 0.0, %v3249
    %3251 = vmatprep.mubr.f32.mxu0 %v349
    %3252 = vmatmul.mubr.f32.gmra.mxu0 %v340
    %v3253 = vpop.f32.mrf.mxu0
    %v3254 = vadd.f32 0.0, %v3253
    %v3255 = vpop.f32.mrf.mxu0
    %v3256 = vadd.f32 0.0, %v3255
    %3257 = vmatprep.mubr.f32.mxu0 %v350
    %3258 = vmatmul.mubr.f32.gmra.mxu0 %v341
    %v3259 = vpop.f32.mrf.mxu0
    %v3260 = vadd.f32 0.0, %v3259
    %v3261 = vpop.f32.mrf.mxu0
    %v3262 = vadd.f32 0.0, %v3261
    %3263 = vmatprep.mubr.f32.mxu0 %v351
    %3264 = vmatmul.mubr.f32.gmra.mxu0 %v342
    %v3265 = vpop.f32.mrf.mxu0
    %v3266 = vadd.f32 0.0, %v3265
    %v3267 = vpop.f32.mrf.mxu0
    %v3268 = vadd.f32 0.0, %v3267
    %3269 = vmatprep.mubr.f32.mxu0 %v352
    %3270 = vmatmul.mubr.f32.gmra.mxu0 %v343
    %v3271 = vpop.f32.mrf.mxu0
    %v3272 = vadd.f32 0.0, %v3271
    %v3273 = vpop.f32.mrf.mxu0
    %v3274 = vadd.f32 0.0, %v3273
    %3275 = vmatprep.mubr.f32.mxu0 %v353
    %3276 = vmatmul.mubr.f32.gmra.mxu0 %v344
    %v3277 = vpop.f32.mrf.mxu0
    %v3278 = vadd.f32 0.0, %v3277
    %v3279 = vpop.f32.mrf.mxu0
    %v3280 = vadd.f32 0.0, %v3279
    %3281 = vmatprep.mubr.f32.mxu0 %v354
    %3282 = vmatmul.mubr.f32.gmra.mxu0 %v345
    %v3283 = vpop.f32.mrf.mxu0
    %v3284 = vadd.f32 0.0, %v3283
    %v3285 = vpop.f32.mrf.mxu0
    %v3286 = vadd.f32 0.0, %v3285
    %3287 = vmatprep.mubr.f32.mxu0 %v355
    %3288 = vmatmul.mubr.f32.gmra.mxu0 %v346
    %v3289 = vpop.f32.mrf.mxu0
    %v3290 = vadd.f32 0.0, %v3289
    %v3291 = vpop.f32.mrf.mxu0
    %v3292 = vadd.f32 0.0, %v3291
    %3293 = vdwg.mxu0
    %3294 = vmatprep.subr.mxu0 %v175
    %3295 = vmatpush1.msra.mxu0 %v174
    %3296 = vmatprep.subr.mxu0 %v173
    %3297 = vmatpush1.msra.mxu0 %v172
    %3298 = vmatprep.subr.mxu0 %v171
    %3299 = vmatpush1.msra.mxu0 %v170
    %3300 = vmatprep.subr.mxu0 %v169
    %3301 = vmatpush1.msra.mxu0 %v168
    %3302 = vmatprep.subr.mxu0 %v167
    %3303 = vmatpush1.msra.mxu0 %v166
    %3304 = vmatprep.subr.mxu0 %v165
    %3305 = vmatpush1.msra.mxu0 %v164
    %3306 = vmatprep.subr.mxu0 %v163
    %3307 = vmatpush1.msra.mxu0 %v162
    %3308 = vmatprep.subr.mxu0 %v161
    %3309 = vmatpush1.msra.mxu0 %v160
    %3310 = vmatprep.subr.mxu0 %v159
    %3311 = vmatpush1.msra.mxu0 %v158
    %3312 = vmatprep.subr.mxu0 %v157
    %3313 = vmatpush1.msra.mxu0 %v156
    %3314 = vmatprep.subr.mxu0 %v155
    %3315 = vmatpush1.msra.mxu0 %v154
    %3316 = vmatprep.subr.mxu0 %v153
    %3317 = vmatpush1.msra.mxu0 %v152
    %3318 = vmatprep.subr.mxu0 %v151
    %3319 = vmatpush1.msra.mxu0 %v150
    %3320 = vmatprep.subr.mxu0 %v149
    %3321 = vmatpush1.msra.mxu0 %v148
    %3322 = vmatprep.subr.mxu0 %v147
    %3323 = vmatpush1.msra.mxu0 %v146
    %3324 = vmatprep.subr.mxu0 %v145
    %3325 = vmatpush1.msra.mxu0 %v144
    %3326 = vmatprep.subr.mxu0 %v207
    %3327 = vmatpush2.msra.mxu0 %v206
    %3328 = vmatprep.subr.mxu0 %v205
    %3329 = vmatpush2.msra.mxu0 %v204
    %3330 = vmatprep.subr.mxu0 %v203
    %3331 = vmatpush2.msra.mxu0 %v202
    %3332 = vmatprep.subr.mxu0 %v201
    %3333 = vmatpush2.msra.mxu0 %v200
    %3334 = vmatprep.subr.mxu0 %v199
    %3335 = vmatpush2.msra.mxu0 %v198
    %3336 = vmatprep.subr.mxu0 %v197
    %3337 = vmatpush2.msra.mxu0 %v196
    %3338 = vmatprep.subr.mxu0 %v195
    %3339 = vmatpush2.msra.mxu0 %v194
    %3340 = vmatprep.subr.mxu0 %v193
    %3341 = vmatpush2.msra.mxu0 %v192
    %3342 = vmatprep.subr.mxu0 %v191
    %3343 = vmatpush2.msra.mxu0 %v190
    %3344 = vmatprep.subr.mxu0 %v189
    %3345 = vmatpush2.msra.mxu0 %v188
    %3346 = vmatprep.subr.mxu0 %v187
    %3347 = vmatpush2.msra.mxu0 %v186
    %3348 = vmatprep.subr.mxu0 %v185
    %3349 = vmatpush2.msra.mxu0 %v184
    %3350 = vmatprep.subr.mxu0 %v183
    %3351 = vmatpush2.msra.mxu0 %v182
    %3352 = vmatprep.subr.mxu0 %v181
    %3353 = vmatpush2.msra.mxu0 %v180
    %3354 = vmatprep.subr.mxu0 %v179
    %3355 = vmatpush2.msra.mxu0 %v178
    %3356 = vmatprep.subr.mxu0 %v177
    %3357 = vmatpush2.msra.mxu0 %v176
    %3358 = vmatprep.mubr.f32.mxu0 %v357
    %3359 = vmatmul.mubr.f32.gmra.mxu0 %v348
    %v3360 = vpop.f32.mrf.mxu0
    %v3361 = vadd.f32 %v3200, %v3360
    %v3362 = vpop.f32.mrf.mxu0
    %v3363 = vadd.f32 %v3202, %v3362
    %3364 = vmatprep.mubr.f32.mxu0 %v358
    %3365 = vmatmul.mubr.f32.gmra.mxu0 %v349
    %v3366 = vpop.f32.mrf.mxu0
    %v3367 = vadd.f32 %v3206, %v3366
    %v3368 = vpop.f32.mrf.mxu0
    %v3369 = vadd.f32 %v3208, %v3368
    %3370 = vmatprep.mubr.f32.mxu0 %v359
    %3371 = vmatmul.mubr.f32.gmra.mxu0 %v350
    %v3372 = vpop.f32.mrf.mxu0
    %v3373 = vadd.f32 %v3212, %v3372
    %v3374 = vpop.f32.mrf.mxu0
    %v3375 = vadd.f32 %v3214, %v3374
    %3376 = vmatprep.mubr.f32.mxu0 %v360
    %3377 = vmatmul.mubr.f32.gmra.mxu0 %v351
    %v3378 = vpop.f32.mrf.mxu0
    %v3379 = vadd.f32 %v3218, %v3378
    %v3380 = vpop.f32.mrf.mxu0
    %v3381 = vadd.f32 %v3220, %v3380
    %3382 = vmatprep.mubr.f32.mxu0 %v361
    %3383 = vmatmul.mubr.f32.gmra.mxu0 %v352
    %v3384 = vpop.f32.mrf.mxu0
    %v3385 = vadd.f32 %v3224, %v3384
    %v3386 = vpop.f32.mrf.mxu0
    %v3387 = vadd.f32 %v3226, %v3386
    %3388 = vmatprep.mubr.f32.mxu0 %v362
    %3389 = vmatmul.mubr.f32.gmra.mxu0 %v353
    %v3390 = vpop.f32.mrf.mxu0
    %v3391 = vadd.f32 %v3230, %v3390
    %v3392 = vpop.f32.mrf.mxu0
    %v3393 = vadd.f32 %v3232, %v3392
    %3394 = vmatprep.mubr.f32.mxu0 %v363
    %3395 = vmatmul.mubr.f32.gmra.mxu0 %v354
    %v3396 = vpop.f32.mrf.mxu0
    %v3397 = vadd.f32 %v3236, %v3396
    %v3398 = vpop.f32.mrf.mxu0
    %v3399 = vadd.f32 %v3238, %v3398
    %3400 = vmatprep.mubr.f32.mxu0 %v364
    %3401 = vmatmul.mubr.f32.gmra.mxu0 %v355
    %v3402 = vpop.f32.mrf.mxu0
    %v3403 = vadd.f32 %v3242, %v3402
    %v3404 = vpop.f32.mrf.mxu0
    %v3405 = vadd.f32 %v3244, %v3404
    %3406 = vmatprep.mubr.f32.mxu0 %v366
    %3407 = vmatmul.mubr.f32.gmra.mxu0 %v357
    %v3408 = vpop.f32.mrf.mxu0
    %v3409 = vadd.f32 %v3248, %v3408
    %v3410 = vpop.f32.mrf.mxu0
    %v3411 = vadd.f32 %v3250, %v3410
    %3412 = vmatprep.mubr.f32.mxu0 %v367
    %3413 = vmatmul.mubr.f32.gmra.mxu0 %v358
    %v3414 = vpop.f32.mrf.mxu0
    %v3415 = vadd.f32 %v3254, %v3414
    %v3416 = vpop.f32.mrf.mxu0
    %v3417 = vadd.f32 %v3256, %v3416
    %3418 = vmatprep.mubr.f32.mxu0 %v368
    %3419 = vmatmul.mubr.f32.gmra.mxu0 %v359
    %v3420 = vpop.f32.mrf.mxu0
    %v3421 = vadd.f32 %v3260, %v3420
    %v3422 = vpop.f32.mrf.mxu0
    %v3423 = vadd.f32 %v3262, %v3422
    %3424 = vmatprep.mubr.f32.mxu0 %v369
    %3425 = vmatmul.mubr.f32.gmra.mxu0 %v360
    %v3426 = vpop.f32.mrf.mxu0
    %v3427 = vadd.f32 %v3266, %v3426
    %v3428 = vpop.f32.mrf.mxu0
    %v3429 = vadd.f32 %v3268, %v3428
    %3430 = vmatprep.mubr.f32.mxu0 %v370
    %3431 = vmatmul.mubr.f32.gmra.mxu0 %v361
    %v3432 = vpop.f32.mrf.mxu0
    %v3433 = vadd.f32 %v3272, %v3432
    %v3434 = vpop.f32.mrf.mxu0
    %v3435 = vadd.f32 %v3274, %v3434
    %3436 = vmatprep.mubr.f32.mxu0 %v371
    %3437 = vmatmul.mubr.f32.gmra.mxu0 %v362
    %v3438 = vpop.f32.mrf.mxu0
    %v3439 = vadd.f32 %v3278, %v3438
    %v3440 = vpop.f32.mrf.mxu0
    %v3441 = vadd.f32 %v3280, %v3440
    %3442 = vmatprep.mubr.f32.mxu0 %v372
    %3443 = vmatmul.mubr.f32.gmra.mxu0 %v363
    %v3444 = vpop.f32.mrf.mxu0
    %v3445 = vadd.f32 %v3284, %v3444
    %v3446 = vpop.f32.mrf.mxu0
    %v3447 = vadd.f32 %v3286, %v3446
    %3448 = vmatprep.mubr.f32.mxu0 %v373
    %3449 = vmatmul.mubr.f32.gmra.mxu0 %v364
    %v3450 = vpop.f32.mrf.mxu0
    %v3451 = vadd.f32 %v3290, %v3450
    %v3452 = vpop.f32.mrf.mxu0
    %v3453 = vadd.f32 %v3292, %v3452
    %3454 = vdwg.mxu0
    %3455 = vmatprep.subr.mxu0 %v239
    %3456 = vmatpush1.msra.mxu0 %v238
    %3457 = vmatprep.subr.mxu0 %v237
    %3458 = vmatpush1.msra.mxu0 %v236
    %3459 = vmatprep.subr.mxu0 %v235
    %3460 = vmatpush1.msra.mxu0 %v234
    %3461 = vmatprep.subr.mxu0 %v233
    %3462 = vmatpush1.msra.mxu0 %v232
    %3463 = vmatprep.subr.mxu0 %v231
    %3464 = vmatpush1.msra.mxu0 %v230
    %3465 = vmatprep.subr.mxu0 %v229
    %3466 = vmatpush1.msra.mxu0 %v228
    %3467 = vmatprep.subr.mxu0 %v227
    %3468 = vmatpush1.msra.mxu0 %v226
    %3469 = vmatprep.subr.mxu0 %v225
    %3470 = vmatpush1.msra.mxu0 %v224
    %3471 = vmatprep.subr.mxu0 %v223
    %3472 = vmatpush1.msra.mxu0 %v222
    %3473 = vmatprep.subr.mxu0 %v221
    %3474 = vmatpush1.msra.mxu0 %v220
    %3475 = vmatprep.subr.mxu0 %v219
    %3476 = vmatpush1.msra.mxu0 %v218
    %3477 = vmatprep.subr.mxu0 %v217
    %3478 = vmatpush1.msra.mxu0 %v216
    %3479 = vmatprep.subr.mxu0 %v215
    %3480 = vmatpush1.msra.mxu0 %v214
    %3481 = vmatprep.subr.mxu0 %v213
    %3482 = vmatpush1.msra.mxu0 %v212
    %3483 = vmatprep.subr.mxu0 %v211
    %3484 = vmatpush1.msra.mxu0 %v210
    %3485 = vmatprep.subr.mxu0 %v209
    %3486 = vmatpush1.msra.mxu0 %v208
    %3487 = vmatprep.subr.mxu0 0.0
    %3488 = vmatpush2.msra.mxu0 0.0
    %3489 = vmatprep.subr.mxu0 0.0
    %3490 = vmatpush2.msra.mxu0 0.0
    %3491 = vmatprep.subr.mxu0 0.0
    %3492 = vmatpush2.msra.mxu0 0.0
    %3493 = vmatprep.subr.mxu0 0.0
    %3494 = vmatpush2.msra.mxu0 0.0
    %3495 = vmatprep.subr.mxu0 0.0
    %3496 = vmatpush2.msra.mxu0 0.0
    %3497 = vmatprep.subr.mxu0 0.0
    %3498 = vmatpush2.msra.mxu0 0.0
    %3499 = vmatprep.subr.mxu0 0.0
    %3500 = vmatpush2.msra.mxu0 0.0
    %3501 = vmatprep.subr.mxu0 0.0
    %3502 = vmatpush2.msra.mxu0 0.0
    %3503 = vmatprep.subr.mxu0 0.0
    %3504 = vmatpush2.msra.mxu0 0.0
    %3505 = vmatprep.subr.mxu0 0.0
    %3506 = vmatpush2.msra.mxu0 0.0
    %3507 = vmatprep.subr.mxu0 0.0
    %3508 = vmatpush2.msra.mxu0 0.0
    %3509 = vmatprep.subr.mxu0 0.0
    %3510 = vmatpush2.msra.mxu0 0.0
    %3511 = vmatprep.subr.mxu0 0.0
    %3512 = vmatpush2.msra.mxu0 0.0
    %3513 = vmatprep.subr.mxu0 0.0
    %3514 = vmatpush2.msra.mxu0 0.0
    %3515 = vmatprep.subr.mxu0 0.0
    %3516 = vmatpush2.msra.mxu0 0.0
    %3517 = vmatprep.subr.mxu0 0.0
    %3518 = vmatpush2.msra.mxu0 0.0
    %3519 = vmatprep.mubr.f32.mxu0 0.0
    %3520 = vmatmul.mubr.f32.gmra.mxu0 %v366
    %v3521 = vpop.f32.mrf.mxu0
    %v3522 = vadd.f32 %v3361, %v3521
    %v3523 = vpop.f32.mrf.mxu0
    %v3524 = vadd.f32 %v3363, %v3523
    %3525 = vmatprep.mubr.f32.mxu0 0.0
    %3526 = vmatmul.mubr.f32.gmra.mxu0 %v367
    %v3527 = vpop.f32.mrf.mxu0
    %v3528 = vadd.f32 %v3367, %v3527
    %v3529 = vpop.f32.mrf.mxu0
    %v3530 = vadd.f32 %v3369, %v3529
    %3531 = vmatprep.mubr.f32.mxu0 0.0
    %3532 = vmatmul.mubr.f32.gmra.mxu0 %v368
    %v3533 = vpop.f32.mrf.mxu0
    %v3534 = vadd.f32 %v3373, %v3533
    %v3535 = vpop.f32.mrf.mxu0
    %v3536 = vadd.f32 %v3375, %v3535
    %3537 = vmatprep.mubr.f32.mxu0 0.0
    %3538 = vmatmul.mubr.f32.gmra.mxu0 %v369
    %v3539 = vpop.f32.mrf.mxu0
    %v3540 = vadd.f32 %v3379, %v3539
    %v3541 = vpop.f32.mrf.mxu0
    %v3542 = vadd.f32 %v3381, %v3541
    %3543 = vmatprep.mubr.f32.mxu0 0.0
    %3544 = vmatmul.mubr.f32.gmra.mxu0 %v370
    %v3545 = vpop.f32.mrf.mxu0
    %v3546 = vadd.f32 %v3385, %v3545
    %v3547 = vpop.f32.mrf.mxu0
    %v3548 = vadd.f32 %v3387, %v3547
    %3549 = vmatprep.mubr.f32.mxu0 0.0
    %3550 = vmatmul.mubr.f32.gmra.mxu0 %v371
    %v3551 = vpop.f32.mrf.mxu0
    %v3552 = vadd.f32 %v3391, %v3551
    %v3553 = vpop.f32.mrf.mxu0
    %v3554 = vadd.f32 %v3393, %v3553
    %3555 = vmatprep.mubr.f32.mxu0 0.0
    %3556 = vmatmul.mubr.f32.gmra.mxu0 %v372
    %v3557 = vpop.f32.mrf.mxu0
    %v3558 = vadd.f32 %v3397, %v3557
    %v3559 = vpop.f32.mrf.mxu0
    %v3560 = vadd.f32 %v3399, %v3559
    %3561 = vmatprep.mubr.f32.mxu0 0.0
    %3562 = vmatmul.mubr.f32.gmra.mxu0 %v373
    %v3563 = vpop.f32.mrf.mxu0
    %v3564 = vadd.f32 %v3403, %v3563
    %v3565 = vpop.f32.mrf.mxu0
    %v3566 = vadd.f32 %v3405, %v3565
    %3567 = vmatprep.mubr.f32.mxu0 0.0
    %3568 = vmatmul.mubr.f32.gmra.mxu0 %v375
    %v3569 = vpop.f32.mrf.mxu0
    %v3570 = vadd.f32 %v3409, %v3569
    %v3571 = vpop.f32.mrf.mxu0
    %v3572 = vadd.f32 %v3411, %v3571
    %3573 = vmatprep.mubr.f32.mxu0 0.0
    %3574 = vmatmul.mubr.f32.gmra.mxu0 %v376
    %v3575 = vpop.f32.mrf.mxu0
    %v3576 = vadd.f32 %v3415, %v3575
    %v3577 = vpop.f32.mrf.mxu0
    %v3578 = vadd.f32 %v3417, %v3577
    %3579 = vmatprep.mubr.f32.mxu0 0.0
    %3580 = vmatmul.mubr.f32.gmra.mxu0 %v377
    %v3581 = vpop.f32.mrf.mxu0
    %v3582 = vadd.f32 %v3421, %v3581
    %v3583 = vpop.f32.mrf.mxu0
    %v3584 = vadd.f32 %v3423, %v3583
    %3585 = vmatprep.mubr.f32.mxu0 0.0
    %3586 = vmatmul.mubr.f32.gmra.mxu0 %v378
    %v3587 = vpop.f32.mrf.mxu0
    %v3588 = vadd.f32 %v3427, %v3587
    %v3589 = vpop.f32.mrf.mxu0
    %v3590 = vadd.f32 %v3429, %v3589
    %3591 = vmatprep.mubr.f32.mxu0 0.0
    %3592 = vmatmul.mubr.f32.gmra.mxu0 %v379
    %v3593 = vpop.f32.mrf.mxu0
    %v3594 = vadd.f32 %v3433, %v3593
    %v3595 = vpop.f32.mrf.mxu0
    %v3596 = vadd.f32 %v3435, %v3595
    %3597 = vmatprep.mubr.f32.mxu0 0.0
    %3598 = vmatmul.mubr.f32.gmra.mxu0 %v380
    %v3599 = vpop.f32.mrf.mxu0
    %v3600 = vadd.f32 %v3439, %v3599
    %v3601 = vpop.f32.mrf.mxu0
    %v3602 = vadd.f32 %v3441, %v3601
    %3603 = vmatprep.mubr.f32.mxu0 0.0
    %3604 = vmatmul.mubr.f32.gmra.mxu0 %v381
    %v3605 = vpop.f32.mrf.mxu0
    %v3606 = vadd.f32 %v3445, %v3605
    %v3607 = vpop.f32.mrf.mxu0
    %v3608 = vadd.f32 %v3447, %v3607
    %3609 = vmatprep.mubr.f32.mxu0 0.0
    %3610 = vmatmul.mubr.f32.gmra.mxu0 %v382
    %v3611 = vpop.f32.mrf.mxu0
    %v3612 = vadd.f32 %v3451, %v3611
    %v3613 = vpop.f32.mrf.mxu0
    %v3614 = vadd.f32 %v3453, %v3613
    %3615 = vdwg.mxu0
    %v3616 = vmax.f32 %v3522, %v3524
    %v3617 = vmax.f32 %v3528, %v3530
    %v3618 = vmax.f32 %v3534, %v3536
    %v3619 = vmax.f32 %v3540, %v3542
    %v3620 = vmax.f32 %v3546, %v3548
    %v3621 = vmax.f32 %v3552, %v3554
    %v3622 = vmax.f32 %v3558, %v3560
    %v3623 = vmax.f32 %v3564, %v3566
    %v3624 = vmax.f32 %v3570, %v3572
    %v3625 = vmax.f32 %v3576, %v3578
    %v3626 = vmax.f32 %v3582, %v3584
    %v3627 = vmax.f32 %v3588, %v3590
    %v3628 = vmax.f32 %v3594, %v3596
    %v3629 = vmax.f32 %v3600, %v3602
    %v3630 = vmax.f32 %v3606, %v3608
    %v3631 = vmax.f32 %v3612, %v3614
    %v3632 = vmax.f32 %v3616, %v3624
    %v3633 = vmax.f32 %v3617, %v3625
    %v3634 = vmax.f32 %v3618, %v3626
    %v3635 = vmax.f32 %v3619, %v3627
    %v3636 = vmax.f32 %v3620, %v3628
    %v3637 = vmax.f32 %v3621, %v3629
    %v3638 = vmax.f32 %v3622, %v3630
    %v3639 = vmax.f32 %v3623, %v3631
    %v3640 = vadd.f32 %v3632, %v1003
    %v3641 = vadd.f32 %v3633, %v1003
    %v3642 = vadd.f32 %v3634, %v1003
    %v3643 = vadd.f32 %v3635, %v1003
    %v3644 = vadd.f32 %v3636, %v1003
    %v3645 = vadd.f32 %v3637, %v1003
    %v3646 = vadd.f32 %v3638, %v1003
    %v3647 = vadd.f32 %v3639, %v1003
    %v3648 = vmax.f32 %v3640, 0.0
    %v3649 = vmax.f32 %v3641, 0.0
    %v3650 = vmax.f32 %v3642, 0.0
    %v3651 = vmax.f32 %v3643, 0.0
    %v3652 = vmax.f32 %v3644, 0.0
    %v3653 = vmax.f32 %v3645, 0.0
    %v3654 = vmax.f32 %v3646, 0.0
    %v3655 = vmax.f32 %v3647, 0.0
    %v3656 = vpack.c.bf16 %v3649, %v3648
    %v3657 = vpack.c.bf16 %v3651, %v3650
    %v3658 = vpack.c.bf16 %v3653, %v3652
    %v3659 = vpack.c.bf16 %v3655, %v3654
    %3660 = vmatprep.subr.mxu0 %v111
    %3661 = vmatpush1.msra.mxu0 %v110
    %3662 = vmatprep.subr.mxu0 %v109
    %3663 = vmatpush1.msra.mxu0 %v108
    %3664 = vmatprep.subr.mxu0 %v107
    %3665 = vmatpush1.msra.mxu0 %v106
    %3666 = vmatprep.subr.mxu0 %v105
    %3667 = vmatpush1.msra.mxu0 %v104
    %3668 = vmatprep.subr.mxu0 %v103
    %3669 = vmatpush1.msra.mxu0 %v102
    %3670 = vmatprep.subr.mxu0 %v101
    %3671 = vmatpush1.msra.mxu0 %v100
    %3672 = vmatprep.subr.mxu0 %v99
    %3673 = vmatpush1.msra.mxu0 %v98
    %3674 = vmatprep.subr.mxu0 %v97
    %3675 = vmatpush1.msra.mxu0 %v96
    %3676 = vmatprep.subr.mxu0 %v95
    %3677 = vmatpush1.msra.mxu0 %v94
    %3678 = vmatprep.subr.mxu0 %v93
    %3679 = vmatpush1.msra.mxu0 %v92
    %3680 = vmatprep.subr.mxu0 %v91
    %3681 = vmatpush1.msra.mxu0 %v90
    %3682 = vmatprep.subr.mxu0 %v89
    %3683 = vmatpush1.msra.mxu0 %v88
    %3684 = vmatprep.subr.mxu0 %v87
    %3685 = vmatpush1.msra.mxu0 %v86
    %3686 = vmatprep.subr.mxu0 %v85
    %3687 = vmatpush1.msra.mxu0 %v84
    %3688 = vmatprep.subr.mxu0 %v83
    %3689 = vmatpush1.msra.mxu0 %v82
    %3690 = vmatprep.subr.mxu0 %v81
    %3691 = vmatpush1.msra.mxu0 %v80
    %3692 = vmatprep.subr.mxu0 %v143
    %3693 = vmatpush2.msra.mxu0 %v142
    %3694 = vmatprep.subr.mxu0 %v141
    %3695 = vmatpush2.msra.mxu0 %v140
    %3696 = vmatprep.subr.mxu0 %v139
    %3697 = vmatpush2.msra.mxu0 %v138
    %3698 = vmatprep.subr.mxu0 %v137
    %3699 = vmatpush2.msra.mxu0 %v136
    %3700 = vmatprep.subr.mxu0 %v135
    %3701 = vmatpush2.msra.mxu0 %v134
    %3702 = vmatprep.subr.mxu0 %v133
    %3703 = vmatpush2.msra.mxu0 %v132
    %3704 = vmatprep.subr.mxu0 %v131
    %3705 = vmatpush2.msra.mxu0 %v130
    %3706 = vmatprep.subr.mxu0 %v129
    %3707 = vmatpush2.msra.mxu0 %v128
    %3708 = vmatprep.subr.mxu0 %v127
    %3709 = vmatpush2.msra.mxu0 %v126
    %3710 = vmatprep.subr.mxu0 %v125
    %3711 = vmatpush2.msra.mxu0 %v124
    %3712 = vmatprep.subr.mxu0 %v123
    %3713 = vmatpush2.msra.mxu0 %v122
    %3714 = vmatprep.subr.mxu0 %v121
    %3715 = vmatpush2.msra.mxu0 %v120
    %3716 = vmatprep.subr.mxu0 %v119
    %3717 = vmatpush2.msra.mxu0 %v118
    %3718 = vmatprep.subr.mxu0 %v117
    %3719 = vmatpush2.msra.mxu0 %v116
    %3720 = vmatprep.subr.mxu0 %v115
    %3721 = vmatpush2.msra.mxu0 %v114
    %3722 = vmatprep.subr.mxu0 %v113
    %3723 = vmatpush2.msra.mxu0 %v112
    %3724 = vmatprep.mubr.f32.mxu0 %v357
    %3725 = vmatmul.mubr.f32.gmra.mxu0 %v348
    %v3726 = vpop.f32.mrf.mxu0
    %v3727 = vadd.f32 0.0, %v3726
    %v3728 = vpop.f32.mrf.mxu0
    %v3729 = vadd.f32 0.0, %v3728
    %3730 = vmatprep.mubr.f32.mxu0 %v358
    %3731 = vmatmul.mubr.f32.gmra.mxu0 %v349
    %v3732 = vpop.f32.mrf.mxu0
    %v3733 = vadd.f32 0.0, %v3732
    %v3734 = vpop.f32.mrf.mxu0
    %v3735 = vadd.f32 0.0, %v3734
    %3736 = vmatprep.mubr.f32.mxu0 %v359
    %3737 = vmatmul.mubr.f32.gmra.mxu0 %v350
    %v3738 = vpop.f32.mrf.mxu0
    %v3739 = vadd.f32 0.0, %v3738
    %v3740 = vpop.f32.mrf.mxu0
    %v3741 = vadd.f32 0.0, %v3740
    %3742 = vmatprep.mubr.f32.mxu0 %v360
    %3743 = vmatmul.mubr.f32.gmra.mxu0 %v351
    %v3744 = vpop.f32.mrf.mxu0
    %v3745 = vadd.f32 0.0, %v3744
    %v3746 = vpop.f32.mrf.mxu0
    %v3747 = vadd.f32 0.0, %v3746
    %3748 = vmatprep.mubr.f32.mxu0 %v361
    %3749 = vmatmul.mubr.f32.gmra.mxu0 %v352
    %v3750 = vpop.f32.mrf.mxu0
    %v3751 = vadd.f32 0.0, %v3750
    %v3752 = vpop.f32.mrf.mxu0
    %v3753 = vadd.f32 0.0, %v3752
    %3754 = vmatprep.mubr.f32.mxu0 %v362
    %3755 = vmatmul.mubr.f32.gmra.mxu0 %v353
    %v3756 = vpop.f32.mrf.mxu0
    %v3757 = vadd.f32 0.0, %v3756
    %v3758 = vpop.f32.mrf.mxu0
    %v3759 = vadd.f32 0.0, %v3758
    %3760 = vmatprep.mubr.f32.mxu0 %v363
    %3761 = vmatmul.mubr.f32.gmra.mxu0 %v354
    %v3762 = vpop.f32.mrf.mxu0
    %v3763 = vadd.f32 0.0, %v3762
    %v3764 = vpop.f32.mrf.mxu0
    %v3765 = vadd.f32 0.0, %v3764
    %3766 = vmatprep.mubr.f32.mxu0 %v364
    %3767 = vmatmul.mubr.f32.gmra.mxu0 %v355
    %v3768 = vpop.f32.mrf.mxu0
    %v3769 = vadd.f32 0.0, %v3768
    %v3770 = vpop.f32.mrf.mxu0
    %v3771 = vadd.f32 0.0, %v3770
    %3772 = vmatprep.mubr.f32.mxu0 %v366
    %3773 = vmatmul.mubr.f32.gmra.mxu0 %v357
    %v3774 = vpop.f32.mrf.mxu0
    %v3775 = vadd.f32 0.0, %v3774
    %v3776 = vpop.f32.mrf.mxu0
    %v3777 = vadd.f32 0.0, %v3776
    %3778 = vmatprep.mubr.f32.mxu0 %v367
    %3779 = vmatmul.mubr.f32.gmra.mxu0 %v358
    %v3780 = vpop.f32.mrf.mxu0
    %v3781 = vadd.f32 0.0, %v3780
    %v3782 = vpop.f32.mrf.mxu0
    %v3783 = vadd.f32 0.0, %v3782
    %3784 = vmatprep.mubr.f32.mxu0 %v368
    %3785 = vmatmul.mubr.f32.gmra.mxu0 %v359
    %v3786 = vpop.f32.mrf.mxu0
    %v3787 = vadd.f32 0.0, %v3786
    %v3788 = vpop.f32.mrf.mxu0
    %v3789 = vadd.f32 0.0, %v3788
    %3790 = vmatprep.mubr.f32.mxu0 %v369
    %3791 = vmatmul.mubr.f32.gmra.mxu0 %v360
    %v3792 = vpop.f32.mrf.mxu0
    %v3793 = vadd.f32 0.0, %v3792
    %v3794 = vpop.f32.mrf.mxu0
    %v3795 = vadd.f32 0.0, %v3794
    %3796 = vmatprep.mubr.f32.mxu0 %v370
    %3797 = vmatmul.mubr.f32.gmra.mxu0 %v361
    %v3798 = vpop.f32.mrf.mxu0
    %v3799 = vadd.f32 0.0, %v3798
    %v3800 = vpop.f32.mrf.mxu0
    %v3801 = vadd.f32 0.0, %v3800
    %3802 = vmatprep.mubr.f32.mxu0 %v371
    %3803 = vmatmul.mubr.f32.gmra.mxu0 %v362
    %v3804 = vpop.f32.mrf.mxu0
    %v3805 = vadd.f32 0.0, %v3804
    %v3806 = vpop.f32.mrf.mxu0
    %v3807 = vadd.f32 0.0, %v3806
    %3808 = vmatprep.mubr.f32.mxu0 %v372
    %3809 = vmatmul.mubr.f32.gmra.mxu0 %v363
    %v3810 = vpop.f32.mrf.mxu0
    %v3811 = vadd.f32 0.0, %v3810
    %v3812 = vpop.f32.mrf.mxu0
    %v3813 = vadd.f32 0.0, %v3812
    %3814 = vmatprep.mubr.f32.mxu0 %v373
    %3815 = vmatmul.mubr.f32.gmra.mxu0 %v364
    %v3816 = vpop.f32.mrf.mxu0
    %v3817 = vadd.f32 0.0, %v3816
    %v3818 = vpop.f32.mrf.mxu0
    %v3819 = vadd.f32 0.0, %v3818
    %3820 = vdwg.mxu0
    %3821 = vmatprep.subr.mxu0 %v175
    %3822 = vmatpush1.msra.mxu0 %v174
    %3823 = vmatprep.subr.mxu0 %v173
    %3824 = vmatpush1.msra.mxu0 %v172
    %3825 = vmatprep.subr.mxu0 %v171
    %3826 = vmatpush1.msra.mxu0 %v170
    %3827 = vmatprep.subr.mxu0 %v169
    %3828 = vmatpush1.msra.mxu0 %v168
    %3829 = vmatprep.subr.mxu0 %v167
    %3830 = vmatpush1.msra.mxu0 %v166
    %3831 = vmatprep.subr.mxu0 %v165
    %3832 = vmatpush1.msra.mxu0 %v164
    %3833 = vmatprep.subr.mxu0 %v163
    %3834 = vmatpush1.msra.mxu0 %v162
    %3835 = vmatprep.subr.mxu0 %v161
    %3836 = vmatpush1.msra.mxu0 %v160
    %3837 = vmatprep.subr.mxu0 %v159
    %3838 = vmatpush1.msra.mxu0 %v158
    %3839 = vmatprep.subr.mxu0 %v157
    %3840 = vmatpush1.msra.mxu0 %v156
    %3841 = vmatprep.subr.mxu0 %v155
    %3842 = vmatpush1.msra.mxu0 %v154
    %3843 = vmatprep.subr.mxu0 %v153
    %3844 = vmatpush1.msra.mxu0 %v152
    %3845 = vmatprep.subr.mxu0 %v151
    %3846 = vmatpush1.msra.mxu0 %v150
    %3847 = vmatprep.subr.mxu0 %v149
    %3848 = vmatpush1.msra.mxu0 %v148
    %3849 = vmatprep.subr.mxu0 %v147
    %3850 = vmatpush1.msra.mxu0 %v146
    %3851 = vmatprep.subr.mxu0 %v145
    %3852 = vmatpush1.msra.mxu0 %v144
    %3853 = vmatprep.subr.mxu0 %v207
    %3854 = vmatpush2.msra.mxu0 %v206
    %3855 = vmatprep.subr.mxu0 %v205
    %3856 = vmatpush2.msra.mxu0 %v204
    %3857 = vmatprep.subr.mxu0 %v203
    %3858 = vmatpush2.msra.mxu0 %v202
    %3859 = vmatprep.subr.mxu0 %v201
    %3860 = vmatpush2.msra.mxu0 %v200
    %3861 = vmatprep.subr.mxu0 %v199
    %3862 = vmatpush2.msra.mxu0 %v198
    %3863 = vmatprep.subr.mxu0 %v197
    %3864 = vmatpush2.msra.mxu0 %v196
    %3865 = vmatprep.subr.mxu0 %v195
    %3866 = vmatpush2.msra.mxu0 %v194
    %3867 = vmatprep.subr.mxu0 %v193
    %3868 = vmatpush2.msra.mxu0 %v192
    %3869 = vmatprep.subr.mxu0 %v191
    %3870 = vmatpush2.msra.mxu0 %v190
    %3871 = vmatprep.subr.mxu0 %v189
    %3872 = vmatpush2.msra.mxu0 %v188
    %3873 = vmatprep.subr.mxu0 %v187
    %3874 = vmatpush2.msra.mxu0 %v186
    %3875 = vmatprep.subr.mxu0 %v185
    %3876 = vmatpush2.msra.mxu0 %v184
    %3877 = vmatprep.subr.mxu0 %v183
    %3878 = vmatpush2.msra.mxu0 %v182
    %3879 = vmatprep.subr.mxu0 %v181
    %3880 = vmatpush2.msra.mxu0 %v180
    %3881 = vmatprep.subr.mxu0 %v179
    %3882 = vmatpush2.msra.mxu0 %v178
    %3883 = vmatprep.subr.mxu0 %v177
    %3884 = vmatpush2.msra.mxu0 %v176
    %3885 = vmatprep.mubr.f32.mxu0 %v375
    %3886 = vmatmul.mubr.f32.gmra.mxu0 %v366
    %v3887 = vpop.f32.mrf.mxu0
    %v3888 = vadd.f32 %v3727, %v3887
    %v3889 = vpop.f32.mrf.mxu0
    %v3890 = vadd.f32 %v3729, %v3889
    %3891 = vmatprep.mubr.f32.mxu0 %v376
    %3892 = vmatmul.mubr.f32.gmra.mxu0 %v367
    %v3893 = vpop.f32.mrf.mxu0
    %v3894 = vadd.f32 %v3733, %v3893
    %v3895 = vpop.f32.mrf.mxu0
    %v3896 = vadd.f32 %v3735, %v3895
    %3897 = vmatprep.mubr.f32.mxu0 %v377
    %3898 = vmatmul.mubr.f32.gmra.mxu0 %v368
    %v3899 = vpop.f32.mrf.mxu0
    %v3900 = vadd.f32 %v3739, %v3899
    %v3901 = vpop.f32.mrf.mxu0
    %v3902 = vadd.f32 %v3741, %v3901
    %3903 = vmatprep.mubr.f32.mxu0 %v378
    %3904 = vmatmul.mubr.f32.gmra.mxu0 %v369
    %v3905 = vpop.f32.mrf.mxu0
    %v3906 = vadd.f32 %v3745, %v3905
    %v3907 = vpop.f32.mrf.mxu0
    %v3908 = vadd.f32 %v3747, %v3907
    %3909 = vmatprep.mubr.f32.mxu0 %v379
    %3910 = vmatmul.mubr.f32.gmra.mxu0 %v370
    %v3911 = vpop.f32.mrf.mxu0
    %v3912 = vadd.f32 %v3751, %v3911
    %v3913 = vpop.f32.mrf.mxu0
    %v3914 = vadd.f32 %v3753, %v3913
    %3915 = vmatprep.mubr.f32.mxu0 %v380
    %3916 = vmatmul.mubr.f32.gmra.mxu0 %v371
    %v3917 = vpop.f32.mrf.mxu0
    %v3918 = vadd.f32 %v3757, %v3917
    %v3919 = vpop.f32.mrf.mxu0
    %v3920 = vadd.f32 %v3759, %v3919
    %3921 = vmatprep.mubr.f32.mxu0 %v381
    %3922 = vmatmul.mubr.f32.gmra.mxu0 %v372
    %v3923 = vpop.f32.mrf.mxu0
    %v3924 = vadd.f32 %v3763, %v3923
    %v3925 = vpop.f32.mrf.mxu0
    %v3926 = vadd.f32 %v3765, %v3925
    %3927 = vmatprep.mubr.f32.mxu0 %v382
    %3928 = vmatmul.mubr.f32.gmra.mxu0 %v373
    %v3929 = vpop.f32.mrf.mxu0
    %v3930 = vadd.f32 %v3769, %v3929
    %v3931 = vpop.f32.mrf.mxu0
    %v3932 = vadd.f32 %v3771, %v3931
    %3933 = vmatprep.mubr.f32.mxu0 %v384
    %3934 = vmatmul.mubr.f32.gmra.mxu0 %v375
    %v3935 = vpop.f32.mrf.mxu0
    %v3936 = vadd.f32 %v3775, %v3935
    %v3937 = vpop.f32.mrf.mxu0
    %v3938 = vadd.f32 %v3777, %v3937
    %3939 = vmatprep.mubr.f32.mxu0 %v385
    %3940 = vmatmul.mubr.f32.gmra.mxu0 %v376
    %v3941 = vpop.f32.mrf.mxu0
    %v3942 = vadd.f32 %v3781, %v3941
    %v3943 = vpop.f32.mrf.mxu0
    %v3944 = vadd.f32 %v3783, %v3943
    %3945 = vmatprep.mubr.f32.mxu0 %v386
    %3946 = vmatmul.mubr.f32.gmra.mxu0 %v377
    %v3947 = vpop.f32.mrf.mxu0
    %v3948 = vadd.f32 %v3787, %v3947
    %v3949 = vpop.f32.mrf.mxu0
    %v3950 = vadd.f32 %v3789, %v3949
    %3951 = vmatprep.mubr.f32.mxu0 %v387
    %3952 = vmatmul.mubr.f32.gmra.mxu0 %v378
    %v3953 = vpop.f32.mrf.mxu0
    %v3954 = vadd.f32 %v3793, %v3953
    %v3955 = vpop.f32.mrf.mxu0
    %v3956 = vadd.f32 %v3795, %v3955
    %3957 = vmatprep.mubr.f32.mxu0 %v388
    %3958 = vmatmul.mubr.f32.gmra.mxu0 %v379
    %v3959 = vpop.f32.mrf.mxu0
    %v3960 = vadd.f32 %v3799, %v3959
    %v3961 = vpop.f32.mrf.mxu0
    %v3962 = vadd.f32 %v3801, %v3961
    %3963 = vmatprep.mubr.f32.mxu0 %v389
    %3964 = vmatmul.mubr.f32.gmra.mxu0 %v380
    %v3965 = vpop.f32.mrf.mxu0
    %v3966 = vadd.f32 %v3805, %v3965
    %v3967 = vpop.f32.mrf.mxu0
    %v3968 = vadd.f32 %v3807, %v3967
    %3969 = vmatprep.mubr.f32.mxu0 %v390
    %3970 = vmatmul.mubr.f32.gmra.mxu0 %v381
    %v3971 = vpop.f32.mrf.mxu0
    %v3972 = vadd.f32 %v3811, %v3971
    %v3973 = vpop.f32.mrf.mxu0
    %v3974 = vadd.f32 %v3813, %v3973
    %3975 = vmatprep.mubr.f32.mxu0 %v391
    %3976 = vmatmul.mubr.f32.gmra.mxu0 %v382
    %v3977 = vpop.f32.mrf.mxu0
    %v3978 = vadd.f32 %v3817, %v3977
    %v3979 = vpop.f32.mrf.mxu0
    %v3980 = vadd.f32 %v3819, %v3979
    %3981 = vdwg.mxu0
    %3982 = vmatprep.subr.mxu0 %v239
    %3983 = vmatpush1.msra.mxu0 %v238
    %3984 = vmatprep.subr.mxu0 %v237
    %3985 = vmatpush1.msra.mxu0 %v236
    %3986 = vmatprep.subr.mxu0 %v235
    %3987 = vmatpush1.msra.mxu0 %v234
    %3988 = vmatprep.subr.mxu0 %v233
    %3989 = vmatpush1.msra.mxu0 %v232
    %3990 = vmatprep.subr.mxu0 %v231
    %3991 = vmatpush1.msra.mxu0 %v230
    %3992 = vmatprep.subr.mxu0 %v229
    %3993 = vmatpush1.msra.mxu0 %v228
    %3994 = vmatprep.subr.mxu0 %v227
    %3995 = vmatpush1.msra.mxu0 %v226
    %3996 = vmatprep.subr.mxu0 %v225
    %3997 = vmatpush1.msra.mxu0 %v224
    %3998 = vmatprep.subr.mxu0 %v223
    %3999 = vmatpush1.msra.mxu0 %v222
    %4000 = vmatprep.subr.mxu0 %v221
    %4001 = vmatpush1.msra.mxu0 %v220
    %4002 = vmatprep.subr.mxu0 %v219
    %4003 = vmatpush1.msra.mxu0 %v218
    %4004 = vmatprep.subr.mxu0 %v217
    %4005 = vmatpush1.msra.mxu0 %v216
    %4006 = vmatprep.subr.mxu0 %v215
    %4007 = vmatpush1.msra.mxu0 %v214
    %4008 = vmatprep.subr.mxu0 %v213
    %4009 = vmatpush1.msra.mxu0 %v212
    %4010 = vmatprep.subr.mxu0 %v211
    %4011 = vmatpush1.msra.mxu0 %v210
    %4012 = vmatprep.subr.mxu0 %v209
    %4013 = vmatpush1.msra.mxu0 %v208
    %4014 = vmatprep.subr.mxu0 0.0
    %4015 = vmatpush2.msra.mxu0 0.0
    %4016 = vmatprep.subr.mxu0 0.0
    %4017 = vmatpush2.msra.mxu0 0.0
    %4018 = vmatprep.subr.mxu0 0.0
    %4019 = vmatpush2.msra.mxu0 0.0
    %4020 = vmatprep.subr.mxu0 0.0
    %4021 = vmatpush2.msra.mxu0 0.0
    %4022 = vmatprep.subr.mxu0 0.0
    %4023 = vmatpush2.msra.mxu0 0.0
    %4024 = vmatprep.subr.mxu0 0.0
    %4025 = vmatpush2.msra.mxu0 0.0
    %4026 = vmatprep.subr.mxu0 0.0
    %4027 = vmatpush2.msra.mxu0 0.0
    %4028 = vmatprep.subr.mxu0 0.0
    %4029 = vmatpush2.msra.mxu0 0.0
    %4030 = vmatprep.subr.mxu0 0.0
    %4031 = vmatpush2.msra.mxu0 0.0
    %4032 = vmatprep.subr.mxu0 0.0
    %4033 = vmatpush2.msra.mxu0 0.0
    %4034 = vmatprep.subr.mxu0 0.0
    %4035 = vmatpush2.msra.mxu0 0.0
    %4036 = vmatprep.subr.mxu0 0.0
    %4037 = vmatpush2.msra.mxu0 0.0
    %4038 = vmatprep.subr.mxu0 0.0
    %4039 = vmatpush2.msra.mxu0 0.0
    %4040 = vmatprep.subr.mxu0 0.0
    %4041 = vmatpush2.msra.mxu0 0.0
    %4042 = vmatprep.subr.mxu0 0.0
    %4043 = vmatpush2.msra.mxu0 0.0
    %4044 = vmatprep.subr.mxu0 0.0
    %4045 = vmatpush2.msra.mxu0 0.0
    %4046 = vmatprep.mubr.f32.mxu0 0.0
    %4047 = vmatmul.mubr.f32.gmra.mxu0 %v384
    %v4048 = vpop.f32.mrf.mxu0
    %v4049 = vadd.f32 %v3888, %v4048
    %v4050 = vpop.f32.mrf.mxu0
    %v4051 = vadd.f32 %v3890, %v4050
    %4052 = vmatprep.mubr.f32.mxu0 0.0
    %4053 = vmatmul.mubr.f32.gmra.mxu0 %v385
    %v4054 = vpop.f32.mrf.mxu0
    %v4055 = vadd.f32 %v3894, %v4054
    %v4056 = vpop.f32.mrf.mxu0
    %v4057 = vadd.f32 %v3896, %v4056
    %4058 = vmatprep.mubr.f32.mxu0 0.0
    %4059 = vmatmul.mubr.f32.gmra.mxu0 %v386
    %v4060 = vpop.f32.mrf.mxu0
    %v4061 = vadd.f32 %v3900, %v4060
    %v4062 = vpop.f32.mrf.mxu0
    %v4063 = vadd.f32 %v3902, %v4062
    %4064 = vmatprep.mubr.f32.mxu0 0.0
    %4065 = vmatmul.mubr.f32.gmra.mxu0 %v387
    %v4066 = vpop.f32.mrf.mxu0
    %v4067 = vadd.f32 %v3906, %v4066
    %v4068 = vpop.f32.mrf.mxu0
    %v4069 = vadd.f32 %v3908, %v4068
    %4070 = vmatprep.mubr.f32.mxu0 0.0
    %4071 = vmatmul.mubr.f32.gmra.mxu0 %v388
    %v4072 = vpop.f32.mrf.mxu0
    %v4073 = vadd.f32 %v3912, %v4072
    %v4074 = vpop.f32.mrf.mxu0
    %v4075 = vadd.f32 %v3914, %v4074
    %4076 = vmatprep.mubr.f32.mxu0 0.0
    %4077 = vmatmul.mubr.f32.gmra.mxu0 %v389
    %v4078 = vpop.f32.mrf.mxu0
    %v4079 = vadd.f32 %v3918, %v4078
    %v4080 = vpop.f32.mrf.mxu0
    %v4081 = vadd.f32 %v3920, %v4080
    %4082 = vmatprep.mubr.f32.mxu0 0.0
    %4083 = vmatmul.mubr.f32.gmra.mxu0 %v390
    %v4084 = vpop.f32.mrf.mxu0
    %v4085 = vadd.f32 %v3924, %v4084
    %v4086 = vpop.f32.mrf.mxu0
    %v4087 = vadd.f32 %v3926, %v4086
    %4088 = vmatprep.mubr.f32.mxu0 0.0
    %4089 = vmatmul.mubr.f32.gmra.mxu0 %v391
    %v4090 = vpop.f32.mrf.mxu0
    %v4091 = vadd.f32 %v3930, %v4090
    %v4092 = vpop.f32.mrf.mxu0
    %v4093 = vadd.f32 %v3932, %v4092
    %4094 = vmatprep.mubr.f32.mxu0 0.0
    %4095 = vmatmul.mubr.f32.gmra.mxu0 %v393
    %v4096 = vpop.f32.mrf.mxu0
    %v4097 = vadd.f32 %v3936, %v4096
    %v4098 = vpop.f32.mrf.mxu0
    %v4099 = vadd.f32 %v3938, %v4098
    %4100 = vmatprep.mubr.f32.mxu0 0.0
    %4101 = vmatmul.mubr.f32.gmra.mxu0 %v394
    %v4102 = vpop.f32.mrf.mxu0
    %v4103 = vadd.f32 %v3942, %v4102
    %v4104 = vpop.f32.mrf.mxu0
    %v4105 = vadd.f32 %v3944, %v4104
    %4106 = vmatprep.mubr.f32.mxu0 0.0
    %4107 = vmatmul.mubr.f32.gmra.mxu0 %v395
    %v4108 = vpop.f32.mrf.mxu0
    %v4109 = vadd.f32 %v3948, %v4108
    %v4110 = vpop.f32.mrf.mxu0
    %v4111 = vadd.f32 %v3950, %v4110
    %4112 = vmatprep.mubr.f32.mxu0 0.0
    %4113 = vmatmul.mubr.f32.gmra.mxu0 %v396
    %v4114 = vpop.f32.mrf.mxu0
    %v4115 = vadd.f32 %v3954, %v4114
    %v4116 = vpop.f32.mrf.mxu0
    %v4117 = vadd.f32 %v3956, %v4116
    %4118 = vmatprep.mubr.f32.mxu0 0.0
    %4119 = vmatmul.mubr.f32.gmra.mxu0 %v397
    %v4120 = vpop.f32.mrf.mxu0
    %v4121 = vadd.f32 %v3960, %v4120
    %v4122 = vpop.f32.mrf.mxu0
    %v4123 = vadd.f32 %v3962, %v4122
    %4124 = vmatprep.mubr.f32.mxu0 0.0
    %4125 = vmatmul.mubr.f32.gmra.mxu0 %v398
    %v4126 = vpop.f32.mrf.mxu0
    %v4127 = vadd.f32 %v3966, %v4126
    %v4128 = vpop.f32.mrf.mxu0
    %v4129 = vadd.f32 %v3968, %v4128
    %4130 = vmatprep.mubr.f32.mxu0 0.0
    %4131 = vmatmul.mubr.f32.gmra.mxu0 %v399
    %v4132 = vpop.f32.mrf.mxu0
    %v4133 = vadd.f32 %v3972, %v4132
    %v4134 = vpop.f32.mrf.mxu0
    %v4135 = vadd.f32 %v3974, %v4134
    %4136 = vmatprep.mubr.f32.mxu0 0.0
    %4137 = vmatmul.mubr.f32.gmra.mxu0 %v400
    %v4138 = vpop.f32.mrf.mxu0
    %v4139 = vadd.f32 %v3978, %v4138
    %v4140 = vpop.f32.mrf.mxu0
    %v4141 = vadd.f32 %v3980, %v4140
    %4142 = vdwg.mxu0
    %v4143 = vmax.f32 %v4049, %v4051
    %v4144 = vmax.f32 %v4055, %v4057
    %v4145 = vmax.f32 %v4061, %v4063
    %v4146 = vmax.f32 %v4067, %v4069
    %v4147 = vmax.f32 %v4073, %v4075
    %v4148 = vmax.f32 %v4079, %v4081
    %v4149 = vmax.f32 %v4085, %v4087
    %v4150 = vmax.f32 %v4091, %v4093
    %v4151 = vmax.f32 %v4097, %v4099
    %v4152 = vmax.f32 %v4103, %v4105
    %v4153 = vmax.f32 %v4109, %v4111
    %v4154 = vmax.f32 %v4115, %v4117
    %v4155 = vmax.f32 %v4121, %v4123
    %v4156 = vmax.f32 %v4127, %v4129
    %v4157 = vmax.f32 %v4133, %v4135
    %v4158 = vmax.f32 %v4139, %v4141
    %v4159 = vmax.f32 %v4143, %v4151
    %v4160 = vmax.f32 %v4144, %v4152
    %v4161 = vmax.f32 %v4145, %v4153
    %v4162 = vmax.f32 %v4146, %v4154
    %v4163 = vmax.f32 %v4147, %v4155
    %v4164 = vmax.f32 %v4148, %v4156
    %v4165 = vmax.f32 %v4149, %v4157
    %v4166 = vmax.f32 %v4150, %v4158
    %v4167 = vadd.f32 %v4159, %v1003
    %v4168 = vadd.f32 %v4160, %v1003
    %v4169 = vadd.f32 %v4161, %v1003
    %v4170 = vadd.f32 %v4162, %v1003
    %v4171 = vadd.f32 %v4163, %v1003
    %v4172 = vadd.f32 %v4164, %v1003
    %v4173 = vadd.f32 %v4165, %v1003
    %v4174 = vadd.f32 %v4166, %v1003
    %v4175 = vmax.f32 %v4167, 0.0
    %v4176 = vmax.f32 %v4168, 0.0
    %v4177 = vmax.f32 %v4169, 0.0
    %v4178 = vmax.f32 %v4170, 0.0
    %v4179 = vmax.f32 %v4171, 0.0
    %v4180 = vmax.f32 %v4172, 0.0
    %v4181 = vmax.f32 %v4173, 0.0
    %v4182 = vmax.f32 %v4174, 0.0
    %v4183 = vpack.c.bf16 %v4176, %v4175
    %v4184 = vpack.c.bf16 %v4178, %v4177
    %v4185 = vpack.c.bf16 %v4180, %v4179
    %v4186 = vpack.c.bf16 %v4182, %v4181
    %4187 = vmatprep.subr.mxu0 %v111
    %4188 = vmatpush1.msra.mxu0 %v110
    %4189 = vmatprep.subr.mxu0 %v109
    %4190 = vmatpush1.msra.mxu0 %v108
    %4191 = vmatprep.subr.mxu0 %v107
    %4192 = vmatpush1.msra.mxu0 %v106
    %4193 = vmatprep.subr.mxu0 %v105
    %4194 = vmatpush1.msra.mxu0 %v104
    %4195 = vmatprep.subr.mxu0 %v103
    %4196 = vmatpush1.msra.mxu0 %v102
    %4197 = vmatprep.subr.mxu0 %v101
    %4198 = vmatpush1.msra.mxu0 %v100
    %4199 = vmatprep.subr.mxu0 %v99
    %4200 = vmatpush1.msra.mxu0 %v98
    %4201 = vmatprep.subr.mxu0 %v97
    %4202 = vmatpush1.msra.mxu0 %v96
    %4203 = vmatprep.subr.mxu0 %v95
    %4204 = vmatpush1.msra.mxu0 %v94
    %4205 = vmatprep.subr.mxu0 %v93
    %4206 = vmatpush1.msra.mxu0 %v92
    %4207 = vmatprep.subr.mxu0 %v91
    %4208 = vmatpush1.msra.mxu0 %v90
    %4209 = vmatprep.subr.mxu0 %v89
    %4210 = vmatpush1.msra.mxu0 %v88
    %4211 = vmatprep.subr.mxu0 %v87
    %4212 = vmatpush1.msra.mxu0 %v86
    %4213 = vmatprep.subr.mxu0 %v85
    %4214 = vmatpush1.msra.mxu0 %v84
    %4215 = vmatprep.subr.mxu0 %v83
    %4216 = vmatpush1.msra.mxu0 %v82
    %4217 = vmatprep.subr.mxu0 %v81
    %4218 = vmatpush1.msra.mxu0 %v80
    %4219 = vmatprep.subr.mxu0 %v143
    %4220 = vmatpush2.msra.mxu0 %v142
    %4221 = vmatprep.subr.mxu0 %v141
    %4222 = vmatpush2.msra.mxu0 %v140
    %4223 = vmatprep.subr.mxu0 %v139
    %4224 = vmatpush2.msra.mxu0 %v138
    %4225 = vmatprep.subr.mxu0 %v137
    %4226 = vmatpush2.msra.mxu0 %v136
    %4227 = vmatprep.subr.mxu0 %v135
    %4228 = vmatpush2.msra.mxu0 %v134
    %4229 = vmatprep.subr.mxu0 %v133
    %4230 = vmatpush2.msra.mxu0 %v132
    %4231 = vmatprep.subr.mxu0 %v131
    %4232 = vmatpush2.msra.mxu0 %v130
    %4233 = vmatprep.subr.mxu0 %v129
    %4234 = vmatpush2.msra.mxu0 %v128
    %4235 = vmatprep.subr.mxu0 %v127
    %4236 = vmatpush2.msra.mxu0 %v126
    %4237 = vmatprep.subr.mxu0 %v125
    %4238 = vmatpush2.msra.mxu0 %v124
    %4239 = vmatprep.subr.mxu0 %v123
    %4240 = vmatpush2.msra.mxu0 %v122
    %4241 = vmatprep.subr.mxu0 %v121
    %4242 = vmatpush2.msra.mxu0 %v120
    %4243 = vmatprep.subr.mxu0 %v119
    %4244 = vmatpush2.msra.mxu0 %v118
    %4245 = vmatprep.subr.mxu0 %v117
    %4246 = vmatpush2.msra.mxu0 %v116
    %4247 = vmatprep.subr.mxu0 %v115
    %4248 = vmatpush2.msra.mxu0 %v114
    %4249 = vmatprep.subr.mxu0 %v113
    %4250 = vmatpush2.msra.mxu0 %v112
    %4251 = vmatprep.mubr.f32.mxu0 %v375
    %4252 = vmatmul.mubr.f32.gmra.mxu0 %v366
    %v4253 = vpop.f32.mrf.mxu0
    %v4254 = vadd.f32 0.0, %v4253
    %v4255 = vpop.f32.mrf.mxu0
    %v4256 = vadd.f32 0.0, %v4255
    %4257 = vmatprep.mubr.f32.mxu0 %v376
    %4258 = vmatmul.mubr.f32.gmra.mxu0 %v367
    %v4259 = vpop.f32.mrf.mxu0
    %v4260 = vadd.f32 0.0, %v4259
    %v4261 = vpop.f32.mrf.mxu0
    %v4262 = vadd.f32 0.0, %v4261
    %4263 = vmatprep.mubr.f32.mxu0 %v377
    %4264 = vmatmul.mubr.f32.gmra.mxu0 %v368
    %v4265 = vpop.f32.mrf.mxu0
    %v4266 = vadd.f32 0.0, %v4265
    %v4267 = vpop.f32.mrf.mxu0
    %v4268 = vadd.f32 0.0, %v4267
    %4269 = vmatprep.mubr.f32.mxu0 %v378
    %4270 = vmatmul.mubr.f32.gmra.mxu0 %v369
    %v4271 = vpop.f32.mrf.mxu0
    %v4272 = vadd.f32 0.0, %v4271
    %v4273 = vpop.f32.mrf.mxu0
    %v4274 = vadd.f32 0.0, %v4273
    %4275 = vmatprep.mubr.f32.mxu0 %v379
    %4276 = vmatmul.mubr.f32.gmra.mxu0 %v370
    %v4277 = vpop.f32.mrf.mxu0
    %v4278 = vadd.f32 0.0, %v4277
    %v4279 = vpop.f32.mrf.mxu0
    %v4280 = vadd.f32 0.0, %v4279
    %4281 = vmatprep.mubr.f32.mxu0 %v380
    %4282 = vmatmul.mubr.f32.gmra.mxu0 %v371
    %v4283 = vpop.f32.mrf.mxu0
    %v4284 = vadd.f32 0.0, %v4283
    %v4285 = vpop.f32.mrf.mxu0
    %v4286 = vadd.f32 0.0, %v4285
    %4287 = vmatprep.mubr.f32.mxu0 %v381
    %4288 = vmatmul.mubr.f32.gmra.mxu0 %v372
    %v4289 = vpop.f32.mrf.mxu0
    %v4290 = vadd.f32 0.0, %v4289
    %v4291 = vpop.f32.mrf.mxu0
    %v4292 = vadd.f32 0.0, %v4291
    %4293 = vmatprep.mubr.f32.mxu0 %v382
    %4294 = vmatmul.mubr.f32.gmra.mxu0 %v373
    %v4295 = vpop.f32.mrf.mxu0
    %v4296 = vadd.f32 0.0, %v4295
    %v4297 = vpop.f32.mrf.mxu0
    %v4298 = vadd.f32 0.0, %v4297
    %4299 = vmatprep.mubr.f32.mxu0 %v384
    %4300 = vmatmul.mubr.f32.gmra.mxu0 %v375
    %v4301 = vpop.f32.mrf.mxu0
    %v4302 = vadd.f32 0.0, %v4301
    %v4303 = vpop.f32.mrf.mxu0
    %v4304 = vadd.f32 0.0, %v4303
    %4305 = vmatprep.mubr.f32.mxu0 %v385
    %4306 = vmatmul.mubr.f32.gmra.mxu0 %v376
    %v4307 = vpop.f32.mrf.mxu0
    %v4308 = vadd.f32 0.0, %v4307
    %v4309 = vpop.f32.mrf.mxu0
    %v4310 = vadd.f32 0.0, %v4309
    %4311 = vmatprep.mubr.f32.mxu0 %v386
    %4312 = vmatmul.mubr.f32.gmra.mxu0 %v377
    %v4313 = vpop.f32.mrf.mxu0
    %v4314 = vadd.f32 0.0, %v4313
    %v4315 = vpop.f32.mrf.mxu0
    %v4316 = vadd.f32 0.0, %v4315
    %4317 = vmatprep.mubr.f32.mxu0 %v387
    %4318 = vmatmul.mubr.f32.gmra.mxu0 %v378
    %v4319 = vpop.f32.mrf.mxu0
    %v4320 = vadd.f32 0.0, %v4319
    %v4321 = vpop.f32.mrf.mxu0
    %v4322 = vadd.f32 0.0, %v4321
    %4323 = vmatprep.mubr.f32.mxu0 %v388
    %4324 = vmatmul.mubr.f32.gmra.mxu0 %v379
    %v4325 = vpop.f32.mrf.mxu0
    %v4326 = vadd.f32 0.0, %v4325
    %v4327 = vpop.f32.mrf.mxu0
    %v4328 = vadd.f32 0.0, %v4327
    %4329 = vmatprep.mubr.f32.mxu0 %v389
    %4330 = vmatmul.mubr.f32.gmra.mxu0 %v380
    %v4331 = vpop.f32.mrf.mxu0
    %v4332 = vadd.f32 0.0, %v4331
    %v4333 = vpop.f32.mrf.mxu0
    %v4334 = vadd.f32 0.0, %v4333
    %4335 = vmatprep.mubr.f32.mxu0 %v390
    %4336 = vmatmul.mubr.f32.gmra.mxu0 %v381
    %v4337 = vpop.f32.mrf.mxu0
    %v4338 = vadd.f32 0.0, %v4337
    %v4339 = vpop.f32.mrf.mxu0
    %v4340 = vadd.f32 0.0, %v4339
    %4341 = vmatprep.mubr.f32.mxu0 %v391
    %4342 = vmatmul.mubr.f32.gmra.mxu0 %v382
    %v4343 = vpop.f32.mrf.mxu0
    %v4344 = vadd.f32 0.0, %v4343
    %v4345 = vpop.f32.mrf.mxu0
    %v4346 = vadd.f32 0.0, %v4345
    %4347 = vdwg.mxu0
    %4348 = vmatprep.subr.mxu0 %v175
    %4349 = vmatpush1.msra.mxu0 %v174
    %4350 = vmatprep.subr.mxu0 %v173
    %4351 = vmatpush1.msra.mxu0 %v172
    %4352 = vmatprep.subr.mxu0 %v171
    %4353 = vmatpush1.msra.mxu0 %v170
    %4354 = vmatprep.subr.mxu0 %v169
    %4355 = vmatpush1.msra.mxu0 %v168
    %4356 = vmatprep.subr.mxu0 %v167
    %4357 = vmatpush1.msra.mxu0 %v166
    %4358 = vmatprep.subr.mxu0 %v165
    %4359 = vmatpush1.msra.mxu0 %v164
    %4360 = vmatprep.subr.mxu0 %v163
    %4361 = vmatpush1.msra.mxu0 %v162
    %4362 = vmatprep.subr.mxu0 %v161
    %4363 = vmatpush1.msra.mxu0 %v160
    %4364 = vmatprep.subr.mxu0 %v159
    %4365 = vmatpush1.msra.mxu0 %v158
    %4366 = vmatprep.subr.mxu0 %v157
    %4367 = vmatpush1.msra.mxu0 %v156
    %4368 = vmatprep.subr.mxu0 %v155
    %4369 = vmatpush1.msra.mxu0 %v154
    %4370 = vmatprep.subr.mxu0 %v153
    %4371 = vmatpush1.msra.mxu0 %v152
    %4372 = vmatprep.subr.mxu0 %v151
    %4373 = vmatpush1.msra.mxu0 %v150
    %4374 = vmatprep.subr.mxu0 %v149
    %4375 = vmatpush1.msra.mxu0 %v148
    %4376 = vmatprep.subr.mxu0 %v147
    %4377 = vmatpush1.msra.mxu0 %v146
    %4378 = vmatprep.subr.mxu0 %v145
    %4379 = vmatpush1.msra.mxu0 %v144
    %4380 = vmatprep.subr.mxu0 %v207
    %4381 = vmatpush2.msra.mxu0 %v206
    %4382 = vmatprep.subr.mxu0 %v205
    %4383 = vmatpush2.msra.mxu0 %v204
    %4384 = vmatprep.subr.mxu0 %v203
    %4385 = vmatpush2.msra.mxu0 %v202
    %4386 = vmatprep.subr.mxu0 %v201
    %4387 = vmatpush2.msra.mxu0 %v200
    %4388 = vmatprep.subr.mxu0 %v199
    %4389 = vmatpush2.msra.mxu0 %v198
    %4390 = vmatprep.subr.mxu0 %v197
    %4391 = vmatpush2.msra.mxu0 %v196
    %4392 = vmatprep.subr.mxu0 %v195
    %4393 = vmatpush2.msra.mxu0 %v194
    %4394 = vmatprep.subr.mxu0 %v193
    %4395 = vmatpush2.msra.mxu0 %v192
    %4396 = vmatprep.subr.mxu0 %v191
    %4397 = vmatpush2.msra.mxu0 %v190
    %4398 = vmatprep.subr.mxu0 %v189
    %4399 = vmatpush2.msra.mxu0 %v188
    %4400 = vmatprep.subr.mxu0 %v187
    %4401 = vmatpush2.msra.mxu0 %v186
    %4402 = vmatprep.subr.mxu0 %v185
    %4403 = vmatpush2.msra.mxu0 %v184
    %4404 = vmatprep.subr.mxu0 %v183
    %4405 = vmatpush2.msra.mxu0 %v182
    %4406 = vmatprep.subr.mxu0 %v181
    %4407 = vmatpush2.msra.mxu0 %v180
    %4408 = vmatprep.subr.mxu0 %v179
    %4409 = vmatpush2.msra.mxu0 %v178
    %4410 = vmatprep.subr.mxu0 %v177
    %4411 = vmatpush2.msra.mxu0 %v176
    %4412 = vmatprep.mubr.f32.mxu0 %v393
    %4413 = vmatmul.mubr.f32.gmra.mxu0 %v384
    %v4414 = vpop.f32.mrf.mxu0
    %v4415 = vadd.f32 %v4254, %v4414
    %v4416 = vpop.f32.mrf.mxu0
    %v4417 = vadd.f32 %v4256, %v4416
    %4418 = vmatprep.mubr.f32.mxu0 %v394
    %4419 = vmatmul.mubr.f32.gmra.mxu0 %v385
    %v4420 = vpop.f32.mrf.mxu0
    %v4421 = vadd.f32 %v4260, %v4420
    %v4422 = vpop.f32.mrf.mxu0
    %v4423 = vadd.f32 %v4262, %v4422
    %4424 = vmatprep.mubr.f32.mxu0 %v395
    %4425 = vmatmul.mubr.f32.gmra.mxu0 %v386
    %v4426 = vpop.f32.mrf.mxu0
    %v4427 = vadd.f32 %v4266, %v4426
    %v4428 = vpop.f32.mrf.mxu0
    %v4429 = vadd.f32 %v4268, %v4428
    %4430 = vmatprep.mubr.f32.mxu0 %v396
    %4431 = vmatmul.mubr.f32.gmra.mxu0 %v387
    %v4432 = vpop.f32.mrf.mxu0
    %v4433 = vadd.f32 %v4272, %v4432
    %v4434 = vpop.f32.mrf.mxu0
    %v4435 = vadd.f32 %v4274, %v4434
    %4436 = vmatprep.mubr.f32.mxu0 %v397
    %4437 = vmatmul.mubr.f32.gmra.mxu0 %v388
    %v4438 = vpop.f32.mrf.mxu0
    %v4439 = vadd.f32 %v4278, %v4438
    %v4440 = vpop.f32.mrf.mxu0
    %v4441 = vadd.f32 %v4280, %v4440
    %4442 = vmatprep.mubr.f32.mxu0 %v398
    %4443 = vmatmul.mubr.f32.gmra.mxu0 %v389
    %v4444 = vpop.f32.mrf.mxu0
    %v4445 = vadd.f32 %v4284, %v4444
    %v4446 = vpop.f32.mrf.mxu0
    %v4447 = vadd.f32 %v4286, %v4446
    %4448 = vmatprep.mubr.f32.mxu0 %v399
    %4449 = vmatmul.mubr.f32.gmra.mxu0 %v390
    %v4450 = vpop.f32.mrf.mxu0
    %v4451 = vadd.f32 %v4290, %v4450
    %v4452 = vpop.f32.mrf.mxu0
    %v4453 = vadd.f32 %v4292, %v4452
    %4454 = vmatprep.mubr.f32.mxu0 %v400
    %4455 = vmatmul.mubr.f32.gmra.mxu0 %v391
    %v4456 = vpop.f32.mrf.mxu0
    %v4457 = vadd.f32 %v4296, %v4456
    %v4458 = vpop.f32.mrf.mxu0
    %v4459 = vadd.f32 %v4298, %v4458
    %4460 = vmatprep.mubr.f32.mxu0 %v402
    %4461 = vmatmul.mubr.f32.gmra.mxu0 %v393
    %v4462 = vpop.f32.mrf.mxu0
    %v4463 = vadd.f32 %v4302, %v4462
    %v4464 = vpop.f32.mrf.mxu0
    %v4465 = vadd.f32 %v4304, %v4464
    %4466 = vmatprep.mubr.f32.mxu0 %v403
    %4467 = vmatmul.mubr.f32.gmra.mxu0 %v394
    %v4468 = vpop.f32.mrf.mxu0
    %v4469 = vadd.f32 %v4308, %v4468
    %v4470 = vpop.f32.mrf.mxu0
    %v4471 = vadd.f32 %v4310, %v4470
    %4472 = vmatprep.mubr.f32.mxu0 %v404
    %4473 = vmatmul.mubr.f32.gmra.mxu0 %v395
    %v4474 = vpop.f32.mrf.mxu0
    %v4475 = vadd.f32 %v4314, %v4474
    %v4476 = vpop.f32.mrf.mxu0
    %v4477 = vadd.f32 %v4316, %v4476
    %4478 = vmatprep.mubr.f32.mxu0 %v405
    %4479 = vmatmul.mubr.f32.gmra.mxu0 %v396
    %v4480 = vpop.f32.mrf.mxu0
    %v4481 = vadd.f32 %v4320, %v4480
    %v4482 = vpop.f32.mrf.mxu0
    %v4483 = vadd.f32 %v4322, %v4482
    %4484 = vmatprep.mubr.f32.mxu0 %v406
    %4485 = vmatmul.mubr.f32.gmra.mxu0 %v397
    %v4486 = vpop.f32.mrf.mxu0
    %v4487 = vadd.f32 %v4326, %v4486
    %v4488 = vpop.f32.mrf.mxu0
    %v4489 = vadd.f32 %v4328, %v4488
    %4490 = vmatprep.mubr.f32.mxu0 %v407
    %4491 = vmatmul.mubr.f32.gmra.mxu0 %v398
    %v4492 = vpop.f32.mrf.mxu0
    %v4493 = vadd.f32 %v4332, %v4492
    %v4494 = vpop.f32.mrf.mxu0
    %v4495 = vadd.f32 %v4334, %v4494
    %4496 = vmatprep.mubr.f32.mxu0 %v408
    %4497 = vmatmul.mubr.f32.gmra.mxu0 %v399
    %v4498 = vpop.f32.mrf.mxu0
    %v4499 = vadd.f32 %v4338, %v4498
    %v4500 = vpop.f32.mrf.mxu0
    %v4501 = vadd.f32 %v4340, %v4500
    %4502 = vmatprep.mubr.f32.mxu0 %v409
    %4503 = vmatmul.mubr.f32.gmra.mxu0 %v400
    %v4504 = vpop.f32.mrf.mxu0
    %v4505 = vadd.f32 %v4344, %v4504
    %v4506 = vpop.f32.mrf.mxu0
    %v4507 = vadd.f32 %v4346, %v4506
    %4508 = vdwg.mxu0
    %4509 = vmatprep.subr.mxu0 %v239
    %4510 = vmatpush1.msra.mxu0 %v238
    %4511 = vmatprep.subr.mxu0 %v237
    %4512 = vmatpush1.msra.mxu0 %v236
    %4513 = vmatprep.subr.mxu0 %v235
    %4514 = vmatpush1.msra.mxu0 %v234
    %4515 = vmatprep.subr.mxu0 %v233
    %4516 = vmatpush1.msra.mxu0 %v232
    %4517 = vmatprep.subr.mxu0 %v231
    %4518 = vmatpush1.msra.mxu0 %v230
    %4519 = vmatprep.subr.mxu0 %v229
    %4520 = vmatpush1.msra.mxu0 %v228
    %4521 = vmatprep.subr.mxu0 %v227
    %4522 = vmatpush1.msra.mxu0 %v226
    %4523 = vmatprep.subr.mxu0 %v225
    %4524 = vmatpush1.msra.mxu0 %v224
    %4525 = vmatprep.subr.mxu0 %v223
    %4526 = vmatpush1.msra.mxu0 %v222
    %4527 = vmatprep.subr.mxu0 %v221
    %4528 = vmatpush1.msra.mxu0 %v220
    %4529 = vmatprep.subr.mxu0 %v219
    %4530 = vmatpush1.msra.mxu0 %v218
    %4531 = vmatprep.subr.mxu0 %v217
    %4532 = vmatpush1.msra.mxu0 %v216
    %4533 = vmatprep.subr.mxu0 %v215
    %4534 = vmatpush1.msra.mxu0 %v214
    %4535 = vmatprep.subr.mxu0 %v213
    %4536 = vmatpush1.msra.mxu0 %v212
    %4537 = vmatprep.subr.mxu0 %v211
    %4538 = vmatpush1.msra.mxu0 %v210
    %4539 = vmatprep.subr.mxu0 %v209
    %4540 = vmatpush1.msra.mxu0 %v208
    %4541 = vmatprep.subr.mxu0 0.0
    %4542 = vmatpush2.msra.mxu0 0.0
    %4543 = vmatprep.subr.mxu0 0.0
    %4544 = vmatpush2.msra.mxu0 0.0
    %4545 = vmatprep.subr.mxu0 0.0
    %4546 = vmatpush2.msra.mxu0 0.0
    %4547 = vmatprep.subr.mxu0 0.0
    %4548 = vmatpush2.msra.mxu0 0.0
    %4549 = vmatprep.subr.mxu0 0.0
    %4550 = vmatpush2.msra.mxu0 0.0
    %4551 = vmatprep.subr.mxu0 0.0
    %4552 = vmatpush2.msra.mxu0 0.0
    %4553 = vmatprep.subr.mxu0 0.0
    %4554 = vmatpush2.msra.mxu0 0.0
    %4555 = vmatprep.subr.mxu0 0.0
    %4556 = vmatpush2.msra.mxu0 0.0
    %4557 = vmatprep.subr.mxu0 0.0
    %4558 = vmatpush2.msra.mxu0 0.0
    %4559 = vmatprep.subr.mxu0 0.0
    %4560 = vmatpush2.msra.mxu0 0.0
    %4561 = vmatprep.subr.mxu0 0.0
    %4562 = vmatpush2.msra.mxu0 0.0
    %4563 = vmatprep.subr.mxu0 0.0
    %4564 = vmatpush2.msra.mxu0 0.0
    %4565 = vmatprep.subr.mxu0 0.0
    %4566 = vmatpush2.msra.mxu0 0.0
    %4567 = vmatprep.subr.mxu0 0.0
    %4568 = vmatpush2.msra.mxu0 0.0
    %4569 = vmatprep.subr.mxu0 0.0
    %4570 = vmatpush2.msra.mxu0 0.0
    %4571 = vmatprep.subr.mxu0 0.0
    %4572 = vmatpush2.msra.mxu0 0.0
    %4573 = vmatprep.mubr.f32.mxu0 0.0
    %4574 = vmatmul.mubr.f32.gmra.mxu0 %v402
    %v4575 = vpop.f32.mrf.mxu0
    %v4576 = vadd.f32 %v4415, %v4575
    %v4577 = vpop.f32.mrf.mxu0
    %v4578 = vadd.f32 %v4417, %v4577
    %4579 = vmatprep.mubr.f32.mxu0 0.0
    %4580 = vmatmul.mubr.f32.gmra.mxu0 %v403
    %v4581 = vpop.f32.mrf.mxu0
    %v4582 = vadd.f32 %v4421, %v4581
    %v4583 = vpop.f32.mrf.mxu0
    %v4584 = vadd.f32 %v4423, %v4583
    %4585 = vmatprep.mubr.f32.mxu0 0.0
    %4586 = vmatmul.mubr.f32.gmra.mxu0 %v404
    %v4587 = vpop.f32.mrf.mxu0
    %v4588 = vadd.f32 %v4427, %v4587
    %v4589 = vpop.f32.mrf.mxu0
    %v4590 = vadd.f32 %v4429, %v4589
    %4591 = vmatprep.mubr.f32.mxu0 0.0
    %4592 = vmatmul.mubr.f32.gmra.mxu0 %v405
    %v4593 = vpop.f32.mrf.mxu0
    %v4594 = vadd.f32 %v4433, %v4593
    %v4595 = vpop.f32.mrf.mxu0
    %v4596 = vadd.f32 %v4435, %v4595
    %4597 = vmatprep.mubr.f32.mxu0 0.0
    %4598 = vmatmul.mubr.f32.gmra.mxu0 %v406
    %v4599 = vpop.f32.mrf.mxu0
    %v4600 = vadd.f32 %v4439, %v4599
    %v4601 = vpop.f32.mrf.mxu0
    %v4602 = vadd.f32 %v4441, %v4601
    %4603 = vmatprep.mubr.f32.mxu0 0.0
    %4604 = vmatmul.mubr.f32.gmra.mxu0 %v407
    %v4605 = vpop.f32.mrf.mxu0
    %v4606 = vadd.f32 %v4445, %v4605
    %v4607 = vpop.f32.mrf.mxu0
    %v4608 = vadd.f32 %v4447, %v4607
    %4609 = vmatprep.mubr.f32.mxu0 0.0
    %4610 = vmatmul.mubr.f32.gmra.mxu0 %v408
    %v4611 = vpop.f32.mrf.mxu0
    %v4612 = vadd.f32 %v4451, %v4611
    %v4613 = vpop.f32.mrf.mxu0
    %v4614 = vadd.f32 %v4453, %v4613
    %4615 = vmatprep.mubr.f32.mxu0 0.0
    %4616 = vmatmul.mubr.f32.gmra.mxu0 %v409
    %v4617 = vpop.f32.mrf.mxu0
    %v4618 = vadd.f32 %v4457, %v4617
    %v4619 = vpop.f32.mrf.mxu0
    %v4620 = vadd.f32 %v4459, %v4619
    %4621 = vmatprep.mubr.f32.mxu0 0.0
    %4622 = vmatmul.mubr.f32.gmra.mxu0 %v411
    %v4623 = vpop.f32.mrf.mxu0
    %v4624 = vadd.f32 %v4463, %v4623
    %v4625 = vpop.f32.mrf.mxu0
    %v4626 = vadd.f32 %v4465, %v4625
    %4627 = vmatprep.mubr.f32.mxu0 0.0
    %4628 = vmatmul.mubr.f32.gmra.mxu0 %v412
    %v4629 = vpop.f32.mrf.mxu0
    %v4630 = vadd.f32 %v4469, %v4629
    %v4631 = vpop.f32.mrf.mxu0
    %v4632 = vadd.f32 %v4471, %v4631
    %4633 = vmatprep.mubr.f32.mxu0 0.0
    %4634 = vmatmul.mubr.f32.gmra.mxu0 %v413
    %v4635 = vpop.f32.mrf.mxu0
    %v4636 = vadd.f32 %v4475, %v4635
    %v4637 = vpop.f32.mrf.mxu0
    %v4638 = vadd.f32 %v4477, %v4637
    %4639 = vmatprep.mubr.f32.mxu0 0.0
    %4640 = vmatmul.mubr.f32.gmra.mxu0 %v414
    %v4641 = vpop.f32.mrf.mxu0
    %v4642 = vadd.f32 %v4481, %v4641
    %v4643 = vpop.f32.mrf.mxu0
    %v4644 = vadd.f32 %v4483, %v4643
    %4645 = vmatprep.mubr.f32.mxu0 0.0
    %4646 = vmatmul.mubr.f32.gmra.mxu0 %v415
    %v4647 = vpop.f32.mrf.mxu0
    %v4648 = vadd.f32 %v4487, %v4647
    %v4649 = vpop.f32.mrf.mxu0
    %v4650 = vadd.f32 %v4489, %v4649
    %4651 = vmatprep.mubr.f32.mxu0 0.0
    %4652 = vmatmul.mubr.f32.gmra.mxu0 %v416
    %v4653 = vpop.f32.mrf.mxu0
    %v4654 = vadd.f32 %v4493, %v4653
    %v4655 = vpop.f32.mrf.mxu0
    %v4656 = vadd.f32 %v4495, %v4655
    %4657 = vmatprep.mubr.f32.mxu0 0.0
    %4658 = vmatmul.mubr.f32.gmra.mxu0 %v417
    %v4659 = vpop.f32.mrf.mxu0
    %v4660 = vadd.f32 %v4499, %v4659
    %v4661 = vpop.f32.mrf.mxu0
    %v4662 = vadd.f32 %v4501, %v4661
    %4663 = vmatprep.mubr.f32.mxu0 0.0
    %4664 = vmatmul.mubr.f32.gmra.mxu0 %v418
    %v4665 = vpop.f32.mrf.mxu0
    %v4666 = vadd.f32 %v4505, %v4665
    %v4667 = vpop.f32.mrf.mxu0
    %v4668 = vadd.f32 %v4507, %v4667
    %4669 = vdwg.mxu0
    %v4670 = vmax.f32 %v4576, %v4578
    %v4671 = vmax.f32 %v4582, %v4584
    %v4672 = vmax.f32 %v4588, %v4590
    %v4673 = vmax.f32 %v4594, %v4596
    %v4674 = vmax.f32 %v4600, %v4602
    %v4675 = vmax.f32 %v4606, %v4608
    %v4676 = vmax.f32 %v4612, %v4614
    %v4677 = vmax.f32 %v4618, %v4620
    %v4678 = vmax.f32 %v4624, %v4626
    %v4679 = vmax.f32 %v4630, %v4632
    %v4680 = vmax.f32 %v4636, %v4638
    %v4681 = vmax.f32 %v4642, %v4644
    %v4682 = vmax.f32 %v4648, %v4650
    %v4683 = vmax.f32 %v4654, %v4656
    %v4684 = vmax.f32 %v4660, %v4662
    %v4685 = vmax.f32 %v4666, %v4668
    %v4686 = vmax.f32 %v4670, %v4678
    %v4687 = vmax.f32 %v4671, %v4679
    %v4688 = vmax.f32 %v4672, %v4680
    %v4689 = vmax.f32 %v4673, %v4681
    %v4690 = vmax.f32 %v4674, %v4682
    %v4691 = vmax.f32 %v4675, %v4683
    %v4692 = vmax.f32 %v4676, %v4684
    %v4693 = vmax.f32 %v4677, %v4685
    %v4694 = vadd.f32 %v4686, %v1003
    %v4695 = vadd.f32 %v4687, %v1003
    %v4696 = vadd.f32 %v4688, %v1003
    %v4697 = vadd.f32 %v4689, %v1003
    %v4698 = vadd.f32 %v4690, %v1003
    %v4699 = vadd.f32 %v4691, %v1003
    %v4700 = vadd.f32 %v4692, %v1003
    %v4701 = vadd.f32 %v4693, %v1003
    %v4702 = vmax.f32 %v4694, 0.0
    %v4703 = vmax.f32 %v4695, 0.0
    %v4704 = vmax.f32 %v4696, 0.0
    %v4705 = vmax.f32 %v4697, 0.0
    %v4706 = vmax.f32 %v4698, 0.0
    %v4707 = vmax.f32 %v4699, 0.0
    %v4708 = vmax.f32 %v4700, 0.0
    %v4709 = vmax.f32 %v4701, 0.0
    %v4710 = vpack.c.bf16 %v4703, %v4702
    %v4711 = vpack.c.bf16 %v4705, %v4704
    %v4712 = vpack.c.bf16 %v4707, %v4706
    %v4713 = vpack.c.bf16 %v4709, %v4708
    %4714 = vmatprep.subr.mxu0 %v111
    %4715 = vmatpush1.msra.mxu0 %v110
    %4716 = vmatprep.subr.mxu0 %v109
    %4717 = vmatpush1.msra.mxu0 %v108
    %4718 = vmatprep.subr.mxu0 %v107
    %4719 = vmatpush1.msra.mxu0 %v106
    %4720 = vmatprep.subr.mxu0 %v105
    %4721 = vmatpush1.msra.mxu0 %v104
    %4722 = vmatprep.subr.mxu0 %v103
    %4723 = vmatpush1.msra.mxu0 %v102
    %4724 = vmatprep.subr.mxu0 %v101
    %4725 = vmatpush1.msra.mxu0 %v100
    %4726 = vmatprep.subr.mxu0 %v99
    %4727 = vmatpush1.msra.mxu0 %v98
    %4728 = vmatprep.subr.mxu0 %v97
    %4729 = vmatpush1.msra.mxu0 %v96
    %4730 = vmatprep.subr.mxu0 %v95
    %4731 = vmatpush1.msra.mxu0 %v94
    %4732 = vmatprep.subr.mxu0 %v93
    %4733 = vmatpush1.msra.mxu0 %v92
    %4734 = vmatprep.subr.mxu0 %v91
    %4735 = vmatpush1.msra.mxu0 %v90
    %4736 = vmatprep.subr.mxu0 %v89
    %4737 = vmatpush1.msra.mxu0 %v88
    %4738 = vmatprep.subr.mxu0 %v87
    %4739 = vmatpush1.msra.mxu0 %v86
    %4740 = vmatprep.subr.mxu0 %v85
    %4741 = vmatpush1.msra.mxu0 %v84
    %4742 = vmatprep.subr.mxu0 %v83
    %4743 = vmatpush1.msra.mxu0 %v82
    %4744 = vmatprep.subr.mxu0 %v81
    %4745 = vmatpush1.msra.mxu0 %v80
    %4746 = vmatprep.subr.mxu0 %v143
    %4747 = vmatpush2.msra.mxu0 %v142
    %4748 = vmatprep.subr.mxu0 %v141
    %4749 = vmatpush2.msra.mxu0 %v140
    %4750 = vmatprep.subr.mxu0 %v139
    %4751 = vmatpush2.msra.mxu0 %v138
    %4752 = vmatprep.subr.mxu0 %v137
    %4753 = vmatpush2.msra.mxu0 %v136
    %4754 = vmatprep.subr.mxu0 %v135
    %4755 = vmatpush2.msra.mxu0 %v134
    %4756 = vmatprep.subr.mxu0 %v133
    %4757 = vmatpush2.msra.mxu0 %v132
    %4758 = vmatprep.subr.mxu0 %v131
    %4759 = vmatpush2.msra.mxu0 %v130
    %4760 = vmatprep.subr.mxu0 %v129
    %4761 = vmatpush2.msra.mxu0 %v128
    %4762 = vmatprep.subr.mxu0 %v127
    %4763 = vmatpush2.msra.mxu0 %v126
    %4764 = vmatprep.subr.mxu0 %v125
    %4765 = vmatpush2.msra.mxu0 %v124
    %4766 = vmatprep.subr.mxu0 %v123
    %4767 = vmatpush2.msra.mxu0 %v122
    %4768 = vmatprep.subr.mxu0 %v121
    %4769 = vmatpush2.msra.mxu0 %v120
    %4770 = vmatprep.subr.mxu0 %v119
    %4771 = vmatpush2.msra.mxu0 %v118
    %4772 = vmatprep.subr.mxu0 %v117
    %4773 = vmatpush2.msra.mxu0 %v116
    %4774 = vmatprep.subr.mxu0 %v115
    %4775 = vmatpush2.msra.mxu0 %v114
    %4776 = vmatprep.subr.mxu0 %v113
    %4777 = vmatpush2.msra.mxu0 %v112
    %4778 = vmatprep.mubr.f32.mxu0 %v393
    %4779 = vmatmul.mubr.f32.gmra.mxu0 %v384
    %v4780 = vpop.f32.mrf.mxu0
    %v4781 = vadd.f32 0.0, %v4780
    %v4782 = vpop.f32.mrf.mxu0
    %v4783 = vadd.f32 0.0, %v4782
    %4784 = vmatprep.mubr.f32.mxu0 %v394
    %4785 = vmatmul.mubr.f32.gmra.mxu0 %v385
    %v4786 = vpop.f32.mrf.mxu0
    %v4787 = vadd.f32 0.0, %v4786
    %v4788 = vpop.f32.mrf.mxu0
    %v4789 = vadd.f32 0.0, %v4788
    %4790 = vmatprep.mubr.f32.mxu0 %v395
    %4791 = vmatmul.mubr.f32.gmra.mxu0 %v386
    %v4792 = vpop.f32.mrf.mxu0
    %v4793 = vadd.f32 0.0, %v4792
    %v4794 = vpop.f32.mrf.mxu0
    %v4795 = vadd.f32 0.0, %v4794
    %4796 = vmatprep.mubr.f32.mxu0 %v396
    %4797 = vmatmul.mubr.f32.gmra.mxu0 %v387
    %v4798 = vpop.f32.mrf.mxu0
    %v4799 = vadd.f32 0.0, %v4798
    %v4800 = vpop.f32.mrf.mxu0
    %v4801 = vadd.f32 0.0, %v4800
    %4802 = vmatprep.mubr.f32.mxu0 %v397
    %4803 = vmatmul.mubr.f32.gmra.mxu0 %v388
    %v4804 = vpop.f32.mrf.mxu0
    %v4805 = vadd.f32 0.0, %v4804
    %v4806 = vpop.f32.mrf.mxu0
    %v4807 = vadd.f32 0.0, %v4806
    %4808 = vmatprep.mubr.f32.mxu0 %v398
    %4809 = vmatmul.mubr.f32.gmra.mxu0 %v389
    %v4810 = vpop.f32.mrf.mxu0
    %v4811 = vadd.f32 0.0, %v4810
    %v4812 = vpop.f32.mrf.mxu0
    %v4813 = vadd.f32 0.0, %v4812
    %4814 = vmatprep.mubr.f32.mxu0 %v399
    %4815 = vmatmul.mubr.f32.gmra.mxu0 %v390
    %v4816 = vpop.f32.mrf.mxu0
    %v4817 = vadd.f32 0.0, %v4816
    %v4818 = vpop.f32.mrf.mxu0
    %v4819 = vadd.f32 0.0, %v4818
    %4820 = vmatprep.mubr.f32.mxu0 %v400
    %4821 = vmatmul.mubr.f32.gmra.mxu0 %v391
    %v4822 = vpop.f32.mrf.mxu0
    %v4823 = vadd.f32 0.0, %v4822
    %v4824 = vpop.f32.mrf.mxu0
    %v4825 = vadd.f32 0.0, %v4824
    %4826 = vmatprep.mubr.f32.mxu0 %v402
    %4827 = vmatmul.mubr.f32.gmra.mxu0 %v393
    %v4828 = vpop.f32.mrf.mxu0
    %v4829 = vadd.f32 0.0, %v4828
    %v4830 = vpop.f32.mrf.mxu0
    %v4831 = vadd.f32 0.0, %v4830
    %4832 = vmatprep.mubr.f32.mxu0 %v403
    %4833 = vmatmul.mubr.f32.gmra.mxu0 %v394
    %v4834 = vpop.f32.mrf.mxu0
    %v4835 = vadd.f32 0.0, %v4834
    %v4836 = vpop.f32.mrf.mxu0
    %v4837 = vadd.f32 0.0, %v4836
    %4838 = vmatprep.mubr.f32.mxu0 %v404
    %4839 = vmatmul.mubr.f32.gmra.mxu0 %v395
    %v4840 = vpop.f32.mrf.mxu0
    %v4841 = vadd.f32 0.0, %v4840
    %v4842 = vpop.f32.mrf.mxu0
    %v4843 = vadd.f32 0.0, %v4842
    %4844 = vmatprep.mubr.f32.mxu0 %v405
    %4845 = vmatmul.mubr.f32.gmra.mxu0 %v396
    %v4846 = vpop.f32.mrf.mxu0
    %v4847 = vadd.f32 0.0, %v4846
    %v4848 = vpop.f32.mrf.mxu0
    %v4849 = vadd.f32 0.0, %v4848
    %4850 = vmatprep.mubr.f32.mxu0 %v406
    %4851 = vmatmul.mubr.f32.gmra.mxu0 %v397
    %v4852 = vpop.f32.mrf.mxu0
    %v4853 = vadd.f32 0.0, %v4852
    %v4854 = vpop.f32.mrf.mxu0
    %v4855 = vadd.f32 0.0, %v4854
    %4856 = vmatprep.mubr.f32.mxu0 %v407
    %4857 = vmatmul.mubr.f32.gmra.mxu0 %v398
    %v4858 = vpop.f32.mrf.mxu0
    %v4859 = vadd.f32 0.0, %v4858
    %v4860 = vpop.f32.mrf.mxu0
    %v4861 = vadd.f32 0.0, %v4860
    %4862 = vmatprep.mubr.f32.mxu0 %v408
    %4863 = vmatmul.mubr.f32.gmra.mxu0 %v399
    %v4864 = vpop.f32.mrf.mxu0
    %v4865 = vadd.f32 0.0, %v4864
    %v4866 = vpop.f32.mrf.mxu0
    %v4867 = vadd.f32 0.0, %v4866
    %4868 = vmatprep.mubr.f32.mxu0 %v409
    %4869 = vmatmul.mubr.f32.gmra.mxu0 %v400
    %v4870 = vpop.f32.mrf.mxu0
    %v4871 = vadd.f32 0.0, %v4870
    %v4872 = vpop.f32.mrf.mxu0
    %v4873 = vadd.f32 0.0, %v4872
    %4874 = vdwg.mxu0
    %4875 = vmatprep.subr.mxu0 %v175
    %4876 = vmatpush1.msra.mxu0 %v174
    %4877 = vmatprep.subr.mxu0 %v173
    %4878 = vmatpush1.msra.mxu0 %v172
    %4879 = vmatprep.subr.mxu0 %v171
    %4880 = vmatpush1.msra.mxu0 %v170
    %4881 = vmatprep.subr.mxu0 %v169
    %4882 = vmatpush1.msra.mxu0 %v168
    %4883 = vmatprep.subr.mxu0 %v167
    %4884 = vmatpush1.msra.mxu0 %v166
    %4885 = vmatprep.subr.mxu0 %v165
    %4886 = vmatpush1.msra.mxu0 %v164
    %4887 = vmatprep.subr.mxu0 %v163
    %4888 = vmatpush1.msra.mxu0 %v162
    %4889 = vmatprep.subr.mxu0 %v161
    %4890 = vmatpush1.msra.mxu0 %v160
    %4891 = vmatprep.subr.mxu0 %v159
    %4892 = vmatpush1.msra.mxu0 %v158
    %4893 = vmatprep.subr.mxu0 %v157
    %4894 = vmatpush1.msra.mxu0 %v156
    %4895 = vmatprep.subr.mxu0 %v155
    %4896 = vmatpush1.msra.mxu0 %v154
    %4897 = vmatprep.subr.mxu0 %v153
    %4898 = vmatpush1.msra.mxu0 %v152
    %4899 = vmatprep.subr.mxu0 %v151
    %4900 = vmatpush1.msra.mxu0 %v150
    %4901 = vmatprep.subr.mxu0 %v149
    %4902 = vmatpush1.msra.mxu0 %v148
    %4903 = vmatprep.subr.mxu0 %v147
    %4904 = vmatpush1.msra.mxu0 %v146
    %4905 = vmatprep.subr.mxu0 %v145
    %4906 = vmatpush1.msra.mxu0 %v144
    %4907 = vmatprep.subr.mxu0 %v207
    %4908 = vmatpush2.msra.mxu0 %v206
    %4909 = vmatprep.subr.mxu0 %v205
    %4910 = vmatpush2.msra.mxu0 %v204
    %4911 = vmatprep.subr.mxu0 %v203
    %4912 = vmatpush2.msra.mxu0 %v202
    %4913 = vmatprep.subr.mxu0 %v201
    %4914 = vmatpush2.msra.mxu0 %v200
    %4915 = vmatprep.subr.mxu0 %v199
    %4916 = vmatpush2.msra.mxu0 %v198
    %4917 = vmatprep.subr.mxu0 %v197
    %4918 = vmatpush2.msra.mxu0 %v196
    %4919 = vmatprep.subr.mxu0 %v195
    %4920 = vmatpush2.msra.mxu0 %v194
    %4921 = vmatprep.subr.mxu0 %v193
    %4922 = vmatpush2.msra.mxu0 %v192
    %4923 = vmatprep.subr.mxu0 %v191
    %4924 = vmatpush2.msra.mxu0 %v190
    %4925 = vmatprep.subr.mxu0 %v189
    %4926 = vmatpush2.msra.mxu0 %v188
    %4927 = vmatprep.subr.mxu0 %v187
    %4928 = vmatpush2.msra.mxu0 %v186
    %4929 = vmatprep.subr.mxu0 %v185
    %4930 = vmatpush2.msra.mxu0 %v184
    %4931 = vmatprep.subr.mxu0 %v183
    %4932 = vmatpush2.msra.mxu0 %v182
    %4933 = vmatprep.subr.mxu0 %v181
    %4934 = vmatpush2.msra.mxu0 %v180
    %4935 = vmatprep.subr.mxu0 %v179
    %4936 = vmatpush2.msra.mxu0 %v178
    %4937 = vmatprep.subr.mxu0 %v177
    %4938 = vmatpush2.msra.mxu0 %v176
    %4939 = vmatprep.mubr.f32.mxu0 %v411
    %4940 = vmatmul.mubr.f32.gmra.mxu0 %v402
    %v4941 = vpop.f32.mrf.mxu0
    %v4942 = vadd.f32 %v4781, %v4941
    %v4943 = vpop.f32.mrf.mxu0
    %v4944 = vadd.f32 %v4783, %v4943
    %4945 = vmatprep.mubr.f32.mxu0 %v412
    %4946 = vmatmul.mubr.f32.gmra.mxu0 %v403
    %v4947 = vpop.f32.mrf.mxu0
    %v4948 = vadd.f32 %v4787, %v4947
    %v4949 = vpop.f32.mrf.mxu0
    %v4950 = vadd.f32 %v4789, %v4949
    %4951 = vmatprep.mubr.f32.mxu0 %v413
    %4952 = vmatmul.mubr.f32.gmra.mxu0 %v404
    %v4953 = vpop.f32.mrf.mxu0
    %v4954 = vadd.f32 %v4793, %v4953
    %v4955 = vpop.f32.mrf.mxu0
    %v4956 = vadd.f32 %v4795, %v4955
    %4957 = vmatprep.mubr.f32.mxu0 %v414
    %4958 = vmatmul.mubr.f32.gmra.mxu0 %v405
    %v4959 = vpop.f32.mrf.mxu0
    %v4960 = vadd.f32 %v4799, %v4959
    %v4961 = vpop.f32.mrf.mxu0
    %v4962 = vadd.f32 %v4801, %v4961
    %4963 = vmatprep.mubr.f32.mxu0 %v415
    %4964 = vmatmul.mubr.f32.gmra.mxu0 %v406
    %v4965 = vpop.f32.mrf.mxu0
    %v4966 = vadd.f32 %v4805, %v4965
    %v4967 = vpop.f32.mrf.mxu0
    %v4968 = vadd.f32 %v4807, %v4967
    %4969 = vmatprep.mubr.f32.mxu0 %v416
    %4970 = vmatmul.mubr.f32.gmra.mxu0 %v407
    %v4971 = vpop.f32.mrf.mxu0
    %v4972 = vadd.f32 %v4811, %v4971
    %v4973 = vpop.f32.mrf.mxu0
    %v4974 = vadd.f32 %v4813, %v4973
    %4975 = vmatprep.mubr.f32.mxu0 %v417
    %4976 = vmatmul.mubr.f32.gmra.mxu0 %v408
    %v4977 = vpop.f32.mrf.mxu0
    %v4978 = vadd.f32 %v4817, %v4977
    %v4979 = vpop.f32.mrf.mxu0
    %v4980 = vadd.f32 %v4819, %v4979
    %4981 = vmatprep.mubr.f32.mxu0 %v418
    %4982 = vmatmul.mubr.f32.gmra.mxu0 %v409
    %v4983 = vpop.f32.mrf.mxu0
    %v4984 = vadd.f32 %v4823, %v4983
    %v4985 = vpop.f32.mrf.mxu0
    %v4986 = vadd.f32 %v4825, %v4985
    %4987 = vmatprep.mubr.f32.mxu0 %v420
    %4988 = vmatmul.mubr.f32.gmra.mxu0 %v411
    %v4989 = vpop.f32.mrf.mxu0
    %v4990 = vadd.f32 %v4829, %v4989
    %v4991 = vpop.f32.mrf.mxu0
    %v4992 = vadd.f32 %v4831, %v4991
    %4993 = vmatprep.mubr.f32.mxu0 %v421
    %4994 = vmatmul.mubr.f32.gmra.mxu0 %v412
    %v4995 = vpop.f32.mrf.mxu0
    %v4996 = vadd.f32 %v4835, %v4995
    %v4997 = vpop.f32.mrf.mxu0
    %v4998 = vadd.f32 %v4837, %v4997
    %4999 = vmatprep.mubr.f32.mxu0 %v422
    %5000 = vmatmul.mubr.f32.gmra.mxu0 %v413
    %v5001 = vpop.f32.mrf.mxu0
    %v5002 = vadd.f32 %v4841, %v5001
    %v5003 = vpop.f32.mrf.mxu0
    %v5004 = vadd.f32 %v4843, %v5003
    %5005 = vmatprep.mubr.f32.mxu0 %v423
    %5006 = vmatmul.mubr.f32.gmra.mxu0 %v414
    %v5007 = vpop.f32.mrf.mxu0
    %v5008 = vadd.f32 %v4847, %v5007
    %v5009 = vpop.f32.mrf.mxu0
    %v5010 = vadd.f32 %v4849, %v5009
    %5011 = vmatprep.mubr.f32.mxu0 %v424
    %5012 = vmatmul.mubr.f32.gmra.mxu0 %v415
    %v5013 = vpop.f32.mrf.mxu0
    %v5014 = vadd.f32 %v4853, %v5013
    %v5015 = vpop.f32.mrf.mxu0
    %v5016 = vadd.f32 %v4855, %v5015
    %5017 = vmatprep.mubr.f32.mxu0 %v425
    %5018 = vmatmul.mubr.f32.gmra.mxu0 %v416
    %v5019 = vpop.f32.mrf.mxu0
    %v5020 = vadd.f32 %v4859, %v5019
    %v5021 = vpop.f32.mrf.mxu0
    %v5022 = vadd.f32 %v4861, %v5021
    %5023 = vmatprep.mubr.f32.mxu0 %v426
    %5024 = vmatmul.mubr.f32.gmra.mxu0 %v417
    %v5025 = vpop.f32.mrf.mxu0
    %v5026 = vadd.f32 %v4865, %v5025
    %v5027 = vpop.f32.mrf.mxu0
    %v5028 = vadd.f32 %v4867, %v5027
    %5029 = vmatprep.mubr.f32.mxu0 %v427
    %5030 = vmatmul.mubr.f32.gmra.mxu0 %v418
    %v5031 = vpop.f32.mrf.mxu0
    %v5032 = vadd.f32 %v4871, %v5031
    %v5033 = vpop.f32.mrf.mxu0
    %v5034 = vadd.f32 %v4873, %v5033
    %5035 = vdwg.mxu0
    %5036 = vmatprep.subr.mxu0 %v239
    %5037 = vmatpush1.msra.mxu0 %v238
    %5038 = vmatprep.subr.mxu0 %v237
    %5039 = vmatpush1.msra.mxu0 %v236
    %5040 = vmatprep.subr.mxu0 %v235
    %5041 = vmatpush1.msra.mxu0 %v234
    %5042 = vmatprep.subr.mxu0 %v233
    %5043 = vmatpush1.msra.mxu0 %v232
    %5044 = vmatprep.subr.mxu0 %v231
    %5045 = vmatpush1.msra.mxu0 %v230
    %5046 = vmatprep.subr.mxu0 %v229
    %5047 = vmatpush1.msra.mxu0 %v228
    %5048 = vmatprep.subr.mxu0 %v227
    %5049 = vmatpush1.msra.mxu0 %v226
    %5050 = vmatprep.subr.mxu0 %v225
    %5051 = vmatpush1.msra.mxu0 %v224
    %5052 = vmatprep.subr.mxu0 %v223
    %5053 = vmatpush1.msra.mxu0 %v222
    %5054 = vmatprep.subr.mxu0 %v221
    %5055 = vmatpush1.msra.mxu0 %v220
    %5056 = vmatprep.subr.mxu0 %v219
    %5057 = vmatpush1.msra.mxu0 %v218
    %5058 = vmatprep.subr.mxu0 %v217
    %5059 = vmatpush1.msra.mxu0 %v216
    %5060 = vmatprep.subr.mxu0 %v215
    %5061 = vmatpush1.msra.mxu0 %v214
    %5062 = vmatprep.subr.mxu0 %v213
    %5063 = vmatpush1.msra.mxu0 %v212
    %5064 = vmatprep.subr.mxu0 %v211
    %5065 = vmatpush1.msra.mxu0 %v210
    %5066 = vmatprep.subr.mxu0 %v209
    %5067 = vmatpush1.msra.mxu0 %v208
    %5068 = vmatprep.subr.mxu0 0.0
    %5069 = vmatpush2.msra.mxu0 0.0
    %5070 = vmatprep.subr.mxu0 0.0
    %5071 = vmatpush2.msra.mxu0 0.0
    %5072 = vmatprep.subr.mxu0 0.0
    %5073 = vmatpush2.msra.mxu0 0.0
    %5074 = vmatprep.subr.mxu0 0.0
    %5075 = vmatpush2.msra.mxu0 0.0
    %5076 = vmatprep.subr.mxu0 0.0
    %5077 = vmatpush2.msra.mxu0 0.0
    %5078 = vmatprep.subr.mxu0 0.0
    %5079 = vmatpush2.msra.mxu0 0.0
    %5080 = vmatprep.subr.mxu0 0.0
    %5081 = vmatpush2.msra.mxu0 0.0
    %5082 = vmatprep.subr.mxu0 0.0
    %5083 = vmatpush2.msra.mxu0 0.0
    %5084 = vmatprep.subr.mxu0 0.0
    %5085 = vmatpush2.msra.mxu0 0.0
    %5086 = vmatprep.subr.mxu0 0.0
    %5087 = vmatpush2.msra.mxu0 0.0
    %5088 = vmatprep.subr.mxu0 0.0
    %5089 = vmatpush2.msra.mxu0 0.0
    %5090 = vmatprep.subr.mxu0 0.0
    %5091 = vmatpush2.msra.mxu0 0.0
    %5092 = vmatprep.subr.mxu0 0.0
    %5093 = vmatpush2.msra.mxu0 0.0
    %5094 = vmatprep.subr.mxu0 0.0
    %5095 = vmatpush2.msra.mxu0 0.0
    %5096 = vmatprep.subr.mxu0 0.0
    %5097 = vmatpush2.msra.mxu0 0.0
    %5098 = vmatprep.subr.mxu0 0.0
    %5099 = vmatpush2.msra.mxu0 0.0
    %5100 = vmatprep.mubr.f32.mxu0 0.0
    %5101 = vmatmul.mubr.f32.gmra.mxu0 %v420
    %v5102 = vpop.f32.mrf.mxu0
    %v5103 = vadd.f32 %v4942, %v5102
    %v5104 = vpop.f32.mrf.mxu0
    %v5105 = vadd.f32 %v4944, %v5104
    %5106 = vmatprep.mubr.f32.mxu0 0.0
    %5107 = vmatmul.mubr.f32.gmra.mxu0 %v421
    %v5108 = vpop.f32.mrf.mxu0
    %v5109 = vadd.f32 %v4948, %v5108
    %v5110 = vpop.f32.mrf.mxu0
    %v5111 = vadd.f32 %v4950, %v5110
    %5112 = vmatprep.mubr.f32.mxu0 0.0
    %5113 = vmatmul.mubr.f32.gmra.mxu0 %v422
    %v5114 = vpop.f32.mrf.mxu0
    %v5115 = vadd.f32 %v4954, %v5114
    %v5116 = vpop.f32.mrf.mxu0
    %v5117 = vadd.f32 %v4956, %v5116
    %5118 = vmatprep.mubr.f32.mxu0 0.0
    %5119 = vmatmul.mubr.f32.gmra.mxu0 %v423
    %v5120 = vpop.f32.mrf.mxu0
    %v5121 = vadd.f32 %v4960, %v5120
    %v5122 = vpop.f32.mrf.mxu0
    %v5123 = vadd.f32 %v4962, %v5122
    %5124 = vmatprep.mubr.f32.mxu0 0.0
    %5125 = vmatmul.mubr.f32.gmra.mxu0 %v424
    %v5126 = vpop.f32.mrf.mxu0
    %v5127 = vadd.f32 %v4966, %v5126
    %v5128 = vpop.f32.mrf.mxu0
    %v5129 = vadd.f32 %v4968, %v5128
    %5130 = vmatprep.mubr.f32.mxu0 0.0
    %5131 = vmatmul.mubr.f32.gmra.mxu0 %v425
    %v5132 = vpop.f32.mrf.mxu0
    %v5133 = vadd.f32 %v4972, %v5132
    %v5134 = vpop.f32.mrf.mxu0
    %v5135 = vadd.f32 %v4974, %v5134
    %5136 = vmatprep.mubr.f32.mxu0 0.0
    %5137 = vmatmul.mubr.f32.gmra.mxu0 %v426
    %v5138 = vpop.f32.mrf.mxu0
    %v5139 = vadd.f32 %v4978, %v5138
    %v5140 = vpop.f32.mrf.mxu0
    %v5141 = vadd.f32 %v4980, %v5140
    %5142 = vmatprep.mubr.f32.mxu0 0.0
    %5143 = vmatmul.mubr.f32.gmra.mxu0 %v427
    %v5144 = vpop.f32.mrf.mxu0
    %v5145 = vadd.f32 %v4984, %v5144
    %v5146 = vpop.f32.mrf.mxu0
    %v5147 = vadd.f32 %v4986, %v5146
    %5148 = vmatprep.mubr.f32.mxu0 0.0
    %5149 = vmatmul.mubr.f32.gmra.mxu0 %v429
    %v5150 = vpop.f32.mrf.mxu0
    %v5151 = vadd.f32 %v4990, %v5150
    %v5152 = vpop.f32.mrf.mxu0
    %v5153 = vadd.f32 %v4992, %v5152
    %5154 = vmatprep.mubr.f32.mxu0 0.0
    %5155 = vmatmul.mubr.f32.gmra.mxu0 %v430
    %v5156 = vpop.f32.mrf.mxu0
    %v5157 = vadd.f32 %v4996, %v5156
    %v5158 = vpop.f32.mrf.mxu0
    %v5159 = vadd.f32 %v4998, %v5158
    %5160 = vmatprep.mubr.f32.mxu0 0.0
    %5161 = vmatmul.mubr.f32.gmra.mxu0 %v431
    %v5162 = vpop.f32.mrf.mxu0
    %v5163 = vadd.f32 %v5002, %v5162
    %v5164 = vpop.f32.mrf.mxu0
    %v5165 = vadd.f32 %v5004, %v5164
    %5166 = vmatprep.mubr.f32.mxu0 0.0
    %5167 = vmatmul.mubr.f32.gmra.mxu0 %v432
    %v5168 = vpop.f32.mrf.mxu0
    %v5169 = vadd.f32 %v5008, %v5168
    %v5170 = vpop.f32.mrf.mxu0
    %v5171 = vadd.f32 %v5010, %v5170
    %5172 = vmatprep.mubr.f32.mxu0 0.0
    %5173 = vmatmul.mubr.f32.gmra.mxu0 %v433
    %v5174 = vpop.f32.mrf.mxu0
    %v5175 = vadd.f32 %v5014, %v5174
    %v5176 = vpop.f32.mrf.mxu0
    %v5177 = vadd.f32 %v5016, %v5176
    %5178 = vmatprep.mubr.f32.mxu0 0.0
    %5179 = vmatmul.mubr.f32.gmra.mxu0 %v434
    %v5180 = vpop.f32.mrf.mxu0
    %v5181 = vadd.f32 %v5020, %v5180
    %v5182 = vpop.f32.mrf.mxu0
    %v5183 = vadd.f32 %v5022, %v5182
    %5184 = vmatprep.mubr.f32.mxu0 0.0
    %5185 = vmatmul.mubr.f32.gmra.mxu0 %v435
    %v5186 = vpop.f32.mrf.mxu0
    %v5187 = vadd.f32 %v5026, %v5186
    %v5188 = vpop.f32.mrf.mxu0
    %v5189 = vadd.f32 %v5028, %v5188
    %5190 = vmatprep.mubr.f32.mxu0 0.0
    %5191 = vmatmul.mubr.f32.gmra.mxu0 %v436
    %v5192 = vpop.f32.mrf.mxu0
    %v5193 = vadd.f32 %v5032, %v5192
    %v5194 = vpop.f32.mrf.mxu0
    %v5195 = vadd.f32 %v5034, %v5194
    %5196 = vdwg.mxu0
    %v5197 = vmax.f32 %v5103, %v5105
    %v5198 = vmax.f32 %v5109, %v5111
    %v5199 = vmax.f32 %v5115, %v5117
    %v5200 = vmax.f32 %v5121, %v5123
    %v5201 = vmax.f32 %v5127, %v5129
    %v5202 = vmax.f32 %v5133, %v5135
    %v5203 = vmax.f32 %v5139, %v5141
    %v5204 = vmax.f32 %v5145, %v5147
    %v5205 = vmax.f32 %v5151, %v5153
    %v5206 = vmax.f32 %v5157, %v5159
    %v5207 = vmax.f32 %v5163, %v5165
    %v5208 = vmax.f32 %v5169, %v5171
    %v5209 = vmax.f32 %v5175, %v5177
    %v5210 = vmax.f32 %v5181, %v5183
    %v5211 = vmax.f32 %v5187, %v5189
    %v5212 = vmax.f32 %v5193, %v5195
    %v5213 = vmax.f32 %v5197, %v5205
    %v5214 = vmax.f32 %v5198, %v5206
    %v5215 = vmax.f32 %v5199, %v5207
    %v5216 = vmax.f32 %v5200, %v5208
    %v5217 = vmax.f32 %v5201, %v5209
    %v5218 = vmax.f32 %v5202, %v5210
    %v5219 = vmax.f32 %v5203, %v5211
    %v5220 = vmax.f32 %v5204, %v5212
    %v5221 = vadd.f32 %v5213, %v1003
    %v5222 = vadd.f32 %v5214, %v1003
    %v5223 = vadd.f32 %v5215, %v1003
    %v5224 = vadd.f32 %v5216, %v1003
    %v5225 = vadd.f32 %v5217, %v1003
    %v5226 = vadd.f32 %v5218, %v1003
    %v5227 = vadd.f32 %v5219, %v1003
    %v5228 = vadd.f32 %v5220, %v1003
    %v5229 = vmax.f32 %v5221, 0.0
    %v5230 = vmax.f32 %v5222, 0.0
    %v5231 = vmax.f32 %v5223, 0.0
    %v5232 = vmax.f32 %v5224, 0.0
    %v5233 = vmax.f32 %v5225, 0.0
    %v5234 = vmax.f32 %v5226, 0.0
    %v5235 = vmax.f32 %v5227, 0.0
    %v5236 = vmax.f32 %v5228, 0.0
    %v5237 = vpack.c.bf16 %v5230, %v5229
    %v5238 = vpack.c.bf16 %v5232, %v5231
    %v5239 = vpack.c.bf16 %v5234, %v5233
    %v5240 = vpack.c.bf16 %v5236, %v5235
    %5241 = vmatprep.subr.mxu0 %v111
    %5242 = vmatpush1.msra.mxu0 %v110
    %5243 = vmatprep.subr.mxu0 %v109
    %5244 = vmatpush1.msra.mxu0 %v108
    %5245 = vmatprep.subr.mxu0 %v107
    %5246 = vmatpush1.msra.mxu0 %v106
    %5247 = vmatprep.subr.mxu0 %v105
    %5248 = vmatpush1.msra.mxu0 %v104
    %5249 = vmatprep.subr.mxu0 %v103
    %5250 = vmatpush1.msra.mxu0 %v102
    %5251 = vmatprep.subr.mxu0 %v101
    %5252 = vmatpush1.msra.mxu0 %v100
    %5253 = vmatprep.subr.mxu0 %v99
    %5254 = vmatpush1.msra.mxu0 %v98
    %5255 = vmatprep.subr.mxu0 %v97
    %5256 = vmatpush1.msra.mxu0 %v96
    %5257 = vmatprep.subr.mxu0 %v95
    %5258 = vmatpush1.msra.mxu0 %v94
    %5259 = vmatprep.subr.mxu0 %v93
    %5260 = vmatpush1.msra.mxu0 %v92
    %5261 = vmatprep.subr.mxu0 %v91
    %5262 = vmatpush1.msra.mxu0 %v90
    %5263 = vmatprep.subr.mxu0 %v89
    %5264 = vmatpush1.msra.mxu0 %v88
    %5265 = vmatprep.subr.mxu0 %v87
    %5266 = vmatpush1.msra.mxu0 %v86
    %5267 = vmatprep.subr.mxu0 %v85
    %5268 = vmatpush1.msra.mxu0 %v84
    %5269 = vmatprep.subr.mxu0 %v83
    %5270 = vmatpush1.msra.mxu0 %v82
    %5271 = vmatprep.subr.mxu0 %v81
    %5272 = vmatpush1.msra.mxu0 %v80
    %5273 = vmatprep.subr.mxu0 %v143
    %5274 = vmatpush2.msra.mxu0 %v142
    %5275 = vmatprep.subr.mxu0 %v141
    %5276 = vmatpush2.msra.mxu0 %v140
    %5277 = vmatprep.subr.mxu0 %v139
    %5278 = vmatpush2.msra.mxu0 %v138
    %5279 = vmatprep.subr.mxu0 %v137
    %5280 = vmatpush2.msra.mxu0 %v136
    %5281 = vmatprep.subr.mxu0 %v135
    %5282 = vmatpush2.msra.mxu0 %v134
    %5283 = vmatprep.subr.mxu0 %v133
    %5284 = vmatpush2.msra.mxu0 %v132
    %5285 = vmatprep.subr.mxu0 %v131
    %5286 = vmatpush2.msra.mxu0 %v130
    %5287 = vmatprep.subr.mxu0 %v129
    %5288 = vmatpush2.msra.mxu0 %v128
    %5289 = vmatprep.subr.mxu0 %v127
    %5290 = vmatpush2.msra.mxu0 %v126
    %5291 = vmatprep.subr.mxu0 %v125
    %5292 = vmatpush2.msra.mxu0 %v124
    %5293 = vmatprep.subr.mxu0 %v123
    %5294 = vmatpush2.msra.mxu0 %v122
    %5295 = vmatprep.subr.mxu0 %v121
    %5296 = vmatpush2.msra.mxu0 %v120
    %5297 = vmatprep.subr.mxu0 %v119
    %5298 = vmatpush2.msra.mxu0 %v118
    %5299 = vmatprep.subr.mxu0 %v117
    %5300 = vmatpush2.msra.mxu0 %v116
    %5301 = vmatprep.subr.mxu0 %v115
    %5302 = vmatpush2.msra.mxu0 %v114
    %5303 = vmatprep.subr.mxu0 %v113
    %5304 = vmatpush2.msra.mxu0 %v112
    %5305 = vmatprep.mubr.f32.mxu0 %v411
    %5306 = vmatmul.mubr.f32.gmra.mxu0 %v402
    %v5307 = vpop.f32.mrf.mxu0
    %v5308 = vadd.f32 0.0, %v5307
    %v5309 = vpop.f32.mrf.mxu0
    %v5310 = vadd.f32 0.0, %v5309
    %5311 = vmatprep.mubr.f32.mxu0 %v412
    %5312 = vmatmul.mubr.f32.gmra.mxu0 %v403
    %v5313 = vpop.f32.mrf.mxu0
    %v5314 = vadd.f32 0.0, %v5313
    %v5315 = vpop.f32.mrf.mxu0
    %v5316 = vadd.f32 0.0, %v5315
    %5317 = vmatprep.mubr.f32.mxu0 %v413
    %5318 = vmatmul.mubr.f32.gmra.mxu0 %v404
    %v5319 = vpop.f32.mrf.mxu0
    %v5320 = vadd.f32 0.0, %v5319
    %v5321 = vpop.f32.mrf.mxu0
    %v5322 = vadd.f32 0.0, %v5321
    %5323 = vmatprep.mubr.f32.mxu0 %v414
    %5324 = vmatmul.mubr.f32.gmra.mxu0 %v405
    %v5325 = vpop.f32.mrf.mxu0
    %v5326 = vadd.f32 0.0, %v5325
    %v5327 = vpop.f32.mrf.mxu0
    %v5328 = vadd.f32 0.0, %v5327
    %5329 = vmatprep.mubr.f32.mxu0 %v415
    %5330 = vmatmul.mubr.f32.gmra.mxu0 %v406
    %v5331 = vpop.f32.mrf.mxu0
    %v5332 = vadd.f32 0.0, %v5331
    %v5333 = vpop.f32.mrf.mxu0
    %v5334 = vadd.f32 0.0, %v5333
    %5335 = vmatprep.mubr.f32.mxu0 %v416
    %5336 = vmatmul.mubr.f32.gmra.mxu0 %v407
    %v5337 = vpop.f32.mrf.mxu0
    %v5338 = vadd.f32 0.0, %v5337
    %v5339 = vpop.f32.mrf.mxu0
    %v5340 = vadd.f32 0.0, %v5339
    %5341 = vmatprep.mubr.f32.mxu0 %v417
    %5342 = vmatmul.mubr.f32.gmra.mxu0 %v408
    %v5343 = vpop.f32.mrf.mxu0
    %v5344 = vadd.f32 0.0, %v5343
    %v5345 = vpop.f32.mrf.mxu0
    %v5346 = vadd.f32 0.0, %v5345
    %5347 = vmatprep.mubr.f32.mxu0 %v418
    %5348 = vmatmul.mubr.f32.gmra.mxu0 %v409
    %v5349 = vpop.f32.mrf.mxu0
    %v5350 = vadd.f32 0.0, %v5349
    %v5351 = vpop.f32.mrf.mxu0
    %v5352 = vadd.f32 0.0, %v5351
    %5353 = vmatprep.mubr.f32.mxu0 %v420
    %5354 = vmatmul.mubr.f32.gmra.mxu0 %v411
    %v5355 = vpop.f32.mrf.mxu0
    %v5356 = vadd.f32 0.0, %v5355
    %v5357 = vpop.f32.mrf.mxu0
    %v5358 = vadd.f32 0.0, %v5357
    %5359 = vmatprep.mubr.f32.mxu0 %v421
    %5360 = vmatmul.mubr.f32.gmra.mxu0 %v412
    %v5361 = vpop.f32.mrf.mxu0
    %v5362 = vadd.f32 0.0, %v5361
    %v5363 = vpop.f32.mrf.mxu0
    %v5364 = vadd.f32 0.0, %v5363
    %5365 = vmatprep.mubr.f32.mxu0 %v422
    %5366 = vmatmul.mubr.f32.gmra.mxu0 %v413
    %v5367 = vpop.f32.mrf.mxu0
    %v5368 = vadd.f32 0.0, %v5367
    %v5369 = vpop.f32.mrf.mxu0
    %v5370 = vadd.f32 0.0, %v5369
    %5371 = vmatprep.mubr.f32.mxu0 %v423
    %5372 = vmatmul.mubr.f32.gmra.mxu0 %v414
    %v5373 = vpop.f32.mrf.mxu0
    %v5374 = vadd.f32 0.0, %v5373
    %v5375 = vpop.f32.mrf.mxu0
    %v5376 = vadd.f32 0.0, %v5375
    %5377 = vmatprep.mubr.f32.mxu0 %v424
    %5378 = vmatmul.mubr.f32.gmra.mxu0 %v415
    %v5379 = vpop.f32.mrf.mxu0
    %v5380 = vadd.f32 0.0, %v5379
    %v5381 = vpop.f32.mrf.mxu0
    %v5382 = vadd.f32 0.0, %v5381
    %5383 = vmatprep.mubr.f32.mxu0 %v425
    %5384 = vmatmul.mubr.f32.gmra.mxu0 %v416
    %v5385 = vpop.f32.mrf.mxu0
    %v5386 = vadd.f32 0.0, %v5385
    %v5387 = vpop.f32.mrf.mxu0
    %v5388 = vadd.f32 0.0, %v5387
    %5389 = vmatprep.mubr.f32.mxu0 %v426
    %5390 = vmatmul.mubr.f32.gmra.mxu0 %v417
    %v5391 = vpop.f32.mrf.mxu0
    %v5392 = vadd.f32 0.0, %v5391
    %v5393 = vpop.f32.mrf.mxu0
    %v5394 = vadd.f32 0.0, %v5393
    %5395 = vmatprep.mubr.f32.mxu0 %v427
    %5396 = vmatmul.mubr.f32.gmra.mxu0 %v418
    %v5397 = vpop.f32.mrf.mxu0
    %v5398 = vadd.f32 0.0, %v5397
    %v5399 = vpop.f32.mrf.mxu0
    %v5400 = vadd.f32 0.0, %v5399
    %5401 = vdwg.mxu0
    %5402 = vmatprep.subr.mxu0 %v175
    %5403 = vmatpush1.msra.mxu0 %v174
    %5404 = vmatprep.subr.mxu0 %v173
    %5405 = vmatpush1.msra.mxu0 %v172
    %5406 = vmatprep.subr.mxu0 %v171
    %5407 = vmatpush1.msra.mxu0 %v170
    %5408 = vmatprep.subr.mxu0 %v169
    %5409 = vmatpush1.msra.mxu0 %v168
    %5410 = vmatprep.subr.mxu0 %v167
    %5411 = vmatpush1.msra.mxu0 %v166
    %5412 = vmatprep.subr.mxu0 %v165
    %5413 = vmatpush1.msra.mxu0 %v164
    %5414 = vmatprep.subr.mxu0 %v163
    %5415 = vmatpush1.msra.mxu0 %v162
    %5416 = vmatprep.subr.mxu0 %v161
    %5417 = vmatpush1.msra.mxu0 %v160
    %5418 = vmatprep.subr.mxu0 %v159
    %5419 = vmatpush1.msra.mxu0 %v158
    %5420 = vmatprep.subr.mxu0 %v157
    %5421 = vmatpush1.msra.mxu0 %v156
    %5422 = vmatprep.subr.mxu0 %v155
    %5423 = vmatpush1.msra.mxu0 %v154
    %5424 = vmatprep.subr.mxu0 %v153
    %5425 = vmatpush1.msra.mxu0 %v152
    %5426 = vmatprep.subr.mxu0 %v151
    %5427 = vmatpush1.msra.mxu0 %v150
    %5428 = vmatprep.subr.mxu0 %v149
    %5429 = vmatpush1.msra.mxu0 %v148
    %5430 = vmatprep.subr.mxu0 %v147
    %5431 = vmatpush1.msra.mxu0 %v146
    %5432 = vmatprep.subr.mxu0 %v145
    %5433 = vmatpush1.msra.mxu0 %v144
    %5434 = vmatprep.subr.mxu0 %v207
    %5435 = vmatpush2.msra.mxu0 %v206
    %5436 = vmatprep.subr.mxu0 %v205
    %5437 = vmatpush2.msra.mxu0 %v204
    %5438 = vmatprep.subr.mxu0 %v203
    %5439 = vmatpush2.msra.mxu0 %v202
    %5440 = vmatprep.subr.mxu0 %v201
    %5441 = vmatpush2.msra.mxu0 %v200
    %5442 = vmatprep.subr.mxu0 %v199
    %5443 = vmatpush2.msra.mxu0 %v198
    %5444 = vmatprep.subr.mxu0 %v197
    %5445 = vmatpush2.msra.mxu0 %v196
    %5446 = vmatprep.subr.mxu0 %v195
    %5447 = vmatpush2.msra.mxu0 %v194
    %5448 = vmatprep.subr.mxu0 %v193
    %5449 = vmatpush2.msra.mxu0 %v192
    %5450 = vmatprep.subr.mxu0 %v191
    %5451 = vmatpush2.msra.mxu0 %v190
    %5452 = vmatprep.subr.mxu0 %v189
    %5453 = vmatpush2.msra.mxu0 %v188
    %5454 = vmatprep.subr.mxu0 %v187
    %5455 = vmatpush2.msra.mxu0 %v186
    %5456 = vmatprep.subr.mxu0 %v185
    %5457 = vmatpush2.msra.mxu0 %v184
    %5458 = vmatprep.subr.mxu0 %v183
    %5459 = vmatpush2.msra.mxu0 %v182
    %5460 = vmatprep.subr.mxu0 %v181
    %5461 = vmatpush2.msra.mxu0 %v180
    %5462 = vmatprep.subr.mxu0 %v179
    %5463 = vmatpush2.msra.mxu0 %v178
    %5464 = vmatprep.subr.mxu0 %v177
    %5465 = vmatpush2.msra.mxu0 %v176
    %5466 = vmatprep.mubr.f32.mxu0 %v429
    %5467 = vmatmul.mubr.f32.gmra.mxu0 %v420
    %v5468 = vpop.f32.mrf.mxu0
    %v5469 = vadd.f32 %v5308, %v5468
    %v5470 = vpop.f32.mrf.mxu0
    %v5471 = vadd.f32 %v5310, %v5470
    %5472 = vmatprep.mubr.f32.mxu0 %v430
    %5473 = vmatmul.mubr.f32.gmra.mxu0 %v421
    %v5474 = vpop.f32.mrf.mxu0
    %v5475 = vadd.f32 %v5314, %v5474
    %v5476 = vpop.f32.mrf.mxu0
    %v5477 = vadd.f32 %v5316, %v5476
    %5478 = vmatprep.mubr.f32.mxu0 %v431
    %5479 = vmatmul.mubr.f32.gmra.mxu0 %v422
    %v5480 = vpop.f32.mrf.mxu0
    %v5481 = vadd.f32 %v5320, %v5480
    %v5482 = vpop.f32.mrf.mxu0
    %v5483 = vadd.f32 %v5322, %v5482
    %5484 = vmatprep.mubr.f32.mxu0 %v432
    %5485 = vmatmul.mubr.f32.gmra.mxu0 %v423
    %v5486 = vpop.f32.mrf.mxu0
    %v5487 = vadd.f32 %v5326, %v5486
    %v5488 = vpop.f32.mrf.mxu0
    %v5489 = vadd.f32 %v5328, %v5488
    %5490 = vmatprep.mubr.f32.mxu0 %v433
    %5491 = vmatmul.mubr.f32.gmra.mxu0 %v424
    %v5492 = vpop.f32.mrf.mxu0
    %v5493 = vadd.f32 %v5332, %v5492
    %v5494 = vpop.f32.mrf.mxu0
    %v5495 = vadd.f32 %v5334, %v5494
    %5496 = vmatprep.mubr.f32.mxu0 %v434
    %5497 = vmatmul.mubr.f32.gmra.mxu0 %v425
    %v5498 = vpop.f32.mrf.mxu0
    %v5499 = vadd.f32 %v5338, %v5498
    %v5500 = vpop.f32.mrf.mxu0
    %v5501 = vadd.f32 %v5340, %v5500
    %5502 = vmatprep.mubr.f32.mxu0 %v435
    %5503 = vmatmul.mubr.f32.gmra.mxu0 %v426
    %v5504 = vpop.f32.mrf.mxu0
    %v5505 = vadd.f32 %v5344, %v5504
    %v5506 = vpop.f32.mrf.mxu0
    %v5507 = vadd.f32 %v5346, %v5506
    %5508 = vmatprep.mubr.f32.mxu0 %v436
    %5509 = vmatmul.mubr.f32.gmra.mxu0 %v427
    %v5510 = vpop.f32.mrf.mxu0
    %v5511 = vadd.f32 %v5350, %v5510
    %v5512 = vpop.f32.mrf.mxu0
    %v5513 = vadd.f32 %v5352, %v5512
    %5514 = vmatprep.mubr.f32.mxu0 %v438
    %5515 = vmatmul.mubr.f32.gmra.mxu0 %v429
    %v5516 = vpop.f32.mrf.mxu0
    %v5517 = vadd.f32 %v5356, %v5516
    %v5518 = vpop.f32.mrf.mxu0
    %v5519 = vadd.f32 %v5358, %v5518
    %5520 = vmatprep.mubr.f32.mxu0 %v439
    %5521 = vmatmul.mubr.f32.gmra.mxu0 %v430
    %v5522 = vpop.f32.mrf.mxu0
    %v5523 = vadd.f32 %v5362, %v5522
    %v5524 = vpop.f32.mrf.mxu0
    %v5525 = vadd.f32 %v5364, %v5524
    %5526 = vmatprep.mubr.f32.mxu0 %v440
    %5527 = vmatmul.mubr.f32.gmra.mxu0 %v431
    %v5528 = vpop.f32.mrf.mxu0
    %v5529 = vadd.f32 %v5368, %v5528
    %v5530 = vpop.f32.mrf.mxu0
    %v5531 = vadd.f32 %v5370, %v5530
    %5532 = vmatprep.mubr.f32.mxu0 %v441
    %5533 = vmatmul.mubr.f32.gmra.mxu0 %v432
    %v5534 = vpop.f32.mrf.mxu0
    %v5535 = vadd.f32 %v5374, %v5534
    %v5536 = vpop.f32.mrf.mxu0
    %v5537 = vadd.f32 %v5376, %v5536
    %5538 = vmatprep.mubr.f32.mxu0 %v442
    %5539 = vmatmul.mubr.f32.gmra.mxu0 %v433
    %v5540 = vpop.f32.mrf.mxu0
    %v5541 = vadd.f32 %v5380, %v5540
    %v5542 = vpop.f32.mrf.mxu0
    %v5543 = vadd.f32 %v5382, %v5542
    %5544 = vmatprep.mubr.f32.mxu0 %v443
    %5545 = vmatmul.mubr.f32.gmra.mxu0 %v434
    %v5546 = vpop.f32.mrf.mxu0
    %v5547 = vadd.f32 %v5386, %v5546
    %v5548 = vpop.f32.mrf.mxu0
    %v5549 = vadd.f32 %v5388, %v5548
    %5550 = vmatprep.mubr.f32.mxu0 %v444
    %5551 = vmatmul.mubr.f32.gmra.mxu0 %v435
    %v5552 = vpop.f32.mrf.mxu0
    %v5553 = vadd.f32 %v5392, %v5552
    %v5554 = vpop.f32.mrf.mxu0
    %v5555 = vadd.f32 %v5394, %v5554
    %5556 = vmatprep.mubr.f32.mxu0 %v445
    %5557 = vmatmul.mubr.f32.gmra.mxu0 %v436
    %v5558 = vpop.f32.mrf.mxu0
    %v5559 = vadd.f32 %v5398, %v5558
    %v5560 = vpop.f32.mrf.mxu0
    %v5561 = vadd.f32 %v5400, %v5560
    %5562 = vdwg.mxu0
    %5563 = vmatprep.subr.mxu0 %v239
    %5564 = vmatpush1.msra.mxu0 %v238
    %5565 = vmatprep.subr.mxu0 %v237
    %5566 = vmatpush1.msra.mxu0 %v236
    %5567 = vmatprep.subr.mxu0 %v235
    %5568 = vmatpush1.msra.mxu0 %v234
    %5569 = vmatprep.subr.mxu0 %v233
    %5570 = vmatpush1.msra.mxu0 %v232
    %5571 = vmatprep.subr.mxu0 %v231
    %5572 = vmatpush1.msra.mxu0 %v230
    %5573 = vmatprep.subr.mxu0 %v229
    %5574 = vmatpush1.msra.mxu0 %v228
    %5575 = vmatprep.subr.mxu0 %v227
    %5576 = vmatpush1.msra.mxu0 %v226
    %5577 = vmatprep.subr.mxu0 %v225
    %5578 = vmatpush1.msra.mxu0 %v224
    %5579 = vmatprep.subr.mxu0 %v223
    %5580 = vmatpush1.msra.mxu0 %v222
    %5581 = vmatprep.subr.mxu0 %v221
    %5582 = vmatpush1.msra.mxu0 %v220
    %5583 = vmatprep.subr.mxu0 %v219
    %5584 = vmatpush1.msra.mxu0 %v218
    %5585 = vmatprep.subr.mxu0 %v217
    %5586 = vmatpush1.msra.mxu0 %v216
    %5587 = vmatprep.subr.mxu0 %v215
    %5588 = vmatpush1.msra.mxu0 %v214
    %5589 = vmatprep.subr.mxu0 %v213
    %5590 = vmatpush1.msra.mxu0 %v212
    %5591 = vmatprep.subr.mxu0 %v211
    %5592 = vmatpush1.msra.mxu0 %v210
    %5593 = vmatprep.subr.mxu0 %v209
    %5594 = vmatpush1.msra.mxu0 %v208
    %5595 = vmatprep.subr.mxu0 0.0
    %5596 = vmatpush2.msra.mxu0 0.0
    %5597 = vmatprep.subr.mxu0 0.0
    %5598 = vmatpush2.msra.mxu0 0.0
    %5599 = vmatprep.subr.mxu0 0.0
    %5600 = vmatpush2.msra.mxu0 0.0
    %5601 = vmatprep.subr.mxu0 0.0
    %5602 = vmatpush2.msra.mxu0 0.0
    %5603 = vmatprep.subr.mxu0 0.0
    %5604 = vmatpush2.msra.mxu0 0.0
    %5605 = vmatprep.subr.mxu0 0.0
    %5606 = vmatpush2.msra.mxu0 0.0
    %5607 = vmatprep.subr.mxu0 0.0
    %5608 = vmatpush2.msra.mxu0 0.0
    %5609 = vmatprep.subr.mxu0 0.0
    %5610 = vmatpush2.msra.mxu0 0.0
    %5611 = vmatprep.subr.mxu0 0.0
    %5612 = vmatpush2.msra.mxu0 0.0
    %5613 = vmatprep.subr.mxu0 0.0
    %5614 = vmatpush2.msra.mxu0 0.0
    %5615 = vmatprep.subr.mxu0 0.0
    %5616 = vmatpush2.msra.mxu0 0.0
    %5617 = vmatprep.subr.mxu0 0.0
    %5618 = vmatpush2.msra.mxu0 0.0
    %5619 = vmatprep.subr.mxu0 0.0
    %5620 = vmatpush2.msra.mxu0 0.0
    %5621 = vmatprep.subr.mxu0 0.0
    %5622 = vmatpush2.msra.mxu0 0.0
    %5623 = vmatprep.subr.mxu0 0.0
    %5624 = vmatpush2.msra.mxu0 0.0
    %5625 = vmatprep.subr.mxu0 0.0
    %5626 = vmatpush2.msra.mxu0 0.0
    %5627 = vmatprep.mubr.f32.mxu0 0.0
    %5628 = vmatmul.mubr.f32.gmra.mxu0 %v438
    %v5629 = vpop.f32.mrf.mxu0
    %v5630 = vadd.f32 %v5469, %v5629
    %v5631 = vpop.f32.mrf.mxu0
    %v5632 = vadd.f32 %v5471, %v5631
    %5633 = vmatprep.mubr.f32.mxu0 0.0
    %5634 = vmatmul.mubr.f32.gmra.mxu0 %v439
    %v5635 = vpop.f32.mrf.mxu0
    %v5636 = vadd.f32 %v5475, %v5635
    %v5637 = vpop.f32.mrf.mxu0
    %v5638 = vadd.f32 %v5477, %v5637
    %5639 = vmatprep.mubr.f32.mxu0 0.0
    %5640 = vmatmul.mubr.f32.gmra.mxu0 %v440
    %v5641 = vpop.f32.mrf.mxu0
    %v5642 = vadd.f32 %v5481, %v5641
    %v5643 = vpop.f32.mrf.mxu0
    %v5644 = vadd.f32 %v5483, %v5643
    %5645 = vmatprep.mubr.f32.mxu0 0.0
    %5646 = vmatmul.mubr.f32.gmra.mxu0 %v441
    %v5647 = vpop.f32.mrf.mxu0
    %v5648 = vadd.f32 %v5487, %v5647
    %v5649 = vpop.f32.mrf.mxu0
    %v5650 = vadd.f32 %v5489, %v5649
    %5651 = vmatprep.mubr.f32.mxu0 0.0
    %5652 = vmatmul.mubr.f32.gmra.mxu0 %v442
    %v5653 = vpop.f32.mrf.mxu0
    %v5654 = vadd.f32 %v5493, %v5653
    %v5655 = vpop.f32.mrf.mxu0
    %v5656 = vadd.f32 %v5495, %v5655
    %5657 = vmatprep.mubr.f32.mxu0 0.0
    %5658 = vmatmul.mubr.f32.gmra.mxu0 %v443
    %v5659 = vpop.f32.mrf.mxu0
    %v5660 = vadd.f32 %v5499, %v5659
    %v5661 = vpop.f32.mrf.mxu0
    %v5662 = vadd.f32 %v5501, %v5661
    %5663 = vmatprep.mubr.f32.mxu0 0.0
    %5664 = vmatmul.mubr.f32.gmra.mxu0 %v444
    %v5665 = vpop.f32.mrf.mxu0
    %v5666 = vadd.f32 %v5505, %v5665
    %v5667 = vpop.f32.mrf.mxu0
    %v5668 = vadd.f32 %v5507, %v5667
    %5669 = vmatprep.mubr.f32.mxu0 0.0
    %5670 = vmatmul.mubr.f32.gmra.mxu0 %v445
    %v5671 = vpop.f32.mrf.mxu0
    %v5672 = vadd.f32 %v5511, %v5671
    %v5673 = vpop.f32.mrf.mxu0
    %v5674 = vadd.f32 %v5513, %v5673
    %5675 = vmatprep.mubr.f32.mxu0 0.0
    %5676 = vmatmul.mubr.f32.gmra.mxu0 %v447
    %v5677 = vpop.f32.mrf.mxu0
    %v5678 = vadd.f32 %v5517, %v5677
    %v5679 = vpop.f32.mrf.mxu0
    %v5680 = vadd.f32 %v5519, %v5679
    %5681 = vmatprep.mubr.f32.mxu0 0.0
    %5682 = vmatmul.mubr.f32.gmra.mxu0 %v448
    %v5683 = vpop.f32.mrf.mxu0
    %v5684 = vadd.f32 %v5523, %v5683
    %v5685 = vpop.f32.mrf.mxu0
    %v5686 = vadd.f32 %v5525, %v5685
    %5687 = vmatprep.mubr.f32.mxu0 0.0
    %5688 = vmatmul.mubr.f32.gmra.mxu0 %v449
    %v5689 = vpop.f32.mrf.mxu0
    %v5690 = vadd.f32 %v5529, %v5689
    %v5691 = vpop.f32.mrf.mxu0
    %v5692 = vadd.f32 %v5531, %v5691
    %5693 = vmatprep.mubr.f32.mxu0 0.0
    %5694 = vmatmul.mubr.f32.gmra.mxu0 %v450
    %v5695 = vpop.f32.mrf.mxu0
    %v5696 = vadd.f32 %v5535, %v5695
    %v5697 = vpop.f32.mrf.mxu0
    %v5698 = vadd.f32 %v5537, %v5697
    %5699 = vmatprep.mubr.f32.mxu0 0.0
    %5700 = vmatmul.mubr.f32.gmra.mxu0 %v451
    %v5701 = vpop.f32.mrf.mxu0
    %v5702 = vadd.f32 %v5541, %v5701
    %v5703 = vpop.f32.mrf.mxu0
    %v5704 = vadd.f32 %v5543, %v5703
    %5705 = vmatprep.mubr.f32.mxu0 0.0
    %5706 = vmatmul.mubr.f32.gmra.mxu0 %v452
    %v5707 = vpop.f32.mrf.mxu0
    %v5708 = vadd.f32 %v5547, %v5707
    %v5709 = vpop.f32.mrf.mxu0
    %v5710 = vadd.f32 %v5549, %v5709
    %5711 = vmatprep.mubr.f32.mxu0 0.0
    %5712 = vmatmul.mubr.f32.gmra.mxu0 %v453
    %v5713 = vpop.f32.mrf.mxu0
    %v5714 = vadd.f32 %v5553, %v5713
    %v5715 = vpop.f32.mrf.mxu0
    %v5716 = vadd.f32 %v5555, %v5715
    %5717 = vmatprep.mubr.f32.mxu0 0.0
    %5718 = vmatmul.mubr.f32.gmra.mxu0 %v454
    %v5719 = vpop.f32.mrf.mxu0
    %v5720 = vadd.f32 %v5559, %v5719
    %v5721 = vpop.f32.mrf.mxu0
    %v5722 = vadd.f32 %v5561, %v5721
    %5723 = vdwg.mxu0
    %v5724 = vmax.f32 %v5630, %v5632
    %v5725 = vmax.f32 %v5636, %v5638
    %v5726 = vmax.f32 %v5642, %v5644
    %v5727 = vmax.f32 %v5648, %v5650
    %v5728 = vmax.f32 %v5654, %v5656
    %v5729 = vmax.f32 %v5660, %v5662
    %v5730 = vmax.f32 %v5666, %v5668
    %v5731 = vmax.f32 %v5672, %v5674
    %v5732 = vmax.f32 %v5678, %v5680
    %v5733 = vmax.f32 %v5684, %v5686
    %v5734 = vmax.f32 %v5690, %v5692
    %v5735 = vmax.f32 %v5696, %v5698
    %v5736 = vmax.f32 %v5702, %v5704
    %v5737 = vmax.f32 %v5708, %v5710
    %v5738 = vmax.f32 %v5714, %v5716
    %v5739 = vmax.f32 %v5720, %v5722
    %v5740 = vmax.f32 %v5724, %v5732
    %v5741 = vmax.f32 %v5725, %v5733
    %v5742 = vmax.f32 %v5726, %v5734
    %v5743 = vmax.f32 %v5727, %v5735
    %v5744 = vmax.f32 %v5728, %v5736
    %v5745 = vmax.f32 %v5729, %v5737
    %v5746 = vmax.f32 %v5730, %v5738
    %v5747 = vmax.f32 %v5731, %v5739
    %v5748 = vadd.f32 %v5740, %v1003
    %v5749 = vadd.f32 %v5741, %v1003
    %v5750 = vadd.f32 %v5742, %v1003
    %v5751 = vadd.f32 %v5743, %v1003
    %v5752 = vadd.f32 %v5744, %v1003
    %v5753 = vadd.f32 %v5745, %v1003
    %v5754 = vadd.f32 %v5746, %v1003
    %v5755 = vadd.f32 %v5747, %v1003
    %v5756 = vmax.f32 %v5748, 0.0
    %v5757 = vmax.f32 %v5749, 0.0
    %v5758 = vmax.f32 %v5750, 0.0
    %v5759 = vmax.f32 %v5751, 0.0
    %v5760 = vmax.f32 %v5752, 0.0
    %v5761 = vmax.f32 %v5753, 0.0
    %v5762 = vmax.f32 %v5754, 0.0
    %v5763 = vmax.f32 %v5755, 0.0
    %v5764 = vpack.c.bf16 %v5757, %v5756
    %v5765 = vpack.c.bf16 %v5759, %v5758
    %v5766 = vpack.c.bf16 %v5761, %v5760
    %v5767 = vpack.c.bf16 %v5763, %v5762
    %5768 = vmatprep.subr.mxu0 %v111
    %5769 = vmatpush1.msra.mxu0 %v110
    %5770 = vmatprep.subr.mxu0 %v109
    %5771 = vmatpush1.msra.mxu0 %v108
    %5772 = vmatprep.subr.mxu0 %v107
    %5773 = vmatpush1.msra.mxu0 %v106
    %5774 = vmatprep.subr.mxu0 %v105
    %5775 = vmatpush1.msra.mxu0 %v104
    %5776 = vmatprep.subr.mxu0 %v103
    %5777 = vmatpush1.msra.mxu0 %v102
    %5778 = vmatprep.subr.mxu0 %v101
    %5779 = vmatpush1.msra.mxu0 %v100
    %5780 = vmatprep.subr.mxu0 %v99
    %5781 = vmatpush1.msra.mxu0 %v98
    %5782 = vmatprep.subr.mxu0 %v97
    %5783 = vmatpush1.msra.mxu0 %v96
    %5784 = vmatprep.subr.mxu0 %v95
    %5785 = vmatpush1.msra.mxu0 %v94
    %5786 = vmatprep.subr.mxu0 %v93
    %5787 = vmatpush1.msra.mxu0 %v92
    %5788 = vmatprep.subr.mxu0 %v91
    %5789 = vmatpush1.msra.mxu0 %v90
    %5790 = vmatprep.subr.mxu0 %v89
    %5791 = vmatpush1.msra.mxu0 %v88
    %5792 = vmatprep.subr.mxu0 %v87
    %5793 = vmatpush1.msra.mxu0 %v86
    %5794 = vmatprep.subr.mxu0 %v85
    %5795 = vmatpush1.msra.mxu0 %v84
    %5796 = vmatprep.subr.mxu0 %v83
    %5797 = vmatpush1.msra.mxu0 %v82
    %5798 = vmatprep.subr.mxu0 %v81
    %5799 = vmatpush1.msra.mxu0 %v80
    %5800 = vmatprep.subr.mxu0 %v143
    %5801 = vmatpush2.msra.mxu0 %v142
    %5802 = vmatprep.subr.mxu0 %v141
    %5803 = vmatpush2.msra.mxu0 %v140
    %5804 = vmatprep.subr.mxu0 %v139
    %5805 = vmatpush2.msra.mxu0 %v138
    %5806 = vmatprep.subr.mxu0 %v137
    %5807 = vmatpush2.msra.mxu0 %v136
    %5808 = vmatprep.subr.mxu0 %v135
    %5809 = vmatpush2.msra.mxu0 %v134
    %5810 = vmatprep.subr.mxu0 %v133
    %5811 = vmatpush2.msra.mxu0 %v132
    %5812 = vmatprep.subr.mxu0 %v131
    %5813 = vmatpush2.msra.mxu0 %v130
    %5814 = vmatprep.subr.mxu0 %v129
    %5815 = vmatpush2.msra.mxu0 %v128
    %5816 = vmatprep.subr.mxu0 %v127
    %5817 = vmatpush2.msra.mxu0 %v126
    %5818 = vmatprep.subr.mxu0 %v125
    %5819 = vmatpush2.msra.mxu0 %v124
    %5820 = vmatprep.subr.mxu0 %v123
    %5821 = vmatpush2.msra.mxu0 %v122
    %5822 = vmatprep.subr.mxu0 %v121
    %5823 = vmatpush2.msra.mxu0 %v120
    %5824 = vmatprep.subr.mxu0 %v119
    %5825 = vmatpush2.msra.mxu0 %v118
    %5826 = vmatprep.subr.mxu0 %v117
    %5827 = vmatpush2.msra.mxu0 %v116
    %5828 = vmatprep.subr.mxu0 %v115
    %5829 = vmatpush2.msra.mxu0 %v114
    %5830 = vmatprep.subr.mxu0 %v113
    %5831 = vmatpush2.msra.mxu0 %v112
    %5832 = vmatprep.mubr.f32.mxu0 %v429
    %5833 = vmatmul.mubr.f32.gmra.mxu0 %v420
    %v5834 = vpop.f32.mrf.mxu0
    %v5835 = vadd.f32 0.0, %v5834
    %v5836 = vpop.f32.mrf.mxu0
    %v5837 = vadd.f32 0.0, %v5836
    %5838 = vmatprep.mubr.f32.mxu0 %v430
    %5839 = vmatmul.mubr.f32.gmra.mxu0 %v421
    %v5840 = vpop.f32.mrf.mxu0
    %v5841 = vadd.f32 0.0, %v5840
    %v5842 = vpop.f32.mrf.mxu0
    %v5843 = vadd.f32 0.0, %v5842
    %5844 = vmatprep.mubr.f32.mxu0 %v431
    %5845 = vmatmul.mubr.f32.gmra.mxu0 %v422
    %v5846 = vpop.f32.mrf.mxu0
    %v5847 = vadd.f32 0.0, %v5846
    %v5848 = vpop.f32.mrf.mxu0
    %v5849 = vadd.f32 0.0, %v5848
    %5850 = vmatprep.mubr.f32.mxu0 %v432
    %5851 = vmatmul.mubr.f32.gmra.mxu0 %v423
    %v5852 = vpop.f32.mrf.mxu0
    %v5853 = vadd.f32 0.0, %v5852
    %v5854 = vpop.f32.mrf.mxu0
    %v5855 = vadd.f32 0.0, %v5854
    %5856 = vmatprep.mubr.f32.mxu0 %v433
    %5857 = vmatmul.mubr.f32.gmra.mxu0 %v424
    %v5858 = vpop.f32.mrf.mxu0
    %v5859 = vadd.f32 0.0, %v5858
    %v5860 = vpop.f32.mrf.mxu0
    %v5861 = vadd.f32 0.0, %v5860
    %5862 = vmatprep.mubr.f32.mxu0 %v434
    %5863 = vmatmul.mubr.f32.gmra.mxu0 %v425
    %v5864 = vpop.f32.mrf.mxu0
    %v5865 = vadd.f32 0.0, %v5864
    %v5866 = vpop.f32.mrf.mxu0
    %v5867 = vadd.f32 0.0, %v5866
    %5868 = vmatprep.mubr.f32.mxu0 %v435
    %5869 = vmatmul.mubr.f32.gmra.mxu0 %v426
    %v5870 = vpop.f32.mrf.mxu0
    %v5871 = vadd.f32 0.0, %v5870
    %v5872 = vpop.f32.mrf.mxu0
    %v5873 = vadd.f32 0.0, %v5872
    %5874 = vmatprep.mubr.f32.mxu0 %v436
    %5875 = vmatmul.mubr.f32.gmra.mxu0 %v427
    %v5876 = vpop.f32.mrf.mxu0
    %v5877 = vadd.f32 0.0, %v5876
    %v5878 = vpop.f32.mrf.mxu0
    %v5879 = vadd.f32 0.0, %v5878
    %5880 = vmatprep.mubr.f32.mxu0 %v438
    %5881 = vmatmul.mubr.f32.gmra.mxu0 %v429
    %v5882 = vpop.f32.mrf.mxu0
    %v5883 = vadd.f32 0.0, %v5882
    %v5884 = vpop.f32.mrf.mxu0
    %v5885 = vadd.f32 0.0, %v5884
    %5886 = vmatprep.mubr.f32.mxu0 %v439
    %5887 = vmatmul.mubr.f32.gmra.mxu0 %v430
    %v5888 = vpop.f32.mrf.mxu0
    %v5889 = vadd.f32 0.0, %v5888
    %v5890 = vpop.f32.mrf.mxu0
    %v5891 = vadd.f32 0.0, %v5890
    %5892 = vmatprep.mubr.f32.mxu0 %v440
    %5893 = vmatmul.mubr.f32.gmra.mxu0 %v431
    %v5894 = vpop.f32.mrf.mxu0
    %v5895 = vadd.f32 0.0, %v5894
    %v5896 = vpop.f32.mrf.mxu0
    %v5897 = vadd.f32 0.0, %v5896
    %5898 = vmatprep.mubr.f32.mxu0 %v441
    %5899 = vmatmul.mubr.f32.gmra.mxu0 %v432
    %v5900 = vpop.f32.mrf.mxu0
    %v5901 = vadd.f32 0.0, %v5900
    %v5902 = vpop.f32.mrf.mxu0
    %v5903 = vadd.f32 0.0, %v5902
    %5904 = vmatprep.mubr.f32.mxu0 %v442
    %5905 = vmatmul.mubr.f32.gmra.mxu0 %v433
    %v5906 = vpop.f32.mrf.mxu0
    %v5907 = vadd.f32 0.0, %v5906
    %v5908 = vpop.f32.mrf.mxu0
    %v5909 = vadd.f32 0.0, %v5908
    %5910 = vmatprep.mubr.f32.mxu0 %v443
    %5911 = vmatmul.mubr.f32.gmra.mxu0 %v434
    %v5912 = vpop.f32.mrf.mxu0
    %v5913 = vadd.f32 0.0, %v5912
    %v5914 = vpop.f32.mrf.mxu0
    %v5915 = vadd.f32 0.0, %v5914
    %5916 = vmatprep.mubr.f32.mxu0 %v444
    %5917 = vmatmul.mubr.f32.gmra.mxu0 %v435
    %v5918 = vpop.f32.mrf.mxu0
    %v5919 = vadd.f32 0.0, %v5918
    %v5920 = vpop.f32.mrf.mxu0
    %v5921 = vadd.f32 0.0, %v5920
    %5922 = vmatprep.mubr.f32.mxu0 %v445
    %5923 = vmatmul.mubr.f32.gmra.mxu0 %v436
    %v5924 = vpop.f32.mrf.mxu0
    %v5925 = vadd.f32 0.0, %v5924
    %v5926 = vpop.f32.mrf.mxu0
    %v5927 = vadd.f32 0.0, %v5926
    %5928 = vdwg.mxu0
    %5929 = vmatprep.subr.mxu0 %v175
    %5930 = vmatpush1.msra.mxu0 %v174
    %5931 = vmatprep.subr.mxu0 %v173
    %5932 = vmatpush1.msra.mxu0 %v172
    %5933 = vmatprep.subr.mxu0 %v171
    %5934 = vmatpush1.msra.mxu0 %v170
    %5935 = vmatprep.subr.mxu0 %v169
    %5936 = vmatpush1.msra.mxu0 %v168
    %5937 = vmatprep.subr.mxu0 %v167
    %5938 = vmatpush1.msra.mxu0 %v166
    %5939 = vmatprep.subr.mxu0 %v165
    %5940 = vmatpush1.msra.mxu0 %v164
    %5941 = vmatprep.subr.mxu0 %v163
    %5942 = vmatpush1.msra.mxu0 %v162
    %5943 = vmatprep.subr.mxu0 %v161
    %5944 = vmatpush1.msra.mxu0 %v160
    %5945 = vmatprep.subr.mxu0 %v159
    %5946 = vmatpush1.msra.mxu0 %v158
    %5947 = vmatprep.subr.mxu0 %v157
    %5948 = vmatpush1.msra.mxu0 %v156
    %5949 = vmatprep.subr.mxu0 %v155
    %5950 = vmatpush1.msra.mxu0 %v154
    %5951 = vmatprep.subr.mxu0 %v153
    %5952 = vmatpush1.msra.mxu0 %v152
    %5953 = vmatprep.subr.mxu0 %v151
    %5954 = vmatpush1.msra.mxu0 %v150
    %5955 = vmatprep.subr.mxu0 %v149
    %5956 = vmatpush1.msra.mxu0 %v148
    %5957 = vmatprep.subr.mxu0 %v147
    %5958 = vmatpush1.msra.mxu0 %v146
    %5959 = vmatprep.subr.mxu0 %v145
    %5960 = vmatpush1.msra.mxu0 %v144
    %5961 = vmatprep.subr.mxu0 %v207
    %5962 = vmatpush2.msra.mxu0 %v206
    %5963 = vmatprep.subr.mxu0 %v205
    %5964 = vmatpush2.msra.mxu0 %v204
    %5965 = vmatprep.subr.mxu0 %v203
    %5966 = vmatpush2.msra.mxu0 %v202
    %5967 = vmatprep.subr.mxu0 %v201
    %5968 = vmatpush2.msra.mxu0 %v200
    %5969 = vmatprep.subr.mxu0 %v199
    %5970 = vmatpush2.msra.mxu0 %v198
    %5971 = vmatprep.subr.mxu0 %v197
    %5972 = vmatpush2.msra.mxu0 %v196
    %5973 = vmatprep.subr.mxu0 %v195
    %5974 = vmatpush2.msra.mxu0 %v194
    %5975 = vmatprep.subr.mxu0 %v193
    %5976 = vmatpush2.msra.mxu0 %v192
    %5977 = vmatprep.subr.mxu0 %v191
    %5978 = vmatpush2.msra.mxu0 %v190
    %5979 = vmatprep.subr.mxu0 %v189
    %5980 = vmatpush2.msra.mxu0 %v188
    %5981 = vmatprep.subr.mxu0 %v187
    %5982 = vmatpush2.msra.mxu0 %v186
    %5983 = vmatprep.subr.mxu0 %v185
    %5984 = vmatpush2.msra.mxu0 %v184
    %5985 = vmatprep.subr.mxu0 %v183
    %5986 = vmatpush2.msra.mxu0 %v182
    %5987 = vmatprep.subr.mxu0 %v181
    %5988 = vmatpush2.msra.mxu0 %v180
    %5989 = vmatprep.subr.mxu0 %v179
    %5990 = vmatpush2.msra.mxu0 %v178
    %5991 = vmatprep.subr.mxu0 %v177
    %5992 = vmatpush2.msra.mxu0 %v176
    %5993 = vmatprep.mubr.f32.mxu0 %v447
    %5994 = vmatmul.mubr.f32.gmra.mxu0 %v438
    %v5995 = vpop.f32.mrf.mxu0
    %v5996 = vadd.f32 %v5835, %v5995
    %v5997 = vpop.f32.mrf.mxu0
    %v5998 = vadd.f32 %v5837, %v5997
    %5999 = vmatprep.mubr.f32.mxu0 %v448
    %6000 = vmatmul.mubr.f32.gmra.mxu0 %v439
    %v6001 = vpop.f32.mrf.mxu0
    %v6002 = vadd.f32 %v5841, %v6001
    %v6003 = vpop.f32.mrf.mxu0
    %v6004 = vadd.f32 %v5843, %v6003
    %6005 = vmatprep.mubr.f32.mxu0 %v449
    %6006 = vmatmul.mubr.f32.gmra.mxu0 %v440
    %v6007 = vpop.f32.mrf.mxu0
    %v6008 = vadd.f32 %v5847, %v6007
    %v6009 = vpop.f32.mrf.mxu0
    %v6010 = vadd.f32 %v5849, %v6009
    %6011 = vmatprep.mubr.f32.mxu0 %v450
    %6012 = vmatmul.mubr.f32.gmra.mxu0 %v441
    %v6013 = vpop.f32.mrf.mxu0
    %v6014 = vadd.f32 %v5853, %v6013
    %v6015 = vpop.f32.mrf.mxu0
    %v6016 = vadd.f32 %v5855, %v6015
    %6017 = vmatprep.mubr.f32.mxu0 %v451
    %6018 = vmatmul.mubr.f32.gmra.mxu0 %v442
    %v6019 = vpop.f32.mrf.mxu0
    %v6020 = vadd.f32 %v5859, %v6019
    %v6021 = vpop.f32.mrf.mxu0
    %v6022 = vadd.f32 %v5861, %v6021
    %6023 = vmatprep.mubr.f32.mxu0 %v452
    %6024 = vmatmul.mubr.f32.gmra.mxu0 %v443
    %v6025 = vpop.f32.mrf.mxu0
    %v6026 = vadd.f32 %v5865, %v6025
    %v6027 = vpop.f32.mrf.mxu0
    %v6028 = vadd.f32 %v5867, %v6027
    %6029 = vmatprep.mubr.f32.mxu0 %v453
    %6030 = vmatmul.mubr.f32.gmra.mxu0 %v444
    %v6031 = vpop.f32.mrf.mxu0
    %v6032 = vadd.f32 %v5871, %v6031
    %v6033 = vpop.f32.mrf.mxu0
    %v6034 = vadd.f32 %v5873, %v6033
    %6035 = vmatprep.mubr.f32.mxu0 %v454
    %6036 = vmatmul.mubr.f32.gmra.mxu0 %v445
    %v6037 = vpop.f32.mrf.mxu0
    %v6038 = vadd.f32 %v5877, %v6037
    %v6039 = vpop.f32.mrf.mxu0
    %v6040 = vadd.f32 %v5879, %v6039
    %6041 = vmatprep.mubr.f32.mxu0 %v456
    %6042 = vmatmul.mubr.f32.gmra.mxu0 %v447
    %v6043 = vpop.f32.mrf.mxu0
    %v6044 = vadd.f32 %v5883, %v6043
    %v6045 = vpop.f32.mrf.mxu0
    %v6046 = vadd.f32 %v5885, %v6045
    %6047 = vmatprep.mubr.f32.mxu0 %v457
    %6048 = vmatmul.mubr.f32.gmra.mxu0 %v448
    %v6049 = vpop.f32.mrf.mxu0
    %v6050 = vadd.f32 %v5889, %v6049
    %v6051 = vpop.f32.mrf.mxu0
    %v6052 = vadd.f32 %v5891, %v6051
    %6053 = vmatprep.mubr.f32.mxu0 %v458
    %6054 = vmatmul.mubr.f32.gmra.mxu0 %v449
    %v6055 = vpop.f32.mrf.mxu0
    %v6056 = vadd.f32 %v5895, %v6055
    %v6057 = vpop.f32.mrf.mxu0
    %v6058 = vadd.f32 %v5897, %v6057
    %6059 = vmatprep.mubr.f32.mxu0 %v459
    %6060 = vmatmul.mubr.f32.gmra.mxu0 %v450
    %v6061 = vpop.f32.mrf.mxu0
    %v6062 = vadd.f32 %v5901, %v6061
    %v6063 = vpop.f32.mrf.mxu0
    %v6064 = vadd.f32 %v5903, %v6063
    %6065 = vmatprep.mubr.f32.mxu0 %v460
    %6066 = vmatmul.mubr.f32.gmra.mxu0 %v451
    %v6067 = vpop.f32.mrf.mxu0
    %v6068 = vadd.f32 %v5907, %v6067
    %v6069 = vpop.f32.mrf.mxu0
    %v6070 = vadd.f32 %v5909, %v6069
    %6071 = vmatprep.mubr.f32.mxu0 %v461
    %6072 = vmatmul.mubr.f32.gmra.mxu0 %v452
    %v6073 = vpop.f32.mrf.mxu0
    %v6074 = vadd.f32 %v5913, %v6073
    %v6075 = vpop.f32.mrf.mxu0
    %v6076 = vadd.f32 %v5915, %v6075
    %6077 = vmatprep.mubr.f32.mxu0 %v462
    %6078 = vmatmul.mubr.f32.gmra.mxu0 %v453
    %v6079 = vpop.f32.mrf.mxu0
    %v6080 = vadd.f32 %v5919, %v6079
    %v6081 = vpop.f32.mrf.mxu0
    %v6082 = vadd.f32 %v5921, %v6081
    %6083 = vmatprep.mubr.f32.mxu0 %v463
    %6084 = vmatmul.mubr.f32.gmra.mxu0 %v454
    %v6085 = vpop.f32.mrf.mxu0
    %v6086 = vadd.f32 %v5925, %v6085
    %v6087 = vpop.f32.mrf.mxu0
    %v6088 = vadd.f32 %v5927, %v6087
    %6089 = vdwg.mxu0
    %6090 = vmatprep.subr.mxu0 %v239
    %6091 = vmatpush1.msra.mxu0 %v238
    %6092 = vmatprep.subr.mxu0 %v237
    %6093 = vmatpush1.msra.mxu0 %v236
    %6094 = vmatprep.subr.mxu0 %v235
    %6095 = vmatpush1.msra.mxu0 %v234
    %6096 = vmatprep.subr.mxu0 %v233
    %6097 = vmatpush1.msra.mxu0 %v232
    %6098 = vmatprep.subr.mxu0 %v231
    %6099 = vmatpush1.msra.mxu0 %v230
    %6100 = vmatprep.subr.mxu0 %v229
    %6101 = vmatpush1.msra.mxu0 %v228
    %6102 = vmatprep.subr.mxu0 %v227
    %6103 = vmatpush1.msra.mxu0 %v226
    %6104 = vmatprep.subr.mxu0 %v225
    %6105 = vmatpush1.msra.mxu0 %v224
    %6106 = vmatprep.subr.mxu0 %v223
    %6107 = vmatpush1.msra.mxu0 %v222
    %6108 = vmatprep.subr.mxu0 %v221
    %6109 = vmatpush1.msra.mxu0 %v220
    %6110 = vmatprep.subr.mxu0 %v219
    %6111 = vmatpush1.msra.mxu0 %v218
    %6112 = vmatprep.subr.mxu0 %v217
    %6113 = vmatpush1.msra.mxu0 %v216
    %6114 = vmatprep.subr.mxu0 %v215
    %6115 = vmatpush1.msra.mxu0 %v214
    %6116 = vmatprep.subr.mxu0 %v213
    %6117 = vmatpush1.msra.mxu0 %v212
    %6118 = vmatprep.subr.mxu0 %v211
    %6119 = vmatpush1.msra.mxu0 %v210
    %6120 = vmatprep.subr.mxu0 %v209
    %6121 = vmatpush1.msra.mxu0 %v208
    %6122 = vmatprep.subr.mxu0 0.0
    %6123 = vmatpush2.msra.mxu0 0.0
    %6124 = vmatprep.subr.mxu0 0.0
    %6125 = vmatpush2.msra.mxu0 0.0
    %6126 = vmatprep.subr.mxu0 0.0
    %6127 = vmatpush2.msra.mxu0 0.0
    %6128 = vmatprep.subr.mxu0 0.0
    %6129 = vmatpush2.msra.mxu0 0.0
    %6130 = vmatprep.subr.mxu0 0.0
    %6131 = vmatpush2.msra.mxu0 0.0
    %6132 = vmatprep.subr.mxu0 0.0
    %6133 = vmatpush2.msra.mxu0 0.0
    %6134 = vmatprep.subr.mxu0 0.0
    %6135 = vmatpush2.msra.mxu0 0.0
    %6136 = vmatprep.subr.mxu0 0.0
    %6137 = vmatpush2.msra.mxu0 0.0
    %6138 = vmatprep.subr.mxu0 0.0
    %6139 = vmatpush2.msra.mxu0 0.0
    %6140 = vmatprep.subr.mxu0 0.0
    %6141 = vmatpush2.msra.mxu0 0.0
    %6142 = vmatprep.subr.mxu0 0.0
    %6143 = vmatpush2.msra.mxu0 0.0
    %6144 = vmatprep.subr.mxu0 0.0
    %6145 = vmatpush2.msra.mxu0 0.0
    %6146 = vmatprep.subr.mxu0 0.0
    %6147 = vmatpush2.msra.mxu0 0.0
    %6148 = vmatprep.subr.mxu0 0.0
    %6149 = vmatpush2.msra.mxu0 0.0
    %6150 = vmatprep.subr.mxu0 0.0
    %6151 = vmatpush2.msra.mxu0 0.0
    %6152 = vmatprep.subr.mxu0 0.0
    %6153 = vmatpush2.msra.mxu0 0.0
    %6154 = vmatprep.mubr.f32.mxu0 0.0
    %6155 = vmatmul.mubr.f32.gmra.mxu0 %v456
    %v6156 = vpop.f32.mrf.mxu0
    %v6157 = vadd.f32 %v5996, %v6156
    %v6158 = vpop.f32.mrf.mxu0
    %v6159 = vadd.f32 %v5998, %v6158
    %6160 = vmatprep.mubr.f32.mxu0 0.0
    %6161 = vmatmul.mubr.f32.gmra.mxu0 %v457
    %v6162 = vpop.f32.mrf.mxu0
    %v6163 = vadd.f32 %v6002, %v6162
    %v6164 = vpop.f32.mrf.mxu0
    %v6165 = vadd.f32 %v6004, %v6164
    %6166 = vmatprep.mubr.f32.mxu0 0.0
    %6167 = vmatmul.mubr.f32.gmra.mxu0 %v458
    %v6168 = vpop.f32.mrf.mxu0
    %v6169 = vadd.f32 %v6008, %v6168
    %v6170 = vpop.f32.mrf.mxu0
    %v6171 = vadd.f32 %v6010, %v6170
    %6172 = vmatprep.mubr.f32.mxu0 0.0
    %6173 = vmatmul.mubr.f32.gmra.mxu0 %v459
    %v6174 = vpop.f32.mrf.mxu0
    %v6175 = vadd.f32 %v6014, %v6174
    %v6176 = vpop.f32.mrf.mxu0
    %v6177 = vadd.f32 %v6016, %v6176
    %6178 = vmatprep.mubr.f32.mxu0 0.0
    %6179 = vmatmul.mubr.f32.gmra.mxu0 %v460
    %v6180 = vpop.f32.mrf.mxu0
    %v6181 = vadd.f32 %v6020, %v6180
    %v6182 = vpop.f32.mrf.mxu0
    %v6183 = vadd.f32 %v6022, %v6182
    %6184 = vmatprep.mubr.f32.mxu0 0.0
    %6185 = vmatmul.mubr.f32.gmra.mxu0 %v461
    %v6186 = vpop.f32.mrf.mxu0
    %v6187 = vadd.f32 %v6026, %v6186
    %v6188 = vpop.f32.mrf.mxu0
    %v6189 = vadd.f32 %v6028, %v6188
    %6190 = vmatprep.mubr.f32.mxu0 0.0
    %6191 = vmatmul.mubr.f32.gmra.mxu0 %v462
    %v6192 = vpop.f32.mrf.mxu0
    %v6193 = vadd.f32 %v6032, %v6192
    %v6194 = vpop.f32.mrf.mxu0
    %v6195 = vadd.f32 %v6034, %v6194
    %6196 = vmatprep.mubr.f32.mxu0 0.0
    %6197 = vmatmul.mubr.f32.gmra.mxu0 %v463
    %v6198 = vpop.f32.mrf.mxu0
    %v6199 = vadd.f32 %v6038, %v6198
    %v6200 = vpop.f32.mrf.mxu0
    %v6201 = vadd.f32 %v6040, %v6200
    %6202 = vmatprep.mubr.f32.mxu0 0.0
    %6203 = vmatmul.mubr.f32.gmra.mxu0 %v465
    %v6204 = vpop.f32.mrf.mxu0
    %v6205 = vadd.f32 %v6044, %v6204
    %v6206 = vpop.f32.mrf.mxu0
    %v6207 = vadd.f32 %v6046, %v6206
    %6208 = vmatprep.mubr.f32.mxu0 0.0
    %6209 = vmatmul.mubr.f32.gmra.mxu0 %v466
    %v6210 = vpop.f32.mrf.mxu0
    %v6211 = vadd.f32 %v6050, %v6210
    %v6212 = vpop.f32.mrf.mxu0
    %v6213 = vadd.f32 %v6052, %v6212
    %6214 = vmatprep.mubr.f32.mxu0 0.0
    %6215 = vmatmul.mubr.f32.gmra.mxu0 %v467
    %v6216 = vpop.f32.mrf.mxu0
    %v6217 = vadd.f32 %v6056, %v6216
    %v6218 = vpop.f32.mrf.mxu0
    %v6219 = vadd.f32 %v6058, %v6218
    %6220 = vmatprep.mubr.f32.mxu0 0.0
    %6221 = vmatmul.mubr.f32.gmra.mxu0 %v468
    %v6222 = vpop.f32.mrf.mxu0
    %v6223 = vadd.f32 %v6062, %v6222
    %v6224 = vpop.f32.mrf.mxu0
    %v6225 = vadd.f32 %v6064, %v6224
    %6226 = vmatprep.mubr.f32.mxu0 0.0
    %6227 = vmatmul.mubr.f32.gmra.mxu0 %v469
    %v6228 = vpop.f32.mrf.mxu0
    %v6229 = vadd.f32 %v6068, %v6228
    %v6230 = vpop.f32.mrf.mxu0
    %v6231 = vadd.f32 %v6070, %v6230
    %6232 = vmatprep.mubr.f32.mxu0 0.0
    %6233 = vmatmul.mubr.f32.gmra.mxu0 %v470
    %v6234 = vpop.f32.mrf.mxu0
    %v6235 = vadd.f32 %v6074, %v6234
    %v6236 = vpop.f32.mrf.mxu0
    %v6237 = vadd.f32 %v6076, %v6236
    %6238 = vmatprep.mubr.f32.mxu0 0.0
    %6239 = vmatmul.mubr.f32.gmra.mxu0 %v471
    %v6240 = vpop.f32.mrf.mxu0
    %v6241 = vadd.f32 %v6080, %v6240
    %v6242 = vpop.f32.mrf.mxu0
    %v6243 = vadd.f32 %v6082, %v6242
    %6244 = vmatprep.mubr.f32.mxu0 0.0
    %6245 = vmatmul.mubr.f32.gmra.mxu0 %v472
    %v6246 = vpop.f32.mrf.mxu0
    %v6247 = vadd.f32 %v6086, %v6246
    %v6248 = vpop.f32.mrf.mxu0
    %v6249 = vadd.f32 %v6088, %v6248
    %6250 = vdwg.mxu0
    %v6251 = vmax.f32 %v6157, %v6159
    %v6252 = vmax.f32 %v6163, %v6165
    %v6253 = vmax.f32 %v6169, %v6171
    %v6254 = vmax.f32 %v6175, %v6177
    %v6255 = vmax.f32 %v6181, %v6183
    %v6256 = vmax.f32 %v6187, %v6189
    %v6257 = vmax.f32 %v6193, %v6195
    %v6258 = vmax.f32 %v6199, %v6201
    %v6259 = vmax.f32 %v6205, %v6207
    %v6260 = vmax.f32 %v6211, %v6213
    %v6261 = vmax.f32 %v6217, %v6219
    %v6262 = vmax.f32 %v6223, %v6225
    %v6263 = vmax.f32 %v6229, %v6231
    %v6264 = vmax.f32 %v6235, %v6237
    %v6265 = vmax.f32 %v6241, %v6243
    %v6266 = vmax.f32 %v6247, %v6249
    %v6267 = vmax.f32 %v6251, %v6259
    %v6268 = vmax.f32 %v6252, %v6260
    %v6269 = vmax.f32 %v6253, %v6261
    %v6270 = vmax.f32 %v6254, %v6262
    %v6271 = vmax.f32 %v6255, %v6263
    %v6272 = vmax.f32 %v6256, %v6264
    %v6273 = vmax.f32 %v6257, %v6265
    %v6274 = vmax.f32 %v6258, %v6266
    %v6275 = vadd.f32 %v6267, %v1003
    %v6276 = vadd.f32 %v6268, %v1003
    %v6277 = vadd.f32 %v6269, %v1003
    %v6278 = vadd.f32 %v6270, %v1003
    %v6279 = vadd.f32 %v6271, %v1003
    %v6280 = vadd.f32 %v6272, %v1003
    %v6281 = vadd.f32 %v6273, %v1003
    %v6282 = vadd.f32 %v6274, %v1003
    %v6283 = vmax.f32 %v6275, 0.0
    %v6284 = vmax.f32 %v6276, 0.0
    %v6285 = vmax.f32 %v6277, 0.0
    %v6286 = vmax.f32 %v6278, 0.0
    %v6287 = vmax.f32 %v6279, 0.0
    %v6288 = vmax.f32 %v6280, 0.0
    %v6289 = vmax.f32 %v6281, 0.0
    %v6290 = vmax.f32 %v6282, 0.0
    %v6291 = vpack.c.bf16 %v6284, %v6283
    %v6292 = vpack.c.bf16 %v6286, %v6285
    %v6293 = vpack.c.bf16 %v6288, %v6287
    %v6294 = vpack.c.bf16 %v6290, %v6289
    %6295 = vmatprep.subr.mxu0 %v111
    %6296 = vmatpush1.msra.mxu0 %v110
    %6297 = vmatprep.subr.mxu0 %v109
    %6298 = vmatpush1.msra.mxu0 %v108
    %6299 = vmatprep.subr.mxu0 %v107
    %6300 = vmatpush1.msra.mxu0 %v106
    %6301 = vmatprep.subr.mxu0 %v105
    %6302 = vmatpush1.msra.mxu0 %v104
    %6303 = vmatprep.subr.mxu0 %v103
    %6304 = vmatpush1.msra.mxu0 %v102
    %6305 = vmatprep.subr.mxu0 %v101
    %6306 = vmatpush1.msra.mxu0 %v100
    %6307 = vmatprep.subr.mxu0 %v99
    %6308 = vmatpush1.msra.mxu0 %v98
    %6309 = vmatprep.subr.mxu0 %v97
    %6310 = vmatpush1.msra.mxu0 %v96
    %6311 = vmatprep.subr.mxu0 %v95
    %6312 = vmatpush1.msra.mxu0 %v94
    %6313 = vmatprep.subr.mxu0 %v93
    %6314 = vmatpush1.msra.mxu0 %v92
    %6315 = vmatprep.subr.mxu0 %v91
    %6316 = vmatpush1.msra.mxu0 %v90
    %6317 = vmatprep.subr.mxu0 %v89
    %6318 = vmatpush1.msra.mxu0 %v88
    %6319 = vmatprep.subr.mxu0 %v87
    %6320 = vmatpush1.msra.mxu0 %v86
    %6321 = vmatprep.subr.mxu0 %v85
    %6322 = vmatpush1.msra.mxu0 %v84
    %6323 = vmatprep.subr.mxu0 %v83
    %6324 = vmatpush1.msra.mxu0 %v82
    %6325 = vmatprep.subr.mxu0 %v81
    %6326 = vmatpush1.msra.mxu0 %v80
    %6327 = vmatprep.subr.mxu0 %v143
    %6328 = vmatpush2.msra.mxu0 %v142
    %6329 = vmatprep.subr.mxu0 %v141
    %6330 = vmatpush2.msra.mxu0 %v140
    %6331 = vmatprep.subr.mxu0 %v139
    %6332 = vmatpush2.msra.mxu0 %v138
    %6333 = vmatprep.subr.mxu0 %v137
    %6334 = vmatpush2.msra.mxu0 %v136
    %6335 = vmatprep.subr.mxu0 %v135
    %6336 = vmatpush2.msra.mxu0 %v134
    %6337 = vmatprep.subr.mxu0 %v133
    %6338 = vmatpush2.msra.mxu0 %v132
    %6339 = vmatprep.subr.mxu0 %v131
    %6340 = vmatpush2.msra.mxu0 %v130
    %6341 = vmatprep.subr.mxu0 %v129
    %6342 = vmatpush2.msra.mxu0 %v128
    %6343 = vmatprep.subr.mxu0 %v127
    %6344 = vmatpush2.msra.mxu0 %v126
    %6345 = vmatprep.subr.mxu0 %v125
    %6346 = vmatpush2.msra.mxu0 %v124
    %6347 = vmatprep.subr.mxu0 %v123
    %6348 = vmatpush2.msra.mxu0 %v122
    %6349 = vmatprep.subr.mxu0 %v121
    %6350 = vmatpush2.msra.mxu0 %v120
    %6351 = vmatprep.subr.mxu0 %v119
    %6352 = vmatpush2.msra.mxu0 %v118
    %6353 = vmatprep.subr.mxu0 %v117
    %6354 = vmatpush2.msra.mxu0 %v116
    %6355 = vmatprep.subr.mxu0 %v115
    %6356 = vmatpush2.msra.mxu0 %v114
    %6357 = vmatprep.subr.mxu0 %v113
    %6358 = vmatpush2.msra.mxu0 %v112
    %6359 = vmatprep.mubr.f32.mxu0 %v447
    %6360 = vmatmul.mubr.f32.gmra.mxu0 %v438
    %v6361 = vpop.f32.mrf.mxu0
    %v6362 = vadd.f32 0.0, %v6361
    %v6363 = vpop.f32.mrf.mxu0
    %v6364 = vadd.f32 0.0, %v6363
    %6365 = vmatprep.mubr.f32.mxu0 %v448
    %6366 = vmatmul.mubr.f32.gmra.mxu0 %v439
    %v6367 = vpop.f32.mrf.mxu0
    %v6368 = vadd.f32 0.0, %v6367
    %v6369 = vpop.f32.mrf.mxu0
    %v6370 = vadd.f32 0.0, %v6369
    %6371 = vmatprep.mubr.f32.mxu0 %v449
    %6372 = vmatmul.mubr.f32.gmra.mxu0 %v440
    %v6373 = vpop.f32.mrf.mxu0
    %v6374 = vadd.f32 0.0, %v6373
    %v6375 = vpop.f32.mrf.mxu0
    %v6376 = vadd.f32 0.0, %v6375
    %6377 = vmatprep.mubr.f32.mxu0 %v450
    %6378 = vmatmul.mubr.f32.gmra.mxu0 %v441
    %v6379 = vpop.f32.mrf.mxu0
    %v6380 = vadd.f32 0.0, %v6379
    %v6381 = vpop.f32.mrf.mxu0
    %v6382 = vadd.f32 0.0, %v6381
    %6383 = vmatprep.mubr.f32.mxu0 %v451
    %6384 = vmatmul.mubr.f32.gmra.mxu0 %v442
    %v6385 = vpop.f32.mrf.mxu0
    %v6386 = vadd.f32 0.0, %v6385
    %v6387 = vpop.f32.mrf.mxu0
    %v6388 = vadd.f32 0.0, %v6387
    %6389 = vmatprep.mubr.f32.mxu0 %v452
    %6390 = vmatmul.mubr.f32.gmra.mxu0 %v443
    %v6391 = vpop.f32.mrf.mxu0
    %v6392 = vadd.f32 0.0, %v6391
    %v6393 = vpop.f32.mrf.mxu0
    %v6394 = vadd.f32 0.0, %v6393
    %6395 = vmatprep.mubr.f32.mxu0 %v453
    %6396 = vmatmul.mubr.f32.gmra.mxu0 %v444
    %v6397 = vpop.f32.mrf.mxu0
    %v6398 = vadd.f32 0.0, %v6397
    %v6399 = vpop.f32.mrf.mxu0
    %v6400 = vadd.f32 0.0, %v6399
    %6401 = vmatprep.mubr.f32.mxu0 %v454
    %6402 = vmatmul.mubr.f32.gmra.mxu0 %v445
    %v6403 = vpop.f32.mrf.mxu0
    %v6404 = vadd.f32 0.0, %v6403
    %v6405 = vpop.f32.mrf.mxu0
    %v6406 = vadd.f32 0.0, %v6405
    %6407 = vmatprep.mubr.f32.mxu0 %v456
    %6408 = vmatmul.mubr.f32.gmra.mxu0 %v447
    %v6409 = vpop.f32.mrf.mxu0
    %v6410 = vadd.f32 0.0, %v6409
    %v6411 = vpop.f32.mrf.mxu0
    %v6412 = vadd.f32 0.0, %v6411
    %6413 = vmatprep.mubr.f32.mxu0 %v457
    %6414 = vmatmul.mubr.f32.gmra.mxu0 %v448
    %v6415 = vpop.f32.mrf.mxu0
    %v6416 = vadd.f32 0.0, %v6415
    %v6417 = vpop.f32.mrf.mxu0
    %v6418 = vadd.f32 0.0, %v6417
    %6419 = vmatprep.mubr.f32.mxu0 %v458
    %6420 = vmatmul.mubr.f32.gmra.mxu0 %v449
    %v6421 = vpop.f32.mrf.mxu0
    %v6422 = vadd.f32 0.0, %v6421
    %v6423 = vpop.f32.mrf.mxu0
    %v6424 = vadd.f32 0.0, %v6423
    %6425 = vmatprep.mubr.f32.mxu0 %v459
    %6426 = vmatmul.mubr.f32.gmra.mxu0 %v450
    %v6427 = vpop.f32.mrf.mxu0
    %v6428 = vadd.f32 0.0, %v6427
    %v6429 = vpop.f32.mrf.mxu0
    %v6430 = vadd.f32 0.0, %v6429
    %6431 = vmatprep.mubr.f32.mxu0 %v460
    %6432 = vmatmul.mubr.f32.gmra.mxu0 %v451
    %v6433 = vpop.f32.mrf.mxu0
    %v6434 = vadd.f32 0.0, %v6433
    %v6435 = vpop.f32.mrf.mxu0
    %v6436 = vadd.f32 0.0, %v6435
    %6437 = vmatprep.mubr.f32.mxu0 %v461
    %6438 = vmatmul.mubr.f32.gmra.mxu0 %v452
    %v6439 = vpop.f32.mrf.mxu0
    %v6440 = vadd.f32 0.0, %v6439
    %v6441 = vpop.f32.mrf.mxu0
    %v6442 = vadd.f32 0.0, %v6441
    %6443 = vmatprep.mubr.f32.mxu0 %v462
    %6444 = vmatmul.mubr.f32.gmra.mxu0 %v453
    %v6445 = vpop.f32.mrf.mxu0
    %v6446 = vadd.f32 0.0, %v6445
    %v6447 = vpop.f32.mrf.mxu0
    %v6448 = vadd.f32 0.0, %v6447
    %6449 = vmatprep.mubr.f32.mxu0 %v463
    %6450 = vmatmul.mubr.f32.gmra.mxu0 %v454
    %v6451 = vpop.f32.mrf.mxu0
    %v6452 = vadd.f32 0.0, %v6451
    %v6453 = vpop.f32.mrf.mxu0
    %v6454 = vadd.f32 0.0, %v6453
    %6455 = vdwg.mxu0
    %6456 = vmatprep.subr.mxu0 %v175
    %6457 = vmatpush1.msra.mxu0 %v174
    %6458 = vmatprep.subr.mxu0 %v173
    %6459 = vmatpush1.msra.mxu0 %v172
    %6460 = vmatprep.subr.mxu0 %v171
    %6461 = vmatpush1.msra.mxu0 %v170
    %6462 = vmatprep.subr.mxu0 %v169
    %6463 = vmatpush1.msra.mxu0 %v168
    %6464 = vmatprep.subr.mxu0 %v167
    %6465 = vmatpush1.msra.mxu0 %v166
    %6466 = vmatprep.subr.mxu0 %v165
    %6467 = vmatpush1.msra.mxu0 %v164
    %6468 = vmatprep.subr.mxu0 %v163
    %6469 = vmatpush1.msra.mxu0 %v162
    %6470 = vmatprep.subr.mxu0 %v161
    %6471 = vmatpush1.msra.mxu0 %v160
    %6472 = vmatprep.subr.mxu0 %v159
    %6473 = vmatpush1.msra.mxu0 %v158
    %6474 = vmatprep.subr.mxu0 %v157
    %6475 = vmatpush1.msra.mxu0 %v156
    %6476 = vmatprep.subr.mxu0 %v155
    %6477 = vmatpush1.msra.mxu0 %v154
    %6478 = vmatprep.subr.mxu0 %v153
    %6479 = vmatpush1.msra.mxu0 %v152
    %6480 = vmatprep.subr.mxu0 %v151
    %6481 = vmatpush1.msra.mxu0 %v150
    %6482 = vmatprep.subr.mxu0 %v149
    %6483 = vmatpush1.msra.mxu0 %v148
    %6484 = vmatprep.subr.mxu0 %v147
    %6485 = vmatpush1.msra.mxu0 %v146
    %6486 = vmatprep.subr.mxu0 %v145
    %6487 = vmatpush1.msra.mxu0 %v144
    %6488 = vmatprep.subr.mxu0 %v207
    %6489 = vmatpush2.msra.mxu0 %v206
    %6490 = vmatprep.subr.mxu0 %v205
    %6491 = vmatpush2.msra.mxu0 %v204
    %6492 = vmatprep.subr.mxu0 %v203
    %6493 = vmatpush2.msra.mxu0 %v202
    %6494 = vmatprep.subr.mxu0 %v201
    %6495 = vmatpush2.msra.mxu0 %v200
    %6496 = vmatprep.subr.mxu0 %v199
    %6497 = vmatpush2.msra.mxu0 %v198
    %6498 = vmatprep.subr.mxu0 %v197
    %6499 = vmatpush2.msra.mxu0 %v196
    %6500 = vmatprep.subr.mxu0 %v195
    %6501 = vmatpush2.msra.mxu0 %v194
    %6502 = vmatprep.subr.mxu0 %v193
    %6503 = vmatpush2.msra.mxu0 %v192
    %6504 = vmatprep.subr.mxu0 %v191
    %6505 = vmatpush2.msra.mxu0 %v190
    %6506 = vmatprep.subr.mxu0 %v189
    %6507 = vmatpush2.msra.mxu0 %v188
    %6508 = vmatprep.subr.mxu0 %v187
    %6509 = vmatpush2.msra.mxu0 %v186
    %6510 = vmatprep.subr.mxu0 %v185
    %6511 = vmatpush2.msra.mxu0 %v184
    %6512 = vmatprep.subr.mxu0 %v183
    %6513 = vmatpush2.msra.mxu0 %v182
    %6514 = vmatprep.subr.mxu0 %v181
    %6515 = vmatpush2.msra.mxu0 %v180
    %6516 = vmatprep.subr.mxu0 %v179
    %6517 = vmatpush2.msra.mxu0 %v178
    %6518 = vmatprep.subr.mxu0 %v177
    %6519 = vmatpush2.msra.mxu0 %v176
    %6520 = vmatprep.mubr.f32.mxu0 %v465
    %6521 = vmatmul.mubr.f32.gmra.mxu0 %v456
    %v6522 = vpop.f32.mrf.mxu0
    %v6523 = vadd.f32 %v6362, %v6522
    %v6524 = vpop.f32.mrf.mxu0
    %v6525 = vadd.f32 %v6364, %v6524
    %6526 = vmatprep.mubr.f32.mxu0 %v466
    %6527 = vmatmul.mubr.f32.gmra.mxu0 %v457
    %v6528 = vpop.f32.mrf.mxu0
    %v6529 = vadd.f32 %v6368, %v6528
    %v6530 = vpop.f32.mrf.mxu0
    %v6531 = vadd.f32 %v6370, %v6530
    %6532 = vmatprep.mubr.f32.mxu0 %v467
    %6533 = vmatmul.mubr.f32.gmra.mxu0 %v458
    %v6534 = vpop.f32.mrf.mxu0
    %v6535 = vadd.f32 %v6374, %v6534
    %v6536 = vpop.f32.mrf.mxu0
    %v6537 = vadd.f32 %v6376, %v6536
    %6538 = vmatprep.mubr.f32.mxu0 %v468
    %6539 = vmatmul.mubr.f32.gmra.mxu0 %v459
    %v6540 = vpop.f32.mrf.mxu0
    %v6541 = vadd.f32 %v6380, %v6540
    %v6542 = vpop.f32.mrf.mxu0
    %v6543 = vadd.f32 %v6382, %v6542
    %6544 = vmatprep.mubr.f32.mxu0 %v469
    %6545 = vmatmul.mubr.f32.gmra.mxu0 %v460
    %v6546 = vpop.f32.mrf.mxu0
    %v6547 = vadd.f32 %v6386, %v6546
    %v6548 = vpop.f32.mrf.mxu0
    %v6549 = vadd.f32 %v6388, %v6548
    %6550 = vmatprep.mubr.f32.mxu0 %v470
    %6551 = vmatmul.mubr.f32.gmra.mxu0 %v461
    %v6552 = vpop.f32.mrf.mxu0
    %v6553 = vadd.f32 %v6392, %v6552
    %v6554 = vpop.f32.mrf.mxu0
    %v6555 = vadd.f32 %v6394, %v6554
    %6556 = vmatprep.mubr.f32.mxu0 %v471
    %6557 = vmatmul.mubr.f32.gmra.mxu0 %v462
    %v6558 = vpop.f32.mrf.mxu0
    %v6559 = vadd.f32 %v6398, %v6558
    %v6560 = vpop.f32.mrf.mxu0
    %v6561 = vadd.f32 %v6400, %v6560
    %6562 = vmatprep.mubr.f32.mxu0 %v472
    %6563 = vmatmul.mubr.f32.gmra.mxu0 %v463
    %v6564 = vpop.f32.mrf.mxu0
    %v6565 = vadd.f32 %v6404, %v6564
    %v6566 = vpop.f32.mrf.mxu0
    %v6567 = vadd.f32 %v6406, %v6566
    %6568 = vmatprep.mubr.f32.mxu0 %v474
    %6569 = vmatmul.mubr.f32.gmra.mxu0 %v465
    %v6570 = vpop.f32.mrf.mxu0
    %v6571 = vadd.f32 %v6410, %v6570
    %v6572 = vpop.f32.mrf.mxu0
    %v6573 = vadd.f32 %v6412, %v6572
    %6574 = vmatprep.mubr.f32.mxu0 %v475
    %6575 = vmatmul.mubr.f32.gmra.mxu0 %v466
    %v6576 = vpop.f32.mrf.mxu0
    %v6577 = vadd.f32 %v6416, %v6576
    %v6578 = vpop.f32.mrf.mxu0
    %v6579 = vadd.f32 %v6418, %v6578
    %6580 = vmatprep.mubr.f32.mxu0 %v476
    %6581 = vmatmul.mubr.f32.gmra.mxu0 %v467
    %v6582 = vpop.f32.mrf.mxu0
    %v6583 = vadd.f32 %v6422, %v6582
    %v6584 = vpop.f32.mrf.mxu0
    %v6585 = vadd.f32 %v6424, %v6584
    %6586 = vmatprep.mubr.f32.mxu0 %v477
    %6587 = vmatmul.mubr.f32.gmra.mxu0 %v468
    %v6588 = vpop.f32.mrf.mxu0
    %v6589 = vadd.f32 %v6428, %v6588
    %v6590 = vpop.f32.mrf.mxu0
    %v6591 = vadd.f32 %v6430, %v6590
    %6592 = vmatprep.mubr.f32.mxu0 %v478
    %6593 = vmatmul.mubr.f32.gmra.mxu0 %v469
    %v6594 = vpop.f32.mrf.mxu0
    %v6595 = vadd.f32 %v6434, %v6594
    %v6596 = vpop.f32.mrf.mxu0
    %v6597 = vadd.f32 %v6436, %v6596
    %6598 = vmatprep.mubr.f32.mxu0 %v479
    %6599 = vmatmul.mubr.f32.gmra.mxu0 %v470
    %v6600 = vpop.f32.mrf.mxu0
    %v6601 = vadd.f32 %v6440, %v6600
    %v6602 = vpop.f32.mrf.mxu0
    %v6603 = vadd.f32 %v6442, %v6602
    %6604 = vmatprep.mubr.f32.mxu0 %v480
    %6605 = vmatmul.mubr.f32.gmra.mxu0 %v471
    %v6606 = vpop.f32.mrf.mxu0
    %v6607 = vadd.f32 %v6446, %v6606
    %v6608 = vpop.f32.mrf.mxu0
    %v6609 = vadd.f32 %v6448, %v6608
    %6610 = vmatprep.mubr.f32.mxu0 %v481
    %6611 = vmatmul.mubr.f32.gmra.mxu0 %v472
    %v6612 = vpop.f32.mrf.mxu0
    %v6613 = vadd.f32 %v6452, %v6612
    %v6614 = vpop.f32.mrf.mxu0
    %v6615 = vadd.f32 %v6454, %v6614
    %6616 = vdwg.mxu0
    %6617 = vmatprep.subr.mxu0 %v239
    %6618 = vmatpush1.msra.mxu0 %v238
    %6619 = vmatprep.subr.mxu0 %v237
    %6620 = vmatpush1.msra.mxu0 %v236
    %6621 = vmatprep.subr.mxu0 %v235
    %6622 = vmatpush1.msra.mxu0 %v234
    %6623 = vmatprep.subr.mxu0 %v233
    %6624 = vmatpush1.msra.mxu0 %v232
    %6625 = vmatprep.subr.mxu0 %v231
    %6626 = vmatpush1.msra.mxu0 %v230
    %6627 = vmatprep.subr.mxu0 %v229
    %6628 = vmatpush1.msra.mxu0 %v228
    %6629 = vmatprep.subr.mxu0 %v227
    %6630 = vmatpush1.msra.mxu0 %v226
    %6631 = vmatprep.subr.mxu0 %v225
    %6632 = vmatpush1.msra.mxu0 %v224
    %6633 = vmatprep.subr.mxu0 %v223
    %6634 = vmatpush1.msra.mxu0 %v222
    %6635 = vmatprep.subr.mxu0 %v221
    %6636 = vmatpush1.msra.mxu0 %v220
    %6637 = vmatprep.subr.mxu0 %v219
    %6638 = vmatpush1.msra.mxu0 %v218
    %6639 = vmatprep.subr.mxu0 %v217
    %6640 = vmatpush1.msra.mxu0 %v216
    %6641 = vmatprep.subr.mxu0 %v215
    %6642 = vmatpush1.msra.mxu0 %v214
    %6643 = vmatprep.subr.mxu0 %v213
    %6644 = vmatpush1.msra.mxu0 %v212
    %6645 = vmatprep.subr.mxu0 %v211
    %6646 = vmatpush1.msra.mxu0 %v210
    %6647 = vmatprep.subr.mxu0 %v209
    %6648 = vmatpush1.msra.mxu0 %v208
    %6649 = vmatprep.subr.mxu0 0.0
    %6650 = vmatpush2.msra.mxu0 0.0
    %6651 = vmatprep.subr.mxu0 0.0
    %6652 = vmatpush2.msra.mxu0 0.0
    %6653 = vmatprep.subr.mxu0 0.0
    %6654 = vmatpush2.msra.mxu0 0.0
    %6655 = vmatprep.subr.mxu0 0.0
    %6656 = vmatpush2.msra.mxu0 0.0
    %6657 = vmatprep.subr.mxu0 0.0
    %6658 = vmatpush2.msra.mxu0 0.0
    %6659 = vmatprep.subr.mxu0 0.0
    %6660 = vmatpush2.msra.mxu0 0.0
    %6661 = vmatprep.subr.mxu0 0.0
    %6662 = vmatpush2.msra.mxu0 0.0
    %6663 = vmatprep.subr.mxu0 0.0
    %6664 = vmatpush2.msra.mxu0 0.0
    %6665 = vmatprep.subr.mxu0 0.0
    %6666 = vmatpush2.msra.mxu0 0.0
    %6667 = vmatprep.subr.mxu0 0.0
    %6668 = vmatpush2.msra.mxu0 0.0
    %6669 = vmatprep.subr.mxu0 0.0
    %6670 = vmatpush2.msra.mxu0 0.0
    %6671 = vmatprep.subr.mxu0 0.0
    %6672 = vmatpush2.msra.mxu0 0.0
    %6673 = vmatprep.subr.mxu0 0.0
    %6674 = vmatpush2.msra.mxu0 0.0
    %6675 = vmatprep.subr.mxu0 0.0
    %6676 = vmatpush2.msra.mxu0 0.0
    %6677 = vmatprep.subr.mxu0 0.0
    %6678 = vmatpush2.msra.mxu0 0.0
    %6679 = vmatprep.subr.mxu0 0.0
    %6680 = vmatpush2.msra.mxu0 0.0
    %6681 = vmatprep.mubr.f32.mxu0 0.0
    %6682 = vmatmul.mubr.f32.gmra.mxu0 %v474
    %v6683 = vpop.f32.mrf.mxu0
    %v6684 = vadd.f32 %v6523, %v6683
    %v6685 = vpop.f32.mrf.mxu0
    %v6686 = vadd.f32 %v6525, %v6685
    %6687 = vmatprep.mubr.f32.mxu0 0.0
    %6688 = vmatmul.mubr.f32.gmra.mxu0 %v475
    %v6689 = vpop.f32.mrf.mxu0
    %v6690 = vadd.f32 %v6529, %v6689
    %v6691 = vpop.f32.mrf.mxu0
    %v6692 = vadd.f32 %v6531, %v6691
    %6693 = vmatprep.mubr.f32.mxu0 0.0
    %6694 = vmatmul.mubr.f32.gmra.mxu0 %v476
    %v6695 = vpop.f32.mrf.mxu0
    %v6696 = vadd.f32 %v6535, %v6695
    %v6697 = vpop.f32.mrf.mxu0
    %v6698 = vadd.f32 %v6537, %v6697
    %6699 = vmatprep.mubr.f32.mxu0 0.0
    %6700 = vmatmul.mubr.f32.gmra.mxu0 %v477
    %v6701 = vpop.f32.mrf.mxu0
    %v6702 = vadd.f32 %v6541, %v6701
    %v6703 = vpop.f32.mrf.mxu0
    %v6704 = vadd.f32 %v6543, %v6703
    %6705 = vmatprep.mubr.f32.mxu0 0.0
    %6706 = vmatmul.mubr.f32.gmra.mxu0 %v478
    %v6707 = vpop.f32.mrf.mxu0
    %v6708 = vadd.f32 %v6547, %v6707
    %v6709 = vpop.f32.mrf.mxu0
    %v6710 = vadd.f32 %v6549, %v6709
    %6711 = vmatprep.mubr.f32.mxu0 0.0
    %6712 = vmatmul.mubr.f32.gmra.mxu0 %v479
    %v6713 = vpop.f32.mrf.mxu0
    %v6714 = vadd.f32 %v6553, %v6713
    %v6715 = vpop.f32.mrf.mxu0
    %v6716 = vadd.f32 %v6555, %v6715
    %6717 = vmatprep.mubr.f32.mxu0 0.0
    %6718 = vmatmul.mubr.f32.gmra.mxu0 %v480
    %v6719 = vpop.f32.mrf.mxu0
    %v6720 = vadd.f32 %v6559, %v6719
    %v6721 = vpop.f32.mrf.mxu0
    %v6722 = vadd.f32 %v6561, %v6721
    %6723 = vmatprep.mubr.f32.mxu0 0.0
    %6724 = vmatmul.mubr.f32.gmra.mxu0 %v481
    %v6725 = vpop.f32.mrf.mxu0
    %v6726 = vadd.f32 %v6565, %v6725
    %v6727 = vpop.f32.mrf.mxu0
    %v6728 = vadd.f32 %v6567, %v6727
    %6729 = vmatprep.mubr.f32.mxu0 0.0
    %6730 = vmatmul.mubr.f32.gmra.mxu0 %v483
    %v6731 = vpop.f32.mrf.mxu0
    %v6732 = vadd.f32 %v6571, %v6731
    %v6733 = vpop.f32.mrf.mxu0
    %v6734 = vadd.f32 %v6573, %v6733
    %6735 = vmatprep.mubr.f32.mxu0 0.0
    %6736 = vmatmul.mubr.f32.gmra.mxu0 %v484
    %v6737 = vpop.f32.mrf.mxu0
    %v6738 = vadd.f32 %v6577, %v6737
    %v6739 = vpop.f32.mrf.mxu0
    %v6740 = vadd.f32 %v6579, %v6739
    %6741 = vmatprep.mubr.f32.mxu0 0.0
    %6742 = vmatmul.mubr.f32.gmra.mxu0 %v485
    %v6743 = vpop.f32.mrf.mxu0
    %v6744 = vadd.f32 %v6583, %v6743
    %v6745 = vpop.f32.mrf.mxu0
    %v6746 = vadd.f32 %v6585, %v6745
    %6747 = vmatprep.mubr.f32.mxu0 0.0
    %6748 = vmatmul.mubr.f32.gmra.mxu0 %v486
    %v6749 = vpop.f32.mrf.mxu0
    %v6750 = vadd.f32 %v6589, %v6749
    %v6751 = vpop.f32.mrf.mxu0
    %v6752 = vadd.f32 %v6591, %v6751
    %6753 = vmatprep.mubr.f32.mxu0 0.0
    %6754 = vmatmul.mubr.f32.gmra.mxu0 %v487
    %v6755 = vpop.f32.mrf.mxu0
    %v6756 = vadd.f32 %v6595, %v6755
    %v6757 = vpop.f32.mrf.mxu0
    %v6758 = vadd.f32 %v6597, %v6757
    %6759 = vmatprep.mubr.f32.mxu0 0.0
    %6760 = vmatmul.mubr.f32.gmra.mxu0 %v488
    %v6761 = vpop.f32.mrf.mxu0
    %v6762 = vadd.f32 %v6601, %v6761
    %v6763 = vpop.f32.mrf.mxu0
    %v6764 = vadd.f32 %v6603, %v6763
    %6765 = vmatprep.mubr.f32.mxu0 0.0
    %6766 = vmatmul.mubr.f32.gmra.mxu0 %v489
    %v6767 = vpop.f32.mrf.mxu0
    %v6768 = vadd.f32 %v6607, %v6767
    %v6769 = vpop.f32.mrf.mxu0
    %v6770 = vadd.f32 %v6609, %v6769
    %6771 = vmatprep.mubr.f32.mxu0 0.0
    %6772 = vmatmul.mubr.f32.gmra.mxu0 %v490
    %v6773 = vpop.f32.mrf.mxu0
    %v6774 = vadd.f32 %v6613, %v6773
    %v6775 = vpop.f32.mrf.mxu0
    %v6776 = vadd.f32 %v6615, %v6775
    %6777 = vdwg.mxu0
    %v6778 = vmax.f32 %v6684, %v6686
    %v6779 = vmax.f32 %v6690, %v6692
    %v6780 = vmax.f32 %v6696, %v6698
    %v6781 = vmax.f32 %v6702, %v6704
    %v6782 = vmax.f32 %v6708, %v6710
    %v6783 = vmax.f32 %v6714, %v6716
    %v6784 = vmax.f32 %v6720, %v6722
    %v6785 = vmax.f32 %v6726, %v6728
    %v6786 = vmax.f32 %v6732, %v6734
    %v6787 = vmax.f32 %v6738, %v6740
    %v6788 = vmax.f32 %v6744, %v6746
    %v6789 = vmax.f32 %v6750, %v6752
    %v6790 = vmax.f32 %v6756, %v6758
    %v6791 = vmax.f32 %v6762, %v6764
    %v6792 = vmax.f32 %v6768, %v6770
    %v6793 = vmax.f32 %v6774, %v6776
    %v6794 = vmax.f32 %v6778, %v6786
    %v6795 = vmax.f32 %v6779, %v6787
    %v6796 = vmax.f32 %v6780, %v6788
    %v6797 = vmax.f32 %v6781, %v6789
    %v6798 = vmax.f32 %v6782, %v6790
    %v6799 = vmax.f32 %v6783, %v6791
    %v6800 = vmax.f32 %v6784, %v6792
    %v6801 = vmax.f32 %v6785, %v6793
    %v6802 = vadd.f32 %v6794, %v1003
    %v6803 = vadd.f32 %v6795, %v1003
    %v6804 = vadd.f32 %v6796, %v1003
    %v6805 = vadd.f32 %v6797, %v1003
    %v6806 = vadd.f32 %v6798, %v1003
    %v6807 = vadd.f32 %v6799, %v1003
    %v6808 = vadd.f32 %v6800, %v1003
    %v6809 = vadd.f32 %v6801, %v1003
    %v6810 = vmax.f32 %v6802, 0.0
    %v6811 = vmax.f32 %v6803, 0.0
    %v6812 = vmax.f32 %v6804, 0.0
    %v6813 = vmax.f32 %v6805, 0.0
    %v6814 = vmax.f32 %v6806, 0.0
    %v6815 = vmax.f32 %v6807, 0.0
    %v6816 = vmax.f32 %v6808, 0.0
    %v6817 = vmax.f32 %v6809, 0.0
    %v6818 = vpack.c.bf16 %v6811, %v6810
    %v6819 = vpack.c.bf16 %v6813, %v6812
    %v6820 = vpack.c.bf16 %v6815, %v6814
    %v6821 = vpack.c.bf16 %v6817, %v6816
    %v6822 = vld [vmem:[%s3] sm:$0xff]
    %v6823 = vld [vmem:[%s3 + $0x8] sm:$0xff]
    %v6824 = vld [vmem:[%s3 + $0x10] sm:$0xff]
    %v6825 = vld [vmem:[%s3 + $0x18] sm:$0xff]
    %v6826 = vld [vmem:[%s3 + $0x20] sm:$0xff]
    %v6827 = vld [vmem:[%s3 + $0x28] sm:$0xff]
    %v6828 = vld [vmem:[%s3 + $0x30] sm:$0xff]
    %v6829 = vld [vmem:[%s3 + $0x38] sm:$0xff]
    %v6830 = vld [vmem:[%s3 + $0x40] sm:$0xff]
    %v6831 = vld [vmem:[%s3 + $0x48] sm:$0xff]
    %v6832 = vld [vmem:[%s3 + $0x50] sm:$0xff]
    %v6833 = vld [vmem:[%s3 + $0x58] sm:$0xff]
    %v6834 = vld [vmem:[%s3 + $0x60] sm:$0xff]
    %v6835 = vld [vmem:[%s3 + $0x68] sm:$0xff]
    %v6836 = vld [vmem:[%s3 + $0x70] sm:$0xff]
    %v6837 = vld [vmem:[%s3 + $0x78] sm:$0xff]
    %v6838 = vld [vmem:[%s3 + $0x80] sm:$0xff]
    %v6839 = vld [vmem:[%s3 + $0x88] sm:$0xff]
    %v6840 = vld [vmem:[%s3 + $0x90] sm:$0xff]
    %v6841 = vld [vmem:[%s3 + $0x98] sm:$0xff]
    %v6842 = vld [vmem:[%s3 + $0xa0] sm:$0xff]
    %v6843 = vld [vmem:[%s3 + $0xa8] sm:$0xff]
    %v6844 = vld [vmem:[%s3 + $0xb0] sm:$0xff]
    %v6845 = vld [vmem:[%s3 + $0xb8] sm:$0xff]
    %v6846 = vld [vmem:[%s3 + $0xc0] sm:$0xff]
    %v6847 = vld [vmem:[%s3 + $0xc8] sm:$0xff]
    %v6848 = vld [vmem:[%s3 + $0xd0] sm:$0xff]
    %v6849 = vld [vmem:[%s3 + $0xd8] sm:$0xff]
    %v6850 = vld [vmem:[%s3 + $0xe0] sm:$0xff]
    %v6851 = vld [vmem:[%s3 + $0xe8] sm:$0xff]
    %v6852 = vld [vmem:[%s3 + $0xf0] sm:$0xff]
    %v6853 = vld [vmem:[%s3 + $0xf8] sm:$0xff]
    %v6854 = vld [vmem:[%s3 + $0x100] sm:$0xff]
    %v6855 = vld [vmem:[%s3 + $0x108] sm:$0xff]
    %v6856 = vld [vmem:[%s3 + $0x110] sm:$0xff]
    %v6857 = vld [vmem:[%s3 + $0x118] sm:$0xff]
    %v6858 = vld [vmem:[%s3 + $0x120] sm:$0xff]
    %v6859 = vld [vmem:[%s3 + $0x128] sm:$0xff]
    %v6860 = vld [vmem:[%s3 + $0x130] sm:$0xff]
    %v6861 = vld [vmem:[%s3 + $0x138] sm:$0xff]
    %v6862 = vld [vmem:[%s3 + $0x140] sm:$0xff]
    %v6863 = vld [vmem:[%s3 + $0x148] sm:$0xff]
    %v6864 = vld [vmem:[%s3 + $0x150] sm:$0xff]
    %v6865 = vld [vmem:[%s3 + $0x158] sm:$0xff]
    %v6866 = vld [vmem:[%s3 + $0x160] sm:$0xff]
    %v6867 = vld [vmem:[%s3 + $0x168] sm:$0xff]
    %v6868 = vld [vmem:[%s3 + $0x170] sm:$0xff]
    %v6869 = vld [vmem:[%s3 + $0x178] sm:$0xff]
    %v6870 = vld [vmem:[%s3 + $0x180] sm:$0xff]
    %v6871 = vld [vmem:[%s3 + $0x188] sm:$0xff]
    %v6872 = vld [vmem:[%s3 + $0x190] sm:$0xff]
    %v6873 = vld [vmem:[%s3 + $0x198] sm:$0xff]
    %v6874 = vld [vmem:[%s3 + $0x1a0] sm:$0xff]
    %v6875 = vld [vmem:[%s3 + $0x1a8] sm:$0xff]
    %v6876 = vld [vmem:[%s3 + $0x1b0] sm:$0xff]
    %v6877 = vld [vmem:[%s3 + $0x1b8] sm:$0xff]
    %v6878 = vld [vmem:[%s3 + $0x1c0] sm:$0xff]
    %v6879 = vld [vmem:[%s3 + $0x1c8] sm:$0xff]
    %v6880 = vld [vmem:[%s3 + $0x1d0] sm:$0xff]
    %v6881 = vld [vmem:[%s3 + $0x1d8] sm:$0xff]
    %v6882 = vld [vmem:[%s3 + $0x1e0] sm:$0xff]
    %v6883 = vld [vmem:[%s3 + $0x1e8] sm:$0xff]
    %v6884 = vld [vmem:[%s3 + $0x1f0] sm:$0xff]
    %v6885 = vld [vmem:[%s3 + $0x1f8] sm:$0xff]
    %v6886 = vld [vmem:[%s3 + $0x200] sm:$0xff]
    %v6887 = vld [vmem:[%s3 + $0x208] sm:$0xff]
    %v6888 = vld [vmem:[%s3 + $0x210] sm:$0xff]
    %v6889 = vld [vmem:[%s3 + $0x218] sm:$0xff]
    %v6890 = vld [vmem:[%s3 + $0x220] sm:$0xff]
    %v6891 = vld [vmem:[%s3 + $0x228] sm:$0xff]
    %v6892 = vld [vmem:[%s3 + $0x230] sm:$0xff]
    %v6893 = vld [vmem:[%s3 + $0x238] sm:$0xff]
    %v6894 = vld [vmem:[%s3 + $0x240] sm:$0xff]
    %v6895 = vld [vmem:[%s3 + $0x248] sm:$0xff]
    %v6896 = vld [vmem:[%s3 + $0x250] sm:$0xff]
    %v6897 = vld [vmem:[%s3 + $0x258] sm:$0xff]
    %v6898 = vld [vmem:[%s3 + $0x260] sm:$0xff]
    %v6899 = vld [vmem:[%s3 + $0x268] sm:$0xff]
    %v6900 = vld [vmem:[%s3 + $0x270] sm:$0xff]
    %v6901 = vld [vmem:[%s3 + $0x278] sm:$0xff]
    %v6982 = vunpack.c.l.b16 %v6822
    %v6983 = vunpack.c.h.b16 %v6822
    %v6984 = vunpack.c.l.b16 %v6823
    %v6985 = vunpack.c.h.b16 %v6823
    %v6986 = vunpack.c.l.b16 %v6824
    %v6987 = vunpack.c.h.b16 %v6824
    %v6988 = vunpack.c.l.b16 %v6825
    %v6989 = vunpack.c.h.b16 %v6825
    %v6990 = vunpack.c.l.b16 %v6826
    %v6991 = vunpack.c.h.b16 %v6826
    %v6992 = vunpack.c.l.b16 %v6827
    %v6993 = vunpack.c.h.b16 %v6827
    %v6994 = vunpack.c.l.b16 %v6828
    %v6995 = vunpack.c.h.b16 %v6828
    %v6996 = vunpack.c.l.b16 %v6829
    %v6997 = vunpack.c.h.b16 %v6829
    %v6998 = vunpack.c.l.b16 %v6830
    %v6999 = vunpack.c.h.b16 %v6830
    %v7000 = vunpack.c.l.b16 %v6831
    %v7001 = vunpack.c.h.b16 %v6831
    %v7002 = vunpack.c.l.b16 %v6832
    %v7003 = vunpack.c.h.b16 %v6832
    %v7004 = vunpack.c.l.b16 %v6833
    %v7005 = vunpack.c.h.b16 %v6833
    %v7006 = vunpack.c.l.b16 %v6834
    %v7007 = vunpack.c.h.b16 %v6834
    %v7008 = vunpack.c.l.b16 %v6835
    %v7009 = vunpack.c.h.b16 %v6835
    %v7010 = vunpack.c.l.b16 %v6836
    %v7011 = vunpack.c.h.b16 %v6836
    %v7012 = vunpack.c.l.b16 %v6837
    %v7013 = vunpack.c.h.b16 %v6837
    %v7014 = vunpack.c.l.b16 %v6838
    %v7015 = vunpack.c.h.b16 %v6838
    %v7016 = vunpack.c.l.b16 %v6839
    %v7017 = vunpack.c.h.b16 %v6839
    %v7018 = vunpack.c.l.b16 %v6840
    %v7019 = vunpack.c.h.b16 %v6840
    %v7020 = vunpack.c.l.b16 %v6841
    %v7021 = vunpack.c.h.b16 %v6841
    %v7022 = vunpack.c.l.b16 %v6842
    %v7023 = vunpack.c.h.b16 %v6842
    %v7024 = vunpack.c.l.b16 %v6843
    %v7025 = vunpack.c.h.b16 %v6843
    %v7026 = vunpack.c.l.b16 %v6844
    %v7027 = vunpack.c.h.b16 %v6844
    %v7028 = vunpack.c.l.b16 %v6845
    %v7029 = vunpack.c.h.b16 %v6845
    %v7030 = vunpack.c.l.b16 %v6846
    %v7031 = vunpack.c.h.b16 %v6846
    %v7032 = vunpack.c.l.b16 %v6847
    %v7033 = vunpack.c.h.b16 %v6847
    %v7034 = vunpack.c.l.b16 %v6848
    %v7035 = vunpack.c.h.b16 %v6848
    %v7036 = vunpack.c.l.b16 %v6849
    %v7037 = vunpack.c.h.b16 %v6849
    %v7038 = vunpack.c.l.b16 %v6850
    %v7039 = vunpack.c.h.b16 %v6850
    %v7040 = vunpack.c.l.b16 %v6851
    %v7041 = vunpack.c.h.b16 %v6851
    %v7042 = vunpack.c.l.b16 %v6852
    %v7043 = vunpack.c.h.b16 %v6852
    %v7044 = vunpack.c.l.b16 %v6853
    %v7045 = vunpack.c.h.b16 %v6853
    %v7046 = vunpack.c.l.b16 %v6854
    %v7047 = vunpack.c.h.b16 %v6854
    %v7048 = vunpack.c.l.b16 %v6855
    %v7049 = vunpack.c.h.b16 %v6855
    %v7050 = vunpack.c.l.b16 %v6856
    %v7051 = vunpack.c.h.b16 %v6856
    %v7052 = vunpack.c.l.b16 %v6857
    %v7053 = vunpack.c.h.b16 %v6857
    %v7054 = vunpack.c.l.b16 %v6858
    %v7055 = vunpack.c.h.b16 %v6858
    %v7056 = vunpack.c.l.b16 %v6859
    %v7057 = vunpack.c.h.b16 %v6859
    %v7058 = vunpack.c.l.b16 %v6860
    %v7059 = vunpack.c.h.b16 %v6860
    %v7060 = vunpack.c.l.b16 %v6861
    %v7061 = vunpack.c.h.b16 %v6861
    %v7062 = vunpack.c.l.b16 %v6862
    %v7063 = vunpack.c.h.b16 %v6862
    %v7064 = vunpack.c.l.b16 %v6863
    %v7065 = vunpack.c.h.b16 %v6863
    %v7066 = vunpack.c.l.b16 %v6864
    %v7067 = vunpack.c.h.b16 %v6864
    %v7068 = vunpack.c.l.b16 %v6865
    %v7069 = vunpack.c.h.b16 %v6865
    %v7070 = vunpack.c.l.b16 %v6866
    %v7071 = vunpack.c.h.b16 %v6866
    %v7072 = vunpack.c.l.b16 %v6867
    %v7073 = vunpack.c.h.b16 %v6867
    %v7074 = vunpack.c.l.b16 %v6868
    %v7075 = vunpack.c.h.b16 %v6868
    %v7076 = vunpack.c.l.b16 %v6869
    %v7077 = vunpack.c.h.b16 %v6869
    %v7078 = vunpack.c.l.b16 %v6870
    %v7079 = vunpack.c.h.b16 %v6870
    %v7080 = vunpack.c.l.b16 %v6871
    %v7081 = vunpack.c.h.b16 %v6871
    %v7082 = vunpack.c.l.b16 %v6872
    %v7083 = vunpack.c.h.b16 %v6872
    %v7084 = vunpack.c.l.b16 %v6873
    %v7085 = vunpack.c.h.b16 %v6873
    %v7086 = vunpack.c.l.b16 %v6874
    %v7087 = vunpack.c.h.b16 %v6874
    %v7088 = vunpack.c.l.b16 %v6875
    %v7089 = vunpack.c.h.b16 %v6875
    %v7090 = vunpack.c.l.b16 %v6876
    %v7091 = vunpack.c.h.b16 %v6876
    %v7092 = vunpack.c.l.b16 %v6877
    %v7093 = vunpack.c.h.b16 %v6877
    %v7094 = vunpack.c.l.b16 %v6878
    %v7095 = vunpack.c.h.b16 %v6878
    %v7096 = vunpack.c.l.b16 %v6879
    %v7097 = vunpack.c.h.b16 %v6879
    %v7098 = vunpack.c.l.b16 %v6880
    %v7099 = vunpack.c.h.b16 %v6880
    %v7100 = vunpack.c.l.b16 %v6881
    %v7101 = vunpack.c.h.b16 %v6881
    %v7102 = vunpack.c.l.b16 %v6882
    %v7103 = vunpack.c.h.b16 %v6882
    %v7104 = vunpack.c.l.b16 %v6883
    %v7105 = vunpack.c.h.b16 %v6883
    %v7106 = vunpack.c.l.b16 %v6884
    %v7107 = vunpack.c.h.b16 %v6884
    %v7108 = vunpack.c.l.b16 %v6885
    %v7109 = vunpack.c.h.b16 %v6885
    %v7110 = vunpack.c.l.b16 %v6886
    %v7111 = vunpack.c.h.b16 %v6886
    %v7112 = vunpack.c.l.b16 %v6887
    %v7113 = vunpack.c.h.b16 %v6887
    %v7114 = vunpack.c.l.b16 %v6888
    %v7115 = vunpack.c.h.b16 %v6888
    %v7116 = vunpack.c.l.b16 %v6889
    %v7117 = vunpack.c.h.b16 %v6889
    %v7118 = vunpack.c.l.b16 %v6890
    %v7119 = vunpack.c.h.b16 %v6890
    %v7120 = vunpack.c.l.b16 %v6891
    %v7121 = vunpack.c.h.b16 %v6891
    %v7122 = vunpack.c.l.b16 %v6892
    %v7123 = vunpack.c.h.b16 %v6892
    %v7124 = vunpack.c.l.b16 %v6893
    %v7125 = vunpack.c.h.b16 %v6893
    %v7126 = vunpack.c.l.b16 %v6894
    %v7127 = vunpack.c.h.b16 %v6894
    %v7128 = vunpack.c.l.b16 %v6895
    %v7129 = vunpack.c.h.b16 %v6895
    %v7130 = vunpack.c.l.b16 %v6896
    %v7131 = vunpack.c.h.b16 %v6896
    %v7132 = vunpack.c.l.b16 %v6897
    %v7133 = vunpack.c.h.b16 %v6897
    %v7134 = vunpack.c.l.b16 %v6898
    %v7135 = vunpack.c.h.b16 %v6898
    %v7136 = vunpack.c.l.b16 %v6899
    %v7137 = vunpack.c.h.b16 %v6899
    %v7138 = vunpack.c.l.b16 %v6900
    %v7139 = vunpack.c.h.b16 %v6900
    %v7140 = vunpack.c.l.b16 %v6901
    %v7141 = vunpack.c.h.b16 %v6901
    %v7142 = vpack.c.b16 %v6984, %v6982
    %v7143 = vpack.c.b16 %v6985, %v6983
    %v7144 = vpack.c.b16 %v6988, %v6986
    %v7145 = vpack.c.b16 %v6989, %v6987
    %v7146 = vpack.c.b16 %v6992, %v6990
    %v7147 = vpack.c.b16 %v6993, %v6991
    %v7148 = vpack.c.b16 %v6996, %v6994
    %v7149 = vpack.c.b16 %v6997, %v6995
    %v7150 = vpack.c.b16 %v7000, %v6998
    %v7151 = vpack.c.b16 %v7001, %v6999
    %v7152 = vpack.c.b16 %v7004, %v7002
    %v7153 = vpack.c.b16 %v7005, %v7003
    %v7154 = vpack.c.b16 %v7008, %v7006
    %v7155 = vpack.c.b16 %v7009, %v7007
    %v7156 = vpack.c.b16 %v7012, %v7010
    %v7157 = vpack.c.b16 %v7013, %v7011
    %v7158 = vpack.c.b16 %v7016, %v7014
    %v7159 = vpack.c.b16 %v7017, %v7015
    %v7160 = vpack.c.b16 %v7020, %v7018
    %v7161 = vpack.c.b16 %v7021, %v7019
    %v7162 = vpack.c.b16 %v7024, %v7022
    %v7163 = vpack.c.b16 %v7025, %v7023
    %v7164 = vpack.c.b16 %v7028, %v7026
    %v7165 = vpack.c.b16 %v7029, %v7027
    %v7166 = vpack.c.b16 %v7032, %v7030
    %v7167 = vpack.c.b16 %v7033, %v7031
    %v7168 = vpack.c.b16 %v7036, %v7034
    %v7169 = vpack.c.b16 %v7037, %v7035
    %v7170 = vpack.c.b16 %v7040, %v7038
    %v7171 = vpack.c.b16 %v7041, %v7039
    %v7172 = vpack.c.b16 %v7044, %v7042
    %v7173 = vpack.c.b16 %v7045, %v7043
    %v7174 = vpack.c.b16 %v7048, %v7046
    %v7175 = vpack.c.b16 %v7049, %v7047
    %v7176 = vpack.c.b16 %v7052, %v7050
    %v7177 = vpack.c.b16 %v7053, %v7051
    %v7178 = vpack.c.b16 %v7056, %v7054
    %v7179 = vpack.c.b16 %v7057, %v7055
    %v7180 = vpack.c.b16 %v7060, %v7058
    %v7181 = vpack.c.b16 %v7061, %v7059
    %v7182 = vpack.c.b16 %v7064, %v7062
    %v7183 = vpack.c.b16 %v7065, %v7063
    %v7184 = vpack.c.b16 %v7068, %v7066
    %v7185 = vpack.c.b16 %v7069, %v7067
    %v7186 = vpack.c.b16 %v7072, %v7070
    %v7187 = vpack.c.b16 %v7073, %v7071
    %v7188 = vpack.c.b16 %v7076, %v7074
    %v7189 = vpack.c.b16 %v7077, %v7075
    %v7190 = vpack.c.b16 %v7080, %v7078
    %v7191 = vpack.c.b16 %v7081, %v7079
    %v7192 = vpack.c.b16 %v7084, %v7082
    %v7193 = vpack.c.b16 %v7085, %v7083
    %v7194 = vpack.c.b16 %v7088, %v7086
    %v7195 = vpack.c.b16 %v7089, %v7087
    %v7196 = vpack.c.b16 %v7092, %v7090
    %v7197 = vpack.c.b16 %v7093, %v7091
    %v7198 = vpack.c.b16 %v7096, %v7094
    %v7199 = vpack.c.b16 %v7097, %v7095
    %v7200 = vpack.c.b16 %v7100, %v7098
    %v7201 = vpack.c.b16 %v7101, %v7099
    %v7202 = vpack.c.b16 %v7104, %v7102
    %v7203 = vpack.c.b16 %v7105, %v7103
    %v7204 = vpack.c.b16 %v7108, %v7106
    %v7205 = vpack.c.b16 %v7109, %v7107
    %v7206 = vpack.c.b16 %v7112, %v7110
    %v7207 = vpack.c.b16 %v7113, %v7111
    %v7208 = vpack.c.b16 %v7116, %v7114
    %v7209 = vpack.c.b16 %v7117, %v7115
    %v7210 = vpack.c.b16 %v7120, %v7118
    %v7211 = vpack.c.b16 %v7121, %v7119
    %v7212 = vpack.c.b16 %v7124, %v7122
    %v7213 = vpack.c.b16 %v7125, %v7123
    %v7214 = vpack.c.b16 %v7128, %v7126
    %v7215 = vpack.c.b16 %v7129, %v7127
    %v7216 = vpack.c.b16 %v7132, %v7130
    %v7217 = vpack.c.b16 %v7133, %v7131
    %v7218 = vpack.c.b16 %v7136, %v7134
    %v7219 = vpack.c.b16 %v7137, %v7135
    %v7220 = vpack.c.b16 %v7140, %v7138
    %v7221 = vpack.c.b16 %v7141, %v7139
    %7302 = vmatprep.subr.bf16.mxu0 %v7157
    %7303 = vmatpush1.bf16.msra.mxu0 %v7156
    %7304 = vmatprep.subr.bf16.mxu0 %v7155
    %7305 = vmatpush1.bf16.msra.mxu0 %v7154
    %7306 = vmatprep.subr.bf16.mxu0 %v7153
    %7307 = vmatpush1.bf16.msra.mxu0 %v7152
    %7308 = vmatprep.subr.bf16.mxu0 %v7151
    %7309 = vmatpush1.bf16.msra.mxu0 %v7150
    %7310 = vmatprep.subr.bf16.mxu0 %v7149
    %7311 = vmatpush1.bf16.msra.mxu0 %v7148
    %7312 = vmatprep.subr.bf16.mxu0 %v7147
    %7313 = vmatpush1.bf16.msra.mxu0 %v7146
    %7314 = vmatprep.subr.bf16.mxu0 %v7145
    %7315 = vmatpush1.bf16.msra.mxu0 %v7144
    %7316 = vmatprep.subr.bf16.mxu0 %v7143
    %7317 = vmatpush1.bf16.msra.mxu0 %v7142
    %7318 = vmatprep.subr.bf16.mxu0 %v7173
    %7319 = vmatpush2.bf16.msra.mxu0 %v7172
    %7320 = vmatprep.subr.bf16.mxu0 %v7171
    %7321 = vmatpush2.bf16.msra.mxu0 %v7170
    %7322 = vmatprep.subr.bf16.mxu0 %v7169
    %7323 = vmatpush2.bf16.msra.mxu0 %v7168
    %7324 = vmatprep.subr.bf16.mxu0 %v7167
    %7325 = vmatpush2.bf16.msra.mxu0 %v7166
    %7326 = vmatprep.subr.bf16.mxu0 %v7165
    %7327 = vmatpush2.bf16.msra.mxu0 %v7164
    %7328 = vmatprep.subr.bf16.mxu0 %v7163
    %7329 = vmatpush2.bf16.msra.mxu0 %v7162
    %7330 = vmatprep.subr.bf16.mxu0 %v7161
    %7331 = vmatpush2.bf16.msra.mxu0 %v7160
    %7332 = vmatprep.subr.bf16.mxu0 %v7159
    %7333 = vmatpush2.bf16.msra.mxu0 %v7158
    %7334 = vmatprep.mubr.bf16.mxu0 %v1548
    %7335 = vmatmul.mubr.bf16.gmra.mxu0 %v1021
    %v7336 = vpop.f32.mrf.mxu0
    %v7337 = vadd.f32 0.0, %v7336
    %v7338 = vpop.f32.mrf.mxu0
    %v7339 = vadd.f32 0.0, %v7338
    %v7340 = vpop.f32.mrf.mxu0
    %v7341 = vadd.f32 0.0, %v7340
    %v7342 = vpop.f32.mrf.mxu0
    %v7343 = vadd.f32 0.0, %v7342
    %7344 = vmatprep.mubr.bf16.mxu0 %v1549
    %7345 = vmatmul.mubr.bf16.gmra.mxu0 %v1022
    %v7346 = vpop.f32.mrf.mxu0
    %v7347 = vadd.f32 0.0, %v7346
    %v7348 = vpop.f32.mrf.mxu0
    %v7349 = vadd.f32 0.0, %v7348
    %v7350 = vpop.f32.mrf.mxu0
    %v7351 = vadd.f32 0.0, %v7350
    %v7352 = vpop.f32.mrf.mxu0
    %v7353 = vadd.f32 0.0, %v7352
    %7354 = vmatprep.mubr.bf16.mxu0 %v1550
    %7355 = vmatmul.mubr.bf16.gmra.mxu0 %v1023
    %v7356 = vpop.f32.mrf.mxu0
    %v7357 = vadd.f32 0.0, %v7356
    %v7358 = vpop.f32.mrf.mxu0
    %v7359 = vadd.f32 0.0, %v7358
    %v7360 = vpop.f32.mrf.mxu0
    %v7361 = vadd.f32 0.0, %v7360
    %v7362 = vpop.f32.mrf.mxu0
    %v7363 = vadd.f32 0.0, %v7362
    %7364 = vmatprep.mubr.bf16.mxu0 %v1551
    %7365 = vmatmul.mubr.bf16.gmra.mxu0 %v1024
    %v7366 = vpop.f32.mrf.mxu0
    %v7367 = vadd.f32 0.0, %v7366
    %v7368 = vpop.f32.mrf.mxu0
    %v7369 = vadd.f32 0.0, %v7368
    %v7370 = vpop.f32.mrf.mxu0
    %v7371 = vadd.f32 0.0, %v7370
    %v7372 = vpop.f32.mrf.mxu0
    %v7373 = vadd.f32 0.0, %v7372
    %7374 = vmatprep.mubr.bf16.mxu0 %v2075
    %7375 = vmatmul.mubr.bf16.gmra.mxu0 %v1548
    %v7376 = vpop.f32.mrf.mxu0
    %v7377 = vadd.f32 0.0, %v7376
    %v7378 = vpop.f32.mrf.mxu0
    %v7379 = vadd.f32 0.0, %v7378
    %v7380 = vpop.f32.mrf.mxu0
    %v7381 = vadd.f32 0.0, %v7380
    %v7382 = vpop.f32.mrf.mxu0
    %v7383 = vadd.f32 0.0, %v7382
    %7384 = vmatprep.mubr.bf16.mxu0 %v2076
    %7385 = vmatmul.mubr.bf16.gmra.mxu0 %v1549
    %v7386 = vpop.f32.mrf.mxu0
    %v7387 = vadd.f32 0.0, %v7386
    %v7388 = vpop.f32.mrf.mxu0
    %v7389 = vadd.f32 0.0, %v7388
    %v7390 = vpop.f32.mrf.mxu0
    %v7391 = vadd.f32 0.0, %v7390
    %v7392 = vpop.f32.mrf.mxu0
    %v7393 = vadd.f32 0.0, %v7392
    %7394 = vmatprep.mubr.bf16.mxu0 %v2077
    %7395 = vmatmul.mubr.bf16.gmra.mxu0 %v1550
    %v7396 = vpop.f32.mrf.mxu0
    %v7397 = vadd.f32 0.0, %v7396
    %v7398 = vpop.f32.mrf.mxu0
    %v7399 = vadd.f32 0.0, %v7398
    %v7400 = vpop.f32.mrf.mxu0
    %v7401 = vadd.f32 0.0, %v7400
    %v7402 = vpop.f32.mrf.mxu0
    %v7403 = vadd.f32 0.0, %v7402
    %7404 = vmatprep.mubr.bf16.mxu0 %v2078
    %7405 = vmatmul.mubr.bf16.gmra.mxu0 %v1551
    %v7406 = vpop.f32.mrf.mxu0
    %v7407 = vadd.f32 0.0, %v7406
    %v7408 = vpop.f32.mrf.mxu0
    %v7409 = vadd.f32 0.0, %v7408
    %v7410 = vpop.f32.mrf.mxu0
    %v7411 = vadd.f32 0.0, %v7410
    %v7412 = vpop.f32.mrf.mxu0
    %v7413 = vadd.f32 0.0, %v7412
    %7414 = vdwg.mxu0
    %7415 = vmatprep.subr.bf16.mxu0 %v7189
    %7416 = vmatpush1.bf16.msra.mxu0 %v7188
    %7417 = vmatprep.subr.bf16.mxu0 %v7187
    %7418 = vmatpush1.bf16.msra.mxu0 %v7186
    %7419 = vmatprep.subr.bf16.mxu0 %v7185
    %7420 = vmatpush1.bf16.msra.mxu0 %v7184
    %7421 = vmatprep.subr.bf16.mxu0 %v7183
    %7422 = vmatpush1.bf16.msra.mxu0 %v7182
    %7423 = vmatprep.subr.bf16.mxu0 %v7181
    %7424 = vmatpush1.bf16.msra.mxu0 %v7180
    %7425 = vmatprep.subr.bf16.mxu0 %v7179
    %7426 = vmatpush1.bf16.msra.mxu0 %v7178
    %7427 = vmatprep.subr.bf16.mxu0 %v7177
    %7428 = vmatpush1.bf16.msra.mxu0 %v7176
    %7429 = vmatprep.subr.bf16.mxu0 %v7175
    %7430 = vmatpush1.bf16.msra.mxu0 %v7174
    %7431 = vmatprep.subr.bf16.mxu0 %v7205
    %7432 = vmatpush2.bf16.msra.mxu0 %v7204
    %7433 = vmatprep.subr.bf16.mxu0 %v7203
    %7434 = vmatpush2.bf16.msra.mxu0 %v7202
    %7435 = vmatprep.subr.bf16.mxu0 %v7201
    %7436 = vmatpush2.bf16.msra.mxu0 %v7200
    %7437 = vmatprep.subr.bf16.mxu0 %v7199
    %7438 = vmatpush2.bf16.msra.mxu0 %v7198
    %7439 = vmatprep.subr.bf16.mxu0 %v7197
    %7440 = vmatpush2.bf16.msra.mxu0 %v7196
    %7441 = vmatprep.subr.bf16.mxu0 %v7195
    %7442 = vmatpush2.bf16.msra.mxu0 %v7194
    %7443 = vmatprep.subr.bf16.mxu0 %v7193
    %7444 = vmatpush2.bf16.msra.mxu0 %v7192
    %7445 = vmatprep.subr.bf16.mxu0 %v7191
    %7446 = vmatpush2.bf16.msra.mxu0 %v7190
    %7447 = vmatprep.mubr.bf16.mxu0 %v2602
    %7448 = vmatmul.mubr.bf16.gmra.mxu0 %v2075
    %v7449 = vpop.f32.mrf.mxu0
    %v7450 = vadd.f32 %v7337, %v7449
    %v7451 = vpop.f32.mrf.mxu0
    %v7452 = vadd.f32 %v7339, %v7451
    %v7453 = vpop.f32.mrf.mxu0
    %v7454 = vadd.f32 %v7341, %v7453
    %v7455 = vpop.f32.mrf.mxu0
    %v7456 = vadd.f32 %v7343, %v7455
    %7457 = vmatprep.mubr.bf16.mxu0 %v2603
    %7458 = vmatmul.mubr.bf16.gmra.mxu0 %v2076
    %v7459 = vpop.f32.mrf.mxu0
    %v7460 = vadd.f32 %v7347, %v7459
    %v7461 = vpop.f32.mrf.mxu0
    %v7462 = vadd.f32 %v7349, %v7461
    %v7463 = vpop.f32.mrf.mxu0
    %v7464 = vadd.f32 %v7351, %v7463
    %v7465 = vpop.f32.mrf.mxu0
    %v7466 = vadd.f32 %v7353, %v7465
    %7467 = vmatprep.mubr.bf16.mxu0 %v2604
    %7468 = vmatmul.mubr.bf16.gmra.mxu0 %v2077
    %v7469 = vpop.f32.mrf.mxu0
    %v7470 = vadd.f32 %v7357, %v7469
    %v7471 = vpop.f32.mrf.mxu0
    %v7472 = vadd.f32 %v7359, %v7471
    %v7473 = vpop.f32.mrf.mxu0
    %v7474 = vadd.f32 %v7361, %v7473
    %v7475 = vpop.f32.mrf.mxu0
    %v7476 = vadd.f32 %v7363, %v7475
    %7477 = vmatprep.mubr.bf16.mxu0 %v2605
    %7478 = vmatmul.mubr.bf16.gmra.mxu0 %v2078
    %v7479 = vpop.f32.mrf.mxu0
    %v7480 = vadd.f32 %v7367, %v7479
    %v7481 = vpop.f32.mrf.mxu0
    %v7482 = vadd.f32 %v7369, %v7481
    %v7483 = vpop.f32.mrf.mxu0
    %v7484 = vadd.f32 %v7371, %v7483
    %v7485 = vpop.f32.mrf.mxu0
    %v7486 = vadd.f32 %v7373, %v7485
    %7487 = vmatprep.mubr.bf16.mxu0 %v3129
    %7488 = vmatmul.mubr.bf16.gmra.mxu0 %v2602
    %v7489 = vpop.f32.mrf.mxu0
    %v7490 = vadd.f32 %v7377, %v7489
    %v7491 = vpop.f32.mrf.mxu0
    %v7492 = vadd.f32 %v7379, %v7491
    %v7493 = vpop.f32.mrf.mxu0
    %v7494 = vadd.f32 %v7381, %v7493
    %v7495 = vpop.f32.mrf.mxu0
    %v7496 = vadd.f32 %v7383, %v7495
    %7497 = vmatprep.mubr.bf16.mxu0 %v3130
    %7498 = vmatmul.mubr.bf16.gmra.mxu0 %v2603
    %v7499 = vpop.f32.mrf.mxu0
    %v7500 = vadd.f32 %v7387, %v7499
    %v7501 = vpop.f32.mrf.mxu0
    %v7502 = vadd.f32 %v7389, %v7501
    %v7503 = vpop.f32.mrf.mxu0
    %v7504 = vadd.f32 %v7391, %v7503
    %v7505 = vpop.f32.mrf.mxu0
    %v7506 = vadd.f32 %v7393, %v7505
    %7507 = vmatprep.mubr.bf16.mxu0 %v3131
    %7508 = vmatmul.mubr.bf16.gmra.mxu0 %v2604
    %v7509 = vpop.f32.mrf.mxu0
    %v7510 = vadd.f32 %v7397, %v7509
    %v7511 = vpop.f32.mrf.mxu0
    %v7512 = vadd.f32 %v7399, %v7511
    %v7513 = vpop.f32.mrf.mxu0
    %v7514 = vadd.f32 %v7401, %v7513
    %v7515 = vpop.f32.mrf.mxu0
    %v7516 = vadd.f32 %v7403, %v7515
    %7517 = vmatprep.mubr.bf16.mxu0 %v3132
    %7518 = vmatmul.mubr.bf16.gmra.mxu0 %v2605
    %v7519 = vpop.f32.mrf.mxu0
    %v7520 = vadd.f32 %v7407, %v7519
    %v7521 = vpop.f32.mrf.mxu0
    %v7522 = vadd.f32 %v7409, %v7521
    %v7523 = vpop.f32.mrf.mxu0
    %v7524 = vadd.f32 %v7411, %v7523
    %v7525 = vpop.f32.mrf.mxu0
    %v7526 = vadd.f32 %v7413, %v7525
    %7527 = vdwg.mxu0
    %7528 = vmatprep.subr.bf16.mxu0 %v7221
    %7529 = vmatpush1.bf16.msra.mxu0 %v7220
    %7530 = vmatprep.subr.bf16.mxu0 %v7219
    %7531 = vmatpush1.bf16.msra.mxu0 %v7218
    %7532 = vmatprep.subr.bf16.mxu0 %v7217
    %7533 = vmatpush1.bf16.msra.mxu0 %v7216
    %7534 = vmatprep.subr.bf16.mxu0 %v7215
    %7535 = vmatpush1.bf16.msra.mxu0 %v7214
    %7536 = vmatprep.subr.bf16.mxu0 %v7213
    %7537 = vmatpush1.bf16.msra.mxu0 %v7212
    %7538 = vmatprep.subr.bf16.mxu0 %v7211
    %7539 = vmatpush1.bf16.msra.mxu0 %v7210
    %7540 = vmatprep.subr.bf16.mxu0 %v7209
    %7541 = vmatpush1.bf16.msra.mxu0 %v7208
    %7542 = vmatprep.subr.bf16.mxu0 %v7207
    %7543 = vmatpush1.bf16.msra.mxu0 %v7206
    %7544 = vmatprep.subr.bf16.mxu0 0
    %7545 = vmatpush2.bf16.msra.mxu0 0
    %7546 = vmatprep.subr.bf16.mxu0 0
    %7547 = vmatpush2.bf16.msra.mxu0 0
    %7548 = vmatprep.subr.bf16.mxu0 0
    %7549 = vmatpush2.bf16.msra.mxu0 0
    %7550 = vmatprep.subr.bf16.mxu0 0
    %7551 = vmatpush2.bf16.msra.mxu0 0
    %7552 = vmatprep.subr.bf16.mxu0 0
    %7553 = vmatpush2.bf16.msra.mxu0 0
    %7554 = vmatprep.subr.bf16.mxu0 0
    %7555 = vmatpush2.bf16.msra.mxu0 0
    %7556 = vmatprep.subr.bf16.mxu0 0
    %7557 = vmatpush2.bf16.msra.mxu0 0
    %7558 = vmatprep.subr.bf16.mxu0 0
    %7559 = vmatpush2.bf16.msra.mxu0 0
    %7560 = vmatprep.mubr.bf16.mxu0 0
    %7561 = vmatmul.mubr.bf16.gmra.mxu0 %v3129
    %v7562 = vpop.f32.mrf.mxu0
    %v7563 = vadd.f32 %v7450, %v7562
    %v7564 = vpop.f32.mrf.mxu0
    %v7565 = vadd.f32 %v7452, %v7564
    %v7566 = vpop.f32.mrf.mxu0
    %v7567 = vadd.f32 %v7454, %v7566
    %v7568 = vpop.f32.mrf.mxu0
    %v7569 = vadd.f32 %v7456, %v7568
    %7570 = vmatprep.mubr.bf16.mxu0 0
    %7571 = vmatmul.mubr.bf16.gmra.mxu0 %v3130
    %v7572 = vpop.f32.mrf.mxu0
    %v7573 = vadd.f32 %v7460, %v7572
    %v7574 = vpop.f32.mrf.mxu0
    %v7575 = vadd.f32 %v7462, %v7574
    %v7576 = vpop.f32.mrf.mxu0
    %v7577 = vadd.f32 %v7464, %v7576
    %v7578 = vpop.f32.mrf.mxu0
    %v7579 = vadd.f32 %v7466, %v7578
    %7580 = vmatprep.mubr.bf16.mxu0 0
    %7581 = vmatmul.mubr.bf16.gmra.mxu0 %v3131
    %v7582 = vpop.f32.mrf.mxu0
    %v7583 = vadd.f32 %v7470, %v7582
    %v7584 = vpop.f32.mrf.mxu0
    %v7585 = vadd.f32 %v7472, %v7584
    %v7586 = vpop.f32.mrf.mxu0
    %v7587 = vadd.f32 %v7474, %v7586
    %v7588 = vpop.f32.mrf.mxu0
    %v7589 = vadd.f32 %v7476, %v7588
    %7590 = vmatprep.mubr.bf16.mxu0 0
    %7591 = vmatmul.mubr.bf16.gmra.mxu0 %v3132
    %v7592 = vpop.f32.mrf.mxu0
    %v7593 = vadd.f32 %v7480, %v7592
    %v7594 = vpop.f32.mrf.mxu0
    %v7595 = vadd.f32 %v7482, %v7594
    %v7596 = vpop.f32.mrf.mxu0
    %v7597 = vadd.f32 %v7484, %v7596
    %v7598 = vpop.f32.mrf.mxu0
    %v7599 = vadd.f32 %v7486, %v7598
    %7600 = vmatprep.mubr.bf16.mxu0 0
    %7601 = vmatmul.mubr.bf16.gmra.mxu0 %v3656
    %v7602 = vpop.f32.mrf.mxu0
    %v7603 = vadd.f32 %v7490, %v7602
    %v7604 = vpop.f32.mrf.mxu0
    %v7605 = vadd.f32 %v7492, %v7604
    %v7606 = vpop.f32.mrf.mxu0
    %v7607 = vadd.f32 %v7494, %v7606
    %v7608 = vpop.f32.mrf.mxu0
    %v7609 = vadd.f32 %v7496, %v7608
    %7610 = vmatprep.mubr.bf16.mxu0 0
    %7611 = vmatmul.mubr.bf16.gmra.mxu0 %v3657
    %v7612 = vpop.f32.mrf.mxu0
    %v7613 = vadd.f32 %v7500, %v7612
    %v7614 = vpop.f32.mrf.mxu0
    %v7615 = vadd.f32 %v7502, %v7614
    %v7616 = vpop.f32.mrf.mxu0
    %v7617 = vadd.f32 %v7504, %v7616
    %v7618 = vpop.f32.mrf.mxu0
    %v7619 = vadd.f32 %v7506, %v7618
    %7620 = vmatprep.mubr.bf16.mxu0 0
    %7621 = vmatmul.mubr.bf16.gmra.mxu0 %v3658
    %v7622 = vpop.f32.mrf.mxu0
    %v7623 = vadd.f32 %v7510, %v7622
    %v7624 = vpop.f32.mrf.mxu0
    %v7625 = vadd.f32 %v7512, %v7624
    %v7626 = vpop.f32.mrf.mxu0
    %v7627 = vadd.f32 %v7514, %v7626
    %v7628 = vpop.f32.mrf.mxu0
    %v7629 = vadd.f32 %v7516, %v7628
    %7630 = vmatprep.mubr.bf16.mxu0 0
    %7631 = vmatmul.mubr.bf16.gmra.mxu0 %v3659
    %v7632 = vpop.f32.mrf.mxu0
    %v7633 = vadd.f32 %v7520, %v7632
    %v7634 = vpop.f32.mrf.mxu0
    %v7635 = vadd.f32 %v7522, %v7634
    %v7636 = vpop.f32.mrf.mxu0
    %v7637 = vadd.f32 %v7524, %v7636
    %v7638 = vpop.f32.mrf.mxu0
    %v7639 = vadd.f32 %v7526, %v7638
    %7640 = vdwg.mxu0
    %v7641 = vmax.f32 %v7563, %v7565
    %v7642 = vmax.f32 %v7567, %v7569
    %v7643 = vmax.f32 %v7573, %v7575
    %v7644 = vmax.f32 %v7577, %v7579
    %v7645 = vmax.f32 %v7583, %v7585
    %v7646 = vmax.f32 %v7587, %v7589
    %v7647 = vmax.f32 %v7593, %v7595
    %v7648 = vmax.f32 %v7597, %v7599
    %v7649 = vmax.f32 %v7603, %v7605
    %v7650 = vmax.f32 %v7607, %v7609
    %v7651 = vmax.f32 %v7613, %v7615
    %v7652 = vmax.f32 %v7617, %v7619
    %v7653 = vmax.f32 %v7623, %v7625
    %v7654 = vmax.f32 %v7627, %v7629
    %v7655 = vmax.f32 %v7633, %v7635
    %v7656 = vmax.f32 %v7637, %v7639
    %v7657 = vmax.f32 %v7641, %v7649
    %v7658 = vmax.f32 %v7642, %v7650
    %v7659 = vmax.f32 %v7643, %v7651
    %v7660 = vmax.f32 %v7644, %v7652
    %v7661 = vmax.f32 %v7645, %v7653
    %v7662 = vmax.f32 %v7646, %v7654
    %v7663 = vmax.f32 %v7647, %v7655
    %v7664 = vmax.f32 %v7648, %v7656
    %v7665 = vld [vmem:[%s4] sm:$0x1]
    %v7667 = vlaneseq
    %v7668 = vshrl.u32 %v7667, 7
    %v7669 = vsub.s32 0, %v7668
    %v7670 = vrot.slane %v7665, %v7669
    %v7672 = vadd.f32 %v7657, %v7670
    %v7673 = vadd.f32 %v7658, %v7670
    %v7674 = vadd.f32 %v7659, %v7670
    %v7675 = vadd.f32 %v7660, %v7670
    %v7676 = vadd.f32 %v7661, %v7670
    %v7677 = vadd.f32 %v7662, %v7670
    %v7678 = vadd.f32 %v7663, %v7670
    %v7679 = vadd.f32 %v7664, %v7670
    %v7680 = vmax.f32 %v7672, 0.0
    %v7681 = vmax.f32 %v7673, 0.0
    %v7682 = vmax.f32 %v7674, 0.0
    %v7683 = vmax.f32 %v7675, 0.0
    %v7684 = vmax.f32 %v7676, 0.0
    %v7685 = vmax.f32 %v7677, 0.0
    %v7686 = vmax.f32 %v7678, 0.0
    %v7687 = vmax.f32 %v7679, 0.0
    %v7688 = vpack.c.bf16 %v7681, %v7680
    %v7689 = vpack.c.bf16 %v7683, %v7682
    %v7690 = vpack.c.bf16 %v7685, %v7684
    %v7691 = vpack.c.bf16 %v7687, %v7686
    %7692 = vmatprep.subr.bf16.mxu0 %v7157
    %7693 = vmatpush1.bf16.msra.mxu0 %v7156
    %7694 = vmatprep.subr.bf16.mxu0 %v7155
    %7695 = vmatpush1.bf16.msra.mxu0 %v7154
    %7696 = vmatprep.subr.bf16.mxu0 %v7153
    %7697 = vmatpush1.bf16.msra.mxu0 %v7152
    %7698 = vmatprep.subr.bf16.mxu0 %v7151
    %7699 = vmatpush1.bf16.msra.mxu0 %v7150
    %7700 = vmatprep.subr.bf16.mxu0 %v7149
    %7701 = vmatpush1.bf16.msra.mxu0 %v7148
    %7702 = vmatprep.subr.bf16.mxu0 %v7147
    %7703 = vmatpush1.bf16.msra.mxu0 %v7146
    %7704 = vmatprep.subr.bf16.mxu0 %v7145
    %7705 = vmatpush1.bf16.msra.mxu0 %v7144
    %7706 = vmatprep.subr.bf16.mxu0 %v7143
    %7707 = vmatpush1.bf16.msra.mxu0 %v7142
    %7708 = vmatprep.subr.bf16.mxu0 %v7173
    %7709 = vmatpush2.bf16.msra.mxu0 %v7172
    %7710 = vmatprep.subr.bf16.mxu0 %v7171
    %7711 = vmatpush2.bf16.msra.mxu0 %v7170
    %7712 = vmatprep.subr.bf16.mxu0 %v7169
    %7713 = vmatpush2.bf16.msra.mxu0 %v7168
    %7714 = vmatprep.subr.bf16.mxu0 %v7167
    %7715 = vmatpush2.bf16.msra.mxu0 %v7166
    %7716 = vmatprep.subr.bf16.mxu0 %v7165
    %7717 = vmatpush2.bf16.msra.mxu0 %v7164
    %7718 = vmatprep.subr.bf16.mxu0 %v7163
    %7719 = vmatpush2.bf16.msra.mxu0 %v7162
    %7720 = vmatprep.subr.bf16.mxu0 %v7161
    %7721 = vmatpush2.bf16.msra.mxu0 %v7160
    %7722 = vmatprep.subr.bf16.mxu0 %v7159
    %7723 = vmatpush2.bf16.msra.mxu0 %v7158
    %7724 = vmatprep.mubr.bf16.mxu0 %v2602
    %7725 = vmatmul.mubr.bf16.gmra.mxu0 %v2075
    %v7726 = vpop.f32.mrf.mxu0
    %v7727 = vadd.f32 0.0, %v7726
    %v7728 = vpop.f32.mrf.mxu0
    %v7729 = vadd.f32 0.0, %v7728
    %v7730 = vpop.f32.mrf.mxu0
    %v7731 = vadd.f32 0.0, %v7730
    %v7732 = vpop.f32.mrf.mxu0
    %v7733 = vadd.f32 0.0, %v7732
    %7734 = vmatprep.mubr.bf16.mxu0 %v2603
    %7735 = vmatmul.mubr.bf16.gmra.mxu0 %v2076
    %v7736 = vpop.f32.mrf.mxu0
    %v7737 = vadd.f32 0.0, %v7736
    %v7738 = vpop.f32.mrf.mxu0
    %v7739 = vadd.f32 0.0, %v7738
    %v7740 = vpop.f32.mrf.mxu0
    %v7741 = vadd.f32 0.0, %v7740
    %v7742 = vpop.f32.mrf.mxu0
    %v7743 = vadd.f32 0.0, %v7742
    %7744 = vmatprep.mubr.bf16.mxu0 %v2604
    %7745 = vmatmul.mubr.bf16.gmra.mxu0 %v2077
    %v7746 = vpop.f32.mrf.mxu0
    %v7747 = vadd.f32 0.0, %v7746
    %v7748 = vpop.f32.mrf.mxu0
    %v7749 = vadd.f32 0.0, %v7748
    %v7750 = vpop.f32.mrf.mxu0
    %v7751 = vadd.f32 0.0, %v7750
    %v7752 = vpop.f32.mrf.mxu0
    %v7753 = vadd.f32 0.0, %v7752
    %7754 = vmatprep.mubr.bf16.mxu0 %v2605
    %7755 = vmatmul.mubr.bf16.gmra.mxu0 %v2078
    %v7756 = vpop.f32.mrf.mxu0
    %v7757 = vadd.f32 0.0, %v7756
    %v7758 = vpop.f32.mrf.mxu0
    %v7759 = vadd.f32 0.0, %v7758
    %v7760 = vpop.f32.mrf.mxu0
    %v7761 = vadd.f32 0.0, %v7760
    %v7762 = vpop.f32.mrf.mxu0
    %v7763 = vadd.f32 0.0, %v7762
    %7764 = vmatprep.mubr.bf16.mxu0 %v3129
    %7765 = vmatmul.mubr.bf16.gmra.mxu0 %v2602
    %v7766 = vpop.f32.mrf.mxu0
    %v7767 = vadd.f32 0.0, %v7766
    %v7768 = vpop.f32.mrf.mxu0
    %v7769 = vadd.f32 0.0, %v7768
    %v7770 = vpop.f32.mrf.mxu0
    %v7771 = vadd.f32 0.0, %v7770
    %v7772 = vpop.f32.mrf.mxu0
    %v7773 = vadd.f32 0.0, %v7772
    %7774 = vmatprep.mubr.bf16.mxu0 %v3130
    %7775 = vmatmul.mubr.bf16.gmra.mxu0 %v2603
    %v7776 = vpop.f32.mrf.mxu0
    %v7777 = vadd.f32 0.0, %v7776
    %v7778 = vpop.f32.mrf.mxu0
    %v7779 = vadd.f32 0.0, %v7778
    %v7780 = vpop.f32.mrf.mxu0
    %v7781 = vadd.f32 0.0, %v7780
    %v7782 = vpop.f32.mrf.mxu0
    %v7783 = vadd.f32 0.0, %v7782
    %7784 = vmatprep.mubr.bf16.mxu0 %v3131
    %7785 = vmatmul.mubr.bf16.gmra.mxu0 %v2604
    %v7786 = vpop.f32.mrf.mxu0
    %v7787 = vadd.f32 0.0, %v7786
    %v7788 = vpop.f32.mrf.mxu0
    %v7789 = vadd.f32 0.0, %v7788
    %v7790 = vpop.f32.mrf.mxu0
    %v7791 = vadd.f32 0.0, %v7790
    %v7792 = vpop.f32.mrf.mxu0
    %v7793 = vadd.f32 0.0, %v7792
    %7794 = vmatprep.mubr.bf16.mxu0 %v3132
    %7795 = vmatmul.mubr.bf16.gmra.mxu0 %v2605
    %v7796 = vpop.f32.mrf.mxu0
    %v7797 = vadd.f32 0.0, %v7796
    %v7798 = vpop.f32.mrf.mxu0
    %v7799 = vadd.f32 0.0, %v7798
    %v7800 = vpop.f32.mrf.mxu0
    %v7801 = vadd.f32 0.0, %v7800
    %v7802 = vpop.f32.mrf.mxu0
    %v7803 = vadd.f32 0.0, %v7802
    %7804 = vdwg.mxu0
    %7805 = vmatprep.subr.bf16.mxu0 %v7189
    %7806 = vmatpush1.bf16.msra.mxu0 %v7188
    %7807 = vmatprep.subr.bf16.mxu0 %v7187
    %7808 = vmatpush1.bf16.msra.mxu0 %v7186
    %7809 = vmatprep.subr.bf16.mxu0 %v7185
    %7810 = vmatpush1.bf16.msra.mxu0 %v7184
    %7811 = vmatprep.subr.bf16.mxu0 %v7183
    %7812 = vmatpush1.bf16.msra.mxu0 %v7182
    %7813 = vmatprep.subr.bf16.mxu0 %v7181
    %7814 = vmatpush1.bf16.msra.mxu0 %v7180
    %7815 = vmatprep.subr.bf16.mxu0 %v7179
    %7816 = vmatpush1.bf16.msra.mxu0 %v7178
    %7817 = vmatprep.subr.bf16.mxu0 %v7177
    %7818 = vmatpush1.bf16.msra.mxu0 %v7176
    %7819 = vmatprep.subr.bf16.mxu0 %v7175
    %7820 = vmatpush1.bf16.msra.mxu0 %v7174
    %7821 = vmatprep.subr.bf16.mxu0 %v7205
    %7822 = vmatpush2.bf16.msra.mxu0 %v7204
    %7823 = vmatprep.subr.bf16.mxu0 %v7203
    %7824 = vmatpush2.bf16.msra.mxu0 %v7202
    %7825 = vmatprep.subr.bf16.mxu0 %v7201
    %7826 = vmatpush2.bf16.msra.mxu0 %v7200
    %7827 = vmatprep.subr.bf16.mxu0 %v7199
    %7828 = vmatpush2.bf16.msra.mxu0 %v7198
    %7829 = vmatprep.subr.bf16.mxu0 %v7197
    %7830 = vmatpush2.bf16.msra.mxu0 %v7196
    %7831 = vmatprep.subr.bf16.mxu0 %v7195
    %7832 = vmatpush2.bf16.msra.mxu0 %v7194
    %7833 = vmatprep.subr.bf16.mxu0 %v7193
    %7834 = vmatpush2.bf16.msra.mxu0 %v7192
    %7835 = vmatprep.subr.bf16.mxu0 %v7191
    %7836 = vmatpush2.bf16.msra.mxu0 %v7190
    %7837 = vmatprep.mubr.bf16.mxu0 %v3656
    %7838 = vmatmul.mubr.bf16.gmra.mxu0 %v3129
    %v7839 = vpop.f32.mrf.mxu0
    %v7840 = vadd.f32 %v7727, %v7839
    %v7841 = vpop.f32.mrf.mxu0
    %v7842 = vadd.f32 %v7729, %v7841
    %v7843 = vpop.f32.mrf.mxu0
    %v7844 = vadd.f32 %v7731, %v7843
    %v7845 = vpop.f32.mrf.mxu0
    %v7846 = vadd.f32 %v7733, %v7845
    %7847 = vmatprep.mubr.bf16.mxu0 %v3657
    %7848 = vmatmul.mubr.bf16.gmra.mxu0 %v3130
    %v7849 = vpop.f32.mrf.mxu0
    %v7850 = vadd.f32 %v7737, %v7849
    %v7851 = vpop.f32.mrf.mxu0
    %v7852 = vadd.f32 %v7739, %v7851
    %v7853 = vpop.f32.mrf.mxu0
    %v7854 = vadd.f32 %v7741, %v7853
    %v7855 = vpop.f32.mrf.mxu0
    %v7856 = vadd.f32 %v7743, %v7855
    %7857 = vmatprep.mubr.bf16.mxu0 %v3658
    %7858 = vmatmul.mubr.bf16.gmra.mxu0 %v3131
    %v7859 = vpop.f32.mrf.mxu0
    %v7860 = vadd.f32 %v7747, %v7859
    %v7861 = vpop.f32.mrf.mxu0
    %v7862 = vadd.f32 %v7749, %v7861
    %v7863 = vpop.f32.mrf.mxu0
    %v7864 = vadd.f32 %v7751, %v7863
    %v7865 = vpop.f32.mrf.mxu0
    %v7866 = vadd.f32 %v7753, %v7865
    %7867 = vmatprep.mubr.bf16.mxu0 %v3659
    %7868 = vmatmul.mubr.bf16.gmra.mxu0 %v3132
    %v7869 = vpop.f32.mrf.mxu0
    %v7870 = vadd.f32 %v7757, %v7869
    %v7871 = vpop.f32.mrf.mxu0
    %v7872 = vadd.f32 %v7759, %v7871
    %v7873 = vpop.f32.mrf.mxu0
    %v7874 = vadd.f32 %v7761, %v7873
    %v7875 = vpop.f32.mrf.mxu0
    %v7876 = vadd.f32 %v7763, %v7875
    %7877 = vmatprep.mubr.bf16.mxu0 %v4183
    %7878 = vmatmul.mubr.bf16.gmra.mxu0 %v3656
    %v7879 = vpop.f32.mrf.mxu0
    %v7880 = vadd.f32 %v7767, %v7879
    %v7881 = vpop.f32.mrf.mxu0
    %v7882 = vadd.f32 %v7769, %v7881
    %v7883 = vpop.f32.mrf.mxu0
    %v7884 = vadd.f32 %v7771, %v7883
    %v7885 = vpop.f32.mrf.mxu0
    %v7886 = vadd.f32 %v7773, %v7885
    %7887 = vmatprep.mubr.bf16.mxu0 %v4184
    %7888 = vmatmul.mubr.bf16.gmra.mxu0 %v3657
    %v7889 = vpop.f32.mrf.mxu0
    %v7890 = vadd.f32 %v7777, %v7889
    %v7891 = vpop.f32.mrf.mxu0
    %v7892 = vadd.f32 %v7779, %v7891
    %v7893 = vpop.f32.mrf.mxu0
    %v7894 = vadd.f32 %v7781, %v7893
    %v7895 = vpop.f32.mrf.mxu0
    %v7896 = vadd.f32 %v7783, %v7895
    %7897 = vmatprep.mubr.bf16.mxu0 %v4185
    %7898 = vmatmul.mubr.bf16.gmra.mxu0 %v3658
    %v7899 = vpop.f32.mrf.mxu0
    %v7900 = vadd.f32 %v7787, %v7899
    %v7901 = vpop.f32.mrf.mxu0
    %v7902 = vadd.f32 %v7789, %v7901
    %v7903 = vpop.f32.mrf.mxu0
    %v7904 = vadd.f32 %v7791, %v7903
    %v7905 = vpop.f32.mrf.mxu0
    %v7906 = vadd.f32 %v7793, %v7905
    %7907 = vmatprep.mubr.bf16.mxu0 %v4186
    %7908 = vmatmul.mubr.bf16.gmra.mxu0 %v3659
    %v7909 = vpop.f32.mrf.mxu0
    %v7910 = vadd.f32 %v7797, %v7909
    %v7911 = vpop.f32.mrf.mxu0
    %v7912 = vadd.f32 %v7799, %v7911
    %v7913 = vpop.f32.mrf.mxu0
    %v7914 = vadd.f32 %v7801, %v7913
    %v7915 = vpop.f32.mrf.mxu0
    %v7916 = vadd.f32 %v7803, %v7915
    %7917 = vdwg.mxu0
    %7918 = vmatprep.subr.bf16.mxu0 %v7221
    %7919 = vmatpush1.bf16.msra.mxu0 %v7220
    %7920 = vmatprep.subr.bf16.mxu0 %v7219
    %7921 = vmatpush1.bf16.msra.mxu0 %v7218
    %7922 = vmatprep.subr.bf16.mxu0 %v7217
    %7923 = vmatpush1.bf16.msra.mxu0 %v7216
    %7924 = vmatprep.subr.bf16.mxu0 %v7215
    %7925 = vmatpush1.bf16.msra.mxu0 %v7214
    %7926 = vmatprep.subr.bf16.mxu0 %v7213
    %7927 = vmatpush1.bf16.msra.mxu0 %v7212
    %7928 = vmatprep.subr.bf16.mxu0 %v7211
    %7929 = vmatpush1.bf16.msra.mxu0 %v7210
    %7930 = vmatprep.subr.bf16.mxu0 %v7209
    %7931 = vmatpush1.bf16.msra.mxu0 %v7208
    %7932 = vmatprep.subr.bf16.mxu0 %v7207
    %7933 = vmatpush1.bf16.msra.mxu0 %v7206
    %7934 = vmatprep.subr.bf16.mxu0 0
    %7935 = vmatpush2.bf16.msra.mxu0 0
    %7936 = vmatprep.subr.bf16.mxu0 0
    %7937 = vmatpush2.bf16.msra.mxu0 0
    %7938 = vmatprep.subr.bf16.mxu0 0
    %7939 = vmatpush2.bf16.msra.mxu0 0
    %7940 = vmatprep.subr.bf16.mxu0 0
    %7941 = vmatpush2.bf16.msra.mxu0 0
    %7942 = vmatprep.subr.bf16.mxu0 0
    %7943 = vmatpush2.bf16.msra.mxu0 0
    %7944 = vmatprep.subr.bf16.mxu0 0
    %7945 = vmatpush2.bf16.msra.mxu0 0
    %7946 = vmatprep.subr.bf16.mxu0 0
    %7947 = vmatpush2.bf16.msra.mxu0 0
    %7948 = vmatprep.subr.bf16.mxu0 0
    %7949 = vmatpush2.bf16.msra.mxu0 0
    %7950 = vmatprep.mubr.bf16.mxu0 0
    %7951 = vmatmul.mubr.bf16.gmra.mxu0 %v4183
    %v7952 = vpop.f32.mrf.mxu0
    %v7953 = vadd.f32 %v7840, %v7952
    %v7954 = vpop.f32.mrf.mxu0
    %v7955 = vadd.f32 %v7842, %v7954
    %v7956 = vpop.f32.mrf.mxu0
    %v7957 = vadd.f32 %v7844, %v7956
    %v7958 = vpop.f32.mrf.mxu0
    %v7959 = vadd.f32 %v7846, %v7958
    %7960 = vmatprep.mubr.bf16.mxu0 0
    %7961 = vmatmul.mubr.bf16.gmra.mxu0 %v4184
    %v7962 = vpop.f32.mrf.mxu0
    %v7963 = vadd.f32 %v7850, %v7962
    %v7964 = vpop.f32.mrf.mxu0
    %v7965 = vadd.f32 %v7852, %v7964
    %v7966 = vpop.f32.mrf.mxu0
    %v7967 = vadd.f32 %v7854, %v7966
    %v7968 = vpop.f32.mrf.mxu0
    %v7969 = vadd.f32 %v7856, %v7968
    %7970 = vmatprep.mubr.bf16.mxu0 0
    %7971 = vmatmul.mubr.bf16.gmra.mxu0 %v4185
    %v7972 = vpop.f32.mrf.mxu0
    %v7973 = vadd.f32 %v7860, %v7972
    %v7974 = vpop.f32.mrf.mxu0
    %v7975 = vadd.f32 %v7862, %v7974
    %v7976 = vpop.f32.mrf.mxu0
    %v7977 = vadd.f32 %v7864, %v7976
    %v7978 = vpop.f32.mrf.mxu0
    %v7979 = vadd.f32 %v7866, %v7978
    %7980 = vmatprep.mubr.bf16.mxu0 0
    %7981 = vmatmul.mubr.bf16.gmra.mxu0 %v4186
    %v7982 = vpop.f32.mrf.mxu0
    %v7983 = vadd.f32 %v7870, %v7982
    %v7984 = vpop.f32.mrf.mxu0
    %v7985 = vadd.f32 %v7872, %v7984
    %v7986 = vpop.f32.mrf.mxu0
    %v7987 = vadd.f32 %v7874, %v7986
    %v7988 = vpop.f32.mrf.mxu0
    %v7989 = vadd.f32 %v7876, %v7988
    %7990 = vmatprep.mubr.bf16.mxu0 0
    %7991 = vmatmul.mubr.bf16.gmra.mxu0 %v4710
    %v7992 = vpop.f32.mrf.mxu0
    %v7993 = vadd.f32 %v7880, %v7992
    %v7994 = vpop.f32.mrf.mxu0
    %v7995 = vadd.f32 %v7882, %v7994
    %v7996 = vpop.f32.mrf.mxu0
    %v7997 = vadd.f32 %v7884, %v7996
    %v7998 = vpop.f32.mrf.mxu0
    %v7999 = vadd.f32 %v7886, %v7998
    %8000 = vmatprep.mubr.bf16.mxu0 0
    %8001 = vmatmul.mubr.bf16.gmra.mxu0 %v4711
    %v8002 = vpop.f32.mrf.mxu0
    %v8003 = vadd.f32 %v7890, %v8002
    %v8004 = vpop.f32.mrf.mxu0
    %v8005 = vadd.f32 %v7892, %v8004
    %v8006 = vpop.f32.mrf.mxu0
    %v8007 = vadd.f32 %v7894, %v8006
    %v8008 = vpop.f32.mrf.mxu0
    %v8009 = vadd.f32 %v7896, %v8008
    %8010 = vmatprep.mubr.bf16.mxu0 0
    %8011 = vmatmul.mubr.bf16.gmra.mxu0 %v4712
    %v8012 = vpop.f32.mrf.mxu0
    %v8013 = vadd.f32 %v7900, %v8012
    %v8014 = vpop.f32.mrf.mxu0
    %v8015 = vadd.f32 %v7902, %v8014
    %v8016 = vpop.f32.mrf.mxu0
    %v8017 = vadd.f32 %v7904, %v8016
    %v8018 = vpop.f32.mrf.mxu0
    %v8019 = vadd.f32 %v7906, %v8018
    %8020 = vmatprep.mubr.bf16.mxu0 0
    %8021 = vmatmul.mubr.bf16.gmra.mxu0 %v4713
    %v8022 = vpop.f32.mrf.mxu0
    %v8023 = vadd.f32 %v7910, %v8022
    %v8024 = vpop.f32.mrf.mxu0
    %v8025 = vadd.f32 %v7912, %v8024
    %v8026 = vpop.f32.mrf.mxu0
    %v8027 = vadd.f32 %v7914, %v8026
    %v8028 = vpop.f32.mrf.mxu0
    %v8029 = vadd.f32 %v7916, %v8028
    %8030 = vdwg.mxu0
    %v8031 = vmax.f32 %v7953, %v7955
    %v8032 = vmax.f32 %v7957, %v7959
    %v8033 = vmax.f32 %v7963, %v7965
    %v8034 = vmax.f32 %v7967, %v7969
    %v8035 = vmax.f32 %v7973, %v7975
    %v8036 = vmax.f32 %v7977, %v7979
    %v8037 = vmax.f32 %v7983, %v7985
    %v8038 = vmax.f32 %v7987, %v7989
    %v8039 = vmax.f32 %v7993, %v7995
    %v8040 = vmax.f32 %v7997, %v7999
    %v8041 = vmax.f32 %v8003, %v8005
    %v8042 = vmax.f32 %v8007, %v8009
    %v8043 = vmax.f32 %v8013, %v8015
    %v8044 = vmax.f32 %v8017, %v8019
    %v8045 = vmax.f32 %v8023, %v8025
    %v8046 = vmax.f32 %v8027, %v8029
    %v8047 = vmax.f32 %v8031, %v8039
    %v8048 = vmax.f32 %v8032, %v8040
    %v8049 = vmax.f32 %v8033, %v8041
    %v8050 = vmax.f32 %v8034, %v8042
    %v8051 = vmax.f32 %v8035, %v8043
    %v8052 = vmax.f32 %v8036, %v8044
    %v8053 = vmax.f32 %v8037, %v8045
    %v8054 = vmax.f32 %v8038, %v8046
    %v8055 = vadd.f32 %v8047, %v7670
    %v8056 = vadd.f32 %v8048, %v7670
    %v8057 = vadd.f32 %v8049, %v7670
    %v8058 = vadd.f32 %v8050, %v7670
    %v8059 = vadd.f32 %v8051, %v7670
    %v8060 = vadd.f32 %v8052, %v7670
    %v8061 = vadd.f32 %v8053, %v7670
    %v8062 = vadd.f32 %v8054, %v7670
    %v8063 = vmax.f32 %v8055, 0.0
    %v8064 = vmax.f32 %v8056, 0.0
    %v8065 = vmax.f32 %v8057, 0.0
    %v8066 = vmax.f32 %v8058, 0.0
    %v8067 = vmax.f32 %v8059, 0.0
    %v8068 = vmax.f32 %v8060, 0.0
    %v8069 = vmax.f32 %v8061, 0.0
    %v8070 = vmax.f32 %v8062, 0.0
    %v8071 = vpack.c.bf16 %v8064, %v8063
    %v8072 = vpack.c.bf16 %v8066, %v8065
    %v8073 = vpack.c.bf16 %v8068, %v8067
    %v8074 = vpack.c.bf16 %v8070, %v8069
    %8075 = vmatprep.subr.bf16.mxu0 %v7157
    %8076 = vmatpush1.bf16.msra.mxu0 %v7156
    %8077 = vmatprep.subr.bf16.mxu0 %v7155
    %8078 = vmatpush1.bf16.msra.mxu0 %v7154
    %8079 = vmatprep.subr.bf16.mxu0 %v7153
    %8080 = vmatpush1.bf16.msra.mxu0 %v7152
    %8081 = vmatprep.subr.bf16.mxu0 %v7151
    %8082 = vmatpush1.bf16.msra.mxu0 %v7150
    %8083 = vmatprep.subr.bf16.mxu0 %v7149
    %8084 = vmatpush1.bf16.msra.mxu0 %v7148
    %8085 = vmatprep.subr.bf16.mxu0 %v7147
    %8086 = vmatpush1.bf16.msra.mxu0 %v7146
    %8087 = vmatprep.subr.bf16.mxu0 %v7145
    %8088 = vmatpush1.bf16.msra.mxu0 %v7144
    %8089 = vmatprep.subr.bf16.mxu0 %v7143
    %8090 = vmatpush1.bf16.msra.mxu0 %v7142
    %8091 = vmatprep.subr.bf16.mxu0 %v7173
    %8092 = vmatpush2.bf16.msra.mxu0 %v7172
    %8093 = vmatprep.subr.bf16.mxu0 %v7171
    %8094 = vmatpush2.bf16.msra.mxu0 %v7170
    %8095 = vmatprep.subr.bf16.mxu0 %v7169
    %8096 = vmatpush2.bf16.msra.mxu0 %v7168
    %8097 = vmatprep.subr.bf16.mxu0 %v7167
    %8098 = vmatpush2.bf16.msra.mxu0 %v7166
    %8099 = vmatprep.subr.bf16.mxu0 %v7165
    %8100 = vmatpush2.bf16.msra.mxu0 %v7164
    %8101 = vmatprep.subr.bf16.mxu0 %v7163
    %8102 = vmatpush2.bf16.msra.mxu0 %v7162
    %8103 = vmatprep.subr.bf16.mxu0 %v7161
    %8104 = vmatpush2.bf16.msra.mxu0 %v7160
    %8105 = vmatprep.subr.bf16.mxu0 %v7159
    %8106 = vmatpush2.bf16.msra.mxu0 %v7158
    %8107 = vmatprep.mubr.bf16.mxu0 %v3656
    %8108 = vmatmul.mubr.bf16.gmra.mxu0 %v3129
    %v8109 = vpop.f32.mrf.mxu0
    %v8110 = vadd.f32 0.0, %v8109
    %v8111 = vpop.f32.mrf.mxu0
    %v8112 = vadd.f32 0.0, %v8111
    %v8113 = vpop.f32.mrf.mxu0
    %v8114 = vadd.f32 0.0, %v8113
    %v8115 = vpop.f32.mrf.mxu0
    %v8116 = vadd.f32 0.0, %v8115
    %8117 = vmatprep.mubr.bf16.mxu0 %v3657
    %8118 = vmatmul.mubr.bf16.gmra.mxu0 %v3130
    %v8119 = vpop.f32.mrf.mxu0
    %v8120 = vadd.f32 0.0, %v8119
    %v8121 = vpop.f32.mrf.mxu0
    %v8122 = vadd.f32 0.0, %v8121
    %v8123 = vpop.f32.mrf.mxu0
    %v8124 = vadd.f32 0.0, %v8123
    %v8125 = vpop.f32.mrf.mxu0
    %v8126 = vadd.f32 0.0, %v8125
    %8127 = vmatprep.mubr.bf16.mxu0 %v3658
    %8128 = vmatmul.mubr.bf16.gmra.mxu0 %v3131
    %v8129 = vpop.f32.mrf.mxu0
    %v8130 = vadd.f32 0.0, %v8129
    %v8131 = vpop.f32.mrf.mxu0
    %v8132 = vadd.f32 0.0, %v8131
    %v8133 = vpop.f32.mrf.mxu0
    %v8134 = vadd.f32 0.0, %v8133
    %v8135 = vpop.f32.mrf.mxu0
    %v8136 = vadd.f32 0.0, %v8135
    %8137 = vmatprep.mubr.bf16.mxu0 %v3659
    %8138 = vmatmul.mubr.bf16.gmra.mxu0 %v3132
    %v8139 = vpop.f32.mrf.mxu0
    %v8140 = vadd.f32 0.0, %v8139
    %v8141 = vpop.f32.mrf.mxu0
    %v8142 = vadd.f32 0.0, %v8141
    %v8143 = vpop.f32.mrf.mxu0
    %v8144 = vadd.f32 0.0, %v8143
    %v8145 = vpop.f32.mrf.mxu0
    %v8146 = vadd.f32 0.0, %v8145
    %8147 = vmatprep.mubr.bf16.mxu0 %v4183
    %8148 = vmatmul.mubr.bf16.gmra.mxu0 %v3656
    %v8149 = vpop.f32.mrf.mxu0
    %v8150 = vadd.f32 0.0, %v8149
    %v8151 = vpop.f32.mrf.mxu0
    %v8152 = vadd.f32 0.0, %v8151
    %v8153 = vpop.f32.mrf.mxu0
    %v8154 = vadd.f32 0.0, %v8153
    %v8155 = vpop.f32.mrf.mxu0
    %v8156 = vadd.f32 0.0, %v8155
    %8157 = vmatprep.mubr.bf16.mxu0 %v4184
    %8158 = vmatmul.mubr.bf16.gmra.mxu0 %v3657
    %v8159 = vpop.f32.mrf.mxu0
    %v8160 = vadd.f32 0.0, %v8159
    %v8161 = vpop.f32.mrf.mxu0
    %v8162 = vadd.f32 0.0, %v8161
    %v8163 = vpop.f32.mrf.mxu0
    %v8164 = vadd.f32 0.0, %v8163
    %v8165 = vpop.f32.mrf.mxu0
    %v8166 = vadd.f32 0.0, %v8165
    %8167 = vmatprep.mubr.bf16.mxu0 %v4185
    %8168 = vmatmul.mubr.bf16.gmra.mxu0 %v3658
    %v8169 = vpop.f32.mrf.mxu0
    %v8170 = vadd.f32 0.0, %v8169
    %v8171 = vpop.f32.mrf.mxu0
    %v8172 = vadd.f32 0.0, %v8171
    %v8173 = vpop.f32.mrf.mxu0
    %v8174 = vadd.f32 0.0, %v8173
    %v8175 = vpop.f32.mrf.mxu0
    %v8176 = vadd.f32 0.0, %v8175
    %8177 = vmatprep.mubr.bf16.mxu0 %v4186
    %8178 = vmatmul.mubr.bf16.gmra.mxu0 %v3659
    %v8179 = vpop.f32.mrf.mxu0
    %v8180 = vadd.f32 0.0, %v8179
    %v8181 = vpop.f32.mrf.mxu0
    %v8182 = vadd.f32 0.0, %v8181
    %v8183 = vpop.f32.mrf.mxu0
    %v8184 = vadd.f32 0.0, %v8183
    %v8185 = vpop.f32.mrf.mxu0
    %v8186 = vadd.f32 0.0, %v8185
    %8187 = vdwg.mxu0
    %8188 = vmatprep.subr.bf16.mxu0 %v7189
    %8189 = vmatpush1.bf16.msra.mxu0 %v7188
    %8190 = vmatprep.subr.bf16.mxu0 %v7187
    %8191 = vmatpush1.bf16.msra.mxu0 %v7186
    %8192 = vmatprep.subr.bf16.mxu0 %v7185
    %8193 = vmatpush1.bf16.msra.mxu0 %v7184
    %8194 = vmatprep.subr.bf16.mxu0 %v7183
    %8195 = vmatpush1.bf16.msra.mxu0 %v7182
    %8196 = vmatprep.subr.bf16.mxu0 %v7181
    %8197 = vmatpush1.bf16.msra.mxu0 %v7180
    %8198 = vmatprep.subr.bf16.mxu0 %v7179
    %8199 = vmatpush1.bf16.msra.mxu0 %v7178
    %8200 = vmatprep.subr.bf16.mxu0 %v7177
    %8201 = vmatpush1.bf16.msra.mxu0 %v7176
    %8202 = vmatprep.subr.bf16.mxu0 %v7175
    %8203 = vmatpush1.bf16.msra.mxu0 %v7174
    %8204 = vmatprep.subr.bf16.mxu0 %v7205
    %8205 = vmatpush2.bf16.msra.mxu0 %v7204
    %8206 = vmatprep.subr.bf16.mxu0 %v7203
    %8207 = vmatpush2.bf16.msra.mxu0 %v7202
    %8208 = vmatprep.subr.bf16.mxu0 %v7201
    %8209 = vmatpush2.bf16.msra.mxu0 %v7200
    %8210 = vmatprep.subr.bf16.mxu0 %v7199
    %8211 = vmatpush2.bf16.msra.mxu0 %v7198
    %8212 = vmatprep.subr.bf16.mxu0 %v7197
    %8213 = vmatpush2.bf16.msra.mxu0 %v7196
    %8214 = vmatprep.subr.bf16.mxu0 %v7195
    %8215 = vmatpush2.bf16.msra.mxu0 %v7194
    %8216 = vmatprep.subr.bf16.mxu0 %v7193
    %8217 = vmatpush2.bf16.msra.mxu0 %v7192
    %8218 = vmatprep.subr.bf16.mxu0 %v7191
    %8219 = vmatpush2.bf16.msra.mxu0 %v7190
    %8220 = vmatprep.mubr.bf16.mxu0 %v4710
    %8221 = vmatmul.mubr.bf16.gmra.mxu0 %v4183
    %v8222 = vpop.f32.mrf.mxu0
    %v8223 = vadd.f32 %v8110, %v8222
    %v8224 = vpop.f32.mrf.mxu0
    %v8225 = vadd.f32 %v8112, %v8224
    %v8226 = vpop.f32.mrf.mxu0
    %v8227 = vadd.f32 %v8114, %v8226
    %v8228 = vpop.f32.mrf.mxu0
    %v8229 = vadd.f32 %v8116, %v8228
    %8230 = vmatprep.mubr.bf16.mxu0 %v4711
    %8231 = vmatmul.mubr.bf16.gmra.mxu0 %v4184
    %v8232 = vpop.f32.mrf.mxu0
    %v8233 = vadd.f32 %v8120, %v8232
    %v8234 = vpop.f32.mrf.mxu0
    %v8235 = vadd.f32 %v8122, %v8234
    %v8236 = vpop.f32.mrf.mxu0
    %v8237 = vadd.f32 %v8124, %v8236
    %v8238 = vpop.f32.mrf.mxu0
    %v8239 = vadd.f32 %v8126, %v8238
    %8240 = vmatprep.mubr.bf16.mxu0 %v4712
    %8241 = vmatmul.mubr.bf16.gmra.mxu0 %v4185
    %v8242 = vpop.f32.mrf.mxu0
    %v8243 = vadd.f32 %v8130, %v8242
    %v8244 = vpop.f32.mrf.mxu0
    %v8245 = vadd.f32 %v8132, %v8244
    %v8246 = vpop.f32.mrf.mxu0
    %v8247 = vadd.f32 %v8134, %v8246
    %v8248 = vpop.f32.mrf.mxu0
    %v8249 = vadd.f32 %v8136, %v8248
    %8250 = vmatprep.mubr.bf16.mxu0 %v4713
    %8251 = vmatmul.mubr.bf16.gmra.mxu0 %v4186
    %v8252 = vpop.f32.mrf.mxu0
    %v8253 = vadd.f32 %v8140, %v8252
    %v8254 = vpop.f32.mrf.mxu0
    %v8255 = vadd.f32 %v8142, %v8254
    %v8256 = vpop.f32.mrf.mxu0
    %v8257 = vadd.f32 %v8144, %v8256
    %v8258 = vpop.f32.mrf.mxu0
    %v8259 = vadd.f32 %v8146, %v8258
    %8260 = vmatprep.mubr.bf16.mxu0 %v5237
    %8261 = vmatmul.mubr.bf16.gmra.mxu0 %v4710
    %v8262 = vpop.f32.mrf.mxu0
    %v8263 = vadd.f32 %v8150, %v8262
    %v8264 = vpop.f32.mrf.mxu0
    %v8265 = vadd.f32 %v8152, %v8264
    %v8266 = vpop.f32.mrf.mxu0
    %v8267 = vadd.f32 %v8154, %v8266
    %v8268 = vpop.f32.mrf.mxu0
    %v8269 = vadd.f32 %v8156, %v8268
    %8270 = vmatprep.mubr.bf16.mxu0 %v5238
    %8271 = vmatmul.mubr.bf16.gmra.mxu0 %v4711
    %v8272 = vpop.f32.mrf.mxu0
    %v8273 = vadd.f32 %v8160, %v8272
    %v8274 = vpop.f32.mrf.mxu0
    %v8275 = vadd.f32 %v8162, %v8274
    %v8276 = vpop.f32.mrf.mxu0
    %v8277 = vadd.f32 %v8164, %v8276
    %v8278 = vpop.f32.mrf.mxu0
    %v8279 = vadd.f32 %v8166, %v8278
    %8280 = vmatprep.mubr.bf16.mxu0 %v5239
    %8281 = vmatmul.mubr.bf16.gmra.mxu0 %v4712
    %v8282 = vpop.f32.mrf.mxu0
    %v8283 = vadd.f32 %v8170, %v8282
    %v8284 = vpop.f32.mrf.mxu0
    %v8285 = vadd.f32 %v8172, %v8284
    %v8286 = vpop.f32.mrf.mxu0
    %v8287 = vadd.f32 %v8174, %v8286
    %v8288 = vpop.f32.mrf.mxu0
    %v8289 = vadd.f32 %v8176, %v8288
    %8290 = vmatprep.mubr.bf16.mxu0 %v5240
    %8291 = vmatmul.mubr.bf16.gmra.mxu0 %v4713
    %v8292 = vpop.f32.mrf.mxu0
    %v8293 = vadd.f32 %v8180, %v8292
    %v8294 = vpop.f32.mrf.mxu0
    %v8295 = vadd.f32 %v8182, %v8294
    %v8296 = vpop.f32.mrf.mxu0
    %v8297 = vadd.f32 %v8184, %v8296
    %v8298 = vpop.f32.mrf.mxu0
    %v8299 = vadd.f32 %v8186, %v8298
    %8300 = vdwg.mxu0
    %8301 = vmatprep.subr.bf16.mxu0 %v7221
    %8302 = vmatpush1.bf16.msra.mxu0 %v7220
    %8303 = vmatprep.subr.bf16.mxu0 %v7219
    %8304 = vmatpush1.bf16.msra.mxu0 %v7218
    %8305 = vmatprep.subr.bf16.mxu0 %v7217
    %8306 = vmatpush1.bf16.msra.mxu0 %v7216
    %8307 = vmatprep.subr.bf16.mxu0 %v7215
    %8308 = vmatpush1.bf16.msra.mxu0 %v7214
    %8309 = vmatprep.subr.bf16.mxu0 %v7213
    %8310 = vmatpush1.bf16.msra.mxu0 %v7212
    %8311 = vmatprep.subr.bf16.mxu0 %v7211
    %8312 = vmatpush1.bf16.msra.mxu0 %v7210
    %8313 = vmatprep.subr.bf16.mxu0 %v7209
    %8314 = vmatpush1.bf16.msra.mxu0 %v7208
    %8315 = vmatprep.subr.bf16.mxu0 %v7207
    %8316 = vmatpush1.bf16.msra.mxu0 %v7206
    %8317 = vmatprep.subr.bf16.mxu0 0
    %8318 = vmatpush2.bf16.msra.mxu0 0
    %8319 = vmatprep.subr.bf16.mxu0 0
    %8320 = vmatpush2.bf16.msra.mxu0 0
    %8321 = vmatprep.subr.bf16.mxu0 0
    %8322 = vmatpush2.bf16.msra.mxu0 0
    %8323 = vmatprep.subr.bf16.mxu0 0
    %8324 = vmatpush2.bf16.msra.mxu0 0
    %8325 = vmatprep.subr.bf16.mxu0 0
    %8326 = vmatpush2.bf16.msra.mxu0 0
    %8327 = vmatprep.subr.bf16.mxu0 0
    %8328 = vmatpush2.bf16.msra.mxu0 0
    %8329 = vmatprep.subr.bf16.mxu0 0
    %8330 = vmatpush2.bf16.msra.mxu0 0
    %8331 = vmatprep.subr.bf16.mxu0 0
    %8332 = vmatpush2.bf16.msra.mxu0 0
    %8333 = vmatprep.mubr.bf16.mxu0 0
    %8334 = vmatmul.mubr.bf16.gmra.mxu0 %v5237
    %v8335 = vpop.f32.mrf.mxu0
    %v8336 = vadd.f32 %v8223, %v8335
    %v8337 = vpop.f32.mrf.mxu0
    %v8338 = vadd.f32 %v8225, %v8337
    %v8339 = vpop.f32.mrf.mxu0
    %v8340 = vadd.f32 %v8227, %v8339
    %v8341 = vpop.f32.mrf.mxu0
    %v8342 = vadd.f32 %v8229, %v8341
    %8343 = vmatprep.mubr.bf16.mxu0 0
    %8344 = vmatmul.mubr.bf16.gmra.mxu0 %v5238
    %v8345 = vpop.f32.mrf.mxu0
    %v8346 = vadd.f32 %v8233, %v8345
    %v8347 = vpop.f32.mrf.mxu0
    %v8348 = vadd.f32 %v8235, %v8347
    %v8349 = vpop.f32.mrf.mxu0
    %v8350 = vadd.f32 %v8237, %v8349
    %v8351 = vpop.f32.mrf.mxu0
    %v8352 = vadd.f32 %v8239, %v8351
    %8353 = vmatprep.mubr.bf16.mxu0 0
    %8354 = vmatmul.mubr.bf16.gmra.mxu0 %v5239
    %v8355 = vpop.f32.mrf.mxu0
    %v8356 = vadd.f32 %v8243, %v8355
    %v8357 = vpop.f32.mrf.mxu0
    %v8358 = vadd.f32 %v8245, %v8357
    %v8359 = vpop.f32.mrf.mxu0
    %v8360 = vadd.f32 %v8247, %v8359
    %v8361 = vpop.f32.mrf.mxu0
    %v8362 = vadd.f32 %v8249, %v8361
    %8363 = vmatprep.mubr.bf16.mxu0 0
    %8364 = vmatmul.mubr.bf16.gmra.mxu0 %v5240
    %v8365 = vpop.f32.mrf.mxu0
    %v8366 = vadd.f32 %v8253, %v8365
    %v8367 = vpop.f32.mrf.mxu0
    %v8368 = vadd.f32 %v8255, %v8367
    %v8369 = vpop.f32.mrf.mxu0
    %v8370 = vadd.f32 %v8257, %v8369
    %v8371 = vpop.f32.mrf.mxu0
    %v8372 = vadd.f32 %v8259, %v8371
    %8373 = vmatprep.mubr.bf16.mxu0 0
    %8374 = vmatmul.mubr.bf16.gmra.mxu0 %v5764
    %v8375 = vpop.f32.mrf.mxu0
    %v8376 = vadd.f32 %v8263, %v8375
    %v8377 = vpop.f32.mrf.mxu0
    %v8378 = vadd.f32 %v8265, %v8377
    %v8379 = vpop.f32.mrf.mxu0
    %v8380 = vadd.f32 %v8267, %v8379
    %v8381 = vpop.f32.mrf.mxu0
    %v8382 = vadd.f32 %v8269, %v8381
    %8383 = vmatprep.mubr.bf16.mxu0 0
    %8384 = vmatmul.mubr.bf16.gmra.mxu0 %v5765
    %v8385 = vpop.f32.mrf.mxu0
    %v8386 = vadd.f32 %v8273, %v8385
    %v8387 = vpop.f32.mrf.mxu0
    %v8388 = vadd.f32 %v8275, %v8387
    %v8389 = vpop.f32.mrf.mxu0
    %v8390 = vadd.f32 %v8277, %v8389
    %v8391 = vpop.f32.mrf.mxu0
    %v8392 = vadd.f32 %v8279, %v8391
    %8393 = vmatprep.mubr.bf16.mxu0 0
    %8394 = vmatmul.mubr.bf16.gmra.mxu0 %v5766
    %v8395 = vpop.f32.mrf.mxu0
    %v8396 = vadd.f32 %v8283, %v8395
    %v8397 = vpop.f32.mrf.mxu0
    %v8398 = vadd.f32 %v8285, %v8397
    %v8399 = vpop.f32.mrf.mxu0
    %v8400 = vadd.f32 %v8287, %v8399
    %v8401 = vpop.f32.mrf.mxu0
    %v8402 = vadd.f32 %v8289, %v8401
    %8403 = vmatprep.mubr.bf16.mxu0 0
    %8404 = vmatmul.mubr.bf16.gmra.mxu0 %v5767
    %v8405 = vpop.f32.mrf.mxu0
    %v8406 = vadd.f32 %v8293, %v8405
    %v8407 = vpop.f32.mrf.mxu0
    %v8408 = vadd.f32 %v8295, %v8407
    %v8409 = vpop.f32.mrf.mxu0
    %v8410 = vadd.f32 %v8297, %v8409
    %v8411 = vpop.f32.mrf.mxu0
    %v8412 = vadd.f32 %v8299, %v8411
    %8413 = vdwg.mxu0
    %v8414 = vmax.f32 %v8336, %v8338
    %v8415 = vmax.f32 %v8340, %v8342
    %v8416 = vmax.f32 %v8346, %v8348
    %v8417 = vmax.f32 %v8350, %v8352
    %v8418 = vmax.f32 %v8356, %v8358
    %v8419 = vmax.f32 %v8360, %v8362
    %v8420 = vmax.f32 %v8366, %v8368
    %v8421 = vmax.f32 %v8370, %v8372
    %v8422 = vmax.f32 %v8376, %v8378
    %v8423 = vmax.f32 %v8380, %v8382
    %v8424 = vmax.f32 %v8386, %v8388
    %v8425 = vmax.f32 %v8390, %v8392
    %v8426 = vmax.f32 %v8396, %v8398
    %v8427 = vmax.f32 %v8400, %v8402
    %v8428 = vmax.f32 %v8406, %v8408
    %v8429 = vmax.f32 %v8410, %v8412
    %v8430 = vmax.f32 %v8414, %v8422
    %v8431 = vmax.f32 %v8415, %v8423
    %v8432 = vmax.f32 %v8416, %v8424
    %v8433 = vmax.f32 %v8417, %v8425
    %v8434 = vmax.f32 %v8418, %v8426
    %v8435 = vmax.f32 %v8419, %v8427
    %v8436 = vmax.f32 %v8420, %v8428
    %v8437 = vmax.f32 %v8421, %v8429
    %v8438 = vadd.f32 %v8430, %v7670
    %v8439 = vadd.f32 %v8431, %v7670
    %v8440 = vadd.f32 %v8432, %v7670
    %v8441 = vadd.f32 %v8433, %v7670
    %v8442 = vadd.f32 %v8434, %v7670
    %v8443 = vadd.f32 %v8435, %v7670
    %v8444 = vadd.f32 %v8436, %v7670
    %v8445 = vadd.f32 %v8437, %v7670
    %v8446 = vmax.f32 %v8438, 0.0
    %v8447 = vmax.f32 %v8439, 0.0
    %v8448 = vmax.f32 %v8440, 0.0
    %v8449 = vmax.f32 %v8441, 0.0
    %v8450 = vmax.f32 %v8442, 0.0
    %v8451 = vmax.f32 %v8443, 0.0
    %v8452 = vmax.f32 %v8444, 0.0
    %v8453 = vmax.f32 %v8445, 0.0
    %v8454 = vpack.c.bf16 %v8447, %v8446
    %v8455 = vpack.c.bf16 %v8449, %v8448
    %v8456 = vpack.c.bf16 %v8451, %v8450
    %v8457 = vpack.c.bf16 %v8453, %v8452
    %8458 = vmatprep.subr.bf16.mxu0 %v7157
    %8459 = vmatpush1.bf16.msra.mxu0 %v7156
    %8460 = vmatprep.subr.bf16.mxu0 %v7155
    %8461 = vmatpush1.bf16.msra.mxu0 %v7154
    %8462 = vmatprep.subr.bf16.mxu0 %v7153
    %8463 = vmatpush1.bf16.msra.mxu0 %v7152
    %8464 = vmatprep.subr.bf16.mxu0 %v7151
    %8465 = vmatpush1.bf16.msra.mxu0 %v7150
    %8466 = vmatprep.subr.bf16.mxu0 %v7149
    %8467 = vmatpush1.bf16.msra.mxu0 %v7148
    %8468 = vmatprep.subr.bf16.mxu0 %v7147
    %8469 = vmatpush1.bf16.msra.mxu0 %v7146
    %8470 = vmatprep.subr.bf16.mxu0 %v7145
    %8471 = vmatpush1.bf16.msra.mxu0 %v7144
    %8472 = vmatprep.subr.bf16.mxu0 %v7143
    %8473 = vmatpush1.bf16.msra.mxu0 %v7142
    %8474 = vmatprep.subr.bf16.mxu0 %v7173
    %8475 = vmatpush2.bf16.msra.mxu0 %v7172
    %8476 = vmatprep.subr.bf16.mxu0 %v7171
    %8477 = vmatpush2.bf16.msra.mxu0 %v7170
    %8478 = vmatprep.subr.bf16.mxu0 %v7169
    %8479 = vmatpush2.bf16.msra.mxu0 %v7168
    %8480 = vmatprep.subr.bf16.mxu0 %v7167
    %8481 = vmatpush2.bf16.msra.mxu0 %v7166
    %8482 = vmatprep.subr.bf16.mxu0 %v7165
    %8483 = vmatpush2.bf16.msra.mxu0 %v7164
    %8484 = vmatprep.subr.bf16.mxu0 %v7163
    %8485 = vmatpush2.bf16.msra.mxu0 %v7162
    %8486 = vmatprep.subr.bf16.mxu0 %v7161
    %8487 = vmatpush2.bf16.msra.mxu0 %v7160
    %8488 = vmatprep.subr.bf16.mxu0 %v7159
    %8489 = vmatpush2.bf16.msra.mxu0 %v7158
    %8490 = vmatprep.mubr.bf16.mxu0 %v4710
    %8491 = vmatmul.mubr.bf16.gmra.mxu0 %v4183
    %v8492 = vpop.f32.mrf.mxu0
    %v8493 = vadd.f32 0.0, %v8492
    %v8494 = vpop.f32.mrf.mxu0
    %v8495 = vadd.f32 0.0, %v8494
    %v8496 = vpop.f32.mrf.mxu0
    %v8497 = vadd.f32 0.0, %v8496
    %v8498 = vpop.f32.mrf.mxu0
    %v8499 = vadd.f32 0.0, %v8498
    %8500 = vmatprep.mubr.bf16.mxu0 %v4711
    %8501 = vmatmul.mubr.bf16.gmra.mxu0 %v4184
    %v8502 = vpop.f32.mrf.mxu0
    %v8503 = vadd.f32 0.0, %v8502
    %v8504 = vpop.f32.mrf.mxu0
    %v8505 = vadd.f32 0.0, %v8504
    %v8506 = vpop.f32.mrf.mxu0
    %v8507 = vadd.f32 0.0, %v8506
    %v8508 = vpop.f32.mrf.mxu0
    %v8509 = vadd.f32 0.0, %v8508
    %8510 = vmatprep.mubr.bf16.mxu0 %v4712
    %8511 = vmatmul.mubr.bf16.gmra.mxu0 %v4185
    %v8512 = vpop.f32.mrf.mxu0
    %v8513 = vadd.f32 0.0, %v8512
    %v8514 = vpop.f32.mrf.mxu0
    %v8515 = vadd.f32 0.0, %v8514
    %v8516 = vpop.f32.mrf.mxu0
    %v8517 = vadd.f32 0.0, %v8516
    %v8518 = vpop.f32.mrf.mxu0
    %v8519 = vadd.f32 0.0, %v8518
    %8520 = vmatprep.mubr.bf16.mxu0 %v4713
    %8521 = vmatmul.mubr.bf16.gmra.mxu0 %v4186
    %v8522 = vpop.f32.mrf.mxu0
    %v8523 = vadd.f32 0.0, %v8522
    %v8524 = vpop.f32.mrf.mxu0
    %v8525 = vadd.f32 0.0, %v8524
    %v8526 = vpop.f32.mrf.mxu0
    %v8527 = vadd.f32 0.0, %v8526
    %v8528 = vpop.f32.mrf.mxu0
    %v8529 = vadd.f32 0.0, %v8528
    %8530 = vmatprep.mubr.bf16.mxu0 %v5237
    %8531 = vmatmul.mubr.bf16.gmra.mxu0 %v4710
    %v8532 = vpop.f32.mrf.mxu0
    %v8533 = vadd.f32 0.0, %v8532
    %v8534 = vpop.f32.mrf.mxu0
    %v8535 = vadd.f32 0.0, %v8534
    %v8536 = vpop.f32.mrf.mxu0
    %v8537 = vadd.f32 0.0, %v8536
    %v8538 = vpop.f32.mrf.mxu0
    %v8539 = vadd.f32 0.0, %v8538
    %8540 = vmatprep.mubr.bf16.mxu0 %v5238
    %8541 = vmatmul.mubr.bf16.gmra.mxu0 %v4711
    %v8542 = vpop.f32.mrf.mxu0
    %v8543 = vadd.f32 0.0, %v8542
    %v8544 = vpop.f32.mrf.mxu0
    %v8545 = vadd.f32 0.0, %v8544
    %v8546 = vpop.f32.mrf.mxu0
    %v8547 = vadd.f32 0.0, %v8546
    %v8548 = vpop.f32.mrf.mxu0
    %v8549 = vadd.f32 0.0, %v8548
    %8550 = vmatprep.mubr.bf16.mxu0 %v5239
    %8551 = vmatmul.mubr.bf16.gmra.mxu0 %v4712
    %v8552 = vpop.f32.mrf.mxu0
    %v8553 = vadd.f32 0.0, %v8552
    %v8554 = vpop.f32.mrf.mxu0
    %v8555 = vadd.f32 0.0, %v8554
    %v8556 = vpop.f32.mrf.mxu0
    %v8557 = vadd.f32 0.0, %v8556
    %v8558 = vpop.f32.mrf.mxu0
    %v8559 = vadd.f32 0.0, %v8558
    %8560 = vmatprep.mubr.bf16.mxu0 %v5240
    %8561 = vmatmul.mubr.bf16.gmra.mxu0 %v4713
    %v8562 = vpop.f32.mrf.mxu0
    %v8563 = vadd.f32 0.0, %v8562
    %v8564 = vpop.f32.mrf.mxu0
    %v8565 = vadd.f32 0.0, %v8564
    %v8566 = vpop.f32.mrf.mxu0
    %v8567 = vadd.f32 0.0, %v8566
    %v8568 = vpop.f32.mrf.mxu0
    %v8569 = vadd.f32 0.0, %v8568
    %8570 = vdwg.mxu0
    %8571 = vmatprep.subr.bf16.mxu0 %v7189
    %8572 = vmatpush1.bf16.msra.mxu0 %v7188
    %8573 = vmatprep.subr.bf16.mxu0 %v7187
    %8574 = vmatpush1.bf16.msra.mxu0 %v7186
    %8575 = vmatprep.subr.bf16.mxu0 %v7185
    %8576 = vmatpush1.bf16.msra.mxu0 %v7184
    %8577 = vmatprep.subr.bf16.mxu0 %v7183
    %8578 = vmatpush1.bf16.msra.mxu0 %v7182
    %8579 = vmatprep.subr.bf16.mxu0 %v7181
    %8580 = vmatpush1.bf16.msra.mxu0 %v7180
    %8581 = vmatprep.subr.bf16.mxu0 %v7179
    %8582 = vmatpush1.bf16.msra.mxu0 %v7178
    %8583 = vmatprep.subr.bf16.mxu0 %v7177
    %8584 = vmatpush1.bf16.msra.mxu0 %v7176
    %8585 = vmatprep.subr.bf16.mxu0 %v7175
    %8586 = vmatpush1.bf16.msra.mxu0 %v7174
    %8587 = vmatprep.subr.bf16.mxu0 %v7205
    %8588 = vmatpush2.bf16.msra.mxu0 %v7204
    %8589 = vmatprep.subr.bf16.mxu0 %v7203
    %8590 = vmatpush2.bf16.msra.mxu0 %v7202
    %8591 = vmatprep.subr.bf16.mxu0 %v7201
    %8592 = vmatpush2.bf16.msra.mxu0 %v7200
    %8593 = vmatprep.subr.bf16.mxu0 %v7199
    %8594 = vmatpush2.bf16.msra.mxu0 %v7198
    %8595 = vmatprep.subr.bf16.mxu0 %v7197
    %8596 = vmatpush2.bf16.msra.mxu0 %v7196
    %8597 = vmatprep.subr.bf16.mxu0 %v7195
    %8598 = vmatpush2.bf16.msra.mxu0 %v7194
    %8599 = vmatprep.subr.bf16.mxu0 %v7193
    %8600 = vmatpush2.bf16.msra.mxu0 %v7192
    %8601 = vmatprep.subr.bf16.mxu0 %v7191
    %8602 = vmatpush2.bf16.msra.mxu0 %v7190
    %8603 = vmatprep.mubr.bf16.mxu0 %v5764
    %8604 = vmatmul.mubr.bf16.gmra.mxu0 %v5237
    %v8605 = vpop.f32.mrf.mxu0
    %v8606 = vadd.f32 %v8493, %v8605
    %v8607 = vpop.f32.mrf.mxu0
    %v8608 = vadd.f32 %v8495, %v8607
    %v8609 = vpop.f32.mrf.mxu0
    %v8610 = vadd.f32 %v8497, %v8609
    %v8611 = vpop.f32.mrf.mxu0
    %v8612 = vadd.f32 %v8499, %v8611
    %8613 = vmatprep.mubr.bf16.mxu0 %v5765
    %8614 = vmatmul.mubr.bf16.gmra.mxu0 %v5238
    %v8615 = vpop.f32.mrf.mxu0
    %v8616 = vadd.f32 %v8503, %v8615
    %v8617 = vpop.f32.mrf.mxu0
    %v8618 = vadd.f32 %v8505, %v8617
    %v8619 = vpop.f32.mrf.mxu0
    %v8620 = vadd.f32 %v8507, %v8619
    %v8621 = vpop.f32.mrf.mxu0
    %v8622 = vadd.f32 %v8509, %v8621
    %8623 = vmatprep.mubr.bf16.mxu0 %v5766
    %8624 = vmatmul.mubr.bf16.gmra.mxu0 %v5239
    %v8625 = vpop.f32.mrf.mxu0
    %v8626 = vadd.f32 %v8513, %v8625
    %v8627 = vpop.f32.mrf.mxu0
    %v8628 = vadd.f32 %v8515, %v8627
    %v8629 = vpop.f32.mrf.mxu0
    %v8630 = vadd.f32 %v8517, %v8629
    %v8631 = vpop.f32.mrf.mxu0
    %v8632 = vadd.f32 %v8519, %v8631
    %8633 = vmatprep.mubr.bf16.mxu0 %v5767
    %8634 = vmatmul.mubr.bf16.gmra.mxu0 %v5240
    %v8635 = vpop.f32.mrf.mxu0
    %v8636 = vadd.f32 %v8523, %v8635
    %v8637 = vpop.f32.mrf.mxu0
    %v8638 = vadd.f32 %v8525, %v8637
    %v8639 = vpop.f32.mrf.mxu0
    %v8640 = vadd.f32 %v8527, %v8639
    %v8641 = vpop.f32.mrf.mxu0
    %v8642 = vadd.f32 %v8529, %v8641
    %8643 = vmatprep.mubr.bf16.mxu0 %v6291
    %8644 = vmatmul.mubr.bf16.gmra.mxu0 %v5764
    %v8645 = vpop.f32.mrf.mxu0
    %v8646 = vadd.f32 %v8533, %v8645
    %v8647 = vpop.f32.mrf.mxu0
    %v8648 = vadd.f32 %v8535, %v8647
    %v8649 = vpop.f32.mrf.mxu0
    %v8650 = vadd.f32 %v8537, %v8649
    %v8651 = vpop.f32.mrf.mxu0
    %v8652 = vadd.f32 %v8539, %v8651
    %8653 = vmatprep.mubr.bf16.mxu0 %v6292
    %8654 = vmatmul.mubr.bf16.gmra.mxu0 %v5765
    %v8655 = vpop.f32.mrf.mxu0
    %v8656 = vadd.f32 %v8543, %v8655
    %v8657 = vpop.f32.mrf.mxu0
    %v8658 = vadd.f32 %v8545, %v8657
    %v8659 = vpop.f32.mrf.mxu0
    %v8660 = vadd.f32 %v8547, %v8659
    %v8661 = vpop.f32.mrf.mxu0
    %v8662 = vadd.f32 %v8549, %v8661
    %8663 = vmatprep.mubr.bf16.mxu0 %v6293
    %8664 = vmatmul.mubr.bf16.gmra.mxu0 %v5766
    %v8665 = vpop.f32.mrf.mxu0
    %v8666 = vadd.f32 %v8553, %v8665
    %v8667 = vpop.f32.mrf.mxu0
    %v8668 = vadd.f32 %v8555, %v8667
    %v8669 = vpop.f32.mrf.mxu0
    %v8670 = vadd.f32 %v8557, %v8669
    %v8671 = vpop.f32.mrf.mxu0
    %v8672 = vadd.f32 %v8559, %v8671
    %8673 = vmatprep.mubr.bf16.mxu0 %v6294
    %8674 = vmatmul.mubr.bf16.gmra.mxu0 %v5767
    %v8675 = vpop.f32.mrf.mxu0
    %v8676 = vadd.f32 %v8563, %v8675
    %v8677 = vpop.f32.mrf.mxu0
    %v8678 = vadd.f32 %v8565, %v8677
    %v8679 = vpop.f32.mrf.mxu0
    %v8680 = vadd.f32 %v8567, %v8679
    %v8681 = vpop.f32.mrf.mxu0
    %v8682 = vadd.f32 %v8569, %v8681
    %8683 = vdwg.mxu0
    %8684 = vmatprep.subr.bf16.mxu0 %v7221
    %8685 = vmatpush1.bf16.msra.mxu0 %v7220
    %8686 = vmatprep.subr.bf16.mxu0 %v7219
    %8687 = vmatpush1.bf16.msra.mxu0 %v7218
    %8688 = vmatprep.subr.bf16.mxu0 %v7217
    %8689 = vmatpush1.bf16.msra.mxu0 %v7216
    %8690 = vmatprep.subr.bf16.mxu0 %v7215
    %8691 = vmatpush1.bf16.msra.mxu0 %v7214
    %8692 = vmatprep.subr.bf16.mxu0 %v7213
    %8693 = vmatpush1.bf16.msra.mxu0 %v7212
    %8694 = vmatprep.subr.bf16.mxu0 %v7211
    %8695 = vmatpush1.bf16.msra.mxu0 %v7210
    %8696 = vmatprep.subr.bf16.mxu0 %v7209
    %8697 = vmatpush1.bf16.msra.mxu0 %v7208
    %8698 = vmatprep.subr.bf16.mxu0 %v7207
    %8699 = vmatpush1.bf16.msra.mxu0 %v7206
    %8700 = vmatprep.subr.bf16.mxu0 0
    %8701 = vmatpush2.bf16.msra.mxu0 0
    %8702 = vmatprep.subr.bf16.mxu0 0
    %8703 = vmatpush2.bf16.msra.mxu0 0
    %8704 = vmatprep.subr.bf16.mxu0 0
    %8705 = vmatpush2.bf16.msra.mxu0 0
    %8706 = vmatprep.subr.bf16.mxu0 0
    %8707 = vmatpush2.bf16.msra.mxu0 0
    %8708 = vmatprep.subr.bf16.mxu0 0
    %8709 = vmatpush2.bf16.msra.mxu0 0
    %8710 = vmatprep.subr.bf16.mxu0 0
    %8711 = vmatpush2.bf16.msra.mxu0 0
    %8712 = vmatprep.subr.bf16.mxu0 0
    %8713 = vmatpush2.bf16.msra.mxu0 0
    %8714 = vmatprep.subr.bf16.mxu0 0
    %8715 = vmatpush2.bf16.msra.mxu0 0
    %8716 = vmatprep.mubr.bf16.mxu0 0
    %8717 = vmatmul.mubr.bf16.gmra.mxu0 %v6291
    %v8718 = vpop.f32.mrf.mxu0
    %v8719 = vadd.f32 %v8606, %v8718
    %v8720 = vpop.f32.mrf.mxu0
    %v8721 = vadd.f32 %v8608, %v8720
    %v8722 = vpop.f32.mrf.mxu0
    %v8723 = vadd.f32 %v8610, %v8722
    %v8724 = vpop.f32.mrf.mxu0
    %v8725 = vadd.f32 %v8612, %v8724
    %8726 = vmatprep.mubr.bf16.mxu0 0
    %8727 = vmatmul.mubr.bf16.gmra.mxu0 %v6292
    %v8728 = vpop.f32.mrf.mxu0
    %v8729 = vadd.f32 %v8616, %v8728
    %v8730 = vpop.f32.mrf.mxu0
    %v8731 = vadd.f32 %v8618, %v8730
    %v8732 = vpop.f32.mrf.mxu0
    %v8733 = vadd.f32 %v8620, %v8732
    %v8734 = vpop.f32.mrf.mxu0
    %v8735 = vadd.f32 %v8622, %v8734
    %8736 = vmatprep.mubr.bf16.mxu0 0
    %8737 = vmatmul.mubr.bf16.gmra.mxu0 %v6293
    %v8738 = vpop.f32.mrf.mxu0
    %v8739 = vadd.f32 %v8626, %v8738
    %v8740 = vpop.f32.mrf.mxu0
    %v8741 = vadd.f32 %v8628, %v8740
    %v8742 = vpop.f32.mrf.mxu0
    %v8743 = vadd.f32 %v8630, %v8742
    %v8744 = vpop.f32.mrf.mxu0
    %v8745 = vadd.f32 %v8632, %v8744
    %8746 = vmatprep.mubr.bf16.mxu0 0
    %8747 = vmatmul.mubr.bf16.gmra.mxu0 %v6294
    %v8748 = vpop.f32.mrf.mxu0
    %v8749 = vadd.f32 %v8636, %v8748
    %v8750 = vpop.f32.mrf.mxu0
    %v8751 = vadd.f32 %v8638, %v8750
    %v8752 = vpop.f32.mrf.mxu0
    %v8753 = vadd.f32 %v8640, %v8752
    %v8754 = vpop.f32.mrf.mxu0
    %v8755 = vadd.f32 %v8642, %v8754
    %8756 = vmatprep.mubr.bf16.mxu0 0
    %8757 = vmatmul.mubr.bf16.gmra.mxu0 %v6818
    %v8758 = vpop.f32.mrf.mxu0
    %v8759 = vadd.f32 %v8646, %v8758
    %v8760 = vpop.f32.mrf.mxu0
    %v8761 = vadd.f32 %v8648, %v8760
    %v8762 = vpop.f32.mrf.mxu0
    %v8763 = vadd.f32 %v8650, %v8762
    %v8764 = vpop.f32.mrf.mxu0
    %v8765 = vadd.f32 %v8652, %v8764
    %8766 = vmatprep.mubr.bf16.mxu0 0
    %8767 = vmatmul.mubr.bf16.gmra.mxu0 %v6819
    %v8768 = vpop.f32.mrf.mxu0
    %v8769 = vadd.f32 %v8656, %v8768
    %v8770 = vpop.f32.mrf.mxu0
    %v8771 = vadd.f32 %v8658, %v8770
    %v8772 = vpop.f32.mrf.mxu0
    %v8773 = vadd.f32 %v8660, %v8772
    %v8774 = vpop.f32.mrf.mxu0
    %v8775 = vadd.f32 %v8662, %v8774
    %8776 = vmatprep.mubr.bf16.mxu0 0
    %8777 = vmatmul.mubr.bf16.gmra.mxu0 %v6820
    %v8778 = vpop.f32.mrf.mxu0
    %v8779 = vadd.f32 %v8666, %v8778
    %v8780 = vpop.f32.mrf.mxu0
    %v8781 = vadd.f32 %v8668, %v8780
    %v8782 = vpop.f32.mrf.mxu0
    %v8783 = vadd.f32 %v8670, %v8782
    %v8784 = vpop.f32.mrf.mxu0
    %v8785 = vadd.f32 %v8672, %v8784
    %8786 = vmatprep.mubr.bf16.mxu0 0
    %8787 = vmatmul.mubr.bf16.gmra.mxu0 %v6821
    %v8788 = vpop.f32.mrf.mxu0
    %v8789 = vadd.f32 %v8676, %v8788
    %v8790 = vpop.f32.mrf.mxu0
    %v8791 = vadd.f32 %v8678, %v8790
    %v8792 = vpop.f32.mrf.mxu0
    %v8793 = vadd.f32 %v8680, %v8792
    %v8794 = vpop.f32.mrf.mxu0
    %v8795 = vadd.f32 %v8682, %v8794
    %8796 = vdwg.mxu0
    %v8797 = vmax.f32 %v8719, %v8721
    %v8798 = vmax.f32 %v8723, %v8725
    %v8799 = vmax.f32 %v8729, %v8731
    %v8800 = vmax.f32 %v8733, %v8735
    %v8801 = vmax.f32 %v8739, %v8741
    %v8802 = vmax.f32 %v8743, %v8745
    %v8803 = vmax.f32 %v8749, %v8751
    %v8804 = vmax.f32 %v8753, %v8755
    %v8805 = vmax.f32 %v8759, %v8761
    %v8806 = vmax.f32 %v8763, %v8765
    %v8807 = vmax.f32 %v8769, %v8771
    %v8808 = vmax.f32 %v8773, %v8775
    %v8809 = vmax.f32 %v8779, %v8781
    %v8810 = vmax.f32 %v8783, %v8785
    %v8811 = vmax.f32 %v8789, %v8791
    %v8812 = vmax.f32 %v8793, %v8795
    %v8813 = vmax.f32 %v8797, %v8805
    %v8814 = vmax.f32 %v8798, %v8806
    %v8815 = vmax.f32 %v8799, %v8807
    %v8816 = vmax.f32 %v8800, %v8808
    %v8817 = vmax.f32 %v8801, %v8809
    %v8818 = vmax.f32 %v8802, %v8810
    %v8819 = vmax.f32 %v8803, %v8811
    %v8820 = vmax.f32 %v8804, %v8812
    %v8821 = vadd.f32 %v8813, %v7670
    %v8822 = vadd.f32 %v8814, %v7670
    %v8823 = vadd.f32 %v8815, %v7670
    %v8824 = vadd.f32 %v8816, %v7670
    %v8825 = vadd.f32 %v8817, %v7670
    %v8826 = vadd.f32 %v8818, %v7670
    %v8827 = vadd.f32 %v8819, %v7670
    %v8828 = vadd.f32 %v8820, %v7670
    %v8829 = vmax.f32 %v8821, 0.0
    %v8830 = vmax.f32 %v8822, 0.0
    %v8831 = vmax.f32 %v8823, 0.0
    %v8832 = vmax.f32 %v8824, 0.0
    %v8833 = vmax.f32 %v8825, 0.0
    %v8834 = vmax.f32 %v8826, 0.0
    %v8835 = vmax.f32 %v8827, 0.0
    %v8836 = vmax.f32 %v8828, 0.0
    %v8837 = vpack.c.bf16 %v8830, %v8829
    %v8838 = vpack.c.bf16 %v8832, %v8831
    %v8839 = vpack.c.bf16 %v8834, %v8833
    %v8840 = vpack.c.bf16 %v8836, %v8835
    %v8841 = vld [vmem:[#allocation2] sm:$0xf]
    %v8842 = vld [vmem:[#allocation2 + $0x4] sm:$0xf]
    %v8843 = vld [vmem:[#allocation2 + $0x8] sm:$0xf]
    %v8844 = vld [vmem:[#allocation2 + $0xc] sm:$0xf]
    %v8845 = vld [vmem:[#allocation2 + $0x10] sm:$0xf]
    %v8846 = vld [vmem:[#allocation2 + $0x14] sm:$0xf]
    %v8847 = vld [vmem:[#allocation2 + $0x18] sm:$0xf]
    %v8848 = vld [vmem:[#allocation2 + $0x1c] sm:$0xf]
    %v8849 = vld [vmem:[#allocation2 + $0x20] sm:$0xf]
    %v8850 = vld [vmem:[#allocation2 + $0x24] sm:$0xf]
    %v8851 = vld [vmem:[#allocation2 + $0x28] sm:$0xf]
    %v8852 = vld [vmem:[#allocation2 + $0x2c] sm:$0xf]
    %v8853 = vld [vmem:[#allocation2 + $0x30] sm:$0xf]
    %v8854 = vld [vmem:[#allocation2 + $0x34] sm:$0xf]
    %v8855 = vld [vmem:[#allocation2 + $0x38] sm:$0xf]
    %v8856 = vld [vmem:[#allocation2 + $0x3c] sm:$0xf]
    %v8857 = vld [vmem:[#allocation2 + $0x40] sm:$0xf]
    %v8858 = vld [vmem:[#allocation2 + $0x44] sm:$0xf]
    %v8859 = vld [vmem:[#allocation2 + $0x48] sm:$0xf]
    %v8860 = vld [vmem:[#allocation2 + $0x4c] sm:$0xf]
    %v8861 = vld [vmem:[#allocation2 + $0x50] sm:$0xf]
    %v8862 = vld [vmem:[#allocation2 + $0x54] sm:$0xf]
    %v8863 = vld [vmem:[#allocation2 + $0x58] sm:$0xf]
    %v8864 = vld [vmem:[#allocation2 + $0x5c] sm:$0xf]
    %v8865 = vld [vmem:[#allocation2 + $0x60] sm:$0xf]
    %v8866 = vld [vmem:[#allocation2 + $0x64] sm:$0xf]
    %v8867 = vld [vmem:[#allocation2 + $0x68] sm:$0xf]
    %v8868 = vld [vmem:[#allocation2 + $0x6c] sm:$0xf]
    %v8869 = vld [vmem:[#allocation2 + $0x70] sm:$0xf]
    %v8870 = vld [vmem:[#allocation2 + $0x74] sm:$0xf]
    %v8871 = vld [vmem:[#allocation2 + $0x78] sm:$0xf]
    %v8872 = vld [vmem:[#allocation2 + $0x7c] sm:$0xf]
    %v8873 = vld [vmem:[#allocation2 + $0x80] sm:$0xf]
    %v8874 = vld [vmem:[#allocation2 + $0x84] sm:$0xf]
    %v8875 = vld [vmem:[#allocation2 + $0x88] sm:$0xf]
    %v8876 = vld [vmem:[#allocation2 + $0x8c] sm:$0xf]
    %v8877 = vld [vmem:[#allocation2 + $0x90] sm:$0xf]
    %v8878 = vld [vmem:[#allocation2 + $0x94] sm:$0xf]
    %v8879 = vld [vmem:[#allocation2 + $0x98] sm:$0xf]
    %v8880 = vld [vmem:[#allocation2 + $0x9c] sm:$0xf]
    %v8881 = vld [vmem:[#allocation2 + $0xa0] sm:$0xf]
    %v8882 = vld [vmem:[#allocation2 + $0xa4] sm:$0xf]
    %v8883 = vld [vmem:[#allocation2 + $0xa8] sm:$0xf]
    %v8884 = vld [vmem:[#allocation2 + $0xac] sm:$0xf]
    %v8885 = vld [vmem:[#allocation2 + $0xb0] sm:$0xf]
    %v8886 = vld [vmem:[#allocation2 + $0xb4] sm:$0xf]
    %v8887 = vld [vmem:[#allocation2 + $0xb8] sm:$0xf]
    %v8888 = vld [vmem:[#allocation2 + $0xbc] sm:$0xf]
    %v8889 = vld [vmem:[#allocation2 + $0xc0] sm:$0xf]
    %v8890 = vld [vmem:[#allocation2 + $0xc4] sm:$0xf]
    %v8891 = vld [vmem:[#allocation2 + $0xc8] sm:$0xf]
    %v8892 = vld [vmem:[#allocation2 + $0xcc] sm:$0xf]
    %v8893 = vld [vmem:[#allocation2 + $0xd0] sm:$0xf]
    %v8894 = vld [vmem:[#allocation2 + $0xd4] sm:$0xf]
    %v8895 = vld [vmem:[#allocation2 + $0xd8] sm:$0xf]
    %v8896 = vld [vmem:[#allocation2 + $0xdc] sm:$0xf]
    %v8897 = vld [vmem:[#allocation2 + $0xe0] sm:$0xf]
    %v8898 = vld [vmem:[#allocation2 + $0xe4] sm:$0xf]
    %v8899 = vld [vmem:[#allocation2 + $0xe8] sm:$0xf]
    %v8900 = vld [vmem:[#allocation2 + $0xec] sm:$0xf]
    %v8901 = vld [vmem:[#allocation2 + $0xf0] sm:$0xf]
    %v8902 = vld [vmem:[#allocation2 + $0xf4] sm:$0xf]
    %v8903 = vld [vmem:[#allocation2 + $0xf8] sm:$0xf]
    %v8904 = vld [vmem:[#allocation2 + $0xfc] sm:$0xf]
    %v8905 = vld [vmem:[%s6] sm:$0x1]
    %v8907 = vlaneseq
    %v8908 = vshrl.u32 %v8907, 7
    %v8909 = vsub.s32 0, %v8908
    %v8910 = vrot.slane %v8905, %v8909
    %v8976 = vunpack.c.l.b16 %v8841
    %v8977 = vunpack.c.l.b16 %v8842
    %v8978 = vunpack.c.l.b16 %v8843
    %v8979 = vunpack.c.l.b16 %v8844
    %v8980 = vunpack.c.l.b16 %v8845
    %v8981 = vunpack.c.l.b16 %v8846
    %v8982 = vunpack.c.l.b16 %v8847
    %v8983 = vunpack.c.l.b16 %v8848
    %v8984 = vunpack.c.l.b16 %v8849
    %v8985 = vunpack.c.l.b16 %v8850
    %v8986 = vunpack.c.l.b16 %v8851
    %v8987 = vunpack.c.l.b16 %v8852
    %v8988 = vunpack.c.l.b16 %v8853
    %v8989 = vunpack.c.l.b16 %v8854
    %v8990 = vunpack.c.l.b16 %v8855
    %v8991 = vunpack.c.l.b16 %v8856
    %v8992 = vunpack.c.l.b16 %v8857
    %v8993 = vunpack.c.l.b16 %v8858
    %v8994 = vunpack.c.l.b16 %v8859
    %v8995 = vunpack.c.l.b16 %v8860
    %v8996 = vunpack.c.l.b16 %v8861
    %v8997 = vunpack.c.l.b16 %v8862
    %v8998 = vunpack.c.l.b16 %v8863
    %v8999 = vunpack.c.l.b16 %v8864
    %v9000 = vunpack.c.l.b16 %v8865
    %v9001 = vunpack.c.l.b16 %v8866
    %v9002 = vunpack.c.l.b16 %v8867
    %v9003 = vunpack.c.l.b16 %v8868
    %v9004 = vunpack.c.l.b16 %v8869
    %v9005 = vunpack.c.l.b16 %v8870
    %v9006 = vunpack.c.l.b16 %v8871
    %v9007 = vunpack.c.l.b16 %v8872
    %v9008 = vunpack.c.l.b16 %v8873
    %v9009 = vunpack.c.l.b16 %v8874
    %v9010 = vunpack.c.l.b16 %v8875
    %v9011 = vunpack.c.l.b16 %v8876
    %v9012 = vunpack.c.l.b16 %v8877
    %v9013 = vunpack.c.l.b16 %v8878
    %v9014 = vunpack.c.l.b16 %v8879
    %v9015 = vunpack.c.l.b16 %v8880
    %v9016 = vunpack.c.l.b16 %v8881
    %v9017 = vunpack.c.l.b16 %v8882
    %v9018 = vunpack.c.l.b16 %v8883
    %v9019 = vunpack.c.l.b16 %v8884
    %v9020 = vunpack.c.l.b16 %v8885
    %v9021 = vunpack.c.l.b16 %v8886
    %v9022 = vunpack.c.l.b16 %v8887
    %v9023 = vunpack.c.l.b16 %v8888
    %v9024 = vunpack.c.l.b16 %v8889
    %v9025 = vunpack.c.l.b16 %v8890
    %v9026 = vunpack.c.l.b16 %v8891
    %v9027 = vunpack.c.l.b16 %v8892
    %v9028 = vunpack.c.l.b16 %v8893
    %v9029 = vunpack.c.l.b16 %v8894
    %v9030 = vunpack.c.l.b16 %v8895
    %v9031 = vunpack.c.l.b16 %v8896
    %v9032 = vunpack.c.l.b16 %v8897
    %v9033 = vunpack.c.l.b16 %v8898
    %v9034 = vunpack.c.l.b16 %v8899
    %v9035 = vunpack.c.l.b16 %v8900
    %v9036 = vunpack.c.l.b16 %v8901
    %v9037 = vunpack.c.l.b16 %v8902
    %v9038 = vunpack.c.l.b16 %v8903
    %v9039 = vunpack.c.l.b16 %v8904
    %v9040 = vpack.c.b16 %v8977, %v8976
    %v9041 = vpack.c.b16 %v8979, %v8978
    %v9042 = vpack.c.b16 %v8981, %v8980
    %v9043 = vpack.c.b16 %v8983, %v8982
    %v9044 = vpack.c.b16 %v8985, %v8984
    %v9045 = vpack.c.b16 %v8987, %v8986
    %v9046 = vpack.c.b16 %v8989, %v8988
    %v9047 = vpack.c.b16 %v8991, %v8990
    %v9048 = vpack.c.b16 %v8993, %v8992
    %v9049 = vpack.c.b16 %v8995, %v8994
    %v9050 = vpack.c.b16 %v8997, %v8996
    %v9051 = vpack.c.b16 %v8999, %v8998
    %v9052 = vpack.c.b16 %v9001, %v9000
    %v9053 = vpack.c.b16 %v9003, %v9002
    %v9054 = vpack.c.b16 %v9005, %v9004
    %v9055 = vpack.c.b16 %v9007, %v9006
    %v9056 = vpack.c.b16 %v9009, %v9008
    %v9057 = vpack.c.b16 %v9011, %v9010
    %v9058 = vpack.c.b16 %v9013, %v9012
    %v9059 = vpack.c.b16 %v9015, %v9014
    %v9060 = vpack.c.b16 %v9017, %v9016
    %v9061 = vpack.c.b16 %v9019, %v9018
    %v9062 = vpack.c.b16 %v9021, %v9020
    %v9063 = vpack.c.b16 %v9023, %v9022
    %v9064 = vpack.c.b16 %v9025, %v9024
    %v9065 = vpack.c.b16 %v9027, %v9026
    %v9066 = vpack.c.b16 %v9029, %v9028
    %v9067 = vpack.c.b16 %v9031, %v9030
    %v9068 = vpack.c.b16 %v9033, %v9032
    %v9069 = vpack.c.b16 %v9035, %v9034
    %v9070 = vpack.c.b16 %v9037, %v9036
    %v9071 = vpack.c.b16 %v9039, %v9038
    %9104 = vmatprep.subr.bf16.mxu0 0
    %9105 = vmatpush1.bf16.msra.mxu0 %v9047
    %9106 = vmatprep.subr.bf16.mxu0 0
    %9107 = vmatpush1.bf16.msra.mxu0 %v9046
    %9108 = vmatprep.subr.bf16.mxu0 0
    %9109 = vmatpush1.bf16.msra.mxu0 %v9045
    %9110 = vmatprep.subr.bf16.mxu0 0
    %9111 = vmatpush1.bf16.msra.mxu0 %v9044
    %9112 = vmatprep.subr.bf16.mxu0 0
    %9113 = vmatpush1.bf16.msra.mxu0 %v9043
    %9114 = vmatprep.subr.bf16.mxu0 0
    %9115 = vmatpush1.bf16.msra.mxu0 %v9042
    %9116 = vmatprep.subr.bf16.mxu0 0
    %9117 = vmatpush1.bf16.msra.mxu0 %v9041
    %9118 = vmatprep.subr.bf16.mxu0 0
    %9119 = vmatpush1.bf16.msra.mxu0 %v9040
    %9120 = vmatprep.subr.bf16.mxu0 0
    %9121 = vmatpush2.bf16.msra.mxu0 %v9055
    %9122 = vmatprep.subr.bf16.mxu0 0
    %9123 = vmatpush2.bf16.msra.mxu0 %v9054
    %9124 = vmatprep.subr.bf16.mxu0 0
    %9125 = vmatpush2.bf16.msra.mxu0 %v9053
    %9126 = vmatprep.subr.bf16.mxu0 0
    %9127 = vmatpush2.bf16.msra.mxu0 %v9052
    %9128 = vmatprep.subr.bf16.mxu0 0
    %9129 = vmatpush2.bf16.msra.mxu0 %v9051
    %9130 = vmatprep.subr.bf16.mxu0 0
    %9131 = vmatpush2.bf16.msra.mxu0 %v9050
    %9132 = vmatprep.subr.bf16.mxu0 0
    %9133 = vmatpush2.bf16.msra.mxu0 %v9049
    %9134 = vmatprep.subr.bf16.mxu0 0
    %9135 = vmatpush2.bf16.msra.mxu0 %v9048
    %9136 = vmatprep.mubr.bf16.mxu0 %v8071
    %9137 = vmatmul.mubr.bf16.gmra.mxu0 %v7688
    %v9138 = vpop.f32.mrf.mxu0
    %v9139 = vadd.f32 %v8910, %v9138
    %v9140 = vpop.f32.mrf.mxu0
    %v9141 = vpop.f32.mrf.mxu0
    %v9142 = vadd.f32 %v8910, %v9141
    %v9143 = vpop.f32.mrf.mxu0
    %9144 = vmatprep.mubr.bf16.mxu0 %v8072
    %9145 = vmatmul.mubr.bf16.gmra.mxu0 %v7689
    %v9146 = vpop.f32.mrf.mxu0
    %v9147 = vadd.f32 %v8910, %v9146
    %v9148 = vpop.f32.mrf.mxu0
    %v9149 = vpop.f32.mrf.mxu0
    %v9150 = vadd.f32 %v8910, %v9149
    %v9151 = vpop.f32.mrf.mxu0
    %9152 = vmatprep.mubr.bf16.mxu0 %v8073
    %9153 = vmatmul.mubr.bf16.gmra.mxu0 %v7690
    %v9154 = vpop.f32.mrf.mxu0
    %v9155 = vadd.f32 %v8910, %v9154
    %v9156 = vpop.f32.mrf.mxu0
    %v9157 = vpop.f32.mrf.mxu0
    %v9158 = vadd.f32 %v8910, %v9157
    %v9159 = vpop.f32.mrf.mxu0
    %9160 = vmatprep.mubr.bf16.mxu0 %v8074
    %9161 = vmatmul.mubr.bf16.gmra.mxu0 %v7691
    %v9162 = vpop.f32.mrf.mxu0
    %v9163 = vadd.f32 %v8910, %v9162
    %v9164 = vpop.f32.mrf.mxu0
    %v9165 = vpop.f32.mrf.mxu0
    %v9166 = vadd.f32 %v8910, %v9165
    %v9167 = vpop.f32.mrf.mxu0
    %9168 = vdwg.mxu0
    %9169 = vmatprep.subr.bf16.mxu0 0
    %9170 = vmatpush1.bf16.msra.mxu0 %v9063
    %9171 = vmatprep.subr.bf16.mxu0 0
    %9172 = vmatpush1.bf16.msra.mxu0 %v9062
    %9173 = vmatprep.subr.bf16.mxu0 0
    %9174 = vmatpush1.bf16.msra.mxu0 %v9061
    %9175 = vmatprep.subr.bf16.mxu0 0
    %9176 = vmatpush1.bf16.msra.mxu0 %v9060
    %9177 = vmatprep.subr.bf16.mxu0 0
    %9178 = vmatpush1.bf16.msra.mxu0 %v9059
    %9179 = vmatprep.subr.bf16.mxu0 0
    %9180 = vmatpush1.bf16.msra.mxu0 %v9058
    %9181 = vmatprep.subr.bf16.mxu0 0
    %9182 = vmatpush1.bf16.msra.mxu0 %v9057
    %9183 = vmatprep.subr.bf16.mxu0 0
    %9184 = vmatpush1.bf16.msra.mxu0 %v9056
    %9185 = vmatprep.subr.bf16.mxu0 0
    %9186 = vmatpush2.bf16.msra.mxu0 %v9071
    %9187 = vmatprep.subr.bf16.mxu0 0
    %9188 = vmatpush2.bf16.msra.mxu0 %v9070
    %9189 = vmatprep.subr.bf16.mxu0 0
    %9190 = vmatpush2.bf16.msra.mxu0 %v9069
    %9191 = vmatprep.subr.bf16.mxu0 0
    %9192 = vmatpush2.bf16.msra.mxu0 %v9068
    %9193 = vmatprep.subr.bf16.mxu0 0
    %9194 = vmatpush2.bf16.msra.mxu0 %v9067
    %9195 = vmatprep.subr.bf16.mxu0 0
    %9196 = vmatpush2.bf16.msra.mxu0 %v9066
    %9197 = vmatprep.subr.bf16.mxu0 0
    %9198 = vmatpush2.bf16.msra.mxu0 %v9065
    %9199 = vmatprep.subr.bf16.mxu0 0
    %9200 = vmatpush2.bf16.msra.mxu0 %v9064
    %9201 = vmatprep.mubr.bf16.mxu0 %v8837
    %9202 = vmatmul.mubr.bf16.gmra.mxu0 %v8454
    %v9203 = vpop.f32.mrf.mxu0
    %v9204 = vadd.f32 %v9139, %v9203
    %v9205 = vpop.f32.mrf.mxu0
    %v9206 = vpop.f32.mrf.mxu0
    %v9207 = vadd.f32 %v9142, %v9206
    %v9208 = vpop.f32.mrf.mxu0
    %9209 = vmatprep.mubr.bf16.mxu0 %v8838
    %9210 = vmatmul.mubr.bf16.gmra.mxu0 %v8455
    %v9211 = vpop.f32.mrf.mxu0
    %v9212 = vadd.f32 %v9147, %v9211
    %v9213 = vpop.f32.mrf.mxu0
    %v9214 = vpop.f32.mrf.mxu0
    %v9215 = vadd.f32 %v9150, %v9214
    %v9216 = vpop.f32.mrf.mxu0
    %9217 = vmatprep.mubr.bf16.mxu0 %v8839
    %9218 = vmatmul.mubr.bf16.gmra.mxu0 %v8456
    %v9219 = vpop.f32.mrf.mxu0
    %v9220 = vadd.f32 %v9155, %v9219
    %v9221 = vpop.f32.mrf.mxu0
    %v9222 = vpop.f32.mrf.mxu0
    %v9223 = vadd.f32 %v9158, %v9222
    %v9224 = vpop.f32.mrf.mxu0
    %9225 = vmatprep.mubr.bf16.mxu0 %v8840
    %9226 = vmatmul.mubr.bf16.gmra.mxu0 %v8457
    %v9227 = vpop.f32.mrf.mxu0
    %v9228 = vadd.f32 %v9163, %v9227
    %v9229 = vpop.f32.mrf.mxu0
    %v9230 = vpop.f32.mrf.mxu0
    %v9231 = vadd.f32 %v9166, %v9230
    %v9232 = vpop.f32.mrf.mxu0
    %9233 = vdwg.mxu0
    %v9234 = vmax.f32 %v9204, 0.0
    %v9235 = vmax.f32 %v9207, 0.0
    %v9236 = vmax.f32 %v9212, 0.0
    %v9237 = vmax.f32 %v9215, 0.0
    %v9238 = vmax.f32 %v9220, 0.0
    %v9239 = vmax.f32 %v9223, 0.0
    %v9240 = vmax.f32 %v9228, 0.0
    %v9241 = vmax.f32 %v9231, 0.0
    %v9242 = vpack.c.bf16 %v9235, %v9234
    %v9243 = vpack.c.bf16 %v9237, %v9236
    %v9244 = vpack.c.bf16 %v9239, %v9238
    %v9245 = vpack.c.bf16 %v9241, %v9240
    %v9246 = vld [vmem:[#allocation4] sm:$0xf]
    %v9247 = vld [vmem:[#allocation4 + $0x4] sm:$0xf]
    %v9248 = vld [vmem:[#allocation4 + $0x8] sm:$0xf]
    %v9249 = vld [vmem:[#allocation4 + $0xc] sm:$0xf]
    %v9250 = vld [vmem:[#allocation4 + $0x10] sm:$0xf]
    %v9251 = vld [vmem:[#allocation4 + $0x14] sm:$0xf]
    %v9252 = vld [vmem:[#allocation4 + $0x18] sm:$0xf]
    %v9253 = vld [vmem:[#allocation4 + $0x1c] sm:$0xf]
    %v9254 = vld [vmem:[#allocation4 + $0x20] sm:$0xf]
    %v9255 = vld [vmem:[#allocation4 + $0x24] sm:$0xf]
    %v9256 = vld [vmem:[#allocation4 + $0x28] sm:$0xf]
    %v9257 = vld [vmem:[#allocation4 + $0x2c] sm:$0xf]
    %v9258 = vld [vmem:[#allocation4 + $0x30] sm:$0xf]
    %v9259 = vld [vmem:[#allocation4 + $0x34] sm:$0xf]
    %v9260 = vld [vmem:[#allocation4 + $0x38] sm:$0xf]
    %v9261 = vld [vmem:[#allocation4 + $0x3c] sm:$0xf]
    %v9262 = vld [vmem:[%s8] sm:$0x1]
    %v9264 = vlaneseq
    %v9265 = vshrl.u32 %v9264, 7
    %v9266 = vsub.s32 0, %v9265
    %v9267 = vrot.slane %v9262, %v9266
    %v9285 = vunpack.c.l.b16 %v9246
    %v9286 = vunpack.c.l.b16 %v9247
    %v9287 = vunpack.c.l.b16 %v9248
    %v9288 = vunpack.c.l.b16 %v9249
    %v9289 = vunpack.c.l.b16 %v9250
    %v9290 = vunpack.c.l.b16 %v9251
    %v9291 = vunpack.c.l.b16 %v9252
    %v9292 = vunpack.c.l.b16 %v9253
    %v9293 = vunpack.c.l.b16 %v9254
    %v9294 = vunpack.c.l.b16 %v9255
    %v9295 = vunpack.c.l.b16 %v9256
    %v9296 = vunpack.c.l.b16 %v9257
    %v9297 = vunpack.c.l.b16 %v9258
    %v9298 = vunpack.c.l.b16 %v9259
    %v9299 = vunpack.c.l.b16 %v9260
    %v9300 = vunpack.c.l.b16 %v9261
    %v9301 = vpack.c.b16 %v9286, %v9285
    %v9302 = vpack.c.b16 %v9288, %v9287
    %v9303 = vpack.c.b16 %v9290, %v9289
    %v9304 = vpack.c.b16 %v9292, %v9291
    %v9305 = vpack.c.b16 %v9294, %v9293
    %v9306 = vpack.c.b16 %v9296, %v9295
    %v9307 = vpack.c.b16 %v9298, %v9297
    %v9308 = vpack.c.b16 %v9300, %v9299
    %9317 = vmatprep.subr.bf16.mxu0 0
    %9318 = vmatpush1.bf16.msra.mxu0 %v9308
    %9319 = vmatprep.subr.bf16.mxu0 0
    %9320 = vmatpush1.bf16.msra.mxu0 %v9307
    %9321 = vmatprep.subr.bf16.mxu0 0
    %9322 = vmatpush1.bf16.msra.mxu0 %v9306
    %9323 = vmatprep.subr.bf16.mxu0 0
    %9324 = vmatpush1.bf16.msra.mxu0 %v9305
    %9325 = vmatprep.subr.bf16.mxu0 0
    %9326 = vmatpush1.bf16.msra.mxu0 %v9304
    %9327 = vmatprep.subr.bf16.mxu0 0
    %9328 = vmatpush1.bf16.msra.mxu0 %v9303
    %9329 = vmatprep.subr.bf16.mxu0 0
    %9330 = vmatpush1.bf16.msra.mxu0 %v9302
    %9331 = vmatprep.subr.bf16.mxu0 0
    %9332 = vmatpush1.bf16.msra.mxu0 %v9301
    %9333 = vmatprep.subr.bf16.mxu0 0
    %9334 = vmatpush2.bf16.msra.mxu0 0
    %9335 = vmatprep.subr.bf16.mxu0 0
    %9336 = vmatpush2.bf16.msra.mxu0 0
    %9337 = vmatprep.subr.bf16.mxu0 0
    %9338 = vmatpush2.bf16.msra.mxu0 0
    %9339 = vmatprep.subr.bf16.mxu0 0
    %9340 = vmatpush2.bf16.msra.mxu0 0
    %9341 = vmatprep.subr.bf16.mxu0 0
    %9342 = vmatpush2.bf16.msra.mxu0 0
    %9343 = vmatprep.subr.bf16.mxu0 0
    %9344 = vmatpush2.bf16.msra.mxu0 0
    %9345 = vmatprep.subr.bf16.mxu0 0
    %9346 = vmatpush2.bf16.msra.mxu0 0
    %9347 = vmatprep.subr.bf16.mxu0 0
    %9348 = vmatpush2.bf16.msra.mxu0 0
    %9349 = vmatprep.mubr.bf16.mxu0 0
    %9350 = vmatmul.mubr.bf16.gmra.mxu0 %v9242
    %v9351 = vpop.f32.mrf.mxu0
    %v9352 = vadd.f32 %v9267, %v9351
    %v9353 = vpop.f32.mrf.mxu0
    %v9354 = vpop.f32.mrf.mxu0
    %v9355 = vadd.f32 %v9267, %v9354
    %v9356 = vpop.f32.mrf.mxu0
    %9357 = vmatprep.mubr.bf16.mxu0 0
    %9358 = vmatmul.mubr.bf16.gmra.mxu0 %v9243
    %v9359 = vpop.f32.mrf.mxu0
    %v9360 = vadd.f32 %v9267, %v9359
    %v9361 = vpop.f32.mrf.mxu0
    %v9362 = vpop.f32.mrf.mxu0
    %v9363 = vadd.f32 %v9267, %v9362
    %v9364 = vpop.f32.mrf.mxu0
    %9365 = vmatprep.mubr.bf16.mxu0 0
    %9366 = vmatmul.mubr.bf16.gmra.mxu0 %v9244
    %v9367 = vpop.f32.mrf.mxu0
    %v9368 = vadd.f32 %v9267, %v9367
    %v9369 = vpop.f32.mrf.mxu0
    %v9370 = vpop.f32.mrf.mxu0
    %v9371 = vadd.f32 %v9267, %v9370
    %v9372 = vpop.f32.mrf.mxu0
    %9373 = vmatprep.mubr.bf16.mxu0 0
    %9374 = vmatmul.mubr.bf16.gmra.mxu0 %v9245
    %v9375 = vpop.f32.mrf.mxu0
    %v9376 = vadd.f32 %v9267, %v9375
    %v9377 = vpop.f32.mrf.mxu0
    %v9378 = vpop.f32.mrf.mxu0
    %v9379 = vadd.f32 %v9267, %v9378
    %v9380 = vpop.f32.mrf.mxu0
    %9381 = vdwg.mxu0
    %v9382 = vmax.f32 %v9352, 0.0
    %v9383 = vmax.f32 %v9355, 0.0
    %v9384 = vmax.f32 %v9360, 0.0
    %v9385 = vmax.f32 %v9363, 0.0
    %v9386 = vmax.f32 %v9368, 0.0
    %v9387 = vmax.f32 %v9371, 0.0
    %v9388 = vmax.f32 %v9376, 0.0
    %v9389 = vmax.f32 %v9379, 0.0
    %v9390 = vpack.c.bf16 %v9383, %v9382
    %v9391 = vpack.c.bf16 %v9385, %v9384
    %v9392 = vpack.c.bf16 %v9387, %v9386
    %v9393 = vpack.c.bf16 %v9389, %v9388
    %v9394 = vld [vmem:[#allocation6] sm:$0xf]
    %v9395 = vld [vmem:[#allocation6 + $0x4] sm:$0xf]
    %v9396 = vld [vmem:[#allocation6 + $0x8] sm:$0xf]
    %v9397 = vld [vmem:[#allocation6 + $0xc] sm:$0xf]
    %v9398 = vld [vmem:[#allocation6 + $0x10] sm:$0xf]
    %v9399 = vld [vmem:[#allocation6 + $0x14] sm:$0xf]
    %v9400 = vld [vmem:[#allocation6 + $0x18] sm:$0xf]
    %v9401 = vld [vmem:[#allocation6 + $0x1c] sm:$0xf]
    %v9402 = vld [vmem:[#allocation6 + $0x20] sm:$0xf]
    %v9403 = vld [vmem:[#allocation6 + $0x24] sm:$0xf]
    %v9404 = vld [vmem:[#allocation6 + $0x28] sm:$0xf]
    %v9405 = vld [vmem:[#allocation6 + $0x2c] sm:$0xf]
    %v9406 = vld [vmem:[#allocation6 + $0x30] sm:$0xf]
    %v9407 = vld [vmem:[#allocation6 + $0x34] sm:$0xf]
    %v9408 = vld [vmem:[#allocation6 + $0x38] sm:$0xf]
    %v9409 = vld [vmem:[#allocation6 + $0x3c] sm:$0xf]
    %v9410 = vld [vmem:[%s10] sm:$0x1]
    %v9412 = vlaneseq
    %v9413 = vshrl.u32 %v9412, 7
    %v9414 = vsub.s32 0, %v9413
    %v9415 = vrot.slane %v9410, %v9414
    %v9433 = vunpack.c.l.b16 %v9394
    %v9434 = vunpack.c.l.b16 %v9395
    %v9435 = vunpack.c.l.b16 %v9396
    %v9436 = vunpack.c.l.b16 %v9397
    %v9437 = vunpack.c.l.b16 %v9398
    %v9438 = vunpack.c.l.b16 %v9399
    %v9439 = vunpack.c.l.b16 %v9400
    %v9440 = vunpack.c.l.b16 %v9401
    %v9441 = vunpack.c.l.b16 %v9402
    %v9442 = vunpack.c.l.b16 %v9403
    %v9443 = vunpack.c.l.b16 %v9404
    %v9444 = vunpack.c.l.b16 %v9405
    %v9445 = vunpack.c.l.b16 %v9406
    %v9446 = vunpack.c.l.b16 %v9407
    %v9447 = vunpack.c.l.b16 %v9408
    %v9448 = vunpack.c.l.b16 %v9409
    %v9449 = vpack.c.b16 %v9434, %v9433
    %v9450 = vpack.c.b16 %v9436, %v9435
    %v9451 = vpack.c.b16 %v9438, %v9437
    %v9452 = vpack.c.b16 %v9440, %v9439
    %v9453 = vpack.c.b16 %v9442, %v9441
    %v9454 = vpack.c.b16 %v9444, %v9443
    %v9455 = vpack.c.b16 %v9446, %v9445
    %v9456 = vpack.c.b16 %v9448, %v9447
    %9465 = vmatprep.subr.bf16.mxu0 0
    %9466 = vmatpush1.bf16.msra.mxu0 %v9456
    %9467 = vmatprep.subr.bf16.mxu0 0
    %9468 = vmatpush1.bf16.msra.mxu0 %v9455
    %9469 = vmatprep.subr.bf16.mxu0 0
    %9470 = vmatpush1.bf16.msra.mxu0 %v9454
    %9471 = vmatprep.subr.bf16.mxu0 0
    %9472 = vmatpush1.bf16.msra.mxu0 %v9453
    %9473 = vmatprep.subr.bf16.mxu0 0
    %9474 = vmatpush1.bf16.msra.mxu0 %v9452
    %9475 = vmatprep.subr.bf16.mxu0 0
    %9476 = vmatpush1.bf16.msra.mxu0 %v9451
    %9477 = vmatprep.subr.bf16.mxu0 0
    %9478 = vmatpush1.bf16.msra.mxu0 %v9450
    %9479 = vmatprep.subr.bf16.mxu0 0
    %9480 = vmatpush1.bf16.msra.mxu0 %v9449
    %9481 = vmatprep.subr.bf16.mxu0 0
    %9482 = vmatpush2.bf16.msra.mxu0 0
    %9483 = vmatprep.subr.bf16.mxu0 0
    %9484 = vmatpush2.bf16.msra.mxu0 0
    %9485 = vmatprep.subr.bf16.mxu0 0
    %9486 = vmatpush2.bf16.msra.mxu0 0
    %9487 = vmatprep.subr.bf16.mxu0 0
    %9488 = vmatpush2.bf16.msra.mxu0 0
    %9489 = vmatprep.subr.bf16.mxu0 0
    %9490 = vmatpush2.bf16.msra.mxu0 0
    %9491 = vmatprep.subr.bf16.mxu0 0
    %9492 = vmatpush2.bf16.msra.mxu0 0
    %9493 = vmatprep.subr.bf16.mxu0 0
    %9494 = vmatpush2.bf16.msra.mxu0 0
    %9495 = vmatprep.subr.bf16.mxu0 0
    %9496 = vmatpush2.bf16.msra.mxu0 0
    %9497 = vmatprep.mubr.bf16.mxu0 0
    %9498 = vmatmul.mubr.bf16.gmra.mxu0 %v9390
    %v9499 = vpop.f32.mrf.mxu0
    %v9500 = vadd.f32 %v9415, %v9499
    %v9501 = vpop.f32.mrf.mxu0
    %v9502 = vpop.f32.mrf.mxu0
    %v9503 = vadd.f32 %v9415, %v9502
    %v9504 = vpop.f32.mrf.mxu0
    %9505 = vmatprep.mubr.bf16.mxu0 0
    %9506 = vmatmul.mubr.bf16.gmra.mxu0 %v9391
    %v9507 = vpop.f32.mrf.mxu0
    %v9508 = vadd.f32 %v9415, %v9507
    %v9509 = vpop.f32.mrf.mxu0
    %v9510 = vpop.f32.mrf.mxu0
    %v9511 = vadd.f32 %v9415, %v9510
    %v9512 = vpop.f32.mrf.mxu0
    %9513 = vmatprep.mubr.bf16.mxu0 0
    %9514 = vmatmul.mubr.bf16.gmra.mxu0 %v9392
    %v9515 = vpop.f32.mrf.mxu0
    %v9516 = vadd.f32 %v9415, %v9515
    %v9517 = vpop.f32.mrf.mxu0
    %v9518 = vpop.f32.mrf.mxu0
    %v9519 = vadd.f32 %v9415, %v9518
    %v9520 = vpop.f32.mrf.mxu0
    %9521 = vmatprep.mubr.bf16.mxu0 0
    %9522 = vmatmul.mubr.bf16.gmra.mxu0 %v9393
    %v9523 = vpop.f32.mrf.mxu0
    %v9524 = vadd.f32 %v9415, %v9523
    %v9525 = vpop.f32.mrf.mxu0
    %v9526 = vpop.f32.mrf.mxu0
    %v9527 = vadd.f32 %v9415, %v9526
    %v9528 = vpop.f32.mrf.mxu0
    %9529 = vdwg.mxu0
    %9530 = vst [vmem:[%s11] sm:$0xff] %v9500
    %9531 = vst [vmem:[%s11 + $0x8] sm:$0xff] %v9503
    %9532 = vst [vmem:[%s11 + $0x10] sm:$0xff] %v9508
    %9533 = vst [vmem:[%s11 + $0x18] sm:$0xff] %v9511
    %9534 = vst [vmem:[%s11 + $0x20] sm:$0xff] %v9516
    %9535 = vst [vmem:[%s11 + $0x28] sm:$0xff] %v9519
    %9536 = vst [vmem:[%s11 + $0x30] sm:$0xff] %v9524
    %9537 = vst [vmem:[%s11 + $0x38] sm:$0xff] %v9527
    // Predicated region
    $region58: #{lenet_forward.1} parent=1 // pred_check
      _
    $region59: #{lenet_forward.1} parent=1 // pred_check_branch
      %9539 = sbr.rel (0) target = $region61
    $region60: #{lenet_forward.1} parent=1 // pred_region
      _
    $region61: #{lenet_forward.1} parent=1 // pred_fallthru
      _
    // Predicated region
    $region62: #{lenet_forward.1} parent=1 // pred_check
      _
    $region63: #{lenet_forward.1} parent=1 // pred_check_branch
      %9541 = sbr.rel (0) target = $region65
    $region64: #{lenet_forward.1} parent=1 // pred_region
      _
    $region65: #{lenet_forward.1} parent=1 // pred_fallthru
      _
    %9542 = vsyncpa [#allocation3], 1
    %9543 = vsyncpa [#allocation5], 1

</llo_original>
